<compile_context>
chip_gen: v7x
topology: tpu7x:2x2x1
jax: 0.10.0
libtpu: 0.0.40
codegen_flags: <defaults>
</compile_context>

<pallas_src>
import functools

import jax
import jax.numpy as jnp
from jax.experimental import pallas as pl
from jax.experimental.pallas import tpu as pltpu


def _round_up(x, m):
    return (x + m - 1) // m * m


def convlstm_kernel(w_ref, b_ref, x_hbm, pc_ref, h_ref, c_ref,
                    xwin_ref, copy_sem,
                    *, hid, K, pad, Wp, H0, TM, WINp, f32_mxu):
    """One (batch b, column-tile t) grid step.

    w_ref   : (4*hid, K*K*Ctp) VMEM  conv weight, columns ordered (dy, dx, c)
    b_ref   : (4*hid, 1)       VMEM  conv bias, f32
    x_hbm   : (B, Ctp, L)      HBM   zero-padded stacked input slab (pl.ANY)
    pc_ref  : (hid, TM)        VMEM  previous cell-state tile, f32
    h_ref   : (hid, TM)        VMEM  hidden output tile (final dtype)
    c_ref   : (hid, TM)        VMEM  cell output tile, f32 (aliased onto pc)
    xwin_ref: (2, Ctp, WINp)   VMEM  double-buffered halo'd input windows
    copy_sem: (2,)                   DMA semaphores
    """
    b = pl.program_id(0)
    t = pl.program_id(1)
    nt = pl.num_programs(1)
    slot = jax.lax.rem(t, 2)

    def window_copy(tile_idx, slot_idx):
        col0 = pl.multiple_of(tile_idx * TM, 128)
        return pltpu.make_async_copy(
            x_hbm.at[b, :, pl.ds(col0, WINp)],
            xwin_ref.at[slot_idx],
            copy_sem.at[slot_idx],
        )

    # Prime the pipeline at the start of every batch row of the grid.  The DMA
    # chain is self-contained per b, so the batch axis can stay "parallel".
    @pl.when(t == 0)
    def _():
        window_copy(t, slot).start()

    # Prefetch the next tile's window into the other slot while we compute.
    @pl.when(t + 1 < nt)
    def _():
        window_copy(t + 1, 1 - slot).start()

    # Wait for this tile's window.
    window_copy(t, slot).wait()

    # Fused im2col: each of the K*K taps is a static lane-offset slice of the
    # halo'd window; stacked they form one deep (K*K*Ctp) MXU contraction.
    taps = []
    for dy in range(K):
        for dx in range(K):
            off = H0 + (dy - pad) * Wp + (dx - pad)      # static, in [0, 2*H0]
            taps.append(xwin_ref[slot, :, pl.ds(off, TM)])
    patches = jnp.concatenate(taps, axis=0)              # (K*K*Ctp, TM)

    prec = jax.lax.Precision.HIGHEST if f32_mxu else None
    gates = jnp.dot(w_ref[...], patches,
                    preferred_element_type=jnp.float32,
                    precision=prec)                      # (4*hid, TM), f32
    gates = gates + b_ref[...]                           # lane broadcast of bias

    # PyTorch chunk(4, dim=1) order: in, remember, out, cell.  hid % 8 == 0 so
    # these splits are sublane-aligned, relayout-free views.
    in_gate = jax.nn.sigmoid(gates[0 * hid:1 * hid])
    remember_gate = jax.nn.sigmoid(gates[1 * hid:2 * hid])
    out_gate = jax.nn.sigmoid(gates[2 * hid:3 * hid])
    cell_gate = jnp.tanh(gates[3 * hid:4 * hid])

    cell = remember_gate * pc_ref[...] + in_gate * cell_gate
    hidden = out_gate * jnp.tanh(cell)

    c_ref[...] = cell                                    # f32, aliased onto prev-cell
    h_ref[...] = hidden.astype(h_ref.dtype)              # final dtype, no epilogue cast


def _vmem_capacity_bytes():
    """Physical per-core VMEM; safe 64 MiB fallback (v7x) if the query fails."""
    try:
        info = pltpu.get_tpu_info()
        cap = int(getattr(info, "vmem_capacity_bytes", 0))
        if cap > 0:
            return cap
    except Exception:
        pass
    return 64 * 1024 * 1024


def _pick_tiling(np_cols, ctp, ckkp, oc, hid, h0, mxu_bytes, out_bytes, budget):
    """Largest lane-dense column tile whose per-step working set fits `budget`."""
    tm_cap = 128
    tm = min(2048, _round_up(np_cols, 128))
    while tm >= 128:
        winp = _round_up(tm + 2 * h0, 128)
        work = (2 * ctp * winp * mxu_bytes          # double-buffered input windows
                + ckkp * tm * mxu_bytes             # patch slab fed to the MXU
                + 2 * oc * ckkp * mxu_bytes         # weight (auto double-buffered)
                + 2 * oc * tm * 4                   # gates + elementwise temporaries
                + 2 * hid * tm * 4                  # prev-cell tile buffers
                + 2 * hid * tm * 4                  # cell tile buffers
                + 2 * hid * tm * out_bytes)         # hidden tile buffers
        if work <= budget:
            tm_cap = tm
            break
        tm -= 128
    # Re-balance: same tile count, smallest 128-multiple tile -> minimal waste.
    nt = -(-np_cols // tm_cap)
    tm = _round_up(-(-np_cols // nt), 128)
    npt = nt * tm
    winp = _round_up(tm + 2 * h0, 128)
    return tm, npt, nt, winp


@functools.partial(jax.jit, static_argnames=("mxu_dtype",))
def convlstm_step(x_nchw, weight_oihw, bias, prev_state=None, *, mxu_dtype=jnp.bfloat16):
    """ConvLSTM.forward: input_ is NCHW; returns (hidden, cell) in NCHW."""
    B, Cin, H, W = x_nchw.shape
    OC, Ct, K, K2 = weight_oihw.shape               # OIHW: (4*hid, Cin+hid, K, K)
    assert K == K2 and K % 2 == 1, "odd kernel_size required for SAME padding"
    hid = OC // 4
    assert hid % 8 == 0, "hidden_size must be a multiple of 8 (sublane-aligned gates)"
    assert Ct == Cin + hid
    pad = K // 2

    if prev_state is None:
        prev_h = jnp.zeros((B, hid, H, W), x_nchw.dtype)
        prev_c = jnp.zeros((B, hid, H, W), x_nchw.dtype)
    else:
        prev_h, prev_c = prev_state

    Hp, Wp = H + 2 * pad, W + 2 * pad
    Np = Hp * Wp                        # padded pixels per image = kernel column space
    H0 = pad * (Wp + 1)                 # max |tap shift| in flattened padded coords
    Ctp = _round_up(Ct, 8)              # sublane-aligned channel count
    CKKp = K * K * Ctp

    mxu_bytes = jnp.dtype(mxu_dtype).itemsize
    out_bytes = jnp.dtype(x_nchw.dtype).itemsize
    vmem_limit = min(int(0.75 * _vmem_capacity_bytes()), 100 * 1024 * 1024)
    TM, Npt, nt, WINp = _pick_tiling(Np, Ctp, CKKp, OC, hid, H0,
                                     mxu_bytes, out_bytes, budget=int(0.6 * vmem_limit))
    L = (nt - 1) * TM + WINp            # slab length incl. left/right halo columns

    # Input slab: cast to the MXU dtype FIRST, then pad channels to Ctp, add the
    # SAME zero-padding ring, flatten padded pixels, add halo columns.
    stacked = jnp.concatenate([x_nchw, prev_h], axis=1).astype(mxu_dtype)     # (B,Ct,H,W)
    padded = jnp.pad(stacked, ((0, 0), (0, Ctp - Ct), (pad, pad), (pad, pad)))
    x_slab = jnp.pad(padded.reshape(B, Ctp, Np),
                     ((0, 0), (0, 0), (H0, L - H0 - Np)))                     # (B,Ctp,L)

    # Previous cell state in the same padded-pixel column space, f32.
    pc_slab = jnp.pad(prev_c.astype(jnp.float32),
                      ((0, 0), (0, 0), (pad, pad), (pad, pad))).reshape(B, hid, Np)
    pc_slab = jnp.pad(pc_slab, ((0, 0), (0, 0), (0, Npt - Np)))               # (B,hid,Npt)

    # Weight: OIHW -> (OC, K, K, Ct) -> zero-pad channels -> (OC, K*K*Ctp), so
    # the patch rows (dy, dx, c) line up with one deep MXU contraction.
    w_mat = jnp.transpose(weight_oihw, (0, 2, 3, 1)).astype(mxu_dtype)
    w_mat = jnp.pad(w_mat, ((0, 0), (0, 0), (0, 0), (0, Ctp - Ct))).reshape(OC, CKKp)
    b_col = bias.reshape(OC, 1).astype(jnp.float32)

    kernel = functools.partial(
        convlstm_kernel, hid=hid, K=K, pad=pad, Wp=Wp, H0=H0, TM=TM, WINp=WINp,
        f32_mxu=(jnp.dtype(mxu_dtype) == jnp.dtype(jnp.float32)))

    hidden_slab, cell_slab = pl.pallas_call(
        kernel,
        out_shape=(
            jax.ShapeDtypeStruct((B, hid, Npt), x_nchw.dtype),   # hidden (final dtype)
            jax.ShapeDtypeStruct((B, hid, Npt), jnp.float32),    # cell (aliased onto pc)
        ),
        grid=(B, nt),
        in_specs=[
            pl.BlockSpec((OC, CKKp), lambda b, t: (0, 0)),       # weight (grid-invariant)
            pl.BlockSpec((OC, 1), lambda b, t: (0, 0)),          # bias
            pl.BlockSpec(memory_space=pl.ANY),                   # input slab stays in HBM
            pl.BlockSpec((None, hid, TM), lambda b, t: (b, 0, t)),
        ],
        out_specs=(
            pl.BlockSpec((None, hid, TM), lambda b, t: (b, 0, t)),
            pl.BlockSpec((None, hid, TM), lambda b, t: (b, 0, t)),
        ),
        scratch_shapes=[
            pltpu.VMEM((2, Ctp, WINp), mxu_dtype),               # halo'd window buffers
            pltpu.SemaphoreType.DMA((2,)),
        ],
        # NOTE: positional — operand 3 is pc_slab, output 1 is the cell slab.
        input_output_aliases={3: 1},
        compiler_params=pltpu.CompilerParams(
            dimension_semantics=("parallel", "arbitrary"),
            vmem_limit_bytes=vmem_limit),
    )(w_mat, b_col, x_slab, pc_slab)

    # Back to NCHW: drop garbage columns + the SAME-padding ring (no transposes).
    hidden = hidden_slab[:, :, :Np].reshape(B, hid, Hp, Wp)[:, :, pad:pad + H, pad:pad + W]
    cell = cell_slab[:, :, :Np].reshape(B, hid, Hp, Wp)[:, :, pad:pad + H, pad:pad + W]
    return hidden, cell.astype(x_nchw.dtype)


def convlstm_reference(x_nchw, weight_oihw, bias, prev_state=None):
    """Pure-JAX reference mirroring the PyTorch module exactly (NCHW / OIHW, f32)."""
    B, _, H, W = x_nchw.shape
    hid = weight_oihw.shape[0] // 4
    if prev_state is None:
        prev_h = jnp.zeros((B, hid, H, W), x_nchw.dtype)
        prev_c = jnp.zeros((B, hid, H, W), x_nchw.dtype)
    else:
        prev_h, prev_c = prev_state

    stacked = jnp.concatenate([x_nchw, prev_h], axis=1)
    gates = jax.lax.conv_general_dilated(
        stacked, weight_oihw, window_strides=(1, 1), padding="SAME",
        dimension_numbers=("NCHW", "OIHW", "NCHW"),
        preferred_element_type=jnp.float32,
        precision=jax.lax.Precision.HIGHEST) + bias.reshape(1, -1, 1, 1)

    ig = jax.nn.sigmoid(gates[:, 0 * hid:1 * hid])
    rg = jax.nn.sigmoid(gates[:, 1 * hid:2 * hid])
    og = jax.nn.sigmoid(gates[:, 2 * hid:3 * hid])
    cg = jnp.tanh(gates[:, 3 * hid:4 * hid])
    cell = rg * prev_c.astype(jnp.float32) + ig * cg
    hidden = og * jnp.tanh(cell)
    return hidden.astype(x_nchw.dtype), cell.astype(x_nchw.dtype)


if __name__ == "__main__":
    # ConvLSTM(input_size=4, hidden_size=32, kernel_size=3), batch=2, spatial=16.
    B, C_IN, HID, K, S = 2, 4, 32, 3, 16

    key = jax.random.PRNGKey(0)
    k_x, k_w, k_b, k_h, k_c = jax.random.split(key, 5)

    x = jax.random.normal(k_x, (B, C_IN, S, S), jnp.float32)
    # Synthetic Gates parameters in PyTorch OIHW layout: (4*HID, C_IN+HID, K, K).
    weight = 0.05 * jax.random.normal(k_w, (4 * HID, C_IN + HID, K, K), jnp.float32)
    bias = 0.05 * jax.random.normal(k_b, (4 * HID,), jnp.float32)
    # Non-trivial previous state to exercise the full cell update.
    prev_h = jax.random.normal(k_h, (B, HID, S, S), jnp.float32)
    prev_c = jax.random.normal(k_c, (B, HID, S, S), jnp.float32)

    hidden_ref, cell_ref = convlstm_reference(x, weight, bias, (prev_h, prev_c))

    # Strict semantics check: f32 MXU operands + HIGHEST precision vs the module reference.
    h32, c32 = convlstm_step(x, weight, bias, (prev_h, prev_c), mxu_dtype=jnp.float32)
    jax.block_until_ready((h32, c32))
    assert h32.shape == (B, HID, S, S) and c32.shape == (B, HID, S, S)
    assert jnp.allclose(h32, hidden_ref, atol=1e-4, rtol=1e-4)
    assert jnp.allclose(c32, cell_ref, atol=1e-4, rtol=1e-4)

    # Default fast path: bf16 MXU operands (full rate on v6e/v7x), f32 accumulation
    # and f32 gate/cell math -> small bounded deviation from the pure-f32 reference.
    hidden, cell = convlstm_step(x, weight, bias, (prev_h, prev_c))
    jax.block_until_ready((hidden, cell))
    assert hidden.shape == (B, HID, S, S) and cell.shape == (B, HID, S, S)
    assert jnp.allclose(hidden, hidden_ref, atol=1e-1, rtol=1e-1)
    assert jnp.allclose(cell, cell_ref, atol=1e-1, rtol=1e-1)

    # Also exercise the prev_state=None path (zeros init), like the module default.
    h0, c0 = convlstm_step(x, weight, bias, None)
    jax.block_until_ready((h0, c0))
    assert h0.shape == (B, HID, S, S) and c0.shape == (B, HID, S, S)

    print("KERNEL_OK")
</pallas_src>

<mosaic_0001>
module attributes {stable_mosaic.version = 11 : i64} {
  func.func @convlstm_kernel(%arg0: i32, %arg1: i32, %arg2: memref<128x360xf32, #tpu.memory_space<vmem>>, %arg3: memref<128x1xf32, #tpu.memory_space<vmem>>, %arg4: memref<2x40x512xf32, #tpu.memory_space<any>>, %arg5: memref<1x32x384xf32, #tpu.memory_space<vmem>>, %arg6: memref<1x32x384xf32, #tpu.memory_space<vmem>>, %arg7: memref<1x32x384xf32, #tpu.memory_space<vmem>>, %arg8: memref<2x40x512xf32, #tpu.memory_space<vmem>>, %arg9: memref<2x!tpu.dma_semaphore, #tpu.memory_space<semaphore_mem>>) attributes {dimension_semantics = [#tpu.dimension_semantics<parallel>, #tpu.dimension_semantics<arbitrary>], iteration_bounds = array<i64: 2, 1>, scalar_prefetch = 0 : i64, scratch_operands = 2 : i64, tpu.core_type = #tpu.core_type<tc>, window_params = [{pipeline_mode = #tpu.pipeline_mode<synchronous>, transform_indices = @transform_0, window_bounds = array<i64: 128, 360>}, {pipeline_mode = #tpu.pipeline_mode<synchronous>, transform_indices = @transform_1, window_bounds = array<i64: 128, 1>}, {}, {transform_indices = @transform_3, window_bounds = array<i64: 1, 32, 384>}, {transform_indices = @transform_4, window_bounds = array<i64: 1, 32, 384>}, {transform_indices = @transform_5, window_bounds = array<i64: 1, 32, 384>}]} {
    %c2_i32 = arith.constant 2 : i32
    %0 = arith.remsi %arg1, %c2_i32 : i32
    %c0_i32 = arith.constant 0 : i32
    %1 = arith.cmpi eq, %arg1, %c0_i32 : i32
    %2 = arith.extui %1 : i1 to i32
    %c0_i32_0 = arith.constant 0 : i32
    %3 = arith.cmpi ne, %2, %c0_i32_0 : i32
    scf.if %3 {
      %c384_i32_31 = arith.constant 384 : i32
      %82 = arith.muli %arg1, %c384_i32_31 : i32
      %83 = tpu.assume_multiple %82, 128 : i32
      %c0_i32_32 = arith.constant 0 : i32
      %84 = tpu.memref_slice %arg4[%arg0, %c0_i32_32, %83] : memref<2x40x512xf32, #tpu.memory_space<any>> -> memref<1x40x512xf32, #tpu.memory_space<any>>
      %85 = tpu.memref_squeeze %84 : memref<1x40x512xf32, #tpu.memory_space<any>> -> memref<40x512xf32, #tpu.memory_space<any>>
      %c0_i32_33 = arith.constant 0 : i32
      %c0_i32_34 = arith.constant 0 : i32
      %86 = tpu.memref_slice %arg8[%0, %c0_i32_33, %c0_i32_34] : memref<2x40x512xf32, #tpu.memory_space<vmem>> -> memref<1x40x512xf32, #tpu.memory_space<vmem>>
      %87 = tpu.memref_squeeze %86 : memref<1x40x512xf32, #tpu.memory_space<vmem>> -> memref<40x512xf32, #tpu.memory_space<vmem>>
      %88 = tpu.memref_slice %arg9[%0] : memref<2x!tpu.dma_semaphore, #tpu.memory_space<semaphore_mem>> -> memref<1x!tpu.dma_semaphore, #tpu.memory_space<semaphore_mem>>
      %89 = tpu.memref_squeeze %88 : memref<1x!tpu.dma_semaphore, #tpu.memory_space<semaphore_mem>> -> memref<!tpu.dma_semaphore, #tpu.memory_space<semaphore_mem>>
      tpu.enqueue_dma source(%85 : memref<40x512xf32, #tpu.memory_space<any>>) target(%87 : memref<40x512xf32, #tpu.memory_space<vmem>>) target_semaphore(%89 : memref<!tpu.dma_semaphore, #tpu.memory_space<semaphore_mem>>)
    } else {
    }
    %c1_i32 = arith.constant 1 : i32
    %4 = arith.addi %arg1, %c1_i32 : i32
    %c1_i32_1 = arith.constant 1 : i32
    %5 = arith.cmpi slt, %4, %c1_i32_1 : i32
    %6 = arith.extui %5 : i1 to i32
    %c0_i32_2 = arith.constant 0 : i32
    %7 = arith.cmpi ne, %6, %c0_i32_2 : i32
    scf.if %7 {
      %c1_i32_31 = arith.constant 1 : i32
      %82 = arith.addi %arg1, %c1_i32_31 : i32
      %c1_i32_32 = arith.constant 1 : i32
      %83 = arith.subi %c1_i32_32, %0 : i32
      %c384_i32_33 = arith.constant 384 : i32
      %84 = arith.muli %82, %c384_i32_33 : i32
      %85 = tpu.assume_multiple %84, 128 : i32
      %c0_i32_34 = arith.constant 0 : i32
      %86 = tpu.memref_slice %arg4[%arg0, %c0_i32_34, %85] : memref<2x40x512xf32, #tpu.memory_space<any>> -> memref<1x40x512xf32, #tpu.memory_space<any>>
      %87 = tpu.memref_squeeze %86 : memref<1x40x512xf32, #tpu.memory_space<any>> -> memref<40x512xf32, #tpu.memory_space<any>>
      %c0_i32_35 = arith.constant 0 : i32
      %c0_i32_36 = arith.constant 0 : i32
      %88 = tpu.memref_slice %arg8[%83, %c0_i32_35, %c0_i32_36] : memref<2x40x512xf32, #tpu.memory_space<vmem>> -> memref<1x40x512xf32, #tpu.memory_space<vmem>>
      %89 = tpu.memref_squeeze %88 : memref<1x40x512xf32, #tpu.memory_space<vmem>> -> memref<40x512xf32, #tpu.memory_space<vmem>>
      %90 = tpu.memref_slice %arg9[%83] : memref<2x!tpu.dma_semaphore, #tpu.memory_space<semaphore_mem>> -> memref<1x!tpu.dma_semaphore, #tpu.memory_space<semaphore_mem>>
      %91 = tpu.memref_squeeze %90 : memref<1x!tpu.dma_semaphore, #tpu.memory_space<semaphore_mem>> -> memref<!tpu.dma_semaphore, #tpu.memory_space<semaphore_mem>>
      tpu.enqueue_dma source(%87 : memref<40x512xf32, #tpu.memory_space<any>>) target(%89 : memref<40x512xf32, #tpu.memory_space<vmem>>) target_semaphore(%91 : memref<!tpu.dma_semaphore, #tpu.memory_space<semaphore_mem>>)
    } else {
    }
    %c384_i32 = arith.constant 384 : i32
    %8 = arith.muli %arg1, %c384_i32 : i32
    %9 = tpu.assume_multiple %8, 128 : i32
    %c0_i32_3 = arith.constant 0 : i32
    %10 = tpu.memref_slice %arg4[%arg0, %c0_i32_3, %9] : memref<2x40x512xf32, #tpu.memory_space<any>> -> memref<1x40x512xf32, #tpu.memory_space<any>>
    %11 = tpu.memref_squeeze %10 : memref<1x40x512xf32, #tpu.memory_space<any>> -> memref<40x512xf32, #tpu.memory_space<any>>
    %c0_i32_4 = arith.constant 0 : i32
    %c0_i32_5 = arith.constant 0 : i32
    %12 = tpu.memref_slice %arg8[%0, %c0_i32_4, %c0_i32_5] : memref<2x40x512xf32, #tpu.memory_space<vmem>> -> memref<1x40x512xf32, #tpu.memory_space<vmem>>
    %13 = tpu.memref_squeeze %12 : memref<1x40x512xf32, #tpu.memory_space<vmem>> -> memref<40x512xf32, #tpu.memory_space<vmem>>
    %14 = tpu.memref_slice %arg9[%0] : memref<2x!tpu.dma_semaphore, #tpu.memory_space<semaphore_mem>> -> memref<1x!tpu.dma_semaphore, #tpu.memory_space<semaphore_mem>>
    %15 = tpu.memref_squeeze %14 : memref<1x!tpu.dma_semaphore, #tpu.memory_space<semaphore_mem>> -> memref<!tpu.dma_semaphore, #tpu.memory_space<semaphore_mem>>
    tpu.wait_dma2 semaphore(%15 : memref<!tpu.dma_semaphore, #tpu.memory_space<semaphore_mem>>) src(%11 : memref<40x512xf32, #tpu.memory_space<any>>) dst(%13 : memref<40x512xf32, #tpu.memory_space<vmem>>)
    %16 = arith.index_cast %0 : i32 to index
    %c0 = arith.constant 0 : index
    %c0_6 = arith.constant 0 : index
    %17 = vector.load %arg8[%16, %c0, %c0_6] : memref<2x40x512xf32, #tpu.memory_space<vmem>>, vector<1x40x384xf32>
    %18 = vector.shape_cast %17 : vector<1x40x384xf32> to vector<40x384xf32>
    %19 = arith.index_cast %0 : i32 to index
    %c0_7 = arith.constant 0 : index
    %c1 = arith.constant 1 : index
    %20 = vector.load %arg8[%19, %c0_7, %c1] : memref<2x40x512xf32, #tpu.memory_space<vmem>>, vector<1x40x384xf32>
    %21 = vector.shape_cast %20 : vector<1x40x384xf32> to vector<40x384xf32>
    %22 = arith.index_cast %0 : i32 to index
    %c0_8 = arith.constant 0 : index
    %c2 = arith.constant 2 : index
    %23 = vector.load %arg8[%22, %c0_8, %c2] : memref<2x40x512xf32, #tpu.memory_space<vmem>>, vector<1x40x384xf32>
    %24 = vector.shape_cast %23 : vector<1x40x384xf32> to vector<40x384xf32>
    %25 = arith.index_cast %0 : i32 to index
    %c0_9 = arith.constant 0 : index
    %c18 = arith.constant 18 : index
    %26 = vector.load %arg8[%25, %c0_9, %c18] : memref<2x40x512xf32, #tpu.memory_space<vmem>>, vector<1x40x384xf32>
    %27 = vector.shape_cast %26 : vector<1x40x384xf32> to vector<40x384xf32>
    %28 = arith.index_cast %0 : i32 to index
    %c0_10 = arith.constant 0 : index
    %c19 = arith.constant 19 : index
    %29 = vector.load %arg8[%28, %c0_10, %c19] : memref<2x40x512xf32, #tpu.memory_space<vmem>>, vector<1x40x384xf32>
    %30 = vector.shape_cast %29 : vector<1x40x384xf32> to vector<40x384xf32>
    %31 = arith.index_cast %0 : i32 to index
    %c0_11 = arith.constant 0 : index
    %c20 = arith.constant 20 : index
    %32 = vector.load %arg8[%31, %c0_11, %c20] : memref<2x40x512xf32, #tpu.memory_space<vmem>>, vector<1x40x384xf32>
    %33 = vector.shape_cast %32 : vector<1x40x384xf32> to vector<40x384xf32>
    %34 = arith.index_cast %0 : i32 to index
    %c0_12 = arith.constant 0 : index
    %c36 = arith.constant 36 : index
    %35 = vector.load %arg8[%34, %c0_12, %c36] : memref<2x40x512xf32, #tpu.memory_space<vmem>>, vector<1x40x384xf32>
    %36 = vector.shape_cast %35 : vector<1x40x384xf32> to vector<40x384xf32>
    %37 = arith.index_cast %0 : i32 to index
    %c0_13 = arith.constant 0 : index
    %c37 = arith.constant 37 : index
    %38 = vector.load %arg8[%37, %c0_13, %c37] : memref<2x40x512xf32, #tpu.memory_space<vmem>>, vector<1x40x384xf32>
    %39 = vector.shape_cast %38 : vector<1x40x384xf32> to vector<40x384xf32>
    %40 = arith.index_cast %0 : i32 to index
    %c0_14 = arith.constant 0 : index
    %c38 = arith.constant 38 : index
    %41 = vector.load %arg8[%40, %c0_14, %c38] : memref<2x40x512xf32, #tpu.memory_space<vmem>>, vector<1x40x384xf32>
    %42 = vector.shape_cast %41 : vector<1x40x384xf32> to vector<40x384xf32>
    %43 = tpu.concatenate %18, %21, %24, %27, %30, %33, %36, %39, %42 in 0 : vector<40x384xf32>, vector<40x384xf32>, vector<40x384xf32>, vector<40x384xf32>, vector<40x384xf32>, vector<40x384xf32>, vector<40x384xf32>, vector<40x384xf32>, vector<40x384xf32> -> vector<360x384xf32>
    %c0_15 = arith.constant 0 : index
    %c0_16 = arith.constant 0 : index
    %44 = vector.load %arg2[%c0_15, %c0_16] : memref<128x360xf32, #tpu.memory_space<vmem>>, vector<128x360xf32>
    %cst = arith.constant dense<0.000000e+00> : vector<128x384xf32>
    %45 = tpu.matmul %44, %43, %cst {dimension_numbers = #tpu.dot_dimension_numbers<[1], [0], [0], [1], [0, 0, 1, 1], [], []>, precision = #tpu.contract_precision<fp32>} : vector<128x360xf32>, vector<360x384xf32>, vector<128x384xf32> -> vector<128x384xf32>
    %c0_17 = arith.constant 0 : index
    %c0_18 = arith.constant 0 : index
    %46 = vector.load %arg3[%c0_17, %c0_18] : memref<128x1xf32, #tpu.memory_space<vmem>>, vector<128x1xf32>
    %47 = vector.broadcast %46 : vector<128x1xf32> to vector<128x384xf32>
    %48 = arith.addf %45, %47 : vector<128x384xf32>
    %49 = vector.extract_strided_slice %48 {offsets = [0, 0], sizes = [32, 384], strides = [1, 1]} : vector<128x384xf32> to vector<32x384xf32>
    %50 = arith.negf %49 : vector<32x384xf32>
    %51 = math.exp %50 : vector<32x384xf32>
    %cst_19 = arith.constant 1.000000e+00 : f32
    %52 = vector.broadcast %cst_19 : f32 to vector<32x384xf32>
    %53 = arith.addf %52, %51 : vector<32x384xf32>
    %54 = arith.divf %52, %53 : vector<32x384xf32>
    %55 = vector.extract_strided_slice %48 {offsets = [32, 0], sizes = [32, 384], strides = [1, 1]} : vector<128x384xf32> to vector<32x384xf32>
    %56 = arith.negf %55 : vector<32x384xf32>
    %57 = math.exp %56 : vector<32x384xf32>
    %cst_20 = arith.constant 1.000000e+00 : f32
    %58 = vector.broadcast %cst_20 : f32 to vector<32x384xf32>
    %59 = arith.addf %58, %57 : vector<32x384xf32>
    %60 = arith.divf %58, %59 : vector<32x384xf32>
    %61 = vector.extract_strided_slice %48 {offsets = [64, 0], sizes = [32, 384], strides = [1, 1]} : vector<128x384xf32> to vector<32x384xf32>
    %62 = arith.negf %61 : vector<32x384xf32>
    %63 = math.exp %62 : vector<32x384xf32>
    %cst_21 = arith.constant 1.000000e+00 : f32
    %64 = vector.broadcast %cst_21 : f32 to vector<32x384xf32>
    %65 = arith.addf %64, %63 : vector<32x384xf32>
    %66 = arith.divf %64, %65 : vector<32x384xf32>
    %67 = vector.extract_strided_slice %48 {offsets = [96, 0], sizes = [32, 384], strides = [1, 1]} : vector<128x384xf32> to vector<32x384xf32>
    %68 = math.tanh %67 : vector<32x384xf32>
    %c0_22 = arith.constant 0 : index
    %c0_23 = arith.constant 0 : index
    %c0_24 = arith.constant 0 : index
    %69 = vector.load %arg5[%c0_22, %c0_23, %c0_24] : memref<1x32x384xf32, #tpu.memory_space<vmem>>, vector<1x32x384xf32>
    %70 = vector.shape_cast %69 : vector<1x32x384xf32> to vector<32x384xf32>
    %71 = arith.mulf %60, %70 : vector<32x384xf32>
    %72 = arith.mulf %54, %68 : vector<32x384xf32>
    %73 = arith.addf %71, %72 : vector<32x384xf32>
    %74 = math.tanh %73 : vector<32x384xf32>
    %75 = arith.mulf %66, %74 : vector<32x384xf32>
    %c0_25 = arith.constant 0 : index
    %c0_26 = arith.constant 0 : index
    %c0_27 = arith.constant 0 : index
    %76 = vector.load %arg7[%c0_25, %c0_26, %c0_27] : memref<1x32x384xf32, #tpu.memory_space<vmem>>, vector<1x32x384xf32>
    %77 = vector.shape_cast %76 : vector<1x32x384xf32> to vector<32x384xf32>
    %78 = vector.shape_cast %73 : vector<32x384xf32> to vector<1x32x384xf32>
    tpu.vector_store %arg7[%c0_25, %c0_26, %c0_27], %78 {strides = array<i32>} : memref<1x32x384xf32, #tpu.memory_space<vmem>>, vector<1x32x384xf32>,
    %c0_28 = arith.constant 0 : index
    %c0_29 = arith.constant 0 : index
    %c0_30 = arith.constant 0 : index
    %79 = vector.load %arg6[%c0_28, %c0_29, %c0_30] : memref<1x32x384xf32, #tpu.memory_space<vmem>>, vector<1x32x384xf32>
    %80 = vector.shape_cast %79 : vector<1x32x384xf32> to vector<32x384xf32>
    %81 = vector.shape_cast %75 : vector<32x384xf32> to vector<1x32x384xf32>
    tpu.vector_store %arg6[%c0_28, %c0_29, %c0_30], %81 {strides = array<i32>} : memref<1x32x384xf32, #tpu.memory_space<vmem>>, vector<1x32x384xf32>,
    return
  }
  func.func @transform_0(%arg0: i32, %arg1: i32) -> (i32, i32) {
    %c0_i32 = arith.constant 0 : i32
    %c0_i32_0 = arith.constant 0 : i32
    %c0_i32_1 = arith.constant 0 : i32
    return %c0_i32, %c0_i32_0 : i32, i32
  }
  func.func @transform_1(%arg0: i32, %arg1: i32) -> (i32, i32) {
    %c0_i32 = arith.constant 0 : i32
    %c0_i32_0 = arith.constant 0 : i32
    %c0_i32_1 = arith.constant 0 : i32
    return %c0_i32, %c0_i32_0 : i32, i32
  }
  func.func @transform_3(%arg0: i32, %arg1: i32) -> (i32, i32, i32) {
    %c0_i32 = arith.constant 0 : i32
    %c0_i32_0 = arith.constant 0 : i32
    return %arg0, %c0_i32, %arg1 : i32, i32, i32
  }
  func.func @transform_4(%arg0: i32, %arg1: i32) -> (i32, i32, i32) {
    %c0_i32 = arith.constant 0 : i32
    %c0_i32_0 = arith.constant 0 : i32
    return %arg0, %c0_i32, %arg1 : i32, i32, i32
  }
  func.func @transform_5(%arg0: i32, %arg1: i32) -> (i32, i32, i32) {
    %c0_i32 = arith.constant 0 : i32
    %c0_i32_0 = arith.constant 0 : i32
    return %arg0, %c0_i32, %arg1 : i32, i32, i32
  }
}

</mosaic_0001>

<llo_original>
// kernel: convlstm_step.1
$region0: #{convlstm_step.1}
  #allocation0 [shape = 'u32[]', space=smem, size = 0x4, offset = 0x4, fixed_abs, tag = 'smem constant byte address 0x4 - core index']
  #allocation1 [shape = 'u32[144,128]{1,0:T(1,128)}', space=vmem, size = 0x12000, scoped, tag = 'internal scratch']
  #allocation2 [shape = 'f32[2,40,512]{2,1,0:T(8,128)}', space=vmem, size = 0x28000, scoped, tag = 'scratch operand']
  #allocation3 [shape = 's32[2]{0}', space=sflag, size = 0x8, scoped, tag = 'scratch operand']
  #allocation4 [shape = 's32[]', space=sflag, size = 0x4, offset = 0, fixed_abs, tag = 'sflag constant byte address 0x0 - dummy sync flag']
  #allocation5 [shape = 's32[]', space=sflag, size = 0x4, offset = 0, fixed_abs, tag = 'sflag constant byte address 0x0 - dummy sync flag']
  %s0 = inlined_call_operand.vmem [shape: f32[128,360], index: 0, kind: input, shape index: {}]
  %s1 = inlined_call_operand.vmem [shape: f32[128,1], index: 1, kind: input, shape index: {}]
  %s2 = inlined_call_operand.vmem [shape: f32[2,40,512], index: 2, kind: input, shape index: {}]
  %s3 = inlined_call_operand.vmem [shape: f32[2,32,384], index: 3, kind: input, shape index: {}, may-alias: {3,5}]
  %s4 = inlined_call_operand.vmem [shape: f32[2,32,384], index: 4, kind: output, shape index: {0}]
  %s5 = inlined_call_operand.vmem [shape: f32[2,32,384], index: 5, kind: output, shape index: {1}, may-alias: {3,5}]
  %6 = xla_tuple %s4, %s5
  %s7 = sld [smem:[#allocation0]]
  $region129: #{convlstm_step.1} parent=0
    _
  %s9 = ssub.s32 1, %s7
  %s10 = scalar_select 0, %s9, %s7
  loop: start=0, step=1, limit=4
  $region2: #{convlstm_step.1} parent=0 // loop_pre_header
    _
  $region3: #{convlstm_step.1} parent=0 // loop_header
    %s12 = sphi 0, %s16
    %p13 = scmp.ge.s32.totalorder %s12, 4
    %s19 = sphi 0, %s31
    %s20 = sphi 0, %s27
    %s21 = sphi 0, %s19
    %s22 = sphi 0, %s20
    %s23 = sphi 0, %s21
    %s24 = sphi 0, %s22
    %s32 = sphi 0, %s32
    %s34 = sphi 0, %s32
    %s35 = sphi 0, %s34
    %s49 = sphi 0, %s35
    %s53 = sphi 0, %s53
    %s55 = sphi 0, %s53
    %s56 = sphi 0, %s55
    %s70 = sphi 0, %s56
    %s78 = sphi 0, %s80
    %s81 = sphi 0, %s78
    %s82 = sphi 0, %s81
    %s98 = sphi 0, %s82
    %s106 = sphi 0, %s108
    %s109 = sphi 0, %s106
    %s110 = sphi 0, %s109
    %s126 = sphi 0, %s110
    %s134 = sphi 0, %s136
    %s137 = sphi 0, %s134
    %s138 = sphi 0, %s137
    %s154 = sphi 0, %s138
  $region4: #{convlstm_step.1} parent=0 // loop_header_branch
    %15 = sbr.rel (%p13) target = $region8
  $region5: #{convlstm_step.1} parent=0 // loop_body
    %s17 = ssub.s32 %s12, 1
    %s18 = ssub.s32 %s12, 2
    %s25 = sadd.s32 1, %s20
    %p26 = scmp.ge.s32.totalorder %s25, 1
    %s27 = scalar_select %p26, 0, %s25
    %s28 = sadd.s32 1, %s19
    %s29 = scalar_select %p26, %s28, %s19
    %p30 = scmp.ge.s32.totalorder %s29, 2
    %s31 = scalar_select %p30, 0, %s29
    %s33 = sadd.s32 %s32, 1
    %p36 = scmp.eq.s32.totalorder %s12, 1
    %p37 = scmp.ne.s32.totalorder %s32, %s34
    %p38 = scmp.eq.s32.totalorder %s12, 0
    %p39 = por %p37, %p38
    %p40 = scmp.ne.s32.totalorder %s32, %s34
    %p41 = scmp.eq.s32.totalorder %s17, 1
    %p42 = por %p40, %p41
    %p43 = scmp.ne.s32.totalorder %s34, %s35
    %p44 = scmp.eq.s32.totalorder %s17, 0
    %p45 = por %p43, %p44
    %p46 = scmp.ne.s32.totalorder %s34, %s35
    %p47 = scmp.eq.s32.totalorder %s18, 1
    %p48 = por %p46, %p47
    %p50 = scmp.ne.s32.totalorder %s35, %s49
    %p51 = scmp.eq.s32.totalorder %s18, 0
    %p52 = por %p50, %p51
    %s54 = sadd.s32 %s53, 1
    %p57 = scmp.eq.s32.totalorder %s12, 1
    %p58 = scmp.ne.s32.totalorder %s53, %s55
    %p59 = scmp.eq.s32.totalorder %s12, 0
    %p60 = por %p58, %p59
    %p61 = scmp.ne.s32.totalorder %s53, %s55
    %p62 = scmp.eq.s32.totalorder %s17, 1
    %p63 = por %p61, %p62
    %p64 = scmp.ne.s32.totalorder %s55, %s56
    %p65 = scmp.eq.s32.totalorder %s17, 0
    %p66 = por %p64, %p65
    %p67 = scmp.ne.s32.totalorder %s55, %s56
    %p68 = scmp.eq.s32.totalorder %s18, 1
    %p69 = por %p67, %p68
    %p71 = scmp.ne.s32.totalorder %s56, %s70
    %p72 = scmp.eq.s32.totalorder %s18, 0
    %p73 = por %p71, %p72
    %s74 = ssub.s32 %s19, %s31
    %s75 = ssub.s32 %s20, %s27
    %s76 = sor.u32 %s74, %s75
    %p77 = scmp.eq.s32.totalorder %s76, 0
    %s79 = sadd.s32 %s78, 1
    %s80 = scalar_select %p77, %s78, %s79
    %p83 = pneg %p77
    %p84 = scmp.eq.s32.totalorder %s12, 1
    %p85 = por %p83, %p84
    %p86 = scmp.ne.s32.totalorder %s78, %s81
    %p87 = scmp.eq.s32.totalorder %s12, 0
    %p88 = por %p86, %p87
    %p89 = scmp.ne.s32.totalorder %s78, %s81
    %p90 = scmp.eq.s32.totalorder %s17, 1
    %p91 = por %p89, %p90
    %p92 = scmp.ne.s32.totalorder %s81, %s82
    %p93 = scmp.eq.s32.totalorder %s17, 0
    %p94 = por %p92, %p93
    %p95 = scmp.ne.s32.totalorder %s81, %s82
    %p96 = scmp.eq.s32.totalorder %s18, 1
    %p97 = por %p95, %p96
    %p99 = scmp.ne.s32.totalorder %s82, %s98
    %p100 = scmp.eq.s32.totalorder %s18, 0
    %p101 = por %p99, %p100
    %s102 = ssub.s32 %s19, %s31
    %s103 = ssub.s32 %s20, %s27
    %s104 = sor.u32 %s102, %s103
    %p105 = scmp.eq.s32.totalorder %s104, 0
    %s107 = sadd.s32 %s106, 1
    %s108 = scalar_select %p105, %s106, %s107
    %p111 = pneg %p105
    %p112 = scmp.eq.s32.totalorder %s12, 1
    %p113 = por %p111, %p112
    %p114 = scmp.ne.s32.totalorder %s106, %s109
    %p115 = scmp.eq.s32.totalorder %s12, 0
    %p116 = por %p114, %p115
    %p117 = scmp.ne.s32.totalorder %s106, %s109
    %p118 = scmp.eq.s32.totalorder %s17, 1
    %p119 = por %p117, %p118
    %p120 = scmp.ne.s32.totalorder %s109, %s110
    %p121 = scmp.eq.s32.totalorder %s17, 0
    %p122 = por %p120, %p121
    %p123 = scmp.ne.s32.totalorder %s109, %s110
    %p124 = scmp.eq.s32.totalorder %s18, 1
    %p125 = por %p123, %p124
    %p127 = scmp.ne.s32.totalorder %s110, %s126
    %p128 = scmp.eq.s32.totalorder %s18, 0
    %p129 = por %p127, %p128
    %s130 = ssub.s32 %s19, %s31
    %s131 = ssub.s32 %s20, %s27
    %s132 = sor.u32 %s130, %s131
    %p133 = scmp.eq.s32.totalorder %s132, 0
    %s135 = sadd.s32 %s134, 1
    %s136 = scalar_select %p133, %s134, %s135
    %p139 = pneg %p133
    %p140 = scmp.eq.s32.totalorder %s12, 1
    %p141 = por %p139, %p140
    %p142 = scmp.ne.s32.totalorder %s134, %s137
    %p143 = scmp.eq.s32.totalorder %s12, 0
    %p144 = por %p142, %p143
    %p145 = scmp.ne.s32.totalorder %s134, %s137
    %p146 = scmp.eq.s32.totalorder %s17, 1
    %p147 = por %p145, %p146
    %p148 = scmp.ne.s32.totalorder %s137, %s138
    %p149 = scmp.eq.s32.totalorder %s17, 0
    %p150 = por %p148, %p149
    %p151 = scmp.ne.s32.totalorder %s137, %s138
    %p152 = scmp.eq.s32.totalorder %s18, 1
    %p153 = por %p151, %p152
    %p155 = scmp.ne.s32.totalorder %s138, %s154
    %p156 = scmp.eq.s32.totalorder %s18, 0
    %p157 = por %p155, %p156
    %p158 = scmp.le.s32.totalorder 1, %s12
    %p159 = scmp.lt.s32.totalorder %s12, 3
    %p160 = pnand %p158, %p159
    %p161 = pneg %p160
    // Predicated region
    $region9: #{convlstm_step.1} parent=5 // pred_check
      _
    $region10: #{convlstm_step.1} parent=5 // pred_check_branch
      %163 = sbr.rel (%p160) target = $region12
    $region11: #{convlstm_step.1} parent=5 // pred_region
      %s164 = ssub.s32 %s12, 1
      // Predicated region
      $region13: #{convlstm_step.1} parent=11 // pred_check
        %p165 = pneg %p45
      $region14: #{convlstm_step.1} parent=11 // pred_check_branch
        %167 = sbr.rel (%p165) target = $region16
      $region15: #{convlstm_step.1} parent=11 // pred_region
        _
      $region16: #{convlstm_step.1} parent=11 // pred_fallthru
        _
      // Predicated region
      $region17: #{convlstm_step.1} parent=11 // pred_check
        %p168 = pneg %p66
      $region18: #{convlstm_step.1} parent=11 // pred_check_branch
        %170 = sbr.rel (%p168) target = $region20
      $region19: #{convlstm_step.1} parent=11 // pred_region
        _
      $region20: #{convlstm_step.1} parent=11 // pred_fallthru
        _
    $region12: #{convlstm_step.1} parent=5 // pred_fallthru
      _
    %p171 = scmp.lt.s32.totalorder %s12, 2
    // Predicated region
    $region21: #{convlstm_step.1} parent=5 // pred_check
      %p172 = pneg %p171
    $region22: #{convlstm_step.1} parent=5 // pred_check_branch
      %174 = sbr.rel (%p172) target = $region24
    $region23: #{convlstm_step.1} parent=5 // pred_region
      // Predicated region
      $region25: #{convlstm_step.1} parent=23 // pred_check
        %p175 = pneg %p88
      $region26: #{convlstm_step.1} parent=23 // pred_check_branch
        %177 = sbr.rel (%p175) target = $region28
      $region27: #{convlstm_step.1} parent=23 // pred_region
        %s178 = smul.u32 3, %s20
        %p179 = scmp.lt.s32.totalorder %s19, 1
        %s180 = scalar_select %p179, %s19, 1
        %p181 = scmp.lt.s32.totalorder %s178, 2
        %s182 = scalar_select %p181, %s178, 2
        %s183 = smul.addr %s180, 12
        %s184 = sadd.s32 %s182, %s183
        %s185 = smul.addr %s184, 8
        %s186 = scalar_lea.vmem %s3, %s185
        %s187 = smul.u32 3, %s20
      $region28: #{convlstm_step.1} parent=23 // pred_fallthru
        _
    $region24: #{convlstm_step.1} parent=5 // pred_fallthru
      _
    %p188 = scmp.le.s32.totalorder 1, %s12
    %p189 = scmp.lt.s32.totalorder %s12, 3
    %p190 = pnand %p188, %p189
    %p191 = pneg %p190
    // Predicated region
    $region29: #{convlstm_step.1} parent=5 // pred_check
      _
    $region30: #{convlstm_step.1} parent=5 // pred_check_branch
      %193 = sbr.rel (%p190) target = $region32
    $region31: #{convlstm_step.1} parent=5 // pred_region
      %s194 = ssub.s32 %s12, 1
      %p195 = pneg %p45
      %p196 = pneg %p42
      %p197 = pneg %p66
      %p198 = pneg %p63
      %s199 = smul.u32 3, %s22
      %p200 = scmp.lt.s32.totalorder %s21, 1
      %s201 = scalar_select %p200, %s21, 1
      %p202 = scmp.lt.s32.totalorder %s199, 2
      %s203 = scalar_select %p202, %s199, 2
      %s204 = smul.addr %s201, 12
      %s205 = sadd.s32 %s203, %s204
      %s206 = smul.addr %s205, 8
      %s207 = scalar_lea.vmem %s3, %s206
      %p208 = pneg %p94
      %p209 = pneg %p91
      %p210 = pneg %p122
      %p211 = pneg %p119
      %s212 = smul.u32 3, %s22
      %p213 = scmp.lt.s32.totalorder %s21, 1
      %s214 = scalar_select %p213, %s21, 1
      %p215 = scmp.lt.s32.totalorder %s212, 2
      %s216 = scalar_select %p215, %s212, 2
      %s217 = smul.addr %s214, 12
      %s218 = sadd.s32 %s216, %s217
      %s219 = smul.addr %s218, 8
      %s220 = scalar_lea.vmem %s4, %s219
      %p221 = pneg %p150
      %p222 = pneg %p147
      %s223 = smul.u32 3, %s22
      %p224 = scmp.lt.s32.totalorder %s21, 1
      %s225 = scalar_select %p224, %s21, 1
      %p226 = scmp.lt.s32.totalorder %s223, 2
      %s227 = scalar_select %p226, %s223, 2
      %s228 = smul.addr %s225, 12
      %s229 = sadd.s32 %s227, %s228
      %s230 = smul.addr %s229, 8
      %s231 = scalar_lea.vmem %s5, %s230
      %s232 = smul.u32 3, %s22
      %p233 = scmp.lt.s32.totalorder %s21, 1
      %s234 = scalar_select %p233, %s21, 1
      %p235 = scmp.lt.s32.totalorder %s232, 2
      %s236 = scalar_select %p235, %s232, 2
      %s237 = smul.addr %s234, 12
      %s238 = sadd.s32 %s236, %s237
      %s239 = smul.addr %s238, 8
      %s240 = scalar_lea.vmem %s3, %s239
      %s241 = smul.u32 3, %s22
      %s242 = smul.u32 3, %s22
      %p243 = scmp.lt.s32.totalorder %s21, 1
      %s244 = scalar_select %p243, %s21, 1
      %p245 = scmp.lt.s32.totalorder %s242, 2
      %s246 = scalar_select %p245, %s242, 2
      %s247 = smul.addr %s244, 12
      %s248 = sadd.s32 %s246, %s247
      %s249 = smul.addr %s248, 8
      %s250 = scalar_lea.vmem %s4, %s249
      %s251 = smul.u32 3, %s22
      %s252 = smul.u32 3, %s22
      %p253 = scmp.lt.s32.totalorder %s21, 1
      %s254 = scalar_select %p253, %s21, 1
      %p255 = scmp.lt.s32.totalorder %s252, 2
      %s256 = scalar_select %p255, %s252, 2
      %s257 = smul.addr %s254, 12
      %s258 = sadd.s32 %s256, %s257
      %s259 = smul.addr %s258, 8
      %s260 = scalar_lea.vmem %s5, %s259
      %s261 = smul.u32 3, %s22
      %p262 = scmp.lt.s32.totalorder %s22, 0
      %s263 = ssub.s32 0, %s22
      %s264 = scalar_select %p262, %s263, %s22
      %s265 = sand.u32 %s264, 1
      %s266 = ssub.s32 0, %s265
      %s267 = scalar_select %p262, %s266, %s265
      %p268 = scmp.eq.s32.totalorder %s22, 0
      // Predicated region
      $region33: #{convlstm_step.1} parent=31 // pred_check
        %p269 = pneg %p268
      $region34: #{convlstm_step.1} parent=31 // pred_check_branch
        %271 = sbr.rel (%p269) target = $region36
      $region35: #{convlstm_step.1} parent=31 // pred_region
        %s272 = smul.u32 %s22, 384
        %s273 = sshra.s32 %s272, 7
        %s274 = sand.u32 %s272, 127
        %s275 = smul.u32 %s21, 20
        %s276 = sadd.s32 %s273, %s275
        %s277 = smul.addr %s276, 8
        %s278 = scalar_lea.vmem %s2, %s277
        %s279 = smul.u32 %s267, 20
        %s280 = smul.addr %s279, 8
        %s281 = scalar_lea.vmem [#allocation2], %s280
        %s282 = scalar_lea.sflag [#allocation3], %s267
        %p284 = scmp.lt.u32.totalorder 160, 8
        %p285 = pneg %p284
        // Predicated region
        $region37: #{convlstm_step.1} parent=35 // pred_check
          _
        $region38: #{convlstm_step.1} parent=35 // pred_check_branch
          %287 = sbr.rel (%p284) target = $region40
        $region39: #{convlstm_step.1} parent=35 // pred_region
          %s302 = sand.u32 160, 7
          %p303 = scmp.eq.s32.totalorder %s302, 0
          // Predicated region
          $region52: #{convlstm_step.1} parent=39 // pred_check
            %p304 = pneg %p303
          $region53: #{convlstm_step.1} parent=39 // pred_check_branch
            %306 = sbr.rel (%p304) target = $region55
          $region54: #{convlstm_step.1} parent=39 // pred_region
            loop: start=0, step=1, limit=1
            $region56: #{convlstm_step.1} parent=54 // loop_pre_header
              _
            $region57: #{convlstm_step.1} parent=54 // loop_header
              %s308 = sphi 0, %s312
              %p309 = scmp.ge.s32.totalorder %s308, 1
              %s313 = sphi %s278, %s278
              %s314 = sphi %s281, %s281
            $region58: #{convlstm_step.1} parent=54 // loop_header_branch
              %311 = sbr.rel (%p309) target = $region62
            $region59: #{convlstm_step.1} parent=54 // loop_body
              %v315 = vld [vmem:[%s313] sm:$0xff]
              %316 = vst [vmem:[%s314] sm:$0xff] %v315
              %v317 = vld [vmem:[%s313 + $0x8] sm:$0xff]
              %318 = vst [vmem:[%s314 + $0x8] sm:$0xff] %v317
              %v319 = vld [vmem:[%s313 + $0x10] sm:$0xff]
              %320 = vst [vmem:[%s314 + $0x10] sm:$0xff] %v319
              %v321 = vld [vmem:[%s313 + $0x18] sm:$0xff]
              %322 = vst [vmem:[%s314 + $0x18] sm:$0xff] %v321
              %v323 = vld [vmem:[%s313 + $0x20] sm:$0xff]
              %324 = vst [vmem:[%s314 + $0x20] sm:$0xff] %v323
              %v325 = vld [vmem:[%s313 + $0x28] sm:$0xff]
              %326 = vst [vmem:[%s314 + $0x28] sm:$0xff] %v325
              %v327 = vld [vmem:[%s313 + $0x30] sm:$0xff]
              %328 = vst [vmem:[%s314 + $0x30] sm:$0xff] %v327
              %v329 = vld [vmem:[%s313 + $0x38] sm:$0xff]
              %330 = vst [vmem:[%s314 + $0x38] sm:$0xff] %v329
              %v331 = vld [vmem:[%s313 + $0x40] sm:$0xff]
              %332 = vst [vmem:[%s314 + $0x40] sm:$0xff] %v331
              %v333 = vld [vmem:[%s313 + $0x48] sm:$0xff]
              %334 = vst [vmem:[%s314 + $0x48] sm:$0xff] %v333
              %v335 = vld [vmem:[%s313 + $0x50] sm:$0xff]
              %336 = vst [vmem:[%s314 + $0x50] sm:$0xff] %v335
              %v337 = vld [vmem:[%s313 + $0x58] sm:$0xff]
              %338 = vst [vmem:[%s314 + $0x58] sm:$0xff] %v337
              %v339 = vld [vmem:[%s313 + $0x60] sm:$0xff]
              %340 = vst [vmem:[%s314 + $0x60] sm:$0xff] %v339
              %v341 = vld [vmem:[%s313 + $0x68] sm:$0xff]
              %342 = vst [vmem:[%s314 + $0x68] sm:$0xff] %v341
              %v343 = vld [vmem:[%s313 + $0x70] sm:$0xff]
              %344 = vst [vmem:[%s314 + $0x70] sm:$0xff] %v343
              %v345 = vld [vmem:[%s313 + $0x78] sm:$0xff]
              %346 = vst [vmem:[%s314 + $0x78] sm:$0xff] %v345
              %v347 = vld [vmem:[%s313 + $0x80] sm:$0xff]
              %348 = vst [vmem:[%s314 + $0x80] sm:$0xff] %v347
              %v349 = vld [vmem:[%s313 + $0x88] sm:$0xff]
              %350 = vst [vmem:[%s314 + $0x88] sm:$0xff] %v349
              %v351 = vld [vmem:[%s313 + $0x90] sm:$0xff]
              %352 = vst [vmem:[%s314 + $0x90] sm:$0xff] %v351
              %v353 = vld [vmem:[%s313 + $0x98] sm:$0xff]
              %354 = vst [vmem:[%s314 + $0x98] sm:$0xff] %v353
            $region60: #{convlstm_step.1} parent=54 // loop_footer
              %s312 = sadd.s32 1, %s308
            $region61: #{convlstm_step.1} parent=54 // loop_footer_branch
              %307 = sbr.rel target = $region57
            $region62: #{convlstm_step.1} parent=54 // loop_exit
              _
          $region55: #{convlstm_step.1} parent=39 // pred_fallthru
            _
          %p355 = pneg %p303
          // Predicated region
          $region63: #{convlstm_step.1} parent=39 // pred_check
            _
          $region64: #{convlstm_step.1} parent=39 // pred_check_branch
            %357 = sbr.rel (%p303) target = $region66
          $region65: #{convlstm_step.1} parent=39 // pred_region
            %s358 = sand.u32 160, 7
          $region66: #{convlstm_step.1} parent=39 // pred_fallthru
            _
        $region40: #{convlstm_step.1} parent=35 // pred_fallthru
          _
        // Predicated region
        $region41: #{convlstm_step.1} parent=35 // pred_check
          %p288 = pneg %p284
        $region42: #{convlstm_step.1} parent=35 // pred_check_branch
          %290 = sbr.rel (%p288) target = $region44
        $region43: #{convlstm_step.1} parent=35 // pred_region
          %s291 = sshllo.u32 0, 160
          loop: start=0, step=1, limit=1
          $region45: #{convlstm_step.1} parent=43 // loop_pre_header
            _
          $region46: #{convlstm_step.1} parent=43 // loop_header
            %s293 = sphi 0, %s297
            %p294 = scmp.ge.s32.totalorder %s293, 1
            %s298 = sphi %s278, %s278
            %s299 = sphi %s281, %s281
          $region47: #{convlstm_step.1} parent=43 // loop_header_branch
            %296 = sbr.rel (%p294) target = $region51
          $region48: #{convlstm_step.1} parent=43 // loop_body
            %v300 = vld [vmem:[%s298] sm:%s291]
            %301 = vst [vmem:[%s299] sm:%s291] %v300
          $region49: #{convlstm_step.1} parent=43 // loop_footer
            %s297 = sadd.s32 1, %s293
          $region50: #{convlstm_step.1} parent=43 // loop_footer_branch
            %292 = sbr.rel target = $region46
          $region51: #{convlstm_step.1} parent=43 // loop_exit
            _
        $region44: #{convlstm_step.1} parent=35 // pred_fallthru
          _
        // Predicated region
        $region67: #{convlstm_step.1} parent=35 // pred_check
          _
        $region68: #{convlstm_step.1} parent=35 // pred_check_branch
          %361 = sbr.rel (0) target = $region70
        $region69: #{convlstm_step.1} parent=35 // pred_region
          %362 = vsyncadd %s282, 2560
        $region70: #{convlstm_step.1} parent=35 // pred_fallthru
          _
      $region36: #{convlstm_step.1} parent=31 // pred_fallthru
        _
      %s363 = sadd.s32 %s22, 1
      %p364 = scmp.lt.s32.totalorder %s363, 1
      // Predicated region
      $region71: #{convlstm_step.1} parent=31 // pred_check
        %p365 = pneg %p364
      $region72: #{convlstm_step.1} parent=31 // pred_check_branch
        %367 = sbr.rel (%p365) target = $region74
      $region73: #{convlstm_step.1} parent=31 // pred_region
        %s368 = ssub.s32 1, %s267
        %s369 = smul.u32 %s363, 384
        %s370 = sshra.s32 %s369, 7
        %s371 = sand.u32 %s369, 127
        %s372 = smul.u32 %s21, 20
        %s373 = sadd.s32 %s370, %s372
        %s374 = smul.addr %s373, 8
        %s375 = scalar_lea.vmem %s2, %s374
        %s376 = smul.u32 %s368, 20
        %s377 = smul.addr %s376, 8
        %s378 = scalar_lea.vmem [#allocation2], %s377
        %s379 = scalar_lea.sflag [#allocation3], %s368
        %p381 = scmp.lt.u32.totalorder 160, 8
        %p382 = pneg %p381
        // Predicated region
        $region75: #{convlstm_step.1} parent=73 // pred_check
          _
        $region76: #{convlstm_step.1} parent=73 // pred_check_branch
          %384 = sbr.rel (%p381) target = $region78
        $region77: #{convlstm_step.1} parent=73 // pred_region
          %s399 = sand.u32 160, 7
          %p400 = scmp.eq.s32.totalorder %s399, 0
          // Predicated region
          $region90: #{convlstm_step.1} parent=77 // pred_check
            %p401 = pneg %p400
          $region91: #{convlstm_step.1} parent=77 // pred_check_branch
            %403 = sbr.rel (%p401) target = $region93
          $region92: #{convlstm_step.1} parent=77 // pred_region
            loop: start=0, step=1, limit=1
            $region94: #{convlstm_step.1} parent=92 // loop_pre_header
              _
            $region95: #{convlstm_step.1} parent=92 // loop_header
              %s405 = sphi 0, %s409
              %p406 = scmp.ge.s32.totalorder %s405, 1
              %s410 = sphi %s375, %s375
              %s411 = sphi %s378, %s378
            $region96: #{convlstm_step.1} parent=92 // loop_header_branch
              %408 = sbr.rel (%p406) target = $region100
            $region97: #{convlstm_step.1} parent=92 // loop_body
              %v412 = vld [vmem:[%s410] sm:$0xff]
              %413 = vst [vmem:[%s411] sm:$0xff] %v412
              %v414 = vld [vmem:[%s410 + $0x8] sm:$0xff]
              %415 = vst [vmem:[%s411 + $0x8] sm:$0xff] %v414
              %v416 = vld [vmem:[%s410 + $0x10] sm:$0xff]
              %417 = vst [vmem:[%s411 + $0x10] sm:$0xff] %v416
              %v418 = vld [vmem:[%s410 + $0x18] sm:$0xff]
              %419 = vst [vmem:[%s411 + $0x18] sm:$0xff] %v418
              %v420 = vld [vmem:[%s410 + $0x20] sm:$0xff]
              %421 = vst [vmem:[%s411 + $0x20] sm:$0xff] %v420
              %v422 = vld [vmem:[%s410 + $0x28] sm:$0xff]
              %423 = vst [vmem:[%s411 + $0x28] sm:$0xff] %v422
              %v424 = vld [vmem:[%s410 + $0x30] sm:$0xff]
              %425 = vst [vmem:[%s411 + $0x30] sm:$0xff] %v424
              %v426 = vld [vmem:[%s410 + $0x38] sm:$0xff]
              %427 = vst [vmem:[%s411 + $0x38] sm:$0xff] %v426
              %v428 = vld [vmem:[%s410 + $0x40] sm:$0xff]
              %429 = vst [vmem:[%s411 + $0x40] sm:$0xff] %v428
              %v430 = vld [vmem:[%s410 + $0x48] sm:$0xff]
              %431 = vst [vmem:[%s411 + $0x48] sm:$0xff] %v430
              %v432 = vld [vmem:[%s410 + $0x50] sm:$0xff]
              %433 = vst [vmem:[%s411 + $0x50] sm:$0xff] %v432
              %v434 = vld [vmem:[%s410 + $0x58] sm:$0xff]
              %435 = vst [vmem:[%s411 + $0x58] sm:$0xff] %v434
              %v436 = vld [vmem:[%s410 + $0x60] sm:$0xff]
              %437 = vst [vmem:[%s411 + $0x60] sm:$0xff] %v436
              %v438 = vld [vmem:[%s410 + $0x68] sm:$0xff]
              %439 = vst [vmem:[%s411 + $0x68] sm:$0xff] %v438
              %v440 = vld [vmem:[%s410 + $0x70] sm:$0xff]
              %441 = vst [vmem:[%s411 + $0x70] sm:$0xff] %v440
              %v442 = vld [vmem:[%s410 + $0x78] sm:$0xff]
              %443 = vst [vmem:[%s411 + $0x78] sm:$0xff] %v442
              %v444 = vld [vmem:[%s410 + $0x80] sm:$0xff]
              %445 = vst [vmem:[%s411 + $0x80] sm:$0xff] %v444
              %v446 = vld [vmem:[%s410 + $0x88] sm:$0xff]
              %447 = vst [vmem:[%s411 + $0x88] sm:$0xff] %v446
              %v448 = vld [vmem:[%s410 + $0x90] sm:$0xff]
              %449 = vst [vmem:[%s411 + $0x90] sm:$0xff] %v448
              %v450 = vld [vmem:[%s410 + $0x98] sm:$0xff]
              %451 = vst [vmem:[%s411 + $0x98] sm:$0xff] %v450
            $region98: #{convlstm_step.1} parent=92 // loop_footer
              %s409 = sadd.s32 1, %s405
            $region99: #{convlstm_step.1} parent=92 // loop_footer_branch
              %404 = sbr.rel target = $region95
            $region100: #{convlstm_step.1} parent=92 // loop_exit
              _
          $region93: #{convlstm_step.1} parent=77 // pred_fallthru
            _
          %p452 = pneg %p400
          // Predicated region
          $region101: #{convlstm_step.1} parent=77 // pred_check
            _
          $region102: #{convlstm_step.1} parent=77 // pred_check_branch
            %454 = sbr.rel (%p400) target = $region104
          $region103: #{convlstm_step.1} parent=77 // pred_region
            %s455 = sand.u32 160, 7
          $region104: #{convlstm_step.1} parent=77 // pred_fallthru
            _
        $region78: #{convlstm_step.1} parent=73 // pred_fallthru
          _
        // Predicated region
        $region79: #{convlstm_step.1} parent=73 // pred_check
          %p385 = pneg %p381
        $region80: #{convlstm_step.1} parent=73 // pred_check_branch
          %387 = sbr.rel (%p385) target = $region82
        $region81: #{convlstm_step.1} parent=73 // pred_region
          %s388 = sshllo.u32 0, 160
          loop: start=0, step=1, limit=1
          $region83: #{convlstm_step.1} parent=81 // loop_pre_header
            _
          $region84: #{convlstm_step.1} parent=81 // loop_header
            %s390 = sphi 0, %s394
            %p391 = scmp.ge.s32.totalorder %s390, 1
            %s395 = sphi %s375, %s375
            %s396 = sphi %s378, %s378
          $region85: #{convlstm_step.1} parent=81 // loop_header_branch
            %393 = sbr.rel (%p391) target = $region89
          $region86: #{convlstm_step.1} parent=81 // loop_body
            %v397 = vld [vmem:[%s395] sm:%s388]
            %398 = vst [vmem:[%s396] sm:%s388] %v397
          $region87: #{convlstm_step.1} parent=81 // loop_footer
            %s394 = sadd.s32 1, %s390
          $region88: #{convlstm_step.1} parent=81 // loop_footer_branch
            %389 = sbr.rel target = $region84
          $region89: #{convlstm_step.1} parent=81 // loop_exit
            _
        $region82: #{convlstm_step.1} parent=73 // pred_fallthru
          _
        // Predicated region
        $region105: #{convlstm_step.1} parent=73 // pred_check
          _
        $region106: #{convlstm_step.1} parent=73 // pred_check_branch
          %458 = sbr.rel (0) target = $region108
        $region107: #{convlstm_step.1} parent=73 // pred_region
          %459 = vsyncadd %s379, 2560
        $region108: #{convlstm_step.1} parent=73 // pred_fallthru
          _
      $region74: #{convlstm_step.1} parent=31 // pred_fallthru
        _
      %s460 = smul.u32 %s22, 384
      %s461 = smul.u32 %s267, 20
      %s462 = smul.addr %s461, 8
      %s463 = scalar_lea.vmem [#allocation2], %s462
      %s464 = scalar_lea.sflag [#allocation3], %s267
      %s465 = smul.u32 8, 5
      %s466 = smul.u32 %s465, 4
      %s467 = sshll.u32 %s466, 4
      %468 = dma.done %s464, %s467
      %v469 = vld [vmem:[%s463] sm:$0xff]
      %v470 = vld [vmem:[%s463 + $0x8] sm:$0xff]
      %v471 = vld [vmem:[%s463 + $0x10] sm:$0xff]
      %v472 = vld [vmem:[%s463 + $0x20] sm:$0xff]
      %v473 = vld [vmem:[%s463 + $0x28] sm:$0xff]
      %v474 = vld [vmem:[%s463 + $0x30] sm:$0xff]
      %v475 = vld [vmem:[%s463 + $0x40] sm:$0xff]
      %v476 = vld [vmem:[%s463 + $0x48] sm:$0xff]
      %v477 = vld [vmem:[%s463 + $0x50] sm:$0xff]
      %v478 = vld [vmem:[%s463 + $0x60] sm:$0xff]
      %v479 = vld [vmem:[%s463 + $0x68] sm:$0xff]
      %v480 = vld [vmem:[%s463 + $0x70] sm:$0xff]
      %v481 = vld [vmem:[%s463 + $0x80] sm:$0xff]
      %v482 = vld [vmem:[%s463 + $0x88] sm:$0xff]
      %v483 = vld [vmem:[%s463 + $0x90] sm:$0xff]
      %v484 = vld [vmem:[%s463 + $0x18] sm:$0xff]
      %v485 = vld [vmem:[%s463 + $0x38] sm:$0xff]
      %v486 = vld [vmem:[%s463 + $0x58] sm:$0xff]
      %v487 = vld [vmem:[%s463 + $0x78] sm:$0xff]
      %v488 = vld [vmem:[%s463 + $0x98] sm:$0xff]
      %509 = vrot.lane.b32.xlu0 %v469, 127
      %v510 = vpop.permute.xlu0 %509
      %511 = vrot.lane.b32.xlu0 %v470, 127
      %v512 = vpop.permute.xlu0 %511
      %513 = vrot.lane.b32.xlu0 %v471, 127
      %v514 = vpop.permute.xlu0 %513
      %515 = vrot.lane.b32.xlu0 %v484, 127
      %v516 = vpop.permute.xlu0 %515
      %517 = vrot.lane.b32.xlu0 %v472, 127
      %v518 = vpop.permute.xlu0 %517
      %519 = vrot.lane.b32.xlu0 %v473, 127
      %v520 = vpop.permute.xlu0 %519
      %521 = vrot.lane.b32.xlu0 %v474, 127
      %v522 = vpop.permute.xlu0 %521
      %523 = vrot.lane.b32.xlu0 %v485, 127
      %v524 = vpop.permute.xlu0 %523
      %525 = vrot.lane.b32.xlu0 %v475, 127
      %v526 = vpop.permute.xlu0 %525
      %527 = vrot.lane.b32.xlu0 %v476, 127
      %v528 = vpop.permute.xlu0 %527
      %529 = vrot.lane.b32.xlu0 %v477, 127
      %v530 = vpop.permute.xlu0 %529
      %531 = vrot.lane.b32.xlu0 %v486, 127
      %v532 = vpop.permute.xlu0 %531
      %533 = vrot.lane.b32.xlu0 %v478, 127
      %v534 = vpop.permute.xlu0 %533
      %535 = vrot.lane.b32.xlu0 %v479, 127
      %v536 = vpop.permute.xlu0 %535
      %537 = vrot.lane.b32.xlu0 %v480, 127
      %v538 = vpop.permute.xlu0 %537
      %539 = vrot.lane.b32.xlu0 %v487, 127
      %v540 = vpop.permute.xlu0 %539
      %541 = vrot.lane.b32.xlu0 %v481, 127
      %v542 = vpop.permute.xlu0 %541
      %543 = vrot.lane.b32.xlu0 %v482, 127
      %v544 = vpop.permute.xlu0 %543
      %545 = vrot.lane.b32.xlu0 %v483, 127
      %v546 = vpop.permute.xlu0 %545
      %547 = vrot.lane.b32.xlu0 %v488, 127
      %v548 = vpop.permute.xlu0 %547
      %vm549 = vcmask 1039360
      %v550 = vsel %vm549, %v510, %v512
      %v551 = vsel %vm549, %v512, %v514
      %v552 = vsel %vm549, %v514, %v516
      %v553 = vsel %vm549, %v518, %v520
      %v554 = vsel %vm549, %v520, %v522
      %v555 = vsel %vm549, %v522, %v524
      %v556 = vsel %vm549, %v526, %v528
      %v557 = vsel %vm549, %v528, %v530
      %v558 = vsel %vm549, %v530, %v532
      %v559 = vsel %vm549, %v534, %v536
      %v560 = vsel %vm549, %v536, %v538
      %v561 = vsel %vm549, %v538, %v540
      %v562 = vsel %vm549, %v542, %v544
      %v563 = vsel %vm549, %v544, %v546
      %v564 = vsel %vm549, %v546, %v548
      %580 = vrot.lane.b32.xlu0 %v469, 126
      %v581 = vpop.permute.xlu0 %580
      %582 = vrot.lane.b32.xlu0 %v470, 126
      %v583 = vpop.permute.xlu0 %582
      %584 = vrot.lane.b32.xlu0 %v471, 126
      %v585 = vpop.permute.xlu0 %584
      %586 = vrot.lane.b32.xlu0 %v484, 126
      %v587 = vpop.permute.xlu0 %586
      %588 = vrot.lane.b32.xlu0 %v472, 126
      %v589 = vpop.permute.xlu0 %588
      %590 = vrot.lane.b32.xlu0 %v473, 126
      %v591 = vpop.permute.xlu0 %590
      %592 = vrot.lane.b32.xlu0 %v474, 126
      %v593 = vpop.permute.xlu0 %592
      %594 = vrot.lane.b32.xlu0 %v485, 126
      %v595 = vpop.permute.xlu0 %594
      %596 = vrot.lane.b32.xlu0 %v475, 126
      %v597 = vpop.permute.xlu0 %596
      %598 = vrot.lane.b32.xlu0 %v476, 126
      %v599 = vpop.permute.xlu0 %598
      %600 = vrot.lane.b32.xlu0 %v477, 126
      %v601 = vpop.permute.xlu0 %600
      %602 = vrot.lane.b32.xlu0 %v486, 126
      %v603 = vpop.permute.xlu0 %602
      %604 = vrot.lane.b32.xlu0 %v478, 126
      %v605 = vpop.permute.xlu0 %604
      %606 = vrot.lane.b32.xlu0 %v479, 126
      %v607 = vpop.permute.xlu0 %606
      %608 = vrot.lane.b32.xlu0 %v480, 126
      %v609 = vpop.permute.xlu0 %608
      %610 = vrot.lane.b32.xlu0 %v487, 126
      %v611 = vpop.permute.xlu0 %610
      %612 = vrot.lane.b32.xlu0 %v481, 126
      %v613 = vpop.permute.xlu0 %612
      %614 = vrot.lane.b32.xlu0 %v482, 126
      %v615 = vpop.permute.xlu0 %614
      %616 = vrot.lane.b32.xlu0 %v483, 126
      %v617 = vpop.permute.xlu0 %616
      %618 = vrot.lane.b32.xlu0 %v488, 126
      %v619 = vpop.permute.xlu0 %618
      %vm620 = vcmask 1031168
      %v621 = vsel %vm620, %v581, %v583
      %v622 = vsel %vm620, %v583, %v585
      %v623 = vsel %vm620, %v585, %v587
      %v624 = vsel %vm620, %v589, %v591
      %v625 = vsel %vm620, %v591, %v593
      %v626 = vsel %vm620, %v593, %v595
      %v627 = vsel %vm620, %v597, %v599
      %v628 = vsel %vm620, %v599, %v601
      %v629 = vsel %vm620, %v601, %v603
      %v630 = vsel %vm620, %v605, %v607
      %v631 = vsel %vm620, %v607, %v609
      %v632 = vsel %vm620, %v609, %v611
      %v633 = vsel %vm620, %v613, %v615
      %v634 = vsel %vm620, %v615, %v617
      %v635 = vsel %vm620, %v617, %v619
      %651 = vrot.lane.b32.xlu0 %v469, 110
      %v652 = vpop.permute.xlu0 %651
      %653 = vrot.lane.b32.xlu0 %v470, 110
      %v654 = vpop.permute.xlu0 %653
      %655 = vrot.lane.b32.xlu0 %v471, 110
      %v656 = vpop.permute.xlu0 %655
      %657 = vrot.lane.b32.xlu0 %v484, 110
      %v658 = vpop.permute.xlu0 %657
      %659 = vrot.lane.b32.xlu0 %v472, 110
      %v660 = vpop.permute.xlu0 %659
      %661 = vrot.lane.b32.xlu0 %v473, 110
      %v662 = vpop.permute.xlu0 %661
      %663 = vrot.lane.b32.xlu0 %v474, 110
      %v664 = vpop.permute.xlu0 %663
      %665 = vrot.lane.b32.xlu0 %v485, 110
      %v666 = vpop.permute.xlu0 %665
      %667 = vrot.lane.b32.xlu0 %v475, 110
      %v668 = vpop.permute.xlu0 %667
      %669 = vrot.lane.b32.xlu0 %v476, 110
      %v670 = vpop.permute.xlu0 %669
      %671 = vrot.lane.b32.xlu0 %v477, 110
      %v672 = vpop.permute.xlu0 %671
      %673 = vrot.lane.b32.xlu0 %v486, 110
      %v674 = vpop.permute.xlu0 %673
      %675 = vrot.lane.b32.xlu0 %v478, 110
      %v676 = vpop.permute.xlu0 %675
      %677 = vrot.lane.b32.xlu0 %v479, 110
      %v678 = vpop.permute.xlu0 %677
      %679 = vrot.lane.b32.xlu0 %v480, 110
      %v680 = vpop.permute.xlu0 %679
      %681 = vrot.lane.b32.xlu0 %v487, 110
      %v682 = vpop.permute.xlu0 %681
      %683 = vrot.lane.b32.xlu0 %v481, 110
      %v684 = vpop.permute.xlu0 %683
      %685 = vrot.lane.b32.xlu0 %v482, 110
      %v686 = vpop.permute.xlu0 %685
      %687 = vrot.lane.b32.xlu0 %v483, 110
      %v688 = vpop.permute.xlu0 %687
      %689 = vrot.lane.b32.xlu0 %v488, 110
      %v690 = vpop.permute.xlu0 %689
      %vm691 = vcmask 900096
      %v692 = vsel %vm691, %v652, %v654
      %v693 = vsel %vm691, %v654, %v656
      %v694 = vsel %vm691, %v656, %v658
      %v695 = vsel %vm691, %v660, %v662
      %v696 = vsel %vm691, %v662, %v664
      %v697 = vsel %vm691, %v664, %v666
      %v698 = vsel %vm691, %v668, %v670
      %v699 = vsel %vm691, %v670, %v672
      %v700 = vsel %vm691, %v672, %v674
      %v701 = vsel %vm691, %v676, %v678
      %v702 = vsel %vm691, %v678, %v680
      %v703 = vsel %vm691, %v680, %v682
      %v704 = vsel %vm691, %v684, %v686
      %v705 = vsel %vm691, %v686, %v688
      %v706 = vsel %vm691, %v688, %v690
      %722 = vrot.lane.b32.xlu0 %v469, 109
      %v723 = vpop.permute.xlu0 %722
      %724 = vrot.lane.b32.xlu0 %v470, 109
      %v725 = vpop.permute.xlu0 %724
      %726 = vrot.lane.b32.xlu0 %v471, 109
      %v727 = vpop.permute.xlu0 %726
      %728 = vrot.lane.b32.xlu0 %v484, 109
      %v729 = vpop.permute.xlu0 %728
      %730 = vrot.lane.b32.xlu0 %v472, 109
      %v731 = vpop.permute.xlu0 %730
      %732 = vrot.lane.b32.xlu0 %v473, 109
      %v733 = vpop.permute.xlu0 %732
      %734 = vrot.lane.b32.xlu0 %v474, 109
      %v735 = vpop.permute.xlu0 %734
      %736 = vrot.lane.b32.xlu0 %v485, 109
      %v737 = vpop.permute.xlu0 %736
      %738 = vrot.lane.b32.xlu0 %v475, 109
      %v739 = vpop.permute.xlu0 %738
      %740 = vrot.lane.b32.xlu0 %v476, 109
      %v741 = vpop.permute.xlu0 %740
      %742 = vrot.lane.b32.xlu0 %v477, 109
      %v743 = vpop.permute.xlu0 %742
      %744 = vrot.lane.b32.xlu0 %v486, 109
      %v745 = vpop.permute.xlu0 %744
      %746 = vrot.lane.b32.xlu0 %v478, 109
      %v747 = vpop.permute.xlu0 %746
      %748 = vrot.lane.b32.xlu0 %v479, 109
      %v749 = vpop.permute.xlu0 %748
      %750 = vrot.lane.b32.xlu0 %v480, 109
      %v751 = vpop.permute.xlu0 %750
      %752 = vrot.lane.b32.xlu0 %v487, 109
      %v753 = vpop.permute.xlu0 %752
      %754 = vrot.lane.b32.xlu0 %v481, 109
      %v755 = vpop.permute.xlu0 %754
      %756 = vrot.lane.b32.xlu0 %v482, 109
      %v757 = vpop.permute.xlu0 %756
      %758 = vrot.lane.b32.xlu0 %v483, 109
      %v759 = vpop.permute.xlu0 %758
      %760 = vrot.lane.b32.xlu0 %v488, 109
      %v761 = vpop.permute.xlu0 %760
      %vm762 = vcmask 891904
      %v763 = vsel %vm762, %v723, %v725
      %v764 = vsel %vm762, %v725, %v727
      %v765 = vsel %vm762, %v727, %v729
      %v766 = vsel %vm762, %v731, %v733
      %v767 = vsel %vm762, %v733, %v735
      %v768 = vsel %vm762, %v735, %v737
      %v769 = vsel %vm762, %v739, %v741
      %v770 = vsel %vm762, %v741, %v743
      %v771 = vsel %vm762, %v743, %v745
      %v772 = vsel %vm762, %v747, %v749
      %v773 = vsel %vm762, %v749, %v751
      %v774 = vsel %vm762, %v751, %v753
      %v775 = vsel %vm762, %v755, %v757
      %v776 = vsel %vm762, %v757, %v759
      %v777 = vsel %vm762, %v759, %v761
      %793 = vrot.lane.b32.xlu0 %v469, 108
      %v794 = vpop.permute.xlu0 %793
      %795 = vrot.lane.b32.xlu0 %v470, 108
      %v796 = vpop.permute.xlu0 %795
      %797 = vrot.lane.b32.xlu0 %v471, 108
      %v798 = vpop.permute.xlu0 %797
      %799 = vrot.lane.b32.xlu0 %v484, 108
      %v800 = vpop.permute.xlu0 %799
      %801 = vrot.lane.b32.xlu0 %v472, 108
      %v802 = vpop.permute.xlu0 %801
      %803 = vrot.lane.b32.xlu0 %v473, 108
      %v804 = vpop.permute.xlu0 %803
      %805 = vrot.lane.b32.xlu0 %v474, 108
      %v806 = vpop.permute.xlu0 %805
      %807 = vrot.lane.b32.xlu0 %v485, 108
      %v808 = vpop.permute.xlu0 %807
      %809 = vrot.lane.b32.xlu0 %v475, 108
      %v810 = vpop.permute.xlu0 %809
      %811 = vrot.lane.b32.xlu0 %v476, 108
      %v812 = vpop.permute.xlu0 %811
      %813 = vrot.lane.b32.xlu0 %v477, 108
      %v814 = vpop.permute.xlu0 %813
      %815 = vrot.lane.b32.xlu0 %v486, 108
      %v816 = vpop.permute.xlu0 %815
      %817 = vrot.lane.b32.xlu0 %v478, 108
      %v818 = vpop.permute.xlu0 %817
      %819 = vrot.lane.b32.xlu0 %v479, 108
      %v820 = vpop.permute.xlu0 %819
      %821 = vrot.lane.b32.xlu0 %v480, 108
      %v822 = vpop.permute.xlu0 %821
      %823 = vrot.lane.b32.xlu0 %v487, 108
      %v824 = vpop.permute.xlu0 %823
      %825 = vrot.lane.b32.xlu0 %v481, 108
      %v826 = vpop.permute.xlu0 %825
      %827 = vrot.lane.b32.xlu0 %v482, 108
      %v828 = vpop.permute.xlu0 %827
      %829 = vrot.lane.b32.xlu0 %v483, 108
      %v830 = vpop.permute.xlu0 %829
      %831 = vrot.lane.b32.xlu0 %v488, 108
      %v832 = vpop.permute.xlu0 %831
      %vm833 = vcmask 883712
      %v834 = vsel %vm833, %v794, %v796
      %v835 = vsel %vm833, %v796, %v798
      %v836 = vsel %vm833, %v798, %v800
      %v837 = vsel %vm833, %v802, %v804
      %v838 = vsel %vm833, %v804, %v806
      %v839 = vsel %vm833, %v806, %v808
      %v840 = vsel %vm833, %v810, %v812
      %v841 = vsel %vm833, %v812, %v814
      %v842 = vsel %vm833, %v814, %v816
      %v843 = vsel %vm833, %v818, %v820
      %v844 = vsel %vm833, %v820, %v822
      %v845 = vsel %vm833, %v822, %v824
      %v846 = vsel %vm833, %v826, %v828
      %v847 = vsel %vm833, %v828, %v830
      %v848 = vsel %vm833, %v830, %v832
      %864 = vrot.lane.b32.xlu0 %v469, 92
      %v865 = vpop.permute.xlu0 %864
      %866 = vrot.lane.b32.xlu0 %v470, 92
      %v867 = vpop.permute.xlu0 %866
      %868 = vrot.lane.b32.xlu0 %v471, 92
      %v869 = vpop.permute.xlu0 %868
      %870 = vrot.lane.b32.xlu0 %v484, 92
      %v871 = vpop.permute.xlu0 %870
      %872 = vrot.lane.b32.xlu0 %v472, 92
      %v873 = vpop.permute.xlu0 %872
      %874 = vrot.lane.b32.xlu0 %v473, 92
      %v875 = vpop.permute.xlu0 %874
      %876 = vrot.lane.b32.xlu0 %v474, 92
      %v877 = vpop.permute.xlu0 %876
      %878 = vrot.lane.b32.xlu0 %v485, 92
      %v879 = vpop.permute.xlu0 %878
      %880 = vrot.lane.b32.xlu0 %v475, 92
      %v881 = vpop.permute.xlu0 %880
      %882 = vrot.lane.b32.xlu0 %v476, 92
      %v883 = vpop.permute.xlu0 %882
      %884 = vrot.lane.b32.xlu0 %v477, 92
      %v885 = vpop.permute.xlu0 %884
      %886 = vrot.lane.b32.xlu0 %v486, 92
      %v887 = vpop.permute.xlu0 %886
      %888 = vrot.lane.b32.xlu0 %v478, 92
      %v889 = vpop.permute.xlu0 %888
      %890 = vrot.lane.b32.xlu0 %v479, 92
      %v891 = vpop.permute.xlu0 %890
      %892 = vrot.lane.b32.xlu0 %v480, 92
      %v893 = vpop.permute.xlu0 %892
      %894 = vrot.lane.b32.xlu0 %v487, 92
      %v895 = vpop.permute.xlu0 %894
      %896 = vrot.lane.b32.xlu0 %v481, 92
      %v897 = vpop.permute.xlu0 %896
      %898 = vrot.lane.b32.xlu0 %v482, 92
      %v899 = vpop.permute.xlu0 %898
      %900 = vrot.lane.b32.xlu0 %v483, 92
      %v901 = vpop.permute.xlu0 %900
      %902 = vrot.lane.b32.xlu0 %v488, 92
      %v903 = vpop.permute.xlu0 %902
      %vm904 = vcmask 752640
      %v905 = vsel %vm904, %v865, %v867
      %v906 = vsel %vm904, %v867, %v869
      %v907 = vsel %vm904, %v869, %v871
      %v908 = vsel %vm904, %v873, %v875
      %v909 = vsel %vm904, %v875, %v877
      %v910 = vsel %vm904, %v877, %v879
      %v911 = vsel %vm904, %v881, %v883
      %v912 = vsel %vm904, %v883, %v885
      %v913 = vsel %vm904, %v885, %v887
      %v914 = vsel %vm904, %v889, %v891
      %v915 = vsel %vm904, %v891, %v893
      %v916 = vsel %vm904, %v893, %v895
      %v917 = vsel %vm904, %v897, %v899
      %v918 = vsel %vm904, %v899, %v901
      %v919 = vsel %vm904, %v901, %v903
      %935 = vrot.lane.b32.xlu0 %v469, 91
      %v936 = vpop.permute.xlu0 %935
      %937 = vrot.lane.b32.xlu0 %v470, 91
      %v938 = vpop.permute.xlu0 %937
      %939 = vrot.lane.b32.xlu0 %v471, 91
      %v940 = vpop.permute.xlu0 %939
      %941 = vrot.lane.b32.xlu0 %v484, 91
      %v942 = vpop.permute.xlu0 %941
      %943 = vrot.lane.b32.xlu0 %v472, 91
      %v944 = vpop.permute.xlu0 %943
      %945 = vrot.lane.b32.xlu0 %v473, 91
      %v946 = vpop.permute.xlu0 %945
      %947 = vrot.lane.b32.xlu0 %v474, 91
      %v948 = vpop.permute.xlu0 %947
      %949 = vrot.lane.b32.xlu0 %v485, 91
      %v950 = vpop.permute.xlu0 %949
      %951 = vrot.lane.b32.xlu0 %v475, 91
      %v952 = vpop.permute.xlu0 %951
      %953 = vrot.lane.b32.xlu0 %v476, 91
      %v954 = vpop.permute.xlu0 %953
      %955 = vrot.lane.b32.xlu0 %v477, 91
      %v956 = vpop.permute.xlu0 %955
      %957 = vrot.lane.b32.xlu0 %v486, 91
      %v958 = vpop.permute.xlu0 %957
      %959 = vrot.lane.b32.xlu0 %v478, 91
      %v960 = vpop.permute.xlu0 %959
      %961 = vrot.lane.b32.xlu0 %v479, 91
      %v962 = vpop.permute.xlu0 %961
      %963 = vrot.lane.b32.xlu0 %v480, 91
      %v964 = vpop.permute.xlu0 %963
      %965 = vrot.lane.b32.xlu0 %v487, 91
      %v966 = vpop.permute.xlu0 %965
      %967 = vrot.lane.b32.xlu0 %v481, 91
      %v968 = vpop.permute.xlu0 %967
      %969 = vrot.lane.b32.xlu0 %v482, 91
      %v970 = vpop.permute.xlu0 %969
      %971 = vrot.lane.b32.xlu0 %v483, 91
      %v972 = vpop.permute.xlu0 %971
      %973 = vrot.lane.b32.xlu0 %v488, 91
      %v974 = vpop.permute.xlu0 %973
      %vm975 = vcmask 744448
      %v976 = vsel %vm975, %v936, %v938
      %v977 = vsel %vm975, %v938, %v940
      %v978 = vsel %vm975, %v940, %v942
      %v979 = vsel %vm975, %v944, %v946
      %v980 = vsel %vm975, %v946, %v948
      %v981 = vsel %vm975, %v948, %v950
      %v982 = vsel %vm975, %v952, %v954
      %v983 = vsel %vm975, %v954, %v956
      %v984 = vsel %vm975, %v956, %v958
      %v985 = vsel %vm975, %v960, %v962
      %v986 = vsel %vm975, %v962, %v964
      %v987 = vsel %vm975, %v964, %v966
      %v988 = vsel %vm975, %v968, %v970
      %v989 = vsel %vm975, %v970, %v972
      %v990 = vsel %vm975, %v972, %v974
      %1006 = vrot.lane.b32.xlu0 %v469, 90
      %v1007 = vpop.permute.xlu0 %1006
      %1008 = vrot.lane.b32.xlu0 %v470, 90
      %v1009 = vpop.permute.xlu0 %1008
      %1010 = vrot.lane.b32.xlu0 %v471, 90
      %v1011 = vpop.permute.xlu0 %1010
      %1012 = vrot.lane.b32.xlu0 %v484, 90
      %v1013 = vpop.permute.xlu0 %1012
      %1014 = vrot.lane.b32.xlu0 %v472, 90
      %v1015 = vpop.permute.xlu0 %1014
      %1016 = vrot.lane.b32.xlu0 %v473, 90
      %v1017 = vpop.permute.xlu0 %1016
      %1018 = vrot.lane.b32.xlu0 %v474, 90
      %v1019 = vpop.permute.xlu0 %1018
      %1020 = vrot.lane.b32.xlu0 %v485, 90
      %v1021 = vpop.permute.xlu0 %1020
      %1022 = vrot.lane.b32.xlu0 %v475, 90
      %v1023 = vpop.permute.xlu0 %1022
      %1024 = vrot.lane.b32.xlu0 %v476, 90
      %v1025 = vpop.permute.xlu0 %1024
      %1026 = vrot.lane.b32.xlu0 %v477, 90
      %v1027 = vpop.permute.xlu0 %1026
      %1028 = vrot.lane.b32.xlu0 %v486, 90
      %v1029 = vpop.permute.xlu0 %1028
      %1030 = vrot.lane.b32.xlu0 %v478, 90
      %v1031 = vpop.permute.xlu0 %1030
      %1032 = vrot.lane.b32.xlu0 %v479, 90
      %v1033 = vpop.permute.xlu0 %1032
      %1034 = vrot.lane.b32.xlu0 %v480, 90
      %v1035 = vpop.permute.xlu0 %1034
      %1036 = vrot.lane.b32.xlu0 %v487, 90
      %v1037 = vpop.permute.xlu0 %1036
      %1038 = vrot.lane.b32.xlu0 %v481, 90
      %v1039 = vpop.permute.xlu0 %1038
      %1040 = vrot.lane.b32.xlu0 %v482, 90
      %v1041 = vpop.permute.xlu0 %1040
      %1042 = vrot.lane.b32.xlu0 %v483, 90
      %v1043 = vpop.permute.xlu0 %1042
      %1044 = vrot.lane.b32.xlu0 %v488, 90
      %v1045 = vpop.permute.xlu0 %1044
      %vm1046 = vcmask 736256
      %v1047 = vsel %vm1046, %v1007, %v1009
      %v1048 = vsel %vm1046, %v1009, %v1011
      %v1049 = vsel %vm1046, %v1011, %v1013
      %v1050 = vsel %vm1046, %v1015, %v1017
      %v1051 = vsel %vm1046, %v1017, %v1019
      %v1052 = vsel %vm1046, %v1019, %v1021
      %v1053 = vsel %vm1046, %v1023, %v1025
      %v1054 = vsel %vm1046, %v1025, %v1027
      %v1055 = vsel %vm1046, %v1027, %v1029
      %v1056 = vsel %vm1046, %v1031, %v1033
      %v1057 = vsel %vm1046, %v1033, %v1035
      %v1058 = vsel %vm1046, %v1035, %v1037
      %v1059 = vsel %vm1046, %v1039, %v1041
      %v1060 = vsel %vm1046, %v1041, %v1043
      %v1061 = vsel %vm1046, %v1043, %v1045
      %v1077 = vld [vmem:[%s0] sm:$0xff]
      %v1078 = vld [vmem:[%s0 + $0x8] sm:$0xff]
      %v1079 = vld [vmem:[%s0 + $0x10] sm:$0xff]
      %v1080 = vld [vmem:[%s0 + $0x18] sm:$0xff]
      %v1081 = vld [vmem:[%s0 + $0x20] sm:$0xff]
      %v1082 = vld [vmem:[%s0 + $0x28] sm:$0xff]
      %v1083 = vld [vmem:[%s0 + $0x30] sm:$0xff]
      %v1084 = vld [vmem:[%s0 + $0x38] sm:$0xff]
      %v1085 = vld [vmem:[%s0 + $0x40] sm:$0xff]
      %v1086 = vld [vmem:[%s0 + $0x48] sm:$0xff]
      %v1087 = vld [vmem:[%s0 + $0x50] sm:$0xff]
      %v1088 = vld [vmem:[%s0 + $0x58] sm:$0xff]
      %v1089 = vld [vmem:[%s0 + $0x60] sm:$0xff]
      %v1090 = vld [vmem:[%s0 + $0x68] sm:$0xff]
      %v1091 = vld [vmem:[%s0 + $0x70] sm:$0xff]
      %v1092 = vld [vmem:[%s0 + $0x78] sm:$0xff]
      %v1093 = vld [vmem:[%s0 + $0x80] sm:$0xff]
      %v1094 = vld [vmem:[%s0 + $0x88] sm:$0xff]
      %v1095 = vld [vmem:[%s0 + $0x90] sm:$0xff]
      %v1096 = vld [vmem:[%s0 + $0x98] sm:$0xff]
      %v1097 = vld [vmem:[%s0 + $0xa0] sm:$0xff]
      %v1098 = vld [vmem:[%s0 + $0xa8] sm:$0xff]
      %v1099 = vld [vmem:[%s0 + $0xb0] sm:$0xff]
      %v1100 = vld [vmem:[%s0 + $0xb8] sm:$0xff]
      %v1101 = vld [vmem:[%s0 + $0xc0] sm:$0xff]
      %v1102 = vld [vmem:[%s0 + $0xc8] sm:$0xff]
      %v1103 = vld [vmem:[%s0 + $0xd0] sm:$0xff]
      %v1104 = vld [vmem:[%s0 + $0xd8] sm:$0xff]
      %v1105 = vld [vmem:[%s0 + $0xe0] sm:$0xff]
      %v1106 = vld [vmem:[%s0 + $0xe8] sm:$0xff]
      %v1107 = vld [vmem:[%s0 + $0xf0] sm:$0xff]
      %v1108 = vld [vmem:[%s0 + $0xf8] sm:$0xff]
      %v1109 = vld [vmem:[%s0 + $0x100] sm:$0xff]
      %v1110 = vld [vmem:[%s0 + $0x108] sm:$0xff]
      %v1111 = vld [vmem:[%s0 + $0x110] sm:$0xff]
      %v1112 = vld [vmem:[%s0 + $0x118] sm:$0xff]
      %v1113 = vld [vmem:[%s0 + $0x120] sm:$0xff]
      %v1114 = vld [vmem:[%s0 + $0x128] sm:$0xff]
      %v1115 = vld [vmem:[%s0 + $0x130] sm:$0xff]
      %v1116 = vld [vmem:[%s0 + $0x138] sm:$0xff]
      %v1117 = vld [vmem:[%s0 + $0x140] sm:$0xff]
      %v1118 = vld [vmem:[%s0 + $0x148] sm:$0xff]
      %v1119 = vld [vmem:[%s0 + $0x150] sm:$0xff]
      %v1120 = vld [vmem:[%s0 + $0x158] sm:$0xff]
      %v1121 = vld [vmem:[%s0 + $0x160] sm:$0xff]
      %v1122 = vld [vmem:[%s0 + $0x168] sm:$0xff]
      %v1123 = vld [vmem:[%s0 + $0x170] sm:$0xff]
      %v1124 = vld [vmem:[%s0 + $0x178] sm:$0xff]
      %v1125 = vld [vmem:[%s1] sm:$0xff]
      %v1126 = vld [vmem:[%s1 + $0x8] sm:$0xff]
      %v1127 = vld [vmem:[%s1 + $0x10] sm:$0xff]
      %v1128 = vld [vmem:[%s1 + $0x18] sm:$0xff]
      %v1129 = vld [vmem:[%s1 + $0x20] sm:$0xff]
      %v1130 = vld [vmem:[%s1 + $0x28] sm:$0xff]
      %v1131 = vld [vmem:[%s1 + $0x30] sm:$0xff]
      %v1132 = vld [vmem:[%s1 + $0x38] sm:$0xff]
      %v1133 = vld [vmem:[%s1 + $0x40] sm:$0xff]
      %v1134 = vld [vmem:[%s1 + $0x48] sm:$0xff]
      %v1135 = vld [vmem:[%s1 + $0x50] sm:$0xff]
      %v1136 = vld [vmem:[%s1 + $0x58] sm:$0xff]
      %v1137 = vld [vmem:[%s1 + $0x60] sm:$0xff]
      %v1138 = vld [vmem:[%s1 + $0x68] sm:$0xff]
      %v1139 = vld [vmem:[%s1 + $0x70] sm:$0xff]
      %v1140 = vld [vmem:[%s1 + $0x78] sm:$0xff]
      %1142 = vset.pattern.permute.xlu0 0
      %1143 = vperm.xlu0 %1142, %v1125
      %v1144 = vpop.permute.xlu0 %1143
      %1147 = vset.pattern.permute.xlu0 0
      %1148 = vperm.xlu0 %1147, %v1126
      %v1149 = vpop.permute.xlu0 %1148
      %1152 = vset.pattern.permute.xlu0 0
      %1153 = vperm.xlu0 %1152, %v1127
      %v1154 = vpop.permute.xlu0 %1153
      %1157 = vset.pattern.permute.xlu0 0
      %1158 = vperm.xlu0 %1157, %v1128
      %v1159 = vpop.permute.xlu0 %1158
      %1162 = vset.pattern.permute.xlu0 0
      %1163 = vperm.xlu0 %1162, %v1129
      %v1164 = vpop.permute.xlu0 %1163
      %1167 = vset.pattern.permute.xlu0 0
      %1168 = vperm.xlu0 %1167, %v1130
      %v1169 = vpop.permute.xlu0 %1168
      %1172 = vset.pattern.permute.xlu0 0
      %1173 = vperm.xlu0 %1172, %v1131
      %v1174 = vpop.permute.xlu0 %1173
      %1177 = vset.pattern.permute.xlu0 0
      %1178 = vperm.xlu0 %1177, %v1132
      %v1179 = vpop.permute.xlu0 %1178
      %1182 = vset.pattern.permute.xlu0 0
      %1183 = vperm.xlu0 %1182, %v1133
      %v1184 = vpop.permute.xlu0 %1183
      %1187 = vset.pattern.permute.xlu0 0
      %1188 = vperm.xlu0 %1187, %v1134
      %v1189 = vpop.permute.xlu0 %1188
      %1192 = vset.pattern.permute.xlu0 0
      %1193 = vperm.xlu0 %1192, %v1135
      %v1194 = vpop.permute.xlu0 %1193
      %1197 = vset.pattern.permute.xlu0 0
      %1198 = vperm.xlu0 %1197, %v1136
      %v1199 = vpop.permute.xlu0 %1198
      %1202 = vset.pattern.permute.xlu0 0
      %1203 = vperm.xlu0 %1202, %v1137
      %v1204 = vpop.permute.xlu0 %1203
      %1207 = vset.pattern.permute.xlu0 0
      %1208 = vperm.xlu0 %1207, %v1138
      %v1209 = vpop.permute.xlu0 %1208
      %1212 = vset.pattern.permute.xlu0 0
      %1213 = vperm.xlu0 %1212, %v1139
      %v1214 = vpop.permute.xlu0 %1213
      %1217 = vset.pattern.permute.xlu0 0
      %1218 = vperm.xlu0 %1217, %v1140
      %v1219 = vpop.permute.xlu0 %1218
      %vm1221 = vcmask 850944
      %v1223 = vsel %vm1221, %v1079, 0
      %v1226 = vsel %vm1221, %v1082, 0
      %v1229 = vsel %vm1221, %v1085, 0
      %v1232 = vsel %vm1221, %v1088, 0
      %v1235 = vsel %vm1221, %v1091, 0
      %v1238 = vsel %vm1221, %v1094, 0
      %v1241 = vsel %vm1221, %v1097, 0
      %v1244 = vsel %vm1221, %v1100, 0
      %v1247 = vsel %vm1221, %v1103, 0
      %v1250 = vsel %vm1221, %v1106, 0
      %v1253 = vsel %vm1221, %v1109, 0
      %v1256 = vsel %vm1221, %v1112, 0
      %v1259 = vsel %vm1221, %v1115, 0
      %v1262 = vsel %vm1221, %v1118, 0
      %v1265 = vsel %vm1221, %v1121, 0
      %v1268 = vsel %vm1221, %v1124, 0
      %v1270 = vand.u32 %v470, 4294901760
      %1271 = vmatprep.subr.mxu0 %v1270
      %v1272 = vand.u32 %v469, 4294901760
      %1273 = vmatpush1.msra.mxu0 %v1272
      %v1274 = vand.u32 %v473, 4294901760
      %1275 = vmatprep.subr.mxu0 %v1274
      %v1276 = vand.u32 %v472, 4294901760
      %1277 = vmatpush1.msra.mxu0 %v1276
      %v1278 = vand.u32 %v476, 4294901760
      %1279 = vmatprep.subr.mxu0 %v1278
      %v1280 = vand.u32 %v475, 4294901760
      %1281 = vmatpush1.msra.mxu0 %v1280
      %v1282 = vand.u32 %v479, 4294901760
      %1283 = vmatprep.subr.mxu0 %v1282
      %v1284 = vand.u32 %v478, 4294901760
      %1285 = vmatpush1.msra.mxu0 %v1284
      %v1286 = vand.u32 %v482, 4294901760
      %1287 = vmatprep.subr.mxu0 %v1286
      %v1288 = vand.u32 %v481, 4294901760
      %1289 = vmatpush1.msra.mxu0 %v1288
      %v1290 = vand.u32 %v551, 4294901760
      %1291 = vmatprep.subr.mxu0 %v1290
      %v1292 = vand.u32 %v550, 4294901760
      %1293 = vmatpush1.msra.mxu0 %v1292
      %v1294 = vand.u32 %v554, 4294901760
      %1295 = vmatprep.subr.mxu0 %v1294
      %v1296 = vand.u32 %v553, 4294901760
      %1297 = vmatpush1.msra.mxu0 %v1296
      %v1298 = vand.u32 %v557, 4294901760
      %1299 = vmatprep.subr.mxu0 %v1298
      %v1300 = vand.u32 %v556, 4294901760
      %1301 = vmatpush1.msra.mxu0 %v1300
      %v1302 = vand.u32 %v560, 4294901760
      %1303 = vmatprep.subr.mxu0 %v1302
      %v1304 = vand.u32 %v559, 4294901760
      %1305 = vmatpush1.msra.mxu0 %v1304
      %v1306 = vand.u32 %v563, 4294901760
      %1307 = vmatprep.subr.mxu0 %v1306
      %v1308 = vand.u32 %v562, 4294901760
      %1309 = vmatpush1.msra.mxu0 %v1308
      %v1310 = vand.u32 %v622, 4294901760
      %1311 = vmatprep.subr.mxu0 %v1310
      %v1312 = vand.u32 %v621, 4294901760
      %1313 = vmatpush1.msra.mxu0 %v1312
      %v1314 = vand.u32 %v625, 4294901760
      %1315 = vmatprep.subr.mxu0 %v1314
      %v1316 = vand.u32 %v624, 4294901760
      %1317 = vmatpush1.msra.mxu0 %v1316
      %v1318 = vand.u32 %v628, 4294901760
      %1319 = vmatprep.subr.mxu0 %v1318
      %v1320 = vand.u32 %v627, 4294901760
      %1321 = vmatpush1.msra.mxu0 %v1320
      %v1322 = vand.u32 %v631, 4294901760
      %1323 = vmatprep.subr.mxu0 %v1322
      %v1324 = vand.u32 %v630, 4294901760
      %1325 = vmatpush1.msra.mxu0 %v1324
      %v1326 = vand.u32 %v634, 4294901760
      %1327 = vmatprep.subr.mxu0 %v1326
      %v1328 = vand.u32 %v633, 4294901760
      %1329 = vmatpush1.msra.mxu0 %v1328
      %v1330 = vand.u32 %v693, 4294901760
      %1331 = vmatprep.subr.mxu0 %v1330
      %v1332 = vand.u32 %v692, 4294901760
      %1333 = vmatpush1.msra.mxu0 %v1332
      %v1334 = vand.u32 %v696, 4294901760
      %1335 = vmatprep.subr.mxu0 %v1334
      %v1336 = vand.u32 %v695, 4294901760
      %1337 = vmatpush1.msra.mxu0 %v1336
      %v1338 = vand.u32 %v699, 4294901760
      %1339 = vmatprep.subr.mxu0 %v1338
      %v1340 = vand.u32 %v698, 4294901760
      %1341 = vmatpush1.msra.mxu0 %v1340
      %v1342 = vand.u32 %v702, 4294901760
      %1343 = vmatprep.subr.mxu0 %v1342
      %v1344 = vand.u32 %v701, 4294901760
      %1345 = vmatpush1.msra.mxu0 %v1344
      %v1346 = vand.u32 %v705, 4294901760
      %1347 = vmatprep.subr.mxu0 %v1346
      %v1348 = vand.u32 %v704, 4294901760
      %1349 = vmatpush1.msra.mxu0 %v1348
      %v1350 = vand.u32 %v764, 4294901760
      %1351 = vmatprep.subr.mxu0 %v1350
      %v1352 = vand.u32 %v763, 4294901760
      %1353 = vmatpush1.msra.mxu0 %v1352
      %v1354 = vand.u32 %v767, 4294901760
      %1355 = vmatprep.subr.mxu0 %v1354
      %v1356 = vand.u32 %v766, 4294901760
      %1357 = vmatpush1.msra.mxu0 %v1356
      %v1358 = vand.u32 %v770, 4294901760
      %1359 = vmatprep.subr.mxu0 %v1358
      %v1360 = vand.u32 %v769, 4294901760
      %1361 = vmatpush1.msra.mxu0 %v1360
      %v1362 = vand.u32 %v773, 4294901760
      %1363 = vmatprep.subr.mxu0 %v1362
      %v1364 = vand.u32 %v772, 4294901760
      %1365 = vmatpush1.msra.mxu0 %v1364
      %v1366 = vand.u32 %v776, 4294901760
      %1367 = vmatprep.subr.mxu0 %v1366
      %v1368 = vand.u32 %v775, 4294901760
      %1369 = vmatpush1.msra.mxu0 %v1368
      %v1370 = vand.u32 %v835, 4294901760
      %1371 = vmatprep.subr.mxu0 %v1370
      %v1372 = vand.u32 %v834, 4294901760
      %1373 = vmatpush1.msra.mxu0 %v1372
      %v1374 = vand.u32 %v838, 4294901760
      %1375 = vmatprep.subr.mxu0 %v1374
      %v1376 = vand.u32 %v837, 4294901760
      %1377 = vmatpush1.msra.mxu0 %v1376
      %v1378 = vand.u32 %v841, 4294901760
      %1379 = vmatprep.subr.mxu0 %v1378
      %v1380 = vand.u32 %v840, 4294901760
      %1381 = vmatpush1.msra.mxu0 %v1380
      %v1382 = vand.u32 %v844, 4294901760
      %1383 = vmatprep.subr.mxu0 %v1382
      %v1384 = vand.u32 %v843, 4294901760
      %1385 = vmatpush1.msra.mxu0 %v1384
      %v1386 = vand.u32 %v847, 4294901760
      %1387 = vmatprep.subr.mxu0 %v1386
      %v1388 = vand.u32 %v846, 4294901760
      %1389 = vmatpush1.msra.mxu0 %v1388
      %v1390 = vand.u32 %v906, 4294901760
      %1391 = vmatprep.subr.mxu0 %v1390
      %v1392 = vand.u32 %v905, 4294901760
      %1393 = vmatpush1.msra.mxu0 %v1392
      %v1394 = vand.u32 %v909, 4294901760
      %1395 = vmatprep.subr.mxu0 %v1394
      %v1396 = vand.u32 %v908, 4294901760
      %1397 = vmatpush1.msra.mxu0 %v1396
      %v1398 = vand.u32 %v1078, 4294901760
      %v1399 = vsub.f32 %v1078, %v1398
      %v1400 = vand.u32 %v1399, 4294901760
      %v1401 = vsub.f32 %v1399, %v1400
      %v1402 = vand.u32 %v1401, 4294901760
      %1403 = vmatprep.mubr.f32.mxu0 %v1402
      %v1404 = vand.u32 %v1077, 4294901760
      %v1405 = vsub.f32 %v1077, %v1404
      %v1406 = vand.u32 %v1405, 4294901760
      %v1407 = vsub.f32 %v1405, %v1406
      %v1408 = vand.u32 %v1407, 4294901760
      %1409 = vmatmul.mubr.f32.gmra.mrb[0].mxu0 %v1408
      %v1410 = vpop.f32.mrb[0].mxu0
      %v1411 = vadd.f32 %v1144, %v1410
      %v1412 = vpop.f32.mrb[0].mxu0
      %v1413 = vadd.f32 %v1144, %v1412
      %v1414 = vand.u32 %v1081, 4294901760
      %v1415 = vsub.f32 %v1081, %v1414
      %v1416 = vand.u32 %v1415, 4294901760
      %v1417 = vsub.f32 %v1415, %v1416
      %v1418 = vand.u32 %v1417, 4294901760
      %1419 = vmatprep.mubr.f32.mxu0 %v1418
      %v1420 = vand.u32 %v1080, 4294901760
      %v1421 = vsub.f32 %v1080, %v1420
      %v1422 = vand.u32 %v1421, 4294901760
      %v1423 = vsub.f32 %v1421, %v1422
      %v1424 = vand.u32 %v1423, 4294901760
      %1425 = vmatmul.mubr.f32.gmra.mrb[0].mxu0 %v1424
      %v1426 = vpop.f32.mrb[0].mxu0
      %v1427 = vadd.f32 %v1149, %v1426
      %v1428 = vpop.f32.mrb[0].mxu0
      %v1429 = vadd.f32 %v1149, %v1428
      %v1430 = vand.u32 %v1084, 4294901760
      %v1431 = vsub.f32 %v1084, %v1430
      %v1432 = vand.u32 %v1431, 4294901760
      %v1433 = vsub.f32 %v1431, %v1432
      %v1434 = vand.u32 %v1433, 4294901760
      %1435 = vmatprep.mubr.f32.mxu0 %v1434
      %v1436 = vand.u32 %v1083, 4294901760
      %v1437 = vsub.f32 %v1083, %v1436
      %v1438 = vand.u32 %v1437, 4294901760
      %v1439 = vsub.f32 %v1437, %v1438
      %v1440 = vand.u32 %v1439, 4294901760
      %1441 = vmatmul.mubr.f32.gmra.mrb[0].mxu0 %v1440
      %v1442 = vpop.f32.mrb[0].mxu0
      %v1443 = vadd.f32 %v1154, %v1442
      %v1444 = vpop.f32.mrb[0].mxu0
      %v1445 = vadd.f32 %v1154, %v1444
      %v1446 = vand.u32 %v1087, 4294901760
      %v1447 = vsub.f32 %v1087, %v1446
      %v1448 = vand.u32 %v1447, 4294901760
      %v1449 = vsub.f32 %v1447, %v1448
      %v1450 = vand.u32 %v1449, 4294901760
      %1451 = vmatprep.mubr.f32.mxu0 %v1450
      %v1452 = vand.u32 %v1086, 4294901760
      %v1453 = vsub.f32 %v1086, %v1452
      %v1454 = vand.u32 %v1453, 4294901760
      %v1455 = vsub.f32 %v1453, %v1454
      %v1456 = vand.u32 %v1455, 4294901760
      %1457 = vmatmul.mubr.f32.gmra.mrb[0].mxu0 %v1456
      %v1458 = vpop.f32.mrb[0].mxu0
      %v1459 = vadd.f32 %v1159, %v1458
      %v1460 = vpop.f32.mrb[0].mxu0
      %v1461 = vadd.f32 %v1159, %v1460
      %v1462 = vand.u32 %v1090, 4294901760
      %v1463 = vsub.f32 %v1090, %v1462
      %v1464 = vand.u32 %v1463, 4294901760
      %v1465 = vsub.f32 %v1463, %v1464
      %v1466 = vand.u32 %v1465, 4294901760
      %1467 = vmatprep.mubr.f32.mxu0 %v1466
      %v1468 = vand.u32 %v1089, 4294901760
      %v1469 = vsub.f32 %v1089, %v1468
      %v1470 = vand.u32 %v1469, 4294901760
      %v1471 = vsub.f32 %v1469, %v1470
      %v1472 = vand.u32 %v1471, 4294901760
      %1473 = vmatmul.mubr.f32.gmra.mrb[0].mxu0 %v1472
      %v1474 = vpop.f32.mrb[0].mxu0
      %v1475 = vadd.f32 %v1164, %v1474
      %v1476 = vpop.f32.mrb[0].mxu0
      %v1477 = vadd.f32 %v1164, %v1476
      %v1478 = vand.u32 %v1093, 4294901760
      %v1479 = vsub.f32 %v1093, %v1478
      %v1480 = vand.u32 %v1479, 4294901760
      %v1481 = vsub.f32 %v1479, %v1480
      %v1482 = vand.u32 %v1481, 4294901760
      %1483 = vmatprep.mubr.f32.mxu0 %v1482
      %v1484 = vand.u32 %v1092, 4294901760
      %v1485 = vsub.f32 %v1092, %v1484
      %v1486 = vand.u32 %v1485, 4294901760
      %v1487 = vsub.f32 %v1485, %v1486
      %v1488 = vand.u32 %v1487, 4294901760
      %1489 = vmatmul.mubr.f32.gmra.mrb[0].mxu0 %v1488
      %v1490 = vpop.f32.mrb[0].mxu0
      %v1491 = vadd.f32 %v1169, %v1490
      %v1492 = vpop.f32.mrb[0].mxu0
      %v1493 = vadd.f32 %v1169, %v1492
      %v1494 = vand.u32 %v1096, 4294901760
      %v1495 = vsub.f32 %v1096, %v1494
      %v1496 = vand.u32 %v1495, 4294901760
      %v1497 = vsub.f32 %v1495, %v1496
      %v1498 = vand.u32 %v1497, 4294901760
      %1499 = vmatprep.mubr.f32.mxu0 %v1498
      %v1500 = vand.u32 %v1095, 4294901760
      %v1501 = vsub.f32 %v1095, %v1500
      %v1502 = vand.u32 %v1501, 4294901760
      %v1503 = vsub.f32 %v1501, %v1502
      %v1504 = vand.u32 %v1503, 4294901760
      %1505 = vmatmul.mubr.f32.gmra.mrb[0].mxu0 %v1504
      %v1506 = vpop.f32.mrb[0].mxu0
      %v1507 = vadd.f32 %v1174, %v1506
      %v1508 = vpop.f32.mrb[0].mxu0
      %v1509 = vadd.f32 %v1174, %v1508
      %v1510 = vand.u32 %v1099, 4294901760
      %v1511 = vsub.f32 %v1099, %v1510
      %v1512 = vand.u32 %v1511, 4294901760
      %v1513 = vsub.f32 %v1511, %v1512
      %v1514 = vand.u32 %v1513, 4294901760
      %1515 = vmatprep.mubr.f32.mxu0 %v1514
      %v1516 = vand.u32 %v1098, 4294901760
      %v1517 = vsub.f32 %v1098, %v1516
      %v1518 = vand.u32 %v1517, 4294901760
      %v1519 = vsub.f32 %v1517, %v1518
      %v1520 = vand.u32 %v1519, 4294901760
      %1521 = vmatmul.mubr.f32.gmra.mrb[0].mxu0 %v1520
      %v1522 = vpop.f32.mrb[0].mxu0
      %v1523 = vadd.f32 %v1179, %v1522
      %v1524 = vpop.f32.mrb[0].mxu0
      %v1525 = vadd.f32 %v1179, %v1524
      %v1526 = vand.u32 %v1102, 4294901760
      %v1527 = vsub.f32 %v1102, %v1526
      %v1528 = vand.u32 %v1527, 4294901760
      %v1529 = vsub.f32 %v1527, %v1528
      %v1530 = vand.u32 %v1529, 4294901760
      %1531 = vmatprep.mubr.f32.mxu0 %v1530
      %v1532 = vand.u32 %v1101, 4294901760
      %v1533 = vsub.f32 %v1101, %v1532
      %v1534 = vand.u32 %v1533, 4294901760
      %v1535 = vsub.f32 %v1533, %v1534
      %v1536 = vand.u32 %v1535, 4294901760
      %1537 = vmatmul.mubr.f32.gmra.mrb[0].mxu0 %v1536
      %v1538 = vpop.f32.mrb[0].mxu0
      %v1539 = vadd.f32 %v1184, %v1538
      %v1540 = vpop.f32.mrb[0].mxu0
      %v1541 = vadd.f32 %v1184, %v1540
      %v1542 = vand.u32 %v1105, 4294901760
      %v1543 = vsub.f32 %v1105, %v1542
      %v1544 = vand.u32 %v1543, 4294901760
      %v1545 = vsub.f32 %v1543, %v1544
      %v1546 = vand.u32 %v1545, 4294901760
      %1547 = vmatprep.mubr.f32.mxu0 %v1546
      %v1548 = vand.u32 %v1104, 4294901760
      %v1549 = vsub.f32 %v1104, %v1548
      %v1550 = vand.u32 %v1549, 4294901760
      %v1551 = vsub.f32 %v1549, %v1550
      %v1552 = vand.u32 %v1551, 4294901760
      %1553 = vmatmul.mubr.f32.gmra.mrb[0].mxu0 %v1552
      %v1554 = vpop.f32.mrb[0].mxu0
      %v1555 = vadd.f32 %v1189, %v1554
      %v1556 = vpop.f32.mrb[0].mxu0
      %v1557 = vadd.f32 %v1189, %v1556
      %v1558 = vand.u32 %v1108, 4294901760
      %v1559 = vsub.f32 %v1108, %v1558
      %v1560 = vand.u32 %v1559, 4294901760
      %v1561 = vsub.f32 %v1559, %v1560
      %v1562 = vand.u32 %v1561, 4294901760
      %1563 = vmatprep.mubr.f32.mxu0 %v1562
      %v1564 = vand.u32 %v1107, 4294901760
      %v1565 = vsub.f32 %v1107, %v1564
      %v1566 = vand.u32 %v1565, 4294901760
      %v1567 = vsub.f32 %v1565, %v1566
      %v1568 = vand.u32 %v1567, 4294901760
      %1569 = vmatmul.mubr.f32.gmra.mrb[0].mxu0 %v1568
      %v1570 = vpop.f32.mrb[0].mxu0
      %v1571 = vadd.f32 %v1194, %v1570
      %v1572 = vpop.f32.mrb[0].mxu0
      %v1573 = vadd.f32 %v1194, %v1572
      %v1574 = vand.u32 %v1111, 4294901760
      %v1575 = vsub.f32 %v1111, %v1574
      %v1576 = vand.u32 %v1575, 4294901760
      %v1577 = vsub.f32 %v1575, %v1576
      %v1578 = vand.u32 %v1577, 4294901760
      %1579 = vmatprep.mubr.f32.mxu0 %v1578
      %v1580 = vand.u32 %v1110, 4294901760
      %v1581 = vsub.f32 %v1110, %v1580
      %v1582 = vand.u32 %v1581, 4294901760
      %v1583 = vsub.f32 %v1581, %v1582
      %v1584 = vand.u32 %v1583, 4294901760
      %1585 = vmatmul.mubr.f32.gmra.mrb[0].mxu0 %v1584
      %v1586 = vpop.f32.mrb[0].mxu0
      %v1587 = vadd.f32 %v1199, %v1586
      %v1588 = vpop.f32.mrb[0].mxu0
      %v1589 = vadd.f32 %v1199, %v1588
      %v1590 = vand.u32 %v1114, 4294901760
      %v1591 = vsub.f32 %v1114, %v1590
      %v1592 = vand.u32 %v1591, 4294901760
      %v1593 = vsub.f32 %v1591, %v1592
      %v1594 = vand.u32 %v1593, 4294901760
      %1595 = vmatprep.mubr.f32.mxu0 %v1594
      %v1596 = vand.u32 %v1113, 4294901760
      %v1597 = vsub.f32 %v1113, %v1596
      %v1598 = vand.u32 %v1597, 4294901760
      %v1599 = vsub.f32 %v1597, %v1598
      %v1600 = vand.u32 %v1599, 4294901760
      %1601 = vmatmul.mubr.f32.gmra.mrb[0].mxu0 %v1600
      %v1602 = vpop.f32.mrb[0].mxu0
      %v1603 = vadd.f32 %v1204, %v1602
      %v1604 = vpop.f32.mrb[0].mxu0
      %v1605 = vadd.f32 %v1204, %v1604
      %v1606 = vand.u32 %v1117, 4294901760
      %v1607 = vsub.f32 %v1117, %v1606
      %v1608 = vand.u32 %v1607, 4294901760
      %v1609 = vsub.f32 %v1607, %v1608
      %v1610 = vand.u32 %v1609, 4294901760
      %1611 = vmatprep.mubr.f32.mxu0 %v1610
      %v1612 = vand.u32 %v1116, 4294901760
      %v1613 = vsub.f32 %v1116, %v1612
      %v1614 = vand.u32 %v1613, 4294901760
      %v1615 = vsub.f32 %v1613, %v1614
      %v1616 = vand.u32 %v1615, 4294901760
      %1617 = vmatmul.mubr.f32.gmra.mrb[0].mxu0 %v1616
      %v1618 = vpop.f32.mrb[0].mxu0
      %v1619 = vadd.f32 %v1209, %v1618
      %v1620 = vpop.f32.mrb[0].mxu0
      %v1621 = vadd.f32 %v1209, %v1620
      %v1622 = vand.u32 %v1120, 4294901760
      %v1623 = vsub.f32 %v1120, %v1622
      %v1624 = vand.u32 %v1623, 4294901760
      %v1625 = vsub.f32 %v1623, %v1624
      %v1626 = vand.u32 %v1625, 4294901760
      %1627 = vmatprep.mubr.f32.mxu0 %v1626
      %v1628 = vand.u32 %v1119, 4294901760
      %v1629 = vsub.f32 %v1119, %v1628
      %v1630 = vand.u32 %v1629, 4294901760
      %v1631 = vsub.f32 %v1629, %v1630
      %v1632 = vand.u32 %v1631, 4294901760
      %1633 = vmatmul.mubr.f32.gmra.mrb[0].mxu0 %v1632
      %v1634 = vpop.f32.mrb[0].mxu0
      %v1635 = vadd.f32 %v1214, %v1634
      %v1636 = vpop.f32.mrb[0].mxu0
      %v1637 = vadd.f32 %v1214, %v1636
      %v1638 = vand.u32 %v1123, 4294901760
      %v1639 = vsub.f32 %v1123, %v1638
      %v1640 = vand.u32 %v1639, 4294901760
      %v1641 = vsub.f32 %v1639, %v1640
      %v1642 = vand.u32 %v1641, 4294901760
      %1643 = vmatprep.mubr.f32.mxu0 %v1642
      %v1644 = vand.u32 %v1122, 4294901760
      %v1645 = vsub.f32 %v1122, %v1644
      %v1646 = vand.u32 %v1645, 4294901760
      %v1647 = vsub.f32 %v1645, %v1646
      %v1648 = vand.u32 %v1647, 4294901760
      %1649 = vmatmul.mubr.f32.gmra.mrb[0].mxu0 %v1648
      %v1650 = vpop.f32.mrb[0].mxu0
      %v1651 = vadd.f32 %v1219, %v1650
      %v1652 = vpop.f32.mrb[0].mxu0
      %v1653 = vadd.f32 %v1219, %v1652
      %1654 = vdwg.mxu0
      %v1655 = vand.u32 %v470, 4294901760
      %v1656 = vsub.f32 %v470, %v1655
      %v1657 = vand.u32 %v1656, 4294901760
      %v1658 = vsub.f32 %v1656, %v1657
      %v1659 = vand.u32 %v1658, 4294901760
      %1660 = vmatprep.subr.mxu0 %v1659
      %v1661 = vand.u32 %v469, 4294901760
      %v1662 = vsub.f32 %v469, %v1661
      %v1663 = vand.u32 %v1662, 4294901760
      %v1664 = vsub.f32 %v1662, %v1663
      %v1665 = vand.u32 %v1664, 4294901760
      %1666 = vmatpush1.msra.mxu0 %v1665
      %v1667 = vand.u32 %v473, 4294901760
      %v1668 = vsub.f32 %v473, %v1667
      %v1669 = vand.u32 %v1668, 4294901760
      %v1670 = vsub.f32 %v1668, %v1669
      %v1671 = vand.u32 %v1670, 4294901760
      %1672 = vmatprep.subr.mxu0 %v1671
      %v1673 = vand.u32 %v472, 4294901760
      %v1674 = vsub.f32 %v472, %v1673
      %v1675 = vand.u32 %v1674, 4294901760
      %v1676 = vsub.f32 %v1674, %v1675
      %v1677 = vand.u32 %v1676, 4294901760
      %1678 = vmatpush1.msra.mxu0 %v1677
      %v1679 = vand.u32 %v476, 4294901760
      %v1680 = vsub.f32 %v476, %v1679
      %v1681 = vand.u32 %v1680, 4294901760
      %v1682 = vsub.f32 %v1680, %v1681
      %v1683 = vand.u32 %v1682, 4294901760
      %1684 = vmatprep.subr.mxu0 %v1683
      %v1685 = vand.u32 %v475, 4294901760
      %v1686 = vsub.f32 %v475, %v1685
      %v1687 = vand.u32 %v1686, 4294901760
      %v1688 = vsub.f32 %v1686, %v1687
      %v1689 = vand.u32 %v1688, 4294901760
      %1690 = vmatpush1.msra.mxu0 %v1689
      %v1691 = vand.u32 %v479, 4294901760
      %v1692 = vsub.f32 %v479, %v1691
      %v1693 = vand.u32 %v1692, 4294901760
      %v1694 = vsub.f32 %v1692, %v1693
      %v1695 = vand.u32 %v1694, 4294901760
      %1696 = vmatprep.subr.mxu0 %v1695
      %v1697 = vand.u32 %v478, 4294901760
      %v1698 = vsub.f32 %v478, %v1697
      %v1699 = vand.u32 %v1698, 4294901760
      %v1700 = vsub.f32 %v1698, %v1699
      %v1701 = vand.u32 %v1700, 4294901760
      %1702 = vmatpush1.msra.mxu0 %v1701
      %v1703 = vand.u32 %v482, 4294901760
      %v1704 = vsub.f32 %v482, %v1703
      %v1705 = vand.u32 %v1704, 4294901760
      %v1706 = vsub.f32 %v1704, %v1705
      %v1707 = vand.u32 %v1706, 4294901760
      %1708 = vmatprep.subr.mxu0 %v1707
      %v1709 = vand.u32 %v481, 4294901760
      %v1710 = vsub.f32 %v481, %v1709
      %v1711 = vand.u32 %v1710, 4294901760
      %v1712 = vsub.f32 %v1710, %v1711
      %v1713 = vand.u32 %v1712, 4294901760
      %1714 = vmatpush1.msra.mxu0 %v1713
      %v1715 = vand.u32 %v551, 4294901760
      %v1716 = vsub.f32 %v551, %v1715
      %v1717 = vand.u32 %v1716, 4294901760
      %v1718 = vsub.f32 %v1716, %v1717
      %v1719 = vand.u32 %v1718, 4294901760
      %1720 = vmatprep.subr.mxu0 %v1719
      %v1721 = vand.u32 %v550, 4294901760
      %v1722 = vsub.f32 %v550, %v1721
      %v1723 = vand.u32 %v1722, 4294901760
      %v1724 = vsub.f32 %v1722, %v1723
      %v1725 = vand.u32 %v1724, 4294901760
      %1726 = vmatpush1.msra.mxu0 %v1725
      %v1727 = vand.u32 %v554, 4294901760
      %v1728 = vsub.f32 %v554, %v1727
      %v1729 = vand.u32 %v1728, 4294901760
      %v1730 = vsub.f32 %v1728, %v1729
      %v1731 = vand.u32 %v1730, 4294901760
      %1732 = vmatprep.subr.mxu0 %v1731
      %v1733 = vand.u32 %v553, 4294901760
      %v1734 = vsub.f32 %v553, %v1733
      %v1735 = vand.u32 %v1734, 4294901760
      %v1736 = vsub.f32 %v1734, %v1735
      %v1737 = vand.u32 %v1736, 4294901760
      %1738 = vmatpush1.msra.mxu0 %v1737
      %v1739 = vand.u32 %v557, 4294901760
      %v1740 = vsub.f32 %v557, %v1739
      %v1741 = vand.u32 %v1740, 4294901760
      %v1742 = vsub.f32 %v1740, %v1741
      %v1743 = vand.u32 %v1742, 4294901760
      %1744 = vmatprep.subr.mxu0 %v1743
      %v1745 = vand.u32 %v556, 4294901760
      %v1746 = vsub.f32 %v556, %v1745
      %v1747 = vand.u32 %v1746, 4294901760
      %v1748 = vsub.f32 %v1746, %v1747
      %v1749 = vand.u32 %v1748, 4294901760
      %1750 = vmatpush1.msra.mxu0 %v1749
      %v1751 = vand.u32 %v560, 4294901760
      %v1752 = vsub.f32 %v560, %v1751
      %v1753 = vand.u32 %v1752, 4294901760
      %v1754 = vsub.f32 %v1752, %v1753
      %v1755 = vand.u32 %v1754, 4294901760
      %1756 = vmatprep.subr.mxu0 %v1755
      %v1757 = vand.u32 %v559, 4294901760
      %v1758 = vsub.f32 %v559, %v1757
      %v1759 = vand.u32 %v1758, 4294901760
      %v1760 = vsub.f32 %v1758, %v1759
      %v1761 = vand.u32 %v1760, 4294901760
      %1762 = vmatpush1.msra.mxu0 %v1761
      %v1763 = vand.u32 %v563, 4294901760
      %v1764 = vsub.f32 %v563, %v1763
      %v1765 = vand.u32 %v1764, 4294901760
      %v1766 = vsub.f32 %v1764, %v1765
      %v1767 = vand.u32 %v1766, 4294901760
      %1768 = vmatprep.subr.mxu0 %v1767
      %v1769 = vand.u32 %v562, 4294901760
      %v1770 = vsub.f32 %v562, %v1769
      %v1771 = vand.u32 %v1770, 4294901760
      %v1772 = vsub.f32 %v1770, %v1771
      %v1773 = vand.u32 %v1772, 4294901760
      %1774 = vmatpush1.msra.mxu0 %v1773
      %v1775 = vand.u32 %v622, 4294901760
      %v1776 = vsub.f32 %v622, %v1775
      %v1777 = vand.u32 %v1776, 4294901760
      %v1778 = vsub.f32 %v1776, %v1777
      %v1779 = vand.u32 %v1778, 4294901760
      %1780 = vmatprep.subr.mxu0 %v1779
      %v1781 = vand.u32 %v621, 4294901760
      %v1782 = vsub.f32 %v621, %v1781
      %v1783 = vand.u32 %v1782, 4294901760
      %v1784 = vsub.f32 %v1782, %v1783
      %v1785 = vand.u32 %v1784, 4294901760
      %1786 = vmatpush1.msra.mxu0 %v1785
      %v1787 = vand.u32 %v625, 4294901760
      %v1788 = vsub.f32 %v625, %v1787
      %v1789 = vand.u32 %v1788, 4294901760
      %v1790 = vsub.f32 %v1788, %v1789
      %v1791 = vand.u32 %v1790, 4294901760
      %1792 = vmatprep.subr.mxu0 %v1791
      %v1793 = vand.u32 %v624, 4294901760
      %v1794 = vsub.f32 %v624, %v1793
      %v1795 = vand.u32 %v1794, 4294901760
      %v1796 = vsub.f32 %v1794, %v1795
      %v1797 = vand.u32 %v1796, 4294901760
      %1798 = vmatpush1.msra.mxu0 %v1797
      %v1799 = vand.u32 %v628, 4294901760
      %v1800 = vsub.f32 %v628, %v1799
      %v1801 = vand.u32 %v1800, 4294901760
      %v1802 = vsub.f32 %v1800, %v1801
      %v1803 = vand.u32 %v1802, 4294901760
      %1804 = vmatprep.subr.mxu0 %v1803
      %v1805 = vand.u32 %v627, 4294901760
      %v1806 = vsub.f32 %v627, %v1805
      %v1807 = vand.u32 %v1806, 4294901760
      %v1808 = vsub.f32 %v1806, %v1807
      %v1809 = vand.u32 %v1808, 4294901760
      %1810 = vmatpush1.msra.mxu0 %v1809
      %v1811 = vand.u32 %v631, 4294901760
      %v1812 = vsub.f32 %v631, %v1811
      %v1813 = vand.u32 %v1812, 4294901760
      %v1814 = vsub.f32 %v1812, %v1813
      %v1815 = vand.u32 %v1814, 4294901760
      %1816 = vmatprep.subr.mxu0 %v1815
      %v1817 = vand.u32 %v630, 4294901760
      %v1818 = vsub.f32 %v630, %v1817
      %v1819 = vand.u32 %v1818, 4294901760
      %v1820 = vsub.f32 %v1818, %v1819
      %v1821 = vand.u32 %v1820, 4294901760
      %1822 = vmatpush1.msra.mxu0 %v1821
      %v1823 = vand.u32 %v634, 4294901760
      %v1824 = vsub.f32 %v634, %v1823
      %v1825 = vand.u32 %v1824, 4294901760
      %v1826 = vsub.f32 %v1824, %v1825
      %v1827 = vand.u32 %v1826, 4294901760
      %1828 = vmatprep.subr.mxu0 %v1827
      %v1829 = vand.u32 %v633, 4294901760
      %v1830 = vsub.f32 %v633, %v1829
      %v1831 = vand.u32 %v1830, 4294901760
      %v1832 = vsub.f32 %v1830, %v1831
      %v1833 = vand.u32 %v1832, 4294901760
      %1834 = vmatpush1.msra.mxu0 %v1833
      %v1835 = vand.u32 %v693, 4294901760
      %v1836 = vsub.f32 %v693, %v1835
      %v1837 = vand.u32 %v1836, 4294901760
      %v1838 = vsub.f32 %v1836, %v1837
      %v1839 = vand.u32 %v1838, 4294901760
      %1840 = vmatprep.subr.mxu0 %v1839
      %v1841 = vand.u32 %v692, 4294901760
      %v1842 = vsub.f32 %v692, %v1841
      %v1843 = vand.u32 %v1842, 4294901760
      %v1844 = vsub.f32 %v1842, %v1843
      %v1845 = vand.u32 %v1844, 4294901760
      %1846 = vmatpush1.msra.mxu0 %v1845
      %v1847 = vand.u32 %v696, 4294901760
      %v1848 = vsub.f32 %v696, %v1847
      %v1849 = vand.u32 %v1848, 4294901760
      %v1850 = vsub.f32 %v1848, %v1849
      %v1851 = vand.u32 %v1850, 4294901760
      %1852 = vmatprep.subr.mxu0 %v1851
      %v1853 = vand.u32 %v695, 4294901760
      %v1854 = vsub.f32 %v695, %v1853
      %v1855 = vand.u32 %v1854, 4294901760
      %v1856 = vsub.f32 %v1854, %v1855
      %v1857 = vand.u32 %v1856, 4294901760
      %1858 = vmatpush1.msra.mxu0 %v1857
      %v1859 = vand.u32 %v699, 4294901760
      %v1860 = vsub.f32 %v699, %v1859
      %v1861 = vand.u32 %v1860, 4294901760
      %v1862 = vsub.f32 %v1860, %v1861
      %v1863 = vand.u32 %v1862, 4294901760
      %1864 = vmatprep.subr.mxu0 %v1863
      %v1865 = vand.u32 %v698, 4294901760
      %v1866 = vsub.f32 %v698, %v1865
      %v1867 = vand.u32 %v1866, 4294901760
      %v1868 = vsub.f32 %v1866, %v1867
      %v1869 = vand.u32 %v1868, 4294901760
      %1870 = vmatpush1.msra.mxu0 %v1869
      %v1871 = vand.u32 %v702, 4294901760
      %v1872 = vsub.f32 %v702, %v1871
      %v1873 = vand.u32 %v1872, 4294901760
      %v1874 = vsub.f32 %v1872, %v1873
      %v1875 = vand.u32 %v1874, 4294901760
      %1876 = vmatprep.subr.mxu0 %v1875
      %v1877 = vand.u32 %v701, 4294901760
      %v1878 = vsub.f32 %v701, %v1877
      %v1879 = vand.u32 %v1878, 4294901760
      %v1880 = vsub.f32 %v1878, %v1879
      %v1881 = vand.u32 %v1880, 4294901760
      %1882 = vmatpush1.msra.mxu0 %v1881
      %v1883 = vand.u32 %v705, 4294901760
      %v1884 = vsub.f32 %v705, %v1883
      %v1885 = vand.u32 %v1884, 4294901760
      %v1886 = vsub.f32 %v1884, %v1885
      %v1887 = vand.u32 %v1886, 4294901760
      %1888 = vmatprep.subr.mxu0 %v1887
      %v1889 = vand.u32 %v704, 4294901760
      %v1890 = vsub.f32 %v704, %v1889
      %v1891 = vand.u32 %v1890, 4294901760
      %v1892 = vsub.f32 %v1890, %v1891
      %v1893 = vand.u32 %v1892, 4294901760
      %1894 = vmatpush1.msra.mxu0 %v1893
      %v1895 = vand.u32 %v764, 4294901760
      %v1896 = vsub.f32 %v764, %v1895
      %v1897 = vand.u32 %v1896, 4294901760
      %v1898 = vsub.f32 %v1896, %v1897
      %v1899 = vand.u32 %v1898, 4294901760
      %1900 = vmatprep.subr.mxu0 %v1899
      %v1901 = vand.u32 %v763, 4294901760
      %v1902 = vsub.f32 %v763, %v1901
      %v1903 = vand.u32 %v1902, 4294901760
      %v1904 = vsub.f32 %v1902, %v1903
      %v1905 = vand.u32 %v1904, 4294901760
      %1906 = vmatpush1.msra.mxu0 %v1905
      %v1907 = vand.u32 %v767, 4294901760
      %v1908 = vsub.f32 %v767, %v1907
      %v1909 = vand.u32 %v1908, 4294901760
      %v1910 = vsub.f32 %v1908, %v1909
      %v1911 = vand.u32 %v1910, 4294901760
      %1912 = vmatprep.subr.mxu0 %v1911
      %v1913 = vand.u32 %v766, 4294901760
      %v1914 = vsub.f32 %v766, %v1913
      %v1915 = vand.u32 %v1914, 4294901760
      %v1916 = vsub.f32 %v1914, %v1915
      %v1917 = vand.u32 %v1916, 4294901760
      %1918 = vmatpush1.msra.mxu0 %v1917
      %v1919 = vand.u32 %v770, 4294901760
      %v1920 = vsub.f32 %v770, %v1919
      %v1921 = vand.u32 %v1920, 4294901760
      %v1922 = vsub.f32 %v1920, %v1921
      %v1923 = vand.u32 %v1922, 4294901760
      %1924 = vmatprep.subr.mxu0 %v1923
      %v1925 = vand.u32 %v769, 4294901760
      %v1926 = vsub.f32 %v769, %v1925
      %v1927 = vand.u32 %v1926, 4294901760
      %v1928 = vsub.f32 %v1926, %v1927
      %v1929 = vand.u32 %v1928, 4294901760
      %1930 = vmatpush1.msra.mxu0 %v1929
      %v1931 = vand.u32 %v773, 4294901760
      %v1932 = vsub.f32 %v773, %v1931
      %v1933 = vand.u32 %v1932, 4294901760
      %v1934 = vsub.f32 %v1932, %v1933
      %v1935 = vand.u32 %v1934, 4294901760
      %1936 = vmatprep.subr.mxu0 %v1935
      %v1937 = vand.u32 %v772, 4294901760
      %v1938 = vsub.f32 %v772, %v1937
      %v1939 = vand.u32 %v1938, 4294901760
      %v1940 = vsub.f32 %v1938, %v1939
      %v1941 = vand.u32 %v1940, 4294901760
      %1942 = vmatpush1.msra.mxu0 %v1941
      %v1943 = vand.u32 %v776, 4294901760
      %v1944 = vsub.f32 %v776, %v1943
      %v1945 = vand.u32 %v1944, 4294901760
      %v1946 = vsub.f32 %v1944, %v1945
      %v1947 = vand.u32 %v1946, 4294901760
      %1948 = vmatprep.subr.mxu0 %v1947
      %v1949 = vand.u32 %v775, 4294901760
      %v1950 = vsub.f32 %v775, %v1949
      %v1951 = vand.u32 %v1950, 4294901760
      %v1952 = vsub.f32 %v1950, %v1951
      %v1953 = vand.u32 %v1952, 4294901760
      %1954 = vmatpush1.msra.mxu0 %v1953
      %v1955 = vand.u32 %v835, 4294901760
      %v1956 = vsub.f32 %v835, %v1955
      %v1957 = vand.u32 %v1956, 4294901760
      %v1958 = vsub.f32 %v1956, %v1957
      %v1959 = vand.u32 %v1958, 4294901760
      %1960 = vmatprep.subr.mxu0 %v1959
      %v1961 = vand.u32 %v834, 4294901760
      %v1962 = vsub.f32 %v834, %v1961
      %v1963 = vand.u32 %v1962, 4294901760
      %v1964 = vsub.f32 %v1962, %v1963
      %v1965 = vand.u32 %v1964, 4294901760
      %1966 = vmatpush1.msra.mxu0 %v1965
      %v1967 = vand.u32 %v838, 4294901760
      %v1968 = vsub.f32 %v838, %v1967
      %v1969 = vand.u32 %v1968, 4294901760
      %v1970 = vsub.f32 %v1968, %v1969
      %v1971 = vand.u32 %v1970, 4294901760
      %1972 = vmatprep.subr.mxu0 %v1971
      %v1973 = vand.u32 %v837, 4294901760
      %v1974 = vsub.f32 %v837, %v1973
      %v1975 = vand.u32 %v1974, 4294901760
      %v1976 = vsub.f32 %v1974, %v1975
      %v1977 = vand.u32 %v1976, 4294901760
      %1978 = vmatpush1.msra.mxu0 %v1977
      %v1979 = vand.u32 %v841, 4294901760
      %v1980 = vsub.f32 %v841, %v1979
      %v1981 = vand.u32 %v1980, 4294901760
      %v1982 = vsub.f32 %v1980, %v1981
      %v1983 = vand.u32 %v1982, 4294901760
      %1984 = vmatprep.subr.mxu0 %v1983
      %v1985 = vand.u32 %v840, 4294901760
      %v1986 = vsub.f32 %v840, %v1985
      %v1987 = vand.u32 %v1986, 4294901760
      %v1988 = vsub.f32 %v1986, %v1987
      %v1989 = vand.u32 %v1988, 4294901760
      %1990 = vmatpush1.msra.mxu0 %v1989
      %v1991 = vand.u32 %v844, 4294901760
      %v1992 = vsub.f32 %v844, %v1991
      %v1993 = vand.u32 %v1992, 4294901760
      %v1994 = vsub.f32 %v1992, %v1993
      %v1995 = vand.u32 %v1994, 4294901760
      %1996 = vmatprep.subr.mxu0 %v1995
      %v1997 = vand.u32 %v843, 4294901760
      %v1998 = vsub.f32 %v843, %v1997
      %v1999 = vand.u32 %v1998, 4294901760
      %v2000 = vsub.f32 %v1998, %v1999
      %v2001 = vand.u32 %v2000, 4294901760
      %2002 = vmatpush1.msra.mxu0 %v2001
      %v2003 = vand.u32 %v847, 4294901760
      %v2004 = vsub.f32 %v847, %v2003
      %v2005 = vand.u32 %v2004, 4294901760
      %v2006 = vsub.f32 %v2004, %v2005
      %v2007 = vand.u32 %v2006, 4294901760
      %2008 = vmatprep.subr.mxu0 %v2007
      %v2009 = vand.u32 %v846, 4294901760
      %v2010 = vsub.f32 %v846, %v2009
      %v2011 = vand.u32 %v2010, 4294901760
      %v2012 = vsub.f32 %v2010, %v2011
      %v2013 = vand.u32 %v2012, 4294901760
      %2014 = vmatpush1.msra.mxu0 %v2013
      %v2015 = vand.u32 %v906, 4294901760
      %v2016 = vsub.f32 %v906, %v2015
      %v2017 = vand.u32 %v2016, 4294901760
      %v2018 = vsub.f32 %v2016, %v2017
      %v2019 = vand.u32 %v2018, 4294901760
      %2020 = vmatprep.subr.mxu0 %v2019
      %v2021 = vand.u32 %v905, 4294901760
      %v2022 = vsub.f32 %v905, %v2021
      %v2023 = vand.u32 %v2022, 4294901760
      %v2024 = vsub.f32 %v2022, %v2023
      %v2025 = vand.u32 %v2024, 4294901760
      %2026 = vmatpush1.msra.mxu0 %v2025
      %v2027 = vand.u32 %v909, 4294901760
      %v2028 = vsub.f32 %v909, %v2027
      %v2029 = vand.u32 %v2028, 4294901760
      %v2030 = vsub.f32 %v2028, %v2029
      %v2031 = vand.u32 %v2030, 4294901760
      %2032 = vmatprep.subr.mxu0 %v2031
      %v2033 = vand.u32 %v908, 4294901760
      %v2034 = vsub.f32 %v908, %v2033
      %v2035 = vand.u32 %v2034, 4294901760
      %v2036 = vsub.f32 %v2034, %v2035
      %v2037 = vand.u32 %v2036, 4294901760
      %2038 = vmatpush1.msra.mxu0 %v2037
      %v2039 = vand.u32 %v1078, 4294901760
      %2040 = vmatprep.mubr.f32.mxu0 %v2039
      %v2041 = vand.u32 %v1077, 4294901760
      %2042 = vmatmul.mubr.f32.gmra.mrb[0].mxu0 %v2041
      %v2043 = vpop.f32.mrb[0].mxu0
      %v2044 = vadd.f32 %v1411, %v2043
      %v2045 = vpop.f32.mrb[0].mxu0
      %v2046 = vadd.f32 %v1413, %v2045
      %v2047 = vand.u32 %v1081, 4294901760
      %2048 = vmatprep.mubr.f32.mxu0 %v2047
      %v2049 = vand.u32 %v1080, 4294901760
      %2050 = vmatmul.mubr.f32.gmra.mrb[0].mxu0 %v2049
      %v2051 = vpop.f32.mrb[0].mxu0
      %v2052 = vadd.f32 %v1427, %v2051
      %v2053 = vpop.f32.mrb[0].mxu0
      %v2054 = vadd.f32 %v1429, %v2053
      %v2055 = vand.u32 %v1084, 4294901760
      %2056 = vmatprep.mubr.f32.mxu0 %v2055
      %v2057 = vand.u32 %v1083, 4294901760
      %2058 = vmatmul.mubr.f32.gmra.mrb[0].mxu0 %v2057
      %v2059 = vpop.f32.mrb[0].mxu0
      %v2060 = vadd.f32 %v1443, %v2059
      %v2061 = vpop.f32.mrb[0].mxu0
      %v2062 = vadd.f32 %v1445, %v2061
      %v2063 = vand.u32 %v1087, 4294901760
      %2064 = vmatprep.mubr.f32.mxu0 %v2063
      %v2065 = vand.u32 %v1086, 4294901760
      %2066 = vmatmul.mubr.f32.gmra.mrb[0].mxu0 %v2065
      %v2067 = vpop.f32.mrb[0].mxu0
      %v2068 = vadd.f32 %v1459, %v2067
      %v2069 = vpop.f32.mrb[0].mxu0
      %v2070 = vadd.f32 %v1461, %v2069
      %v2071 = vand.u32 %v1090, 4294901760
      %2072 = vmatprep.mubr.f32.mxu0 %v2071
      %v2073 = vand.u32 %v1089, 4294901760
      %2074 = vmatmul.mubr.f32.gmra.mrb[0].mxu0 %v2073
      %v2075 = vpop.f32.mrb[0].mxu0
      %v2076 = vadd.f32 %v1475, %v2075
      %v2077 = vpop.f32.mrb[0].mxu0
      %v2078 = vadd.f32 %v1477, %v2077
      %v2079 = vand.u32 %v1093, 4294901760
      %2080 = vmatprep.mubr.f32.mxu0 %v2079
      %v2081 = vand.u32 %v1092, 4294901760
      %2082 = vmatmul.mubr.f32.gmra.mrb[0].mxu0 %v2081
      %v2083 = vpop.f32.mrb[0].mxu0
      %v2084 = vadd.f32 %v1491, %v2083
      %v2085 = vpop.f32.mrb[0].mxu0
      %v2086 = vadd.f32 %v1493, %v2085
      %v2087 = vand.u32 %v1096, 4294901760
      %2088 = vmatprep.mubr.f32.mxu0 %v2087
      %v2089 = vand.u32 %v1095, 4294901760
      %2090 = vmatmul.mubr.f32.gmra.mrb[0].mxu0 %v2089
      %v2091 = vpop.f32.mrb[0].mxu0
      %v2092 = vadd.f32 %v1507, %v2091
      %v2093 = vpop.f32.mrb[0].mxu0
      %v2094 = vadd.f32 %v1509, %v2093
      %v2095 = vand.u32 %v1099, 4294901760
      %2096 = vmatprep.mubr.f32.mxu0 %v2095
      %v2097 = vand.u32 %v1098, 4294901760
      %2098 = vmatmul.mubr.f32.gmra.mrb[0].mxu0 %v2097
      %v2099 = vpop.f32.mrb[0].mxu0
      %v2100 = vadd.f32 %v1523, %v2099
      %v2101 = vpop.f32.mrb[0].mxu0
      %v2102 = vadd.f32 %v1525, %v2101
      %v2103 = vand.u32 %v1102, 4294901760
      %2104 = vmatprep.mubr.f32.mxu0 %v2103
      %v2105 = vand.u32 %v1101, 4294901760
      %2106 = vmatmul.mubr.f32.gmra.mrb[0].mxu0 %v2105
      %v2107 = vpop.f32.mrb[0].mxu0
      %v2108 = vadd.f32 %v1539, %v2107
      %v2109 = vpop.f32.mrb[0].mxu0
      %v2110 = vadd.f32 %v1541, %v2109
      %v2111 = vand.u32 %v1105, 4294901760
      %2112 = vmatprep.mubr.f32.mxu0 %v2111
      %v2113 = vand.u32 %v1104, 4294901760
      %2114 = vmatmul.mubr.f32.gmra.mrb[0].mxu0 %v2113
      %v2115 = vpop.f32.mrb[0].mxu0
      %v2116 = vadd.f32 %v1555, %v2115
      %v2117 = vpop.f32.mrb[0].mxu0
      %v2118 = vadd.f32 %v1557, %v2117
      %v2119 = vand.u32 %v1108, 4294901760
      %2120 = vmatprep.mubr.f32.mxu0 %v2119
      %v2121 = vand.u32 %v1107, 4294901760
      %2122 = vmatmul.mubr.f32.gmra.mrb[0].mxu0 %v2121
      %v2123 = vpop.f32.mrb[0].mxu0
      %v2124 = vadd.f32 %v1571, %v2123
      %v2125 = vpop.f32.mrb[0].mxu0
      %v2126 = vadd.f32 %v1573, %v2125
      %v2127 = vand.u32 %v1111, 4294901760
      %2128 = vmatprep.mubr.f32.mxu0 %v2127
      %v2129 = vand.u32 %v1110, 4294901760
      %2130 = vmatmul.mubr.f32.gmra.mrb[0].mxu0 %v2129
      %v2131 = vpop.f32.mrb[0].mxu0
      %v2132 = vadd.f32 %v1587, %v2131
      %v2133 = vpop.f32.mrb[0].mxu0
      %v2134 = vadd.f32 %v1589, %v2133
      %v2135 = vand.u32 %v1114, 4294901760
      %2136 = vmatprep.mubr.f32.mxu0 %v2135
      %v2137 = vand.u32 %v1113, 4294901760
      %2138 = vmatmul.mubr.f32.gmra.mrb[0].mxu0 %v2137
      %v2139 = vpop.f32.mrb[0].mxu0
      %v2140 = vadd.f32 %v1603, %v2139
      %v2141 = vpop.f32.mrb[0].mxu0
      %v2142 = vadd.f32 %v1605, %v2141
      %v2143 = vand.u32 %v1117, 4294901760
      %2144 = vmatprep.mubr.f32.mxu0 %v2143
      %v2145 = vand.u32 %v1116, 4294901760
      %2146 = vmatmul.mubr.f32.gmra.mrb[0].mxu0 %v2145
      %v2147 = vpop.f32.mrb[0].mxu0
      %v2148 = vadd.f32 %v1619, %v2147
      %v2149 = vpop.f32.mrb[0].mxu0
      %v2150 = vadd.f32 %v1621, %v2149
      %v2151 = vand.u32 %v1120, 4294901760
      %2152 = vmatprep.mubr.f32.mxu0 %v2151
      %v2153 = vand.u32 %v1119, 4294901760
      %2154 = vmatmul.mubr.f32.gmra.mrb[0].mxu0 %v2153
      %v2155 = vpop.f32.mrb[0].mxu0
      %v2156 = vadd.f32 %v1635, %v2155
      %v2157 = vpop.f32.mrb[0].mxu0
      %v2158 = vadd.f32 %v1637, %v2157
      %v2159 = vand.u32 %v1123, 4294901760
      %2160 = vmatprep.mubr.f32.mxu0 %v2159
      %v2161 = vand.u32 %v1122, 4294901760
      %2162 = vmatmul.mubr.f32.gmra.mrb[0].mxu0 %v2161
      %v2163 = vpop.f32.mrb[0].mxu0
      %v2164 = vadd.f32 %v1651, %v2163
      %v2165 = vpop.f32.mrb[0].mxu0
      %v2166 = vadd.f32 %v1653, %v2165
      %2167 = vdwg.mxu0
      %v2168 = vand.u32 %v470, 4294901760
      %v2169 = vsub.f32 %v470, %v2168
      %2170 = vmatprep.subr.mxu0 %v2169
      %v2171 = vand.u32 %v469, 4294901760
      %v2172 = vsub.f32 %v469, %v2171
      %2173 = vmatpush1.msra.mxu0 %v2172
      %v2174 = vand.u32 %v473, 4294901760
      %v2175 = vsub.f32 %v473, %v2174
      %2176 = vmatprep.subr.mxu0 %v2175
      %v2177 = vand.u32 %v472, 4294901760
      %v2178 = vsub.f32 %v472, %v2177
      %2179 = vmatpush1.msra.mxu0 %v2178
      %v2180 = vand.u32 %v476, 4294901760
      %v2181 = vsub.f32 %v476, %v2180
      %2182 = vmatprep.subr.mxu0 %v2181
      %v2183 = vand.u32 %v475, 4294901760
      %v2184 = vsub.f32 %v475, %v2183
      %2185 = vmatpush1.msra.mxu0 %v2184
      %v2186 = vand.u32 %v479, 4294901760
      %v2187 = vsub.f32 %v479, %v2186
      %2188 = vmatprep.subr.mxu0 %v2187
      %v2189 = vand.u32 %v478, 4294901760
      %v2190 = vsub.f32 %v478, %v2189
      %2191 = vmatpush1.msra.mxu0 %v2190
      %v2192 = vand.u32 %v482, 4294901760
      %v2193 = vsub.f32 %v482, %v2192
      %2194 = vmatprep.subr.mxu0 %v2193
      %v2195 = vand.u32 %v481, 4294901760
      %v2196 = vsub.f32 %v481, %v2195
      %2197 = vmatpush1.msra.mxu0 %v2196
      %v2198 = vand.u32 %v551, 4294901760
      %v2199 = vsub.f32 %v551, %v2198
      %2200 = vmatprep.subr.mxu0 %v2199
      %v2201 = vand.u32 %v550, 4294901760
      %v2202 = vsub.f32 %v550, %v2201
      %2203 = vmatpush1.msra.mxu0 %v2202
      %v2204 = vand.u32 %v554, 4294901760
      %v2205 = vsub.f32 %v554, %v2204
      %2206 = vmatprep.subr.mxu0 %v2205
      %v2207 = vand.u32 %v553, 4294901760
      %v2208 = vsub.f32 %v553, %v2207
      %2209 = vmatpush1.msra.mxu0 %v2208
      %v2210 = vand.u32 %v557, 4294901760
      %v2211 = vsub.f32 %v557, %v2210
      %2212 = vmatprep.subr.mxu0 %v2211
      %v2213 = vand.u32 %v556, 4294901760
      %v2214 = vsub.f32 %v556, %v2213
      %2215 = vmatpush1.msra.mxu0 %v2214
      %v2216 = vand.u32 %v560, 4294901760
      %v2217 = vsub.f32 %v560, %v2216
      %2218 = vmatprep.subr.mxu0 %v2217
      %v2219 = vand.u32 %v559, 4294901760
      %v2220 = vsub.f32 %v559, %v2219
      %2221 = vmatpush1.msra.mxu0 %v2220
      %v2222 = vand.u32 %v563, 4294901760
      %v2223 = vsub.f32 %v563, %v2222
      %2224 = vmatprep.subr.mxu0 %v2223
      %v2225 = vand.u32 %v562, 4294901760
      %v2226 = vsub.f32 %v562, %v2225
      %2227 = vmatpush1.msra.mxu0 %v2226
      %v2228 = vand.u32 %v622, 4294901760
      %v2229 = vsub.f32 %v622, %v2228
      %2230 = vmatprep.subr.mxu0 %v2229
      %v2231 = vand.u32 %v621, 4294901760
      %v2232 = vsub.f32 %v621, %v2231
      %2233 = vmatpush1.msra.mxu0 %v2232
      %v2234 = vand.u32 %v625, 4294901760
      %v2235 = vsub.f32 %v625, %v2234
      %2236 = vmatprep.subr.mxu0 %v2235
      %v2237 = vand.u32 %v624, 4294901760
      %v2238 = vsub.f32 %v624, %v2237
      %2239 = vmatpush1.msra.mxu0 %v2238
      %v2240 = vand.u32 %v628, 4294901760
      %v2241 = vsub.f32 %v628, %v2240
      %2242 = vmatprep.subr.mxu0 %v2241
      %v2243 = vand.u32 %v627, 4294901760
      %v2244 = vsub.f32 %v627, %v2243
      %2245 = vmatpush1.msra.mxu0 %v2244
      %v2246 = vand.u32 %v631, 4294901760
      %v2247 = vsub.f32 %v631, %v2246
      %2248 = vmatprep.subr.mxu0 %v2247
      %v2249 = vand.u32 %v630, 4294901760
      %v2250 = vsub.f32 %v630, %v2249
      %2251 = vmatpush1.msra.mxu0 %v2250
      %v2252 = vand.u32 %v634, 4294901760
      %v2253 = vsub.f32 %v634, %v2252
      %2254 = vmatprep.subr.mxu0 %v2253
      %v2255 = vand.u32 %v633, 4294901760
      %v2256 = vsub.f32 %v633, %v2255
      %2257 = vmatpush1.msra.mxu0 %v2256
      %v2258 = vand.u32 %v693, 4294901760
      %v2259 = vsub.f32 %v693, %v2258
      %2260 = vmatprep.subr.mxu0 %v2259
      %v2261 = vand.u32 %v692, 4294901760
      %v2262 = vsub.f32 %v692, %v2261
      %2263 = vmatpush1.msra.mxu0 %v2262
      %v2264 = vand.u32 %v696, 4294901760
      %v2265 = vsub.f32 %v696, %v2264
      %2266 = vmatprep.subr.mxu0 %v2265
      %v2267 = vand.u32 %v695, 4294901760
      %v2268 = vsub.f32 %v695, %v2267
      %2269 = vmatpush1.msra.mxu0 %v2268
      %v2270 = vand.u32 %v699, 4294901760
      %v2271 = vsub.f32 %v699, %v2270
      %2272 = vmatprep.subr.mxu0 %v2271
      %v2273 = vand.u32 %v698, 4294901760
      %v2274 = vsub.f32 %v698, %v2273
      %2275 = vmatpush1.msra.mxu0 %v2274
      %v2276 = vand.u32 %v702, 4294901760
      %v2277 = vsub.f32 %v702, %v2276
      %2278 = vmatprep.subr.mxu0 %v2277
      %v2279 = vand.u32 %v701, 4294901760
      %v2280 = vsub.f32 %v701, %v2279
      %2281 = vmatpush1.msra.mxu0 %v2280
      %v2282 = vand.u32 %v705, 4294901760
      %v2283 = vsub.f32 %v705, %v2282
      %2284 = vmatprep.subr.mxu0 %v2283
      %v2285 = vand.u32 %v704, 4294901760
      %v2286 = vsub.f32 %v704, %v2285
      %2287 = vmatpush1.msra.mxu0 %v2286
      %v2288 = vand.u32 %v764, 4294901760
      %v2289 = vsub.f32 %v764, %v2288
      %2290 = vmatprep.subr.mxu0 %v2289
      %v2291 = vand.u32 %v763, 4294901760
      %v2292 = vsub.f32 %v763, %v2291
      %2293 = vmatpush1.msra.mxu0 %v2292
      %v2294 = vand.u32 %v767, 4294901760
      %v2295 = vsub.f32 %v767, %v2294
      %2296 = vmatprep.subr.mxu0 %v2295
      %v2297 = vand.u32 %v766, 4294901760
      %v2298 = vsub.f32 %v766, %v2297
      %2299 = vmatpush1.msra.mxu0 %v2298
      %v2300 = vand.u32 %v770, 4294901760
      %v2301 = vsub.f32 %v770, %v2300
      %2302 = vmatprep.subr.mxu0 %v2301
      %v2303 = vand.u32 %v769, 4294901760
      %v2304 = vsub.f32 %v769, %v2303
      %2305 = vmatpush1.msra.mxu0 %v2304
      %v2306 = vand.u32 %v773, 4294901760
      %v2307 = vsub.f32 %v773, %v2306
      %2308 = vmatprep.subr.mxu0 %v2307
      %v2309 = vand.u32 %v772, 4294901760
      %v2310 = vsub.f32 %v772, %v2309
      %2311 = vmatpush1.msra.mxu0 %v2310
      %v2312 = vand.u32 %v776, 4294901760
      %v2313 = vsub.f32 %v776, %v2312
      %2314 = vmatprep.subr.mxu0 %v2313
      %v2315 = vand.u32 %v775, 4294901760
      %v2316 = vsub.f32 %v775, %v2315
      %2317 = vmatpush1.msra.mxu0 %v2316
      %v2318 = vand.u32 %v835, 4294901760
      %v2319 = vsub.f32 %v835, %v2318
      %2320 = vmatprep.subr.mxu0 %v2319
      %v2321 = vand.u32 %v834, 4294901760
      %v2322 = vsub.f32 %v834, %v2321
      %2323 = vmatpush1.msra.mxu0 %v2322
      %v2324 = vand.u32 %v838, 4294901760
      %v2325 = vsub.f32 %v838, %v2324
      %2326 = vmatprep.subr.mxu0 %v2325
      %v2327 = vand.u32 %v837, 4294901760
      %v2328 = vsub.f32 %v837, %v2327
      %2329 = vmatpush1.msra.mxu0 %v2328
      %v2330 = vand.u32 %v841, 4294901760
      %v2331 = vsub.f32 %v841, %v2330
      %2332 = vmatprep.subr.mxu0 %v2331
      %v2333 = vand.u32 %v840, 4294901760
      %v2334 = vsub.f32 %v840, %v2333
      %2335 = vmatpush1.msra.mxu0 %v2334
      %v2336 = vand.u32 %v844, 4294901760
      %v2337 = vsub.f32 %v844, %v2336
      %2338 = vmatprep.subr.mxu0 %v2337
      %v2339 = vand.u32 %v843, 4294901760
      %v2340 = vsub.f32 %v843, %v2339
      %2341 = vmatpush1.msra.mxu0 %v2340
      %v2342 = vand.u32 %v847, 4294901760
      %v2343 = vsub.f32 %v847, %v2342
      %2344 = vmatprep.subr.mxu0 %v2343
      %v2345 = vand.u32 %v846, 4294901760
      %v2346 = vsub.f32 %v846, %v2345
      %2347 = vmatpush1.msra.mxu0 %v2346
      %v2348 = vand.u32 %v906, 4294901760
      %v2349 = vsub.f32 %v906, %v2348
      %2350 = vmatprep.subr.mxu0 %v2349
      %v2351 = vand.u32 %v905, 4294901760
      %v2352 = vsub.f32 %v905, %v2351
      %2353 = vmatpush1.msra.mxu0 %v2352
      %v2354 = vand.u32 %v909, 4294901760
      %v2355 = vsub.f32 %v909, %v2354
      %2356 = vmatprep.subr.mxu0 %v2355
      %v2357 = vand.u32 %v908, 4294901760
      %v2358 = vsub.f32 %v908, %v2357
      %2359 = vmatpush1.msra.mxu0 %v2358
      %v2360 = vand.u32 %v1078, 4294901760
      %v2361 = vsub.f32 %v1078, %v2360
      %2362 = vmatprep.mubr.f32.mxu0 %v2361
      %v2363 = vand.u32 %v1077, 4294901760
      %v2364 = vsub.f32 %v1077, %v2363
      %2365 = vmatmul.mubr.f32.gmra.mrb[0].mxu0 %v2364
      %v2366 = vpop.f32.mrb[0].mxu0
      %v2367 = vadd.f32 %v2044, %v2366
      %v2368 = vpop.f32.mrb[0].mxu0
      %v2369 = vadd.f32 %v2046, %v2368
      %v2370 = vand.u32 %v1081, 4294901760
      %v2371 = vsub.f32 %v1081, %v2370
      %2372 = vmatprep.mubr.f32.mxu0 %v2371
      %v2373 = vand.u32 %v1080, 4294901760
      %v2374 = vsub.f32 %v1080, %v2373
      %2375 = vmatmul.mubr.f32.gmra.mrb[0].mxu0 %v2374
      %v2376 = vpop.f32.mrb[0].mxu0
      %v2377 = vadd.f32 %v2052, %v2376
      %v2378 = vpop.f32.mrb[0].mxu0
      %v2379 = vadd.f32 %v2054, %v2378
      %v2380 = vand.u32 %v1084, 4294901760
      %v2381 = vsub.f32 %v1084, %v2380
      %2382 = vmatprep.mubr.f32.mxu0 %v2381
      %v2383 = vand.u32 %v1083, 4294901760
      %v2384 = vsub.f32 %v1083, %v2383
      %2385 = vmatmul.mubr.f32.gmra.mrb[0].mxu0 %v2384
      %v2386 = vpop.f32.mrb[0].mxu0
      %v2387 = vadd.f32 %v2060, %v2386
      %v2388 = vpop.f32.mrb[0].mxu0
      %v2389 = vadd.f32 %v2062, %v2388
      %v2390 = vand.u32 %v1087, 4294901760
      %v2391 = vsub.f32 %v1087, %v2390
      %2392 = vmatprep.mubr.f32.mxu0 %v2391
      %v2393 = vand.u32 %v1086, 4294901760
      %v2394 = vsub.f32 %v1086, %v2393
      %2395 = vmatmul.mubr.f32.gmra.mrb[0].mxu0 %v2394
      %v2396 = vpop.f32.mrb[0].mxu0
      %v2397 = vadd.f32 %v2068, %v2396
      %v2398 = vpop.f32.mrb[0].mxu0
      %v2399 = vadd.f32 %v2070, %v2398
      %v2400 = vand.u32 %v1090, 4294901760
      %v2401 = vsub.f32 %v1090, %v2400
      %2402 = vmatprep.mubr.f32.mxu0 %v2401
      %v2403 = vand.u32 %v1089, 4294901760
      %v2404 = vsub.f32 %v1089, %v2403
      %2405 = vmatmul.mubr.f32.gmra.mrb[0].mxu0 %v2404
      %v2406 = vpop.f32.mrb[0].mxu0
      %v2407 = vadd.f32 %v2076, %v2406
      %v2408 = vpop.f32.mrb[0].mxu0
      %v2409 = vadd.f32 %v2078, %v2408
      %v2410 = vand.u32 %v1093, 4294901760
      %v2411 = vsub.f32 %v1093, %v2410
      %2412 = vmatprep.mubr.f32.mxu0 %v2411
      %v2413 = vand.u32 %v1092, 4294901760
      %v2414 = vsub.f32 %v1092, %v2413
      %2415 = vmatmul.mubr.f32.gmra.mrb[0].mxu0 %v2414
      %v2416 = vpop.f32.mrb[0].mxu0
      %v2417 = vadd.f32 %v2084, %v2416
      %v2418 = vpop.f32.mrb[0].mxu0
      %v2419 = vadd.f32 %v2086, %v2418
      %v2420 = vand.u32 %v1096, 4294901760
      %v2421 = vsub.f32 %v1096, %v2420
      %2422 = vmatprep.mubr.f32.mxu0 %v2421
      %v2423 = vand.u32 %v1095, 4294901760
      %v2424 = vsub.f32 %v1095, %v2423
      %2425 = vmatmul.mubr.f32.gmra.mrb[0].mxu0 %v2424
      %v2426 = vpop.f32.mrb[0].mxu0
      %v2427 = vadd.f32 %v2092, %v2426
      %v2428 = vpop.f32.mrb[0].mxu0
      %v2429 = vadd.f32 %v2094, %v2428
      %v2430 = vand.u32 %v1099, 4294901760
      %v2431 = vsub.f32 %v1099, %v2430
      %2432 = vmatprep.mubr.f32.mxu0 %v2431
      %v2433 = vand.u32 %v1098, 4294901760
      %v2434 = vsub.f32 %v1098, %v2433
      %2435 = vmatmul.mubr.f32.gmra.mrb[0].mxu0 %v2434
      %v2436 = vpop.f32.mrb[0].mxu0
      %v2437 = vadd.f32 %v2100, %v2436
      %v2438 = vpop.f32.mrb[0].mxu0
      %v2439 = vadd.f32 %v2102, %v2438
      %v2440 = vand.u32 %v1102, 4294901760
      %v2441 = vsub.f32 %v1102, %v2440
      %2442 = vmatprep.mubr.f32.mxu0 %v2441
      %v2443 = vand.u32 %v1101, 4294901760
      %v2444 = vsub.f32 %v1101, %v2443
      %2445 = vmatmul.mubr.f32.gmra.mrb[0].mxu0 %v2444
      %v2446 = vpop.f32.mrb[0].mxu0
      %v2447 = vadd.f32 %v2108, %v2446
      %v2448 = vpop.f32.mrb[0].mxu0
      %v2449 = vadd.f32 %v2110, %v2448
      %v2450 = vand.u32 %v1105, 4294901760
      %v2451 = vsub.f32 %v1105, %v2450
      %2452 = vmatprep.mubr.f32.mxu0 %v2451
      %v2453 = vand.u32 %v1104, 4294901760
      %v2454 = vsub.f32 %v1104, %v2453
      %2455 = vmatmul.mubr.f32.gmra.mrb[0].mxu0 %v2454
      %v2456 = vpop.f32.mrb[0].mxu0
      %v2457 = vadd.f32 %v2116, %v2456
      %v2458 = vpop.f32.mrb[0].mxu0
      %v2459 = vadd.f32 %v2118, %v2458
      %v2460 = vand.u32 %v1108, 4294901760
      %v2461 = vsub.f32 %v1108, %v2460
      %2462 = vmatprep.mubr.f32.mxu0 %v2461
      %v2463 = vand.u32 %v1107, 4294901760
      %v2464 = vsub.f32 %v1107, %v2463
      %2465 = vmatmul.mubr.f32.gmra.mrb[0].mxu0 %v2464
      %v2466 = vpop.f32.mrb[0].mxu0
      %v2467 = vadd.f32 %v2124, %v2466
      %v2468 = vpop.f32.mrb[0].mxu0
      %v2469 = vadd.f32 %v2126, %v2468
      %v2470 = vand.u32 %v1111, 4294901760
      %v2471 = vsub.f32 %v1111, %v2470
      %2472 = vmatprep.mubr.f32.mxu0 %v2471
      %v2473 = vand.u32 %v1110, 4294901760
      %v2474 = vsub.f32 %v1110, %v2473
      %2475 = vmatmul.mubr.f32.gmra.mrb[0].mxu0 %v2474
      %v2476 = vpop.f32.mrb[0].mxu0
      %v2477 = vadd.f32 %v2132, %v2476
      %v2478 = vpop.f32.mrb[0].mxu0
      %v2479 = vadd.f32 %v2134, %v2478
      %v2480 = vand.u32 %v1114, 4294901760
      %v2481 = vsub.f32 %v1114, %v2480
      %2482 = vmatprep.mubr.f32.mxu0 %v2481
      %v2483 = vand.u32 %v1113, 4294901760
      %v2484 = vsub.f32 %v1113, %v2483
      %2485 = vmatmul.mubr.f32.gmra.mrb[0].mxu0 %v2484
      %v2486 = vpop.f32.mrb[0].mxu0
      %v2487 = vadd.f32 %v2140, %v2486
      %v2488 = vpop.f32.mrb[0].mxu0
      %v2489 = vadd.f32 %v2142, %v2488
      %v2490 = vand.u32 %v1117, 4294901760
      %v2491 = vsub.f32 %v1117, %v2490
      %2492 = vmatprep.mubr.f32.mxu0 %v2491
      %v2493 = vand.u32 %v1116, 4294901760
      %v2494 = vsub.f32 %v1116, %v2493
      %2495 = vmatmul.mubr.f32.gmra.mrb[0].mxu0 %v2494
      %v2496 = vpop.f32.mrb[0].mxu0
      %v2497 = vadd.f32 %v2148, %v2496
      %v2498 = vpop.f32.mrb[0].mxu0
      %v2499 = vadd.f32 %v2150, %v2498
      %v2500 = vand.u32 %v1120, 4294901760
      %v2501 = vsub.f32 %v1120, %v2500
      %2502 = vmatprep.mubr.f32.mxu0 %v2501
      %v2503 = vand.u32 %v1119, 4294901760
      %v2504 = vsub.f32 %v1119, %v2503
      %2505 = vmatmul.mubr.f32.gmra.mrb[0].mxu0 %v2504
      %v2506 = vpop.f32.mrb[0].mxu0
      %v2507 = vadd.f32 %v2156, %v2506
      %v2508 = vpop.f32.mrb[0].mxu0
      %v2509 = vadd.f32 %v2158, %v2508
      %v2510 = vand.u32 %v1123, 4294901760
      %v2511 = vsub.f32 %v1123, %v2510
      %2512 = vmatprep.mubr.f32.mxu0 %v2511
      %v2513 = vand.u32 %v1122, 4294901760
      %v2514 = vsub.f32 %v1122, %v2513
      %2515 = vmatmul.mubr.f32.gmra.mrb[0].mxu0 %v2514
      %v2516 = vpop.f32.mrb[0].mxu0
      %v2517 = vadd.f32 %v2164, %v2516
      %v2518 = vpop.f32.mrb[0].mxu0
      %v2519 = vadd.f32 %v2166, %v2518
      %2520 = vdwg.mxu0
      %v2521 = vand.u32 %v470, 4294901760
      %2522 = vmatprep.subr.mxu0 %v2521
      %v2523 = vand.u32 %v469, 4294901760
      %2524 = vmatpush1.msra.mxu0 %v2523
      %v2525 = vand.u32 %v473, 4294901760
      %2526 = vmatprep.subr.mxu0 %v2525
      %v2527 = vand.u32 %v472, 4294901760
      %2528 = vmatpush1.msra.mxu0 %v2527
      %v2529 = vand.u32 %v476, 4294901760
      %2530 = vmatprep.subr.mxu0 %v2529
      %v2531 = vand.u32 %v475, 4294901760
      %2532 = vmatpush1.msra.mxu0 %v2531
      %v2533 = vand.u32 %v479, 4294901760
      %2534 = vmatprep.subr.mxu0 %v2533
      %v2535 = vand.u32 %v478, 4294901760
      %2536 = vmatpush1.msra.mxu0 %v2535
      %v2537 = vand.u32 %v482, 4294901760
      %2538 = vmatprep.subr.mxu0 %v2537
      %v2539 = vand.u32 %v481, 4294901760
      %2540 = vmatpush1.msra.mxu0 %v2539
      %v2541 = vand.u32 %v551, 4294901760
      %2542 = vmatprep.subr.mxu0 %v2541
      %v2543 = vand.u32 %v550, 4294901760
      %2544 = vmatpush1.msra.mxu0 %v2543
      %v2545 = vand.u32 %v554, 4294901760
      %2546 = vmatprep.subr.mxu0 %v2545
      %v2547 = vand.u32 %v553, 4294901760
      %2548 = vmatpush1.msra.mxu0 %v2547
      %v2549 = vand.u32 %v557, 4294901760
      %2550 = vmatprep.subr.mxu0 %v2549
      %v2551 = vand.u32 %v556, 4294901760
      %2552 = vmatpush1.msra.mxu0 %v2551
      %v2553 = vand.u32 %v560, 4294901760
      %2554 = vmatprep.subr.mxu0 %v2553
      %v2555 = vand.u32 %v559, 4294901760
      %2556 = vmatpush1.msra.mxu0 %v2555
      %v2557 = vand.u32 %v563, 4294901760
      %2558 = vmatprep.subr.mxu0 %v2557
      %v2559 = vand.u32 %v562, 4294901760
      %2560 = vmatpush1.msra.mxu0 %v2559
      %v2561 = vand.u32 %v622, 4294901760
      %2562 = vmatprep.subr.mxu0 %v2561
      %v2563 = vand.u32 %v621, 4294901760
      %2564 = vmatpush1.msra.mxu0 %v2563
      %v2565 = vand.u32 %v625, 4294901760
      %2566 = vmatprep.subr.mxu0 %v2565
      %v2567 = vand.u32 %v624, 4294901760
      %2568 = vmatpush1.msra.mxu0 %v2567
      %v2569 = vand.u32 %v628, 4294901760
      %2570 = vmatprep.subr.mxu0 %v2569
      %v2571 = vand.u32 %v627, 4294901760
      %2572 = vmatpush1.msra.mxu0 %v2571
      %v2573 = vand.u32 %v631, 4294901760
      %2574 = vmatprep.subr.mxu0 %v2573
      %v2575 = vand.u32 %v630, 4294901760
      %2576 = vmatpush1.msra.mxu0 %v2575
      %v2577 = vand.u32 %v634, 4294901760
      %2578 = vmatprep.subr.mxu0 %v2577
      %v2579 = vand.u32 %v633, 4294901760
      %2580 = vmatpush1.msra.mxu0 %v2579
      %v2581 = vand.u32 %v693, 4294901760
      %2582 = vmatprep.subr.mxu0 %v2581
      %v2583 = vand.u32 %v692, 4294901760
      %2584 = vmatpush1.msra.mxu0 %v2583
      %v2585 = vand.u32 %v696, 4294901760
      %2586 = vmatprep.subr.mxu0 %v2585
      %v2587 = vand.u32 %v695, 4294901760
      %2588 = vmatpush1.msra.mxu0 %v2587
      %v2589 = vand.u32 %v699, 4294901760
      %2590 = vmatprep.subr.mxu0 %v2589
      %v2591 = vand.u32 %v698, 4294901760
      %2592 = vmatpush1.msra.mxu0 %v2591
      %v2593 = vand.u32 %v702, 4294901760
      %2594 = vmatprep.subr.mxu0 %v2593
      %v2595 = vand.u32 %v701, 4294901760
      %2596 = vmatpush1.msra.mxu0 %v2595
      %v2597 = vand.u32 %v705, 4294901760
      %2598 = vmatprep.subr.mxu0 %v2597
      %v2599 = vand.u32 %v704, 4294901760
      %2600 = vmatpush1.msra.mxu0 %v2599
      %v2601 = vand.u32 %v764, 4294901760
      %2602 = vmatprep.subr.mxu0 %v2601
      %v2603 = vand.u32 %v763, 4294901760
      %2604 = vmatpush1.msra.mxu0 %v2603
      %v2605 = vand.u32 %v767, 4294901760
      %2606 = vmatprep.subr.mxu0 %v2605
      %v2607 = vand.u32 %v766, 4294901760
      %2608 = vmatpush1.msra.mxu0 %v2607
      %v2609 = vand.u32 %v770, 4294901760
      %2610 = vmatprep.subr.mxu0 %v2609
      %v2611 = vand.u32 %v769, 4294901760
      %2612 = vmatpush1.msra.mxu0 %v2611
      %v2613 = vand.u32 %v773, 4294901760
      %2614 = vmatprep.subr.mxu0 %v2613
      %v2615 = vand.u32 %v772, 4294901760
      %2616 = vmatpush1.msra.mxu0 %v2615
      %v2617 = vand.u32 %v776, 4294901760
      %2618 = vmatprep.subr.mxu0 %v2617
      %v2619 = vand.u32 %v775, 4294901760
      %2620 = vmatpush1.msra.mxu0 %v2619
      %v2621 = vand.u32 %v835, 4294901760
      %2622 = vmatprep.subr.mxu0 %v2621
      %v2623 = vand.u32 %v834, 4294901760
      %2624 = vmatpush1.msra.mxu0 %v2623
      %v2625 = vand.u32 %v838, 4294901760
      %2626 = vmatprep.subr.mxu0 %v2625
      %v2627 = vand.u32 %v837, 4294901760
      %2628 = vmatpush1.msra.mxu0 %v2627
      %v2629 = vand.u32 %v841, 4294901760
      %2630 = vmatprep.subr.mxu0 %v2629
      %v2631 = vand.u32 %v840, 4294901760
      %2632 = vmatpush1.msra.mxu0 %v2631
      %v2633 = vand.u32 %v844, 4294901760
      %2634 = vmatprep.subr.mxu0 %v2633
      %v2635 = vand.u32 %v843, 4294901760
      %2636 = vmatpush1.msra.mxu0 %v2635
      %v2637 = vand.u32 %v847, 4294901760
      %2638 = vmatprep.subr.mxu0 %v2637
      %v2639 = vand.u32 %v846, 4294901760
      %2640 = vmatpush1.msra.mxu0 %v2639
      %v2641 = vand.u32 %v906, 4294901760
      %2642 = vmatprep.subr.mxu0 %v2641
      %v2643 = vand.u32 %v905, 4294901760
      %2644 = vmatpush1.msra.mxu0 %v2643
      %v2645 = vand.u32 %v909, 4294901760
      %2646 = vmatprep.subr.mxu0 %v2645
      %v2647 = vand.u32 %v908, 4294901760
      %2648 = vmatpush1.msra.mxu0 %v2647
      %v2649 = vand.u32 %v1078, 4294901760
      %v2650 = vsub.f32 %v1078, %v2649
      %v2651 = vand.u32 %v2650, 4294901760
      %2652 = vmatprep.mubr.f32.mxu0 %v2651
      %v2653 = vand.u32 %v1077, 4294901760
      %v2654 = vsub.f32 %v1077, %v2653
      %v2655 = vand.u32 %v2654, 4294901760
      %2656 = vmatmul.mubr.f32.gmra.mrb[0].mxu0 %v2655
      %v2657 = vpop.f32.mrb[0].mxu0
      %v2658 = vadd.f32 %v2367, %v2657
      %v2659 = vpop.f32.mrb[0].mxu0
      %v2660 = vadd.f32 %v2369, %v2659
      %v2661 = vand.u32 %v1081, 4294901760
      %v2662 = vsub.f32 %v1081, %v2661
      %v2663 = vand.u32 %v2662, 4294901760
      %2664 = vmatprep.mubr.f32.mxu0 %v2663
      %v2665 = vand.u32 %v1080, 4294901760
      %v2666 = vsub.f32 %v1080, %v2665
      %v2667 = vand.u32 %v2666, 4294901760
      %2668 = vmatmul.mubr.f32.gmra.mrb[0].mxu0 %v2667
      %v2669 = vpop.f32.mrb[0].mxu0
      %v2670 = vadd.f32 %v2377, %v2669
      %v2671 = vpop.f32.mrb[0].mxu0
      %v2672 = vadd.f32 %v2379, %v2671
      %v2673 = vand.u32 %v1084, 4294901760
      %v2674 = vsub.f32 %v1084, %v2673
      %v2675 = vand.u32 %v2674, 4294901760
      %2676 = vmatprep.mubr.f32.mxu0 %v2675
      %v2677 = vand.u32 %v1083, 4294901760
      %v2678 = vsub.f32 %v1083, %v2677
      %v2679 = vand.u32 %v2678, 4294901760
      %2680 = vmatmul.mubr.f32.gmra.mrb[0].mxu0 %v2679
      %v2681 = vpop.f32.mrb[0].mxu0
      %v2682 = vadd.f32 %v2387, %v2681
      %v2683 = vpop.f32.mrb[0].mxu0
      %v2684 = vadd.f32 %v2389, %v2683
      %v2685 = vand.u32 %v1087, 4294901760
      %v2686 = vsub.f32 %v1087, %v2685
      %v2687 = vand.u32 %v2686, 4294901760
      %2688 = vmatprep.mubr.f32.mxu0 %v2687
      %v2689 = vand.u32 %v1086, 4294901760
      %v2690 = vsub.f32 %v1086, %v2689
      %v2691 = vand.u32 %v2690, 4294901760
      %2692 = vmatmul.mubr.f32.gmra.mrb[0].mxu0 %v2691
      %v2693 = vpop.f32.mrb[0].mxu0
      %v2694 = vadd.f32 %v2397, %v2693
      %v2695 = vpop.f32.mrb[0].mxu0
      %v2696 = vadd.f32 %v2399, %v2695
      %v2697 = vand.u32 %v1090, 4294901760
      %v2698 = vsub.f32 %v1090, %v2697
      %v2699 = vand.u32 %v2698, 4294901760
      %2700 = vmatprep.mubr.f32.mxu0 %v2699
      %v2701 = vand.u32 %v1089, 4294901760
      %v2702 = vsub.f32 %v1089, %v2701
      %v2703 = vand.u32 %v2702, 4294901760
      %2704 = vmatmul.mubr.f32.gmra.mrb[0].mxu0 %v2703
      %v2705 = vpop.f32.mrb[0].mxu0
      %v2706 = vadd.f32 %v2407, %v2705
      %v2707 = vpop.f32.mrb[0].mxu0
      %v2708 = vadd.f32 %v2409, %v2707
      %v2709 = vand.u32 %v1093, 4294901760
      %v2710 = vsub.f32 %v1093, %v2709
      %v2711 = vand.u32 %v2710, 4294901760
      %2712 = vmatprep.mubr.f32.mxu0 %v2711
      %v2713 = vand.u32 %v1092, 4294901760
      %v2714 = vsub.f32 %v1092, %v2713
      %v2715 = vand.u32 %v2714, 4294901760
      %2716 = vmatmul.mubr.f32.gmra.mrb[0].mxu0 %v2715
      %v2717 = vpop.f32.mrb[0].mxu0
      %v2718 = vadd.f32 %v2417, %v2717
      %v2719 = vpop.f32.mrb[0].mxu0
      %v2720 = vadd.f32 %v2419, %v2719
      %v2721 = vand.u32 %v1096, 4294901760
      %v2722 = vsub.f32 %v1096, %v2721
      %v2723 = vand.u32 %v2722, 4294901760
      %2724 = vmatprep.mubr.f32.mxu0 %v2723
      %v2725 = vand.u32 %v1095, 4294901760
      %v2726 = vsub.f32 %v1095, %v2725
      %v2727 = vand.u32 %v2726, 4294901760
      %2728 = vmatmul.mubr.f32.gmra.mrb[0].mxu0 %v2727
      %v2729 = vpop.f32.mrb[0].mxu0
      %v2730 = vadd.f32 %v2427, %v2729
      %v2731 = vpop.f32.mrb[0].mxu0
      %v2732 = vadd.f32 %v2429, %v2731
      %v2733 = vand.u32 %v1099, 4294901760
      %v2734 = vsub.f32 %v1099, %v2733
      %v2735 = vand.u32 %v2734, 4294901760
      %2736 = vmatprep.mubr.f32.mxu0 %v2735
      %v2737 = vand.u32 %v1098, 4294901760
      %v2738 = vsub.f32 %v1098, %v2737
      %v2739 = vand.u32 %v2738, 4294901760
      %2740 = vmatmul.mubr.f32.gmra.mrb[0].mxu0 %v2739
      %v2741 = vpop.f32.mrb[0].mxu0
      %v2742 = vadd.f32 %v2437, %v2741
      %v2743 = vpop.f32.mrb[0].mxu0
      %v2744 = vadd.f32 %v2439, %v2743
      %v2745 = vand.u32 %v1102, 4294901760
      %v2746 = vsub.f32 %v1102, %v2745
      %v2747 = vand.u32 %v2746, 4294901760
      %2748 = vmatprep.mubr.f32.mxu0 %v2747
      %v2749 = vand.u32 %v1101, 4294901760
      %v2750 = vsub.f32 %v1101, %v2749
      %v2751 = vand.u32 %v2750, 4294901760
      %2752 = vmatmul.mubr.f32.gmra.mrb[0].mxu0 %v2751
      %v2753 = vpop.f32.mrb[0].mxu0
      %v2754 = vadd.f32 %v2447, %v2753
      %v2755 = vpop.f32.mrb[0].mxu0
      %v2756 = vadd.f32 %v2449, %v2755
      %v2757 = vand.u32 %v1105, 4294901760
      %v2758 = vsub.f32 %v1105, %v2757
      %v2759 = vand.u32 %v2758, 4294901760
      %2760 = vmatprep.mubr.f32.mxu0 %v2759
      %v2761 = vand.u32 %v1104, 4294901760
      %v2762 = vsub.f32 %v1104, %v2761
      %v2763 = vand.u32 %v2762, 4294901760
      %2764 = vmatmul.mubr.f32.gmra.mrb[0].mxu0 %v2763
      %v2765 = vpop.f32.mrb[0].mxu0
      %v2766 = vadd.f32 %v2457, %v2765
      %v2767 = vpop.f32.mrb[0].mxu0
      %v2768 = vadd.f32 %v2459, %v2767
      %v2769 = vand.u32 %v1108, 4294901760
      %v2770 = vsub.f32 %v1108, %v2769
      %v2771 = vand.u32 %v2770, 4294901760
      %2772 = vmatprep.mubr.f32.mxu0 %v2771
      %v2773 = vand.u32 %v1107, 4294901760
      %v2774 = vsub.f32 %v1107, %v2773
      %v2775 = vand.u32 %v2774, 4294901760
      %2776 = vmatmul.mubr.f32.gmra.mrb[0].mxu0 %v2775
      %v2777 = vpop.f32.mrb[0].mxu0
      %v2778 = vadd.f32 %v2467, %v2777
      %v2779 = vpop.f32.mrb[0].mxu0
      %v2780 = vadd.f32 %v2469, %v2779
      %v2781 = vand.u32 %v1111, 4294901760
      %v2782 = vsub.f32 %v1111, %v2781
      %v2783 = vand.u32 %v2782, 4294901760
      %2784 = vmatprep.mubr.f32.mxu0 %v2783
      %v2785 = vand.u32 %v1110, 4294901760
      %v2786 = vsub.f32 %v1110, %v2785
      %v2787 = vand.u32 %v2786, 4294901760
      %2788 = vmatmul.mubr.f32.gmra.mrb[0].mxu0 %v2787
      %v2789 = vpop.f32.mrb[0].mxu0
      %v2790 = vadd.f32 %v2477, %v2789
      %v2791 = vpop.f32.mrb[0].mxu0
      %v2792 = vadd.f32 %v2479, %v2791
      %v2793 = vand.u32 %v1114, 4294901760
      %v2794 = vsub.f32 %v1114, %v2793
      %v2795 = vand.u32 %v2794, 4294901760
      %2796 = vmatprep.mubr.f32.mxu0 %v2795
      %v2797 = vand.u32 %v1113, 4294901760
      %v2798 = vsub.f32 %v1113, %v2797
      %v2799 = vand.u32 %v2798, 4294901760
      %2800 = vmatmul.mubr.f32.gmra.mrb[0].mxu0 %v2799
      %v2801 = vpop.f32.mrb[0].mxu0
      %v2802 = vadd.f32 %v2487, %v2801
      %v2803 = vpop.f32.mrb[0].mxu0
      %v2804 = vadd.f32 %v2489, %v2803
      %v2805 = vand.u32 %v1117, 4294901760
      %v2806 = vsub.f32 %v1117, %v2805
      %v2807 = vand.u32 %v2806, 4294901760
      %2808 = vmatprep.mubr.f32.mxu0 %v2807
      %v2809 = vand.u32 %v1116, 4294901760
      %v2810 = vsub.f32 %v1116, %v2809
      %v2811 = vand.u32 %v2810, 4294901760
      %2812 = vmatmul.mubr.f32.gmra.mrb[0].mxu0 %v2811
      %v2813 = vpop.f32.mrb[0].mxu0
      %v2814 = vadd.f32 %v2497, %v2813
      %v2815 = vpop.f32.mrb[0].mxu0
      %v2816 = vadd.f32 %v2499, %v2815
      %v2817 = vand.u32 %v1120, 4294901760
      %v2818 = vsub.f32 %v1120, %v2817
      %v2819 = vand.u32 %v2818, 4294901760
      %2820 = vmatprep.mubr.f32.mxu0 %v2819
      %v2821 = vand.u32 %v1119, 4294901760
      %v2822 = vsub.f32 %v1119, %v2821
      %v2823 = vand.u32 %v2822, 4294901760
      %2824 = vmatmul.mubr.f32.gmra.mrb[0].mxu0 %v2823
      %v2825 = vpop.f32.mrb[0].mxu0
      %v2826 = vadd.f32 %v2507, %v2825
      %v2827 = vpop.f32.mrb[0].mxu0
      %v2828 = vadd.f32 %v2509, %v2827
      %v2829 = vand.u32 %v1123, 4294901760
      %v2830 = vsub.f32 %v1123, %v2829
      %v2831 = vand.u32 %v2830, 4294901760
      %2832 = vmatprep.mubr.f32.mxu0 %v2831
      %v2833 = vand.u32 %v1122, 4294901760
      %v2834 = vsub.f32 %v1122, %v2833
      %v2835 = vand.u32 %v2834, 4294901760
      %2836 = vmatmul.mubr.f32.gmra.mrb[0].mxu0 %v2835
      %v2837 = vpop.f32.mrb[0].mxu0
      %v2838 = vadd.f32 %v2517, %v2837
      %v2839 = vpop.f32.mrb[0].mxu0
      %v2840 = vadd.f32 %v2519, %v2839
      %2841 = vdwg.mxu0
      %v2842 = vand.u32 %v470, 4294901760
      %v2843 = vsub.f32 %v470, %v2842
      %v2844 = vand.u32 %v2843, 4294901760
      %2845 = vmatprep.subr.mxu0 %v2844
      %v2846 = vand.u32 %v469, 4294901760
      %v2847 = vsub.f32 %v469, %v2846
      %v2848 = vand.u32 %v2847, 4294901760
      %2849 = vmatpush1.msra.mxu0 %v2848
      %v2850 = vand.u32 %v473, 4294901760
      %v2851 = vsub.f32 %v473, %v2850
      %v2852 = vand.u32 %v2851, 4294901760
      %2853 = vmatprep.subr.mxu0 %v2852
      %v2854 = vand.u32 %v472, 4294901760
      %v2855 = vsub.f32 %v472, %v2854
      %v2856 = vand.u32 %v2855, 4294901760
      %2857 = vmatpush1.msra.mxu0 %v2856
      %v2858 = vand.u32 %v476, 4294901760
      %v2859 = vsub.f32 %v476, %v2858
      %v2860 = vand.u32 %v2859, 4294901760
      %2861 = vmatprep.subr.mxu0 %v2860
      %v2862 = vand.u32 %v475, 4294901760
      %v2863 = vsub.f32 %v475, %v2862
      %v2864 = vand.u32 %v2863, 4294901760
      %2865 = vmatpush1.msra.mxu0 %v2864
      %v2866 = vand.u32 %v479, 4294901760
      %v2867 = vsub.f32 %v479, %v2866
      %v2868 = vand.u32 %v2867, 4294901760
      %2869 = vmatprep.subr.mxu0 %v2868
      %v2870 = vand.u32 %v478, 4294901760
      %v2871 = vsub.f32 %v478, %v2870
      %v2872 = vand.u32 %v2871, 4294901760
      %2873 = vmatpush1.msra.mxu0 %v2872
      %v2874 = vand.u32 %v482, 4294901760
      %v2875 = vsub.f32 %v482, %v2874
      %v2876 = vand.u32 %v2875, 4294901760
      %2877 = vmatprep.subr.mxu0 %v2876
      %v2878 = vand.u32 %v481, 4294901760
      %v2879 = vsub.f32 %v481, %v2878
      %v2880 = vand.u32 %v2879, 4294901760
      %2881 = vmatpush1.msra.mxu0 %v2880
      %v2882 = vand.u32 %v551, 4294901760
      %v2883 = vsub.f32 %v551, %v2882
      %v2884 = vand.u32 %v2883, 4294901760
      %2885 = vmatprep.subr.mxu0 %v2884
      %v2886 = vand.u32 %v550, 4294901760
      %v2887 = vsub.f32 %v550, %v2886
      %v2888 = vand.u32 %v2887, 4294901760
      %2889 = vmatpush1.msra.mxu0 %v2888
      %v2890 = vand.u32 %v554, 4294901760
      %v2891 = vsub.f32 %v554, %v2890
      %v2892 = vand.u32 %v2891, 4294901760
      %2893 = vmatprep.subr.mxu0 %v2892
      %v2894 = vand.u32 %v553, 4294901760
      %v2895 = vsub.f32 %v553, %v2894
      %v2896 = vand.u32 %v2895, 4294901760
      %2897 = vmatpush1.msra.mxu0 %v2896
      %v2898 = vand.u32 %v557, 4294901760
      %v2899 = vsub.f32 %v557, %v2898
      %v2900 = vand.u32 %v2899, 4294901760
      %2901 = vmatprep.subr.mxu0 %v2900
      %v2902 = vand.u32 %v556, 4294901760
      %v2903 = vsub.f32 %v556, %v2902
      %v2904 = vand.u32 %v2903, 4294901760
      %2905 = vmatpush1.msra.mxu0 %v2904
      %v2906 = vand.u32 %v560, 4294901760
      %v2907 = vsub.f32 %v560, %v2906
      %v2908 = vand.u32 %v2907, 4294901760
      %2909 = vmatprep.subr.mxu0 %v2908
      %v2910 = vand.u32 %v559, 4294901760
      %v2911 = vsub.f32 %v559, %v2910
      %v2912 = vand.u32 %v2911, 4294901760
      %2913 = vmatpush1.msra.mxu0 %v2912
      %v2914 = vand.u32 %v563, 4294901760
      %v2915 = vsub.f32 %v563, %v2914
      %v2916 = vand.u32 %v2915, 4294901760
      %2917 = vmatprep.subr.mxu0 %v2916
      %v2918 = vand.u32 %v562, 4294901760
      %v2919 = vsub.f32 %v562, %v2918
      %v2920 = vand.u32 %v2919, 4294901760
      %2921 = vmatpush1.msra.mxu0 %v2920
      %v2922 = vand.u32 %v622, 4294901760
      %v2923 = vsub.f32 %v622, %v2922
      %v2924 = vand.u32 %v2923, 4294901760
      %2925 = vmatprep.subr.mxu0 %v2924
      %v2926 = vand.u32 %v621, 4294901760
      %v2927 = vsub.f32 %v621, %v2926
      %v2928 = vand.u32 %v2927, 4294901760
      %2929 = vmatpush1.msra.mxu0 %v2928
      %v2930 = vand.u32 %v625, 4294901760
      %v2931 = vsub.f32 %v625, %v2930
      %v2932 = vand.u32 %v2931, 4294901760
      %2933 = vmatprep.subr.mxu0 %v2932
      %v2934 = vand.u32 %v624, 4294901760
      %v2935 = vsub.f32 %v624, %v2934
      %v2936 = vand.u32 %v2935, 4294901760
      %2937 = vmatpush1.msra.mxu0 %v2936
      %v2938 = vand.u32 %v628, 4294901760
      %v2939 = vsub.f32 %v628, %v2938
      %v2940 = vand.u32 %v2939, 4294901760
      %2941 = vmatprep.subr.mxu0 %v2940
      %v2942 = vand.u32 %v627, 4294901760
      %v2943 = vsub.f32 %v627, %v2942
      %v2944 = vand.u32 %v2943, 4294901760
      %2945 = vmatpush1.msra.mxu0 %v2944
      %v2946 = vand.u32 %v631, 4294901760
      %v2947 = vsub.f32 %v631, %v2946
      %v2948 = vand.u32 %v2947, 4294901760
      %2949 = vmatprep.subr.mxu0 %v2948
      %v2950 = vand.u32 %v630, 4294901760
      %v2951 = vsub.f32 %v630, %v2950
      %v2952 = vand.u32 %v2951, 4294901760
      %2953 = vmatpush1.msra.mxu0 %v2952
      %v2954 = vand.u32 %v634, 4294901760
      %v2955 = vsub.f32 %v634, %v2954
      %v2956 = vand.u32 %v2955, 4294901760
      %2957 = vmatprep.subr.mxu0 %v2956
      %v2958 = vand.u32 %v633, 4294901760
      %v2959 = vsub.f32 %v633, %v2958
      %v2960 = vand.u32 %v2959, 4294901760
      %2961 = vmatpush1.msra.mxu0 %v2960
      %v2962 = vand.u32 %v693, 4294901760
      %v2963 = vsub.f32 %v693, %v2962
      %v2964 = vand.u32 %v2963, 4294901760
      %2965 = vmatprep.subr.mxu0 %v2964
      %v2966 = vand.u32 %v692, 4294901760
      %v2967 = vsub.f32 %v692, %v2966
      %v2968 = vand.u32 %v2967, 4294901760
      %2969 = vmatpush1.msra.mxu0 %v2968
      %v2970 = vand.u32 %v696, 4294901760
      %v2971 = vsub.f32 %v696, %v2970
      %v2972 = vand.u32 %v2971, 4294901760
      %2973 = vmatprep.subr.mxu0 %v2972
      %v2974 = vand.u32 %v695, 4294901760
      %v2975 = vsub.f32 %v695, %v2974
      %v2976 = vand.u32 %v2975, 4294901760
      %2977 = vmatpush1.msra.mxu0 %v2976
      %v2978 = vand.u32 %v699, 4294901760
      %v2979 = vsub.f32 %v699, %v2978
      %v2980 = vand.u32 %v2979, 4294901760
      %2981 = vmatprep.subr.mxu0 %v2980
      %v2982 = vand.u32 %v698, 4294901760
      %v2983 = vsub.f32 %v698, %v2982
      %v2984 = vand.u32 %v2983, 4294901760
      %2985 = vmatpush1.msra.mxu0 %v2984
      %v2986 = vand.u32 %v702, 4294901760
      %v2987 = vsub.f32 %v702, %v2986
      %v2988 = vand.u32 %v2987, 4294901760
      %2989 = vmatprep.subr.mxu0 %v2988
      %v2990 = vand.u32 %v701, 4294901760
      %v2991 = vsub.f32 %v701, %v2990
      %v2992 = vand.u32 %v2991, 4294901760
      %2993 = vmatpush1.msra.mxu0 %v2992
      %v2994 = vand.u32 %v705, 4294901760
      %v2995 = vsub.f32 %v705, %v2994
      %v2996 = vand.u32 %v2995, 4294901760
      %2997 = vmatprep.subr.mxu0 %v2996
      %v2998 = vand.u32 %v704, 4294901760
      %v2999 = vsub.f32 %v704, %v2998
      %v3000 = vand.u32 %v2999, 4294901760
      %3001 = vmatpush1.msra.mxu0 %v3000
      %v3002 = vand.u32 %v764, 4294901760
      %v3003 = vsub.f32 %v764, %v3002
      %v3004 = vand.u32 %v3003, 4294901760
      %3005 = vmatprep.subr.mxu0 %v3004
      %v3006 = vand.u32 %v763, 4294901760
      %v3007 = vsub.f32 %v763, %v3006
      %v3008 = vand.u32 %v3007, 4294901760
      %3009 = vmatpush1.msra.mxu0 %v3008
      %v3010 = vand.u32 %v767, 4294901760
      %v3011 = vsub.f32 %v767, %v3010
      %v3012 = vand.u32 %v3011, 4294901760
      %3013 = vmatprep.subr.mxu0 %v3012
      %v3014 = vand.u32 %v766, 4294901760
      %v3015 = vsub.f32 %v766, %v3014
      %v3016 = vand.u32 %v3015, 4294901760
      %3017 = vmatpush1.msra.mxu0 %v3016
      %v3018 = vand.u32 %v770, 4294901760
      %v3019 = vsub.f32 %v770, %v3018
      %v3020 = vand.u32 %v3019, 4294901760
      %3021 = vmatprep.subr.mxu0 %v3020
      %v3022 = vand.u32 %v769, 4294901760
      %v3023 = vsub.f32 %v769, %v3022
      %v3024 = vand.u32 %v3023, 4294901760
      %3025 = vmatpush1.msra.mxu0 %v3024
      %v3026 = vand.u32 %v773, 4294901760
      %v3027 = vsub.f32 %v773, %v3026
      %v3028 = vand.u32 %v3027, 4294901760
      %3029 = vmatprep.subr.mxu0 %v3028
      %v3030 = vand.u32 %v772, 4294901760
      %v3031 = vsub.f32 %v772, %v3030
      %v3032 = vand.u32 %v3031, 4294901760
      %3033 = vmatpush1.msra.mxu0 %v3032
      %v3034 = vand.u32 %v776, 4294901760
      %v3035 = vsub.f32 %v776, %v3034
      %v3036 = vand.u32 %v3035, 4294901760
      %3037 = vmatprep.subr.mxu0 %v3036
      %v3038 = vand.u32 %v775, 4294901760
      %v3039 = vsub.f32 %v775, %v3038
      %v3040 = vand.u32 %v3039, 4294901760
      %3041 = vmatpush1.msra.mxu0 %v3040
      %v3042 = vand.u32 %v835, 4294901760
      %v3043 = vsub.f32 %v835, %v3042
      %v3044 = vand.u32 %v3043, 4294901760
      %3045 = vmatprep.subr.mxu0 %v3044
      %v3046 = vand.u32 %v834, 4294901760
      %v3047 = vsub.f32 %v834, %v3046
      %v3048 = vand.u32 %v3047, 4294901760
      %3049 = vmatpush1.msra.mxu0 %v3048
      %v3050 = vand.u32 %v838, 4294901760
      %v3051 = vsub.f32 %v838, %v3050
      %v3052 = vand.u32 %v3051, 4294901760
      %3053 = vmatprep.subr.mxu0 %v3052
      %v3054 = vand.u32 %v837, 4294901760
      %v3055 = vsub.f32 %v837, %v3054
      %v3056 = vand.u32 %v3055, 4294901760
      %3057 = vmatpush1.msra.mxu0 %v3056
      %v3058 = vand.u32 %v841, 4294901760
      %v3059 = vsub.f32 %v841, %v3058
      %v3060 = vand.u32 %v3059, 4294901760
      %3061 = vmatprep.subr.mxu0 %v3060
      %v3062 = vand.u32 %v840, 4294901760
      %v3063 = vsub.f32 %v840, %v3062
      %v3064 = vand.u32 %v3063, 4294901760
      %3065 = vmatpush1.msra.mxu0 %v3064
      %v3066 = vand.u32 %v844, 4294901760
      %v3067 = vsub.f32 %v844, %v3066
      %v3068 = vand.u32 %v3067, 4294901760
      %3069 = vmatprep.subr.mxu0 %v3068
      %v3070 = vand.u32 %v843, 4294901760
      %v3071 = vsub.f32 %v843, %v3070
      %v3072 = vand.u32 %v3071, 4294901760
      %3073 = vmatpush1.msra.mxu0 %v3072
      %v3074 = vand.u32 %v847, 4294901760
      %v3075 = vsub.f32 %v847, %v3074
      %v3076 = vand.u32 %v3075, 4294901760
      %3077 = vmatprep.subr.mxu0 %v3076
      %v3078 = vand.u32 %v846, 4294901760
      %v3079 = vsub.f32 %v846, %v3078
      %v3080 = vand.u32 %v3079, 4294901760
      %3081 = vmatpush1.msra.mxu0 %v3080
      %v3082 = vand.u32 %v906, 4294901760
      %v3083 = vsub.f32 %v906, %v3082
      %v3084 = vand.u32 %v3083, 4294901760
      %3085 = vmatprep.subr.mxu0 %v3084
      %v3086 = vand.u32 %v905, 4294901760
      %v3087 = vsub.f32 %v905, %v3086
      %v3088 = vand.u32 %v3087, 4294901760
      %3089 = vmatpush1.msra.mxu0 %v3088
      %v3090 = vand.u32 %v909, 4294901760
      %v3091 = vsub.f32 %v909, %v3090
      %v3092 = vand.u32 %v3091, 4294901760
      %3093 = vmatprep.subr.mxu0 %v3092
      %v3094 = vand.u32 %v908, 4294901760
      %v3095 = vsub.f32 %v908, %v3094
      %v3096 = vand.u32 %v3095, 4294901760
      %3097 = vmatpush1.msra.mxu0 %v3096
      %v3098 = vand.u32 %v1078, 4294901760
      %3099 = vmatprep.mubr.f32.mxu0 %v3098
      %v3100 = vand.u32 %v1077, 4294901760
      %3101 = vmatmul.mubr.f32.gmra.mrb[0].mxu0 %v3100
      %v3102 = vpop.f32.mrb[0].mxu0
      %v3103 = vadd.f32 %v2658, %v3102
      %v3104 = vpop.f32.mrb[0].mxu0
      %v3105 = vadd.f32 %v2660, %v3104
      %v3106 = vand.u32 %v1081, 4294901760
      %3107 = vmatprep.mubr.f32.mxu0 %v3106
      %v3108 = vand.u32 %v1080, 4294901760
      %3109 = vmatmul.mubr.f32.gmra.mrb[0].mxu0 %v3108
      %v3110 = vpop.f32.mrb[0].mxu0
      %v3111 = vadd.f32 %v2670, %v3110
      %v3112 = vpop.f32.mrb[0].mxu0
      %v3113 = vadd.f32 %v2672, %v3112
      %v3114 = vand.u32 %v1084, 4294901760
      %3115 = vmatprep.mubr.f32.mxu0 %v3114
      %v3116 = vand.u32 %v1083, 4294901760
      %3117 = vmatmul.mubr.f32.gmra.mrb[0].mxu0 %v3116
      %v3118 = vpop.f32.mrb[0].mxu0
      %v3119 = vadd.f32 %v2682, %v3118
      %v3120 = vpop.f32.mrb[0].mxu0
      %v3121 = vadd.f32 %v2684, %v3120
      %v3122 = vand.u32 %v1087, 4294901760
      %3123 = vmatprep.mubr.f32.mxu0 %v3122
      %v3124 = vand.u32 %v1086, 4294901760
      %3125 = vmatmul.mubr.f32.gmra.mrb[0].mxu0 %v3124
      %v3126 = vpop.f32.mrb[0].mxu0
      %v3127 = vadd.f32 %v2694, %v3126
      %v3128 = vpop.f32.mrb[0].mxu0
      %v3129 = vadd.f32 %v2696, %v3128
      %v3130 = vand.u32 %v1090, 4294901760
      %3131 = vmatprep.mubr.f32.mxu0 %v3130
      %v3132 = vand.u32 %v1089, 4294901760
      %3133 = vmatmul.mubr.f32.gmra.mrb[0].mxu0 %v3132
      %v3134 = vpop.f32.mrb[0].mxu0
      %v3135 = vadd.f32 %v2706, %v3134
      %v3136 = vpop.f32.mrb[0].mxu0
      %v3137 = vadd.f32 %v2708, %v3136
      %v3138 = vand.u32 %v1093, 4294901760
      %3139 = vmatprep.mubr.f32.mxu0 %v3138
      %v3140 = vand.u32 %v1092, 4294901760
      %3141 = vmatmul.mubr.f32.gmra.mrb[0].mxu0 %v3140
      %v3142 = vpop.f32.mrb[0].mxu0
      %v3143 = vadd.f32 %v2718, %v3142
      %v3144 = vpop.f32.mrb[0].mxu0
      %v3145 = vadd.f32 %v2720, %v3144
      %v3146 = vand.u32 %v1096, 4294901760
      %3147 = vmatprep.mubr.f32.mxu0 %v3146
      %v3148 = vand.u32 %v1095, 4294901760
      %3149 = vmatmul.mubr.f32.gmra.mrb[0].mxu0 %v3148
      %v3150 = vpop.f32.mrb[0].mxu0
      %v3151 = vadd.f32 %v2730, %v3150
      %v3152 = vpop.f32.mrb[0].mxu0
      %v3153 = vadd.f32 %v2732, %v3152
      %v3154 = vand.u32 %v1099, 4294901760
      %3155 = vmatprep.mubr.f32.mxu0 %v3154
      %v3156 = vand.u32 %v1098, 4294901760
      %3157 = vmatmul.mubr.f32.gmra.mrb[0].mxu0 %v3156
      %v3158 = vpop.f32.mrb[0].mxu0
      %v3159 = vadd.f32 %v2742, %v3158
      %v3160 = vpop.f32.mrb[0].mxu0
      %v3161 = vadd.f32 %v2744, %v3160
      %v3162 = vand.u32 %v1102, 4294901760
      %3163 = vmatprep.mubr.f32.mxu0 %v3162
      %v3164 = vand.u32 %v1101, 4294901760
      %3165 = vmatmul.mubr.f32.gmra.mrb[0].mxu0 %v3164
      %v3166 = vpop.f32.mrb[0].mxu0
      %v3167 = vadd.f32 %v2754, %v3166
      %v3168 = vpop.f32.mrb[0].mxu0
      %v3169 = vadd.f32 %v2756, %v3168
      %v3170 = vand.u32 %v1105, 4294901760
      %3171 = vmatprep.mubr.f32.mxu0 %v3170
      %v3172 = vand.u32 %v1104, 4294901760
      %3173 = vmatmul.mubr.f32.gmra.mrb[0].mxu0 %v3172
      %v3174 = vpop.f32.mrb[0].mxu0
      %v3175 = vadd.f32 %v2766, %v3174
      %v3176 = vpop.f32.mrb[0].mxu0
      %v3177 = vadd.f32 %v2768, %v3176
      %v3178 = vand.u32 %v1108, 4294901760
      %3179 = vmatprep.mubr.f32.mxu0 %v3178
      %v3180 = vand.u32 %v1107, 4294901760
      %3181 = vmatmul.mubr.f32.gmra.mrb[0].mxu0 %v3180
      %v3182 = vpop.f32.mrb[0].mxu0
      %v3183 = vadd.f32 %v2778, %v3182
      %v3184 = vpop.f32.mrb[0].mxu0
      %v3185 = vadd.f32 %v2780, %v3184
      %v3186 = vand.u32 %v1111, 4294901760
      %3187 = vmatprep.mubr.f32.mxu0 %v3186
      %v3188 = vand.u32 %v1110, 4294901760
      %3189 = vmatmul.mubr.f32.gmra.mrb[0].mxu0 %v3188
      %v3190 = vpop.f32.mrb[0].mxu0
      %v3191 = vadd.f32 %v2790, %v3190
      %v3192 = vpop.f32.mrb[0].mxu0
      %v3193 = vadd.f32 %v2792, %v3192
      %v3194 = vand.u32 %v1114, 4294901760
      %3195 = vmatprep.mubr.f32.mxu0 %v3194
      %v3196 = vand.u32 %v1113, 4294901760
      %3197 = vmatmul.mubr.f32.gmra.mrb[0].mxu0 %v3196
      %v3198 = vpop.f32.mrb[0].mxu0
      %v3199 = vadd.f32 %v2802, %v3198
      %v3200 = vpop.f32.mrb[0].mxu0
      %v3201 = vadd.f32 %v2804, %v3200
      %v3202 = vand.u32 %v1117, 4294901760
      %3203 = vmatprep.mubr.f32.mxu0 %v3202
      %v3204 = vand.u32 %v1116, 4294901760
      %3205 = vmatmul.mubr.f32.gmra.mrb[0].mxu0 %v3204
      %v3206 = vpop.f32.mrb[0].mxu0
      %v3207 = vadd.f32 %v2814, %v3206
      %v3208 = vpop.f32.mrb[0].mxu0
      %v3209 = vadd.f32 %v2816, %v3208
      %v3210 = vand.u32 %v1120, 4294901760
      %3211 = vmatprep.mubr.f32.mxu0 %v3210
      %v3212 = vand.u32 %v1119, 4294901760
      %3213 = vmatmul.mubr.f32.gmra.mrb[0].mxu0 %v3212
      %v3214 = vpop.f32.mrb[0].mxu0
      %v3215 = vadd.f32 %v2826, %v3214
      %v3216 = vpop.f32.mrb[0].mxu0
      %v3217 = vadd.f32 %v2828, %v3216
      %v3218 = vand.u32 %v1123, 4294901760
      %3219 = vmatprep.mubr.f32.mxu0 %v3218
      %v3220 = vand.u32 %v1122, 4294901760
      %3221 = vmatmul.mubr.f32.gmra.mrb[0].mxu0 %v3220
      %v3222 = vpop.f32.mrb[0].mxu0
      %v3223 = vadd.f32 %v2838, %v3222
      %v3224 = vpop.f32.mrb[0].mxu0
      %v3225 = vadd.f32 %v2840, %v3224
      %3226 = vdwg.mxu0
      %v3227 = vand.u32 %v470, 4294901760
      %3228 = vmatprep.subr.mxu0 %v3227
      %v3229 = vand.u32 %v469, 4294901760
      %3230 = vmatpush1.msra.mxu0 %v3229
      %v3231 = vand.u32 %v473, 4294901760
      %3232 = vmatprep.subr.mxu0 %v3231
      %v3233 = vand.u32 %v472, 4294901760
      %3234 = vmatpush1.msra.mxu0 %v3233
      %v3235 = vand.u32 %v476, 4294901760
      %3236 = vmatprep.subr.mxu0 %v3235
      %v3237 = vand.u32 %v475, 4294901760
      %3238 = vmatpush1.msra.mxu0 %v3237
      %v3239 = vand.u32 %v479, 4294901760
      %3240 = vmatprep.subr.mxu0 %v3239
      %v3241 = vand.u32 %v478, 4294901760
      %3242 = vmatpush1.msra.mxu0 %v3241
      %v3243 = vand.u32 %v482, 4294901760
      %3244 = vmatprep.subr.mxu0 %v3243
      %v3245 = vand.u32 %v481, 4294901760
      %3246 = vmatpush1.msra.mxu0 %v3245
      %v3247 = vand.u32 %v551, 4294901760
      %3248 = vmatprep.subr.mxu0 %v3247
      %v3249 = vand.u32 %v550, 4294901760
      %3250 = vmatpush1.msra.mxu0 %v3249
      %v3251 = vand.u32 %v554, 4294901760
      %3252 = vmatprep.subr.mxu0 %v3251
      %v3253 = vand.u32 %v553, 4294901760
      %3254 = vmatpush1.msra.mxu0 %v3253
      %v3255 = vand.u32 %v557, 4294901760
      %3256 = vmatprep.subr.mxu0 %v3255
      %v3257 = vand.u32 %v556, 4294901760
      %3258 = vmatpush1.msra.mxu0 %v3257
      %v3259 = vand.u32 %v560, 4294901760
      %3260 = vmatprep.subr.mxu0 %v3259
      %v3261 = vand.u32 %v559, 4294901760
      %3262 = vmatpush1.msra.mxu0 %v3261
      %v3263 = vand.u32 %v563, 4294901760
      %3264 = vmatprep.subr.mxu0 %v3263
      %v3265 = vand.u32 %v562, 4294901760
      %3266 = vmatpush1.msra.mxu0 %v3265
      %v3267 = vand.u32 %v622, 4294901760
      %3268 = vmatprep.subr.mxu0 %v3267
      %v3269 = vand.u32 %v621, 4294901760
      %3270 = vmatpush1.msra.mxu0 %v3269
      %v3271 = vand.u32 %v625, 4294901760
      %3272 = vmatprep.subr.mxu0 %v3271
      %v3273 = vand.u32 %v624, 4294901760
      %3274 = vmatpush1.msra.mxu0 %v3273
      %v3275 = vand.u32 %v628, 4294901760
      %3276 = vmatprep.subr.mxu0 %v3275
      %v3277 = vand.u32 %v627, 4294901760
      %3278 = vmatpush1.msra.mxu0 %v3277
      %v3279 = vand.u32 %v631, 4294901760
      %3280 = vmatprep.subr.mxu0 %v3279
      %v3281 = vand.u32 %v630, 4294901760
      %3282 = vmatpush1.msra.mxu0 %v3281
      %v3283 = vand.u32 %v634, 4294901760
      %3284 = vmatprep.subr.mxu0 %v3283
      %v3285 = vand.u32 %v633, 4294901760
      %3286 = vmatpush1.msra.mxu0 %v3285
      %v3287 = vand.u32 %v693, 4294901760
      %3288 = vmatprep.subr.mxu0 %v3287
      %v3289 = vand.u32 %v692, 4294901760
      %3290 = vmatpush1.msra.mxu0 %v3289
      %v3291 = vand.u32 %v696, 4294901760
      %3292 = vmatprep.subr.mxu0 %v3291
      %v3293 = vand.u32 %v695, 4294901760
      %3294 = vmatpush1.msra.mxu0 %v3293
      %v3295 = vand.u32 %v699, 4294901760
      %3296 = vmatprep.subr.mxu0 %v3295
      %v3297 = vand.u32 %v698, 4294901760
      %3298 = vmatpush1.msra.mxu0 %v3297
      %v3299 = vand.u32 %v702, 4294901760
      %3300 = vmatprep.subr.mxu0 %v3299
      %v3301 = vand.u32 %v701, 4294901760
      %3302 = vmatpush1.msra.mxu0 %v3301
      %v3303 = vand.u32 %v705, 4294901760
      %3304 = vmatprep.subr.mxu0 %v3303
      %v3305 = vand.u32 %v704, 4294901760
      %3306 = vmatpush1.msra.mxu0 %v3305
      %v3307 = vand.u32 %v764, 4294901760
      %3308 = vmatprep.subr.mxu0 %v3307
      %v3309 = vand.u32 %v763, 4294901760
      %3310 = vmatpush1.msra.mxu0 %v3309
      %v3311 = vand.u32 %v767, 4294901760
      %3312 = vmatprep.subr.mxu0 %v3311
      %v3313 = vand.u32 %v766, 4294901760
      %3314 = vmatpush1.msra.mxu0 %v3313
      %v3315 = vand.u32 %v770, 4294901760
      %3316 = vmatprep.subr.mxu0 %v3315
      %v3317 = vand.u32 %v769, 4294901760
      %3318 = vmatpush1.msra.mxu0 %v3317
      %v3319 = vand.u32 %v773, 4294901760
      %3320 = vmatprep.subr.mxu0 %v3319
      %v3321 = vand.u32 %v772, 4294901760
      %3322 = vmatpush1.msra.mxu0 %v3321
      %v3323 = vand.u32 %v776, 4294901760
      %3324 = vmatprep.subr.mxu0 %v3323
      %v3325 = vand.u32 %v775, 4294901760
      %3326 = vmatpush1.msra.mxu0 %v3325
      %v3327 = vand.u32 %v835, 4294901760
      %3328 = vmatprep.subr.mxu0 %v3327
      %v3329 = vand.u32 %v834, 4294901760
      %3330 = vmatpush1.msra.mxu0 %v3329
      %v3331 = vand.u32 %v838, 4294901760
      %3332 = vmatprep.subr.mxu0 %v3331
      %v3333 = vand.u32 %v837, 4294901760
      %3334 = vmatpush1.msra.mxu0 %v3333
      %v3335 = vand.u32 %v841, 4294901760
      %3336 = vmatprep.subr.mxu0 %v3335
      %v3337 = vand.u32 %v840, 4294901760
      %3338 = vmatpush1.msra.mxu0 %v3337
      %v3339 = vand.u32 %v844, 4294901760
      %3340 = vmatprep.subr.mxu0 %v3339
      %v3341 = vand.u32 %v843, 4294901760
      %3342 = vmatpush1.msra.mxu0 %v3341
      %v3343 = vand.u32 %v847, 4294901760
      %3344 = vmatprep.subr.mxu0 %v3343
      %v3345 = vand.u32 %v846, 4294901760
      %3346 = vmatpush1.msra.mxu0 %v3345
      %v3347 = vand.u32 %v906, 4294901760
      %3348 = vmatprep.subr.mxu0 %v3347
      %v3349 = vand.u32 %v905, 4294901760
      %3350 = vmatpush1.msra.mxu0 %v3349
      %v3351 = vand.u32 %v909, 4294901760
      %3352 = vmatprep.subr.mxu0 %v3351
      %v3353 = vand.u32 %v908, 4294901760
      %3354 = vmatpush1.msra.mxu0 %v3353
      %v3355 = vand.u32 %v1078, 4294901760
      %3356 = vmatprep.mubr.f32.mxu0 %v3355
      %v3357 = vand.u32 %v1077, 4294901760
      %3358 = vmatmul.mubr.f32.gmra.mrb[0].mxu0 %v3357
      %v3359 = vpop.f32.mrb[0].mxu0
      %v3360 = vadd.f32 %v3103, %v3359
      %v3361 = vpop.f32.mrb[0].mxu0
      %v3362 = vadd.f32 %v3105, %v3361
      %v3363 = vand.u32 %v1081, 4294901760
      %3364 = vmatprep.mubr.f32.mxu0 %v3363
      %v3365 = vand.u32 %v1080, 4294901760
      %3366 = vmatmul.mubr.f32.gmra.mrb[0].mxu0 %v3365
      %v3367 = vpop.f32.mrb[0].mxu0
      %v3368 = vadd.f32 %v3111, %v3367
      %v3369 = vpop.f32.mrb[0].mxu0
      %v3370 = vadd.f32 %v3113, %v3369
      %v3371 = vand.u32 %v1084, 4294901760
      %3372 = vmatprep.mubr.f32.mxu0 %v3371
      %v3373 = vand.u32 %v1083, 4294901760
      %3374 = vmatmul.mubr.f32.gmra.mrb[0].mxu0 %v3373
      %v3375 = vpop.f32.mrb[0].mxu0
      %v3376 = vadd.f32 %v3119, %v3375
      %v3377 = vpop.f32.mrb[0].mxu0
      %v3378 = vadd.f32 %v3121, %v3377
      %v3379 = vand.u32 %v1087, 4294901760
      %3380 = vmatprep.mubr.f32.mxu0 %v3379
      %v3381 = vand.u32 %v1086, 4294901760
      %3382 = vmatmul.mubr.f32.gmra.mrb[0].mxu0 %v3381
      %v3383 = vpop.f32.mrb[0].mxu0
      %v3384 = vadd.f32 %v3127, %v3383
      %v3385 = vpop.f32.mrb[0].mxu0
      %v3386 = vadd.f32 %v3129, %v3385
      %v3387 = vand.u32 %v1090, 4294901760
      %3388 = vmatprep.mubr.f32.mxu0 %v3387
      %v3389 = vand.u32 %v1089, 4294901760
      %3390 = vmatmul.mubr.f32.gmra.mrb[0].mxu0 %v3389
      %v3391 = vpop.f32.mrb[0].mxu0
      %v3392 = vadd.f32 %v3135, %v3391
      %v3393 = vpop.f32.mrb[0].mxu0
      %v3394 = vadd.f32 %v3137, %v3393
      %v3395 = vand.u32 %v1093, 4294901760
      %3396 = vmatprep.mubr.f32.mxu0 %v3395
      %v3397 = vand.u32 %v1092, 4294901760
      %3398 = vmatmul.mubr.f32.gmra.mrb[0].mxu0 %v3397
      %v3399 = vpop.f32.mrb[0].mxu0
      %v3400 = vadd.f32 %v3143, %v3399
      %v3401 = vpop.f32.mrb[0].mxu0
      %v3402 = vadd.f32 %v3145, %v3401
      %v3403 = vand.u32 %v1096, 4294901760
      %3404 = vmatprep.mubr.f32.mxu0 %v3403
      %v3405 = vand.u32 %v1095, 4294901760
      %3406 = vmatmul.mubr.f32.gmra.mrb[0].mxu0 %v3405
      %v3407 = vpop.f32.mrb[0].mxu0
      %v3408 = vadd.f32 %v3151, %v3407
      %v3409 = vpop.f32.mrb[0].mxu0
      %v3410 = vadd.f32 %v3153, %v3409
      %v3411 = vand.u32 %v1099, 4294901760
      %3412 = vmatprep.mubr.f32.mxu0 %v3411
      %v3413 = vand.u32 %v1098, 4294901760
      %3414 = vmatmul.mubr.f32.gmra.mrb[0].mxu0 %v3413
      %v3415 = vpop.f32.mrb[0].mxu0
      %v3416 = vadd.f32 %v3159, %v3415
      %v3417 = vpop.f32.mrb[0].mxu0
      %v3418 = vadd.f32 %v3161, %v3417
      %v3419 = vand.u32 %v1102, 4294901760
      %3420 = vmatprep.mubr.f32.mxu0 %v3419
      %v3421 = vand.u32 %v1101, 4294901760
      %3422 = vmatmul.mubr.f32.gmra.mrb[0].mxu0 %v3421
      %v3423 = vpop.f32.mrb[0].mxu0
      %v3424 = vadd.f32 %v3167, %v3423
      %v3425 = vpop.f32.mrb[0].mxu0
      %v3426 = vadd.f32 %v3169, %v3425
      %v3427 = vand.u32 %v1105, 4294901760
      %3428 = vmatprep.mubr.f32.mxu0 %v3427
      %v3429 = vand.u32 %v1104, 4294901760
      %3430 = vmatmul.mubr.f32.gmra.mrb[0].mxu0 %v3429
      %v3431 = vpop.f32.mrb[0].mxu0
      %v3432 = vadd.f32 %v3175, %v3431
      %v3433 = vpop.f32.mrb[0].mxu0
      %v3434 = vadd.f32 %v3177, %v3433
      %v3435 = vand.u32 %v1108, 4294901760
      %3436 = vmatprep.mubr.f32.mxu0 %v3435
      %v3437 = vand.u32 %v1107, 4294901760
      %3438 = vmatmul.mubr.f32.gmra.mrb[0].mxu0 %v3437
      %v3439 = vpop.f32.mrb[0].mxu0
      %v3440 = vadd.f32 %v3183, %v3439
      %v3441 = vpop.f32.mrb[0].mxu0
      %v3442 = vadd.f32 %v3185, %v3441
      %v3443 = vand.u32 %v1111, 4294901760
      %3444 = vmatprep.mubr.f32.mxu0 %v3443
      %v3445 = vand.u32 %v1110, 4294901760
      %3446 = vmatmul.mubr.f32.gmra.mrb[0].mxu0 %v3445
      %v3447 = vpop.f32.mrb[0].mxu0
      %v3448 = vadd.f32 %v3191, %v3447
      %v3449 = vpop.f32.mrb[0].mxu0
      %v3450 = vadd.f32 %v3193, %v3449
      %v3451 = vand.u32 %v1114, 4294901760
      %3452 = vmatprep.mubr.f32.mxu0 %v3451
      %v3453 = vand.u32 %v1113, 4294901760
      %3454 = vmatmul.mubr.f32.gmra.mrb[0].mxu0 %v3453
      %v3455 = vpop.f32.mrb[0].mxu0
      %v3456 = vadd.f32 %v3199, %v3455
      %v3457 = vpop.f32.mrb[0].mxu0
      %v3458 = vadd.f32 %v3201, %v3457
      %v3459 = vand.u32 %v1117, 4294901760
      %3460 = vmatprep.mubr.f32.mxu0 %v3459
      %v3461 = vand.u32 %v1116, 4294901760
      %3462 = vmatmul.mubr.f32.gmra.mrb[0].mxu0 %v3461
      %v3463 = vpop.f32.mrb[0].mxu0
      %v3464 = vadd.f32 %v3207, %v3463
      %v3465 = vpop.f32.mrb[0].mxu0
      %v3466 = vadd.f32 %v3209, %v3465
      %v3467 = vand.u32 %v1120, 4294901760
      %3468 = vmatprep.mubr.f32.mxu0 %v3467
      %v3469 = vand.u32 %v1119, 4294901760
      %3470 = vmatmul.mubr.f32.gmra.mrb[0].mxu0 %v3469
      %v3471 = vpop.f32.mrb[0].mxu0
      %v3472 = vadd.f32 %v3215, %v3471
      %v3473 = vpop.f32.mrb[0].mxu0
      %v3474 = vadd.f32 %v3217, %v3473
      %v3475 = vand.u32 %v1123, 4294901760
      %3476 = vmatprep.mubr.f32.mxu0 %v3475
      %v3477 = vand.u32 %v1122, 4294901760
      %3478 = vmatmul.mubr.f32.gmra.mrb[0].mxu0 %v3477
      %v3479 = vpop.f32.mrb[0].mxu0
      %v3480 = vadd.f32 %v3223, %v3479
      %v3481 = vpop.f32.mrb[0].mxu0
      %v3482 = vadd.f32 %v3225, %v3481
      %3483 = vdwg.mxu0
      %v3484 = vand.u32 %v912, 4294901760
      %3485 = vmatprep.subr.mxu0 %v3484
      %v3486 = vand.u32 %v911, 4294901760
      %3487 = vmatpush1.msra.mxu0 %v3486
      %v3488 = vand.u32 %v915, 4294901760
      %3489 = vmatprep.subr.mxu0 %v3488
      %v3490 = vand.u32 %v914, 4294901760
      %3491 = vmatpush1.msra.mxu0 %v3490
      %v3492 = vand.u32 %v918, 4294901760
      %3493 = vmatprep.subr.mxu0 %v3492
      %v3494 = vand.u32 %v917, 4294901760
      %3495 = vmatpush1.msra.mxu0 %v3494
      %v3496 = vand.u32 %v977, 4294901760
      %3497 = vmatprep.subr.mxu0 %v3496
      %v3498 = vand.u32 %v976, 4294901760
      %3499 = vmatpush1.msra.mxu0 %v3498
      %v3500 = vand.u32 %v980, 4294901760
      %3501 = vmatprep.subr.mxu0 %v3500
      %v3502 = vand.u32 %v979, 4294901760
      %3503 = vmatpush1.msra.mxu0 %v3502
      %v3504 = vand.u32 %v983, 4294901760
      %3505 = vmatprep.subr.mxu0 %v3504
      %v3506 = vand.u32 %v982, 4294901760
      %3507 = vmatpush1.msra.mxu0 %v3506
      %v3508 = vand.u32 %v986, 4294901760
      %3509 = vmatprep.subr.mxu0 %v3508
      %v3510 = vand.u32 %v985, 4294901760
      %3511 = vmatpush1.msra.mxu0 %v3510
      %v3512 = vand.u32 %v989, 4294901760
      %3513 = vmatprep.subr.mxu0 %v3512
      %v3514 = vand.u32 %v988, 4294901760
      %3515 = vmatpush1.msra.mxu0 %v3514
      %v3516 = vand.u32 %v1048, 4294901760
      %3517 = vmatprep.subr.mxu0 %v3516
      %v3518 = vand.u32 %v1047, 4294901760
      %3519 = vmatpush1.msra.mxu0 %v3518
      %v3520 = vand.u32 %v1051, 4294901760
      %3521 = vmatprep.subr.mxu0 %v3520
      %v3522 = vand.u32 %v1050, 4294901760
      %3523 = vmatpush1.msra.mxu0 %v3522
      %v3524 = vand.u32 %v1054, 4294901760
      %3525 = vmatprep.subr.mxu0 %v3524
      %v3526 = vand.u32 %v1053, 4294901760
      %3527 = vmatpush1.msra.mxu0 %v3526
      %v3528 = vand.u32 %v1057, 4294901760
      %3529 = vmatprep.subr.mxu0 %v3528
      %v3530 = vand.u32 %v1056, 4294901760
      %3531 = vmatpush1.msra.mxu0 %v3530
      %v3532 = vand.u32 %v1060, 4294901760
      %3533 = vmatprep.subr.mxu0 %v3532
      %v3534 = vand.u32 %v1059, 4294901760
      %3535 = vmatpush1.msra.mxu0 %v3534
      %3536 = vmatprep.subr.mxu0 0.0
      %3537 = vmatpush1.msra.mxu0 0.0
      %3538 = vmatprep.subr.mxu0 0.0
      %3539 = vmatpush1.msra.mxu0 0.0
      %3540 = vmatprep.subr.mxu0 0.0
      %3541 = vmatpush1.msra.mxu0 0.0
      %3542 = vmatprep.subr.mxu0 0.0
      %3543 = vmatpush1.msra.mxu0 0.0
      %3544 = vmatprep.subr.mxu0 0.0
      %3545 = vmatpush1.msra.mxu0 0.0
      %3546 = vmatprep.subr.mxu0 0.0
      %3547 = vmatpush1.msra.mxu0 0.0
      %3548 = vmatprep.subr.mxu0 0.0
      %3549 = vmatpush1.msra.mxu0 0.0
      %3550 = vmatprep.subr.mxu0 0.0
      %3551 = vmatpush1.msra.mxu0 0.0
      %3552 = vmatprep.subr.mxu0 0.0
      %3553 = vmatpush1.msra.mxu0 0.0
      %3554 = vmatprep.subr.mxu0 0.0
      %3555 = vmatpush1.msra.mxu0 0.0
      %3556 = vmatprep.subr.mxu0 0.0
      %3557 = vmatpush1.msra.mxu0 0.0
      %3558 = vmatprep.subr.mxu0 0.0
      %3559 = vmatpush1.msra.mxu0 0.0
      %3560 = vmatprep.subr.mxu0 0.0
      %3561 = vmatpush1.msra.mxu0 0.0
      %3562 = vmatprep.subr.mxu0 0.0
      %3563 = vmatpush1.msra.mxu0 0.0
      %3564 = vmatprep.subr.mxu0 0.0
      %3565 = vmatpush1.msra.mxu0 0.0
      %3566 = vmatprep.subr.mxu0 0.0
      %3567 = vmatpush1.msra.mxu0 0.0
      %3568 = vmatprep.subr.mxu0 0.0
      %3569 = vmatpush1.msra.mxu0 0.0
      %3570 = vmatprep.subr.mxu0 0.0
      %3571 = vmatpush1.msra.mxu0 0.0
      %3572 = vmatprep.subr.mxu0 0.0
      %3573 = vmatpush1.msra.mxu0 0.0
      %3574 = vmatprep.mubr.f32.mxu0 0.0
      %v3575 = vand.u32 %v1223, 4294901760
      %v3576 = vsub.f32 %v1223, %v3575
      %v3577 = vand.u32 %v3576, 4294901760
      %v3578 = vsub.f32 %v3576, %v3577
      %v3579 = vand.u32 %v3578, 4294901760
      %3580 = vmatmul.mubr.f32.gmra.mrb[0].mxu0 %v3579
      %v3581 = vpop.f32.mrb[0].mxu0
      %v3582 = vadd.f32 %v3360, %v3581
      %v3583 = vpop.f32.mrb[0].mxu0
      %v3584 = vadd.f32 %v3362, %v3583
      %3585 = vmatprep.mubr.f32.mxu0 0.0
      %v3586 = vand.u32 %v1226, 4294901760
      %v3587 = vsub.f32 %v1226, %v3586
      %v3588 = vand.u32 %v3587, 4294901760
      %v3589 = vsub.f32 %v3587, %v3588
      %v3590 = vand.u32 %v3589, 4294901760
      %3591 = vmatmul.mubr.f32.gmra.mrb[0].mxu0 %v3590
      %v3592 = vpop.f32.mrb[0].mxu0
      %v3593 = vadd.f32 %v3368, %v3592
      %v3594 = vpop.f32.mrb[0].mxu0
      %v3595 = vadd.f32 %v3370, %v3594
      %3596 = vmatprep.mubr.f32.mxu0 0.0
      %v3597 = vand.u32 %v1229, 4294901760
      %v3598 = vsub.f32 %v1229, %v3597
      %v3599 = vand.u32 %v3598, 4294901760
      %v3600 = vsub.f32 %v3598, %v3599
      %v3601 = vand.u32 %v3600, 4294901760
      %3602 = vmatmul.mubr.f32.gmra.mrb[0].mxu0 %v3601
      %v3603 = vpop.f32.mrb[0].mxu0
      %v3604 = vadd.f32 %v3376, %v3603
      %v3605 = vpop.f32.mrb[0].mxu0
      %v3606 = vadd.f32 %v3378, %v3605
      %3607 = vmatprep.mubr.f32.mxu0 0.0
      %v3608 = vand.u32 %v1232, 4294901760
      %v3609 = vsub.f32 %v1232, %v3608
      %v3610 = vand.u32 %v3609, 4294901760
      %v3611 = vsub.f32 %v3609, %v3610
      %v3612 = vand.u32 %v3611, 4294901760
      %3613 = vmatmul.mubr.f32.gmra.mrb[0].mxu0 %v3612
      %v3614 = vpop.f32.mrb[0].mxu0
      %v3615 = vadd.f32 %v3384, %v3614
      %v3616 = vpop.f32.mrb[0].mxu0
      %v3617 = vadd.f32 %v3386, %v3616
      %3618 = vmatprep.mubr.f32.mxu0 0.0
      %v3619 = vand.u32 %v1235, 4294901760
      %v3620 = vsub.f32 %v1235, %v3619
      %v3621 = vand.u32 %v3620, 4294901760
      %v3622 = vsub.f32 %v3620, %v3621
      %v3623 = vand.u32 %v3622, 4294901760
      %3624 = vmatmul.mubr.f32.gmra.mrb[0].mxu0 %v3623
      %v3625 = vpop.f32.mrb[0].mxu0
      %v3626 = vadd.f32 %v3392, %v3625
      %v3627 = vpop.f32.mrb[0].mxu0
      %v3628 = vadd.f32 %v3394, %v3627
      %3629 = vmatprep.mubr.f32.mxu0 0.0
      %v3630 = vand.u32 %v1238, 4294901760
      %v3631 = vsub.f32 %v1238, %v3630
      %v3632 = vand.u32 %v3631, 4294901760
      %v3633 = vsub.f32 %v3631, %v3632
      %v3634 = vand.u32 %v3633, 4294901760
      %3635 = vmatmul.mubr.f32.gmra.mrb[0].mxu0 %v3634
      %v3636 = vpop.f32.mrb[0].mxu0
      %v3637 = vadd.f32 %v3400, %v3636
      %v3638 = vpop.f32.mrb[0].mxu0
      %v3639 = vadd.f32 %v3402, %v3638
      %3640 = vmatprep.mubr.f32.mxu0 0.0
      %v3641 = vand.u32 %v1241, 4294901760
      %v3642 = vsub.f32 %v1241, %v3641
      %v3643 = vand.u32 %v3642, 4294901760
      %v3644 = vsub.f32 %v3642, %v3643
      %v3645 = vand.u32 %v3644, 4294901760
      %3646 = vmatmul.mubr.f32.gmra.mrb[0].mxu0 %v3645
      %v3647 = vpop.f32.mrb[0].mxu0
      %v3648 = vadd.f32 %v3408, %v3647
      %v3649 = vpop.f32.mrb[0].mxu0
      %v3650 = vadd.f32 %v3410, %v3649
      %3651 = vmatprep.mubr.f32.mxu0 0.0
      %v3652 = vand.u32 %v1244, 4294901760
      %v3653 = vsub.f32 %v1244, %v3652
      %v3654 = vand.u32 %v3653, 4294901760
      %v3655 = vsub.f32 %v3653, %v3654
      %v3656 = vand.u32 %v3655, 4294901760
      %3657 = vmatmul.mubr.f32.gmra.mrb[0].mxu0 %v3656
      %v3658 = vpop.f32.mrb[0].mxu0
      %v3659 = vadd.f32 %v3416, %v3658
      %v3660 = vpop.f32.mrb[0].mxu0
      %v3661 = vadd.f32 %v3418, %v3660
      %3662 = vmatprep.mubr.f32.mxu0 0.0
      %v3663 = vand.u32 %v1247, 4294901760
      %v3664 = vsub.f32 %v1247, %v3663
      %v3665 = vand.u32 %v3664, 4294901760
      %v3666 = vsub.f32 %v3664, %v3665
      %v3667 = vand.u32 %v3666, 4294901760
      %3668 = vmatmul.mubr.f32.gmra.mrb[0].mxu0 %v3667
      %v3669 = vpop.f32.mrb[0].mxu0
      %v3670 = vadd.f32 %v3424, %v3669
      %v3671 = vpop.f32.mrb[0].mxu0
      %v3672 = vadd.f32 %v3426, %v3671
      %3673 = vmatprep.mubr.f32.mxu0 0.0
      %v3674 = vand.u32 %v1250, 4294901760
      %v3675 = vsub.f32 %v1250, %v3674
      %v3676 = vand.u32 %v3675, 4294901760
      %v3677 = vsub.f32 %v3675, %v3676
      %v3678 = vand.u32 %v3677, 4294901760
      %3679 = vmatmul.mubr.f32.gmra.mrb[0].mxu0 %v3678
      %v3680 = vpop.f32.mrb[0].mxu0
      %v3681 = vadd.f32 %v3432, %v3680
      %v3682 = vpop.f32.mrb[0].mxu0
      %v3683 = vadd.f32 %v3434, %v3682
      %3684 = vmatprep.mubr.f32.mxu0 0.0
      %v3685 = vand.u32 %v1253, 4294901760
      %v3686 = vsub.f32 %v1253, %v3685
      %v3687 = vand.u32 %v3686, 4294901760
      %v3688 = vsub.f32 %v3686, %v3687
      %v3689 = vand.u32 %v3688, 4294901760
      %3690 = vmatmul.mubr.f32.gmra.mrb[0].mxu0 %v3689
      %v3691 = vpop.f32.mrb[0].mxu0
      %v3692 = vadd.f32 %v3440, %v3691
      %v3693 = vpop.f32.mrb[0].mxu0
      %v3694 = vadd.f32 %v3442, %v3693
      %3695 = vmatprep.mubr.f32.mxu0 0.0
      %v3696 = vand.u32 %v1256, 4294901760
      %v3697 = vsub.f32 %v1256, %v3696
      %v3698 = vand.u32 %v3697, 4294901760
      %v3699 = vsub.f32 %v3697, %v3698
      %v3700 = vand.u32 %v3699, 4294901760
      %3701 = vmatmul.mubr.f32.gmra.mrb[0].mxu0 %v3700
      %v3702 = vpop.f32.mrb[0].mxu0
      %v3703 = vadd.f32 %v3448, %v3702
      %v3704 = vpop.f32.mrb[0].mxu0
      %v3705 = vadd.f32 %v3450, %v3704
      %3706 = vmatprep.mubr.f32.mxu0 0.0
      %v3707 = vand.u32 %v1259, 4294901760
      %v3708 = vsub.f32 %v1259, %v3707
      %v3709 = vand.u32 %v3708, 4294901760
      %v3710 = vsub.f32 %v3708, %v3709
      %v3711 = vand.u32 %v3710, 4294901760
      %3712 = vmatmul.mubr.f32.gmra.mrb[0].mxu0 %v3711
      %v3713 = vpop.f32.mrb[0].mxu0
      %v3714 = vadd.f32 %v3456, %v3713
      %v3715 = vpop.f32.mrb[0].mxu0
      %v3716 = vadd.f32 %v3458, %v3715
      %3717 = vmatprep.mubr.f32.mxu0 0.0
      %v3718 = vand.u32 %v1262, 4294901760
      %v3719 = vsub.f32 %v1262, %v3718
      %v3720 = vand.u32 %v3719, 4294901760
      %v3721 = vsub.f32 %v3719, %v3720
      %v3722 = vand.u32 %v3721, 4294901760
      %3723 = vmatmul.mubr.f32.gmra.mrb[0].mxu0 %v3722
      %v3724 = vpop.f32.mrb[0].mxu0
      %v3725 = vadd.f32 %v3464, %v3724
      %v3726 = vpop.f32.mrb[0].mxu0
      %v3727 = vadd.f32 %v3466, %v3726
      %3728 = vmatprep.mubr.f32.mxu0 0.0
      %v3729 = vand.u32 %v1265, 4294901760
      %v3730 = vsub.f32 %v1265, %v3729
      %v3731 = vand.u32 %v3730, 4294901760
      %v3732 = vsub.f32 %v3730, %v3731
      %v3733 = vand.u32 %v3732, 4294901760
      %3734 = vmatmul.mubr.f32.gmra.mrb[0].mxu0 %v3733
      %v3735 = vpop.f32.mrb[0].mxu0
      %v3736 = vadd.f32 %v3472, %v3735
      %v3737 = vpop.f32.mrb[0].mxu0
      %v3738 = vadd.f32 %v3474, %v3737
      %3739 = vmatprep.mubr.f32.mxu0 0.0
      %v3740 = vand.u32 %v1268, 4294901760
      %v3741 = vsub.f32 %v1268, %v3740
      %v3742 = vand.u32 %v3741, 4294901760
      %v3743 = vsub.f32 %v3741, %v3742
      %v3744 = vand.u32 %v3743, 4294901760
      %3745 = vmatmul.mubr.f32.gmra.mrb[0].mxu0 %v3744
      %v3746 = vpop.f32.mrb[0].mxu0
      %v3747 = vadd.f32 %v3480, %v3746
      %v3748 = vpop.f32.mrb[0].mxu0
      %v3749 = vadd.f32 %v3482, %v3748
      %3750 = vdwg.mxu0
      %v3751 = vand.u32 %v912, 4294901760
      %v3752 = vsub.f32 %v912, %v3751
      %v3753 = vand.u32 %v3752, 4294901760
      %v3754 = vsub.f32 %v3752, %v3753
      %v3755 = vand.u32 %v3754, 4294901760
      %3756 = vmatprep.subr.mxu0 %v3755
      %v3757 = vand.u32 %v911, 4294901760
      %v3758 = vsub.f32 %v911, %v3757
      %v3759 = vand.u32 %v3758, 4294901760
      %v3760 = vsub.f32 %v3758, %v3759
      %v3761 = vand.u32 %v3760, 4294901760
      %3762 = vmatpush1.msra.mxu0 %v3761
      %v3763 = vand.u32 %v915, 4294901760
      %v3764 = vsub.f32 %v915, %v3763
      %v3765 = vand.u32 %v3764, 4294901760
      %v3766 = vsub.f32 %v3764, %v3765
      %v3767 = vand.u32 %v3766, 4294901760
      %3768 = vmatprep.subr.mxu0 %v3767
      %v3769 = vand.u32 %v914, 4294901760
      %v3770 = vsub.f32 %v914, %v3769
      %v3771 = vand.u32 %v3770, 4294901760
      %v3772 = vsub.f32 %v3770, %v3771
      %v3773 = vand.u32 %v3772, 4294901760
      %3774 = vmatpush1.msra.mxu0 %v3773
      %v3775 = vand.u32 %v918, 4294901760
      %v3776 = vsub.f32 %v918, %v3775
      %v3777 = vand.u32 %v3776, 4294901760
      %v3778 = vsub.f32 %v3776, %v3777
      %v3779 = vand.u32 %v3778, 4294901760
      %3780 = vmatprep.subr.mxu0 %v3779
      %v3781 = vand.u32 %v917, 4294901760
      %v3782 = vsub.f32 %v917, %v3781
      %v3783 = vand.u32 %v3782, 4294901760
      %v3784 = vsub.f32 %v3782, %v3783
      %v3785 = vand.u32 %v3784, 4294901760
      %3786 = vmatpush1.msra.mxu0 %v3785
      %v3787 = vand.u32 %v977, 4294901760
      %v3788 = vsub.f32 %v977, %v3787
      %v3789 = vand.u32 %v3788, 4294901760
      %v3790 = vsub.f32 %v3788, %v3789
      %v3791 = vand.u32 %v3790, 4294901760
      %3792 = vmatprep.subr.mxu0 %v3791
      %v3793 = vand.u32 %v976, 4294901760
      %v3794 = vsub.f32 %v976, %v3793
      %v3795 = vand.u32 %v3794, 4294901760
      %v3796 = vsub.f32 %v3794, %v3795
      %v3797 = vand.u32 %v3796, 4294901760
      %3798 = vmatpush1.msra.mxu0 %v3797
      %v3799 = vand.u32 %v980, 4294901760
      %v3800 = vsub.f32 %v980, %v3799
      %v3801 = vand.u32 %v3800, 4294901760
      %v3802 = vsub.f32 %v3800, %v3801
      %v3803 = vand.u32 %v3802, 4294901760
      %3804 = vmatprep.subr.mxu0 %v3803
      %v3805 = vand.u32 %v979, 4294901760
      %v3806 = vsub.f32 %v979, %v3805
      %v3807 = vand.u32 %v3806, 4294901760
      %v3808 = vsub.f32 %v3806, %v3807
      %v3809 = vand.u32 %v3808, 4294901760
      %3810 = vmatpush1.msra.mxu0 %v3809
      %v3811 = vand.u32 %v983, 4294901760
      %v3812 = vsub.f32 %v983, %v3811
      %v3813 = vand.u32 %v3812, 4294901760
      %v3814 = vsub.f32 %v3812, %v3813
      %v3815 = vand.u32 %v3814, 4294901760
      %3816 = vmatprep.subr.mxu0 %v3815
      %v3817 = vand.u32 %v982, 4294901760
      %v3818 = vsub.f32 %v982, %v3817
      %v3819 = vand.u32 %v3818, 4294901760
      %v3820 = vsub.f32 %v3818, %v3819
      %v3821 = vand.u32 %v3820, 4294901760
      %3822 = vmatpush1.msra.mxu0 %v3821
      %v3823 = vand.u32 %v986, 4294901760
      %v3824 = vsub.f32 %v986, %v3823
      %v3825 = vand.u32 %v3824, 4294901760
      %v3826 = vsub.f32 %v3824, %v3825
      %v3827 = vand.u32 %v3826, 4294901760
      %3828 = vmatprep.subr.mxu0 %v3827
      %v3829 = vand.u32 %v985, 4294901760
      %v3830 = vsub.f32 %v985, %v3829
      %v3831 = vand.u32 %v3830, 4294901760
      %v3832 = vsub.f32 %v3830, %v3831
      %v3833 = vand.u32 %v3832, 4294901760
      %3834 = vmatpush1.msra.mxu0 %v3833
      %v3835 = vand.u32 %v989, 4294901760
      %v3836 = vsub.f32 %v989, %v3835
      %v3837 = vand.u32 %v3836, 4294901760
      %v3838 = vsub.f32 %v3836, %v3837
      %v3839 = vand.u32 %v3838, 4294901760
      %3840 = vmatprep.subr.mxu0 %v3839
      %v3841 = vand.u32 %v988, 4294901760
      %v3842 = vsub.f32 %v988, %v3841
      %v3843 = vand.u32 %v3842, 4294901760
      %v3844 = vsub.f32 %v3842, %v3843
      %v3845 = vand.u32 %v3844, 4294901760
      %3846 = vmatpush1.msra.mxu0 %v3845
      %v3847 = vand.u32 %v1048, 4294901760
      %v3848 = vsub.f32 %v1048, %v3847
      %v3849 = vand.u32 %v3848, 4294901760
      %v3850 = vsub.f32 %v3848, %v3849
      %v3851 = vand.u32 %v3850, 4294901760
      %3852 = vmatprep.subr.mxu0 %v3851
      %v3853 = vand.u32 %v1047, 4294901760
      %v3854 = vsub.f32 %v1047, %v3853
      %v3855 = vand.u32 %v3854, 4294901760
      %v3856 = vsub.f32 %v3854, %v3855
      %v3857 = vand.u32 %v3856, 4294901760
      %3858 = vmatpush1.msra.mxu0 %v3857
      %v3859 = vand.u32 %v1051, 4294901760
      %v3860 = vsub.f32 %v1051, %v3859
      %v3861 = vand.u32 %v3860, 4294901760
      %v3862 = vsub.f32 %v3860, %v3861
      %v3863 = vand.u32 %v3862, 4294901760
      %3864 = vmatprep.subr.mxu0 %v3863
      %v3865 = vand.u32 %v1050, 4294901760
      %v3866 = vsub.f32 %v1050, %v3865
      %v3867 = vand.u32 %v3866, 4294901760
      %v3868 = vsub.f32 %v3866, %v3867
      %v3869 = vand.u32 %v3868, 4294901760
      %3870 = vmatpush1.msra.mxu0 %v3869
      %v3871 = vand.u32 %v1054, 4294901760
      %v3872 = vsub.f32 %v1054, %v3871
      %v3873 = vand.u32 %v3872, 4294901760
      %v3874 = vsub.f32 %v3872, %v3873
      %v3875 = vand.u32 %v3874, 4294901760
      %3876 = vmatprep.subr.mxu0 %v3875
      %v3877 = vand.u32 %v1053, 4294901760
      %v3878 = vsub.f32 %v1053, %v3877
      %v3879 = vand.u32 %v3878, 4294901760
      %v3880 = vsub.f32 %v3878, %v3879
      %v3881 = vand.u32 %v3880, 4294901760
      %3882 = vmatpush1.msra.mxu0 %v3881
      %v3883 = vand.u32 %v1057, 4294901760
      %v3884 = vsub.f32 %v1057, %v3883
      %v3885 = vand.u32 %v3884, 4294901760
      %v3886 = vsub.f32 %v3884, %v3885
      %v3887 = vand.u32 %v3886, 4294901760
      %3888 = vmatprep.subr.mxu0 %v3887
      %v3889 = vand.u32 %v1056, 4294901760
      %v3890 = vsub.f32 %v1056, %v3889
      %v3891 = vand.u32 %v3890, 4294901760
      %v3892 = vsub.f32 %v3890, %v3891
      %v3893 = vand.u32 %v3892, 4294901760
      %3894 = vmatpush1.msra.mxu0 %v3893
      %v3895 = vand.u32 %v1060, 4294901760
      %v3896 = vsub.f32 %v1060, %v3895
      %v3897 = vand.u32 %v3896, 4294901760
      %v3898 = vsub.f32 %v3896, %v3897
      %v3899 = vand.u32 %v3898, 4294901760
      %3900 = vmatprep.subr.mxu0 %v3899
      %v3901 = vand.u32 %v1059, 4294901760
      %v3902 = vsub.f32 %v1059, %v3901
      %v3903 = vand.u32 %v3902, 4294901760
      %v3904 = vsub.f32 %v3902, %v3903
      %v3905 = vand.u32 %v3904, 4294901760
      %3906 = vmatpush1.msra.mxu0 %v3905
      %3907 = vmatprep.subr.mxu0 0.0
      %3908 = vmatpush1.msra.mxu0 0.0
      %3909 = vmatprep.subr.mxu0 0.0
      %3910 = vmatpush1.msra.mxu0 0.0
      %3911 = vmatprep.subr.mxu0 0.0
      %3912 = vmatpush1.msra.mxu0 0.0
      %3913 = vmatprep.subr.mxu0 0.0
      %3914 = vmatpush1.msra.mxu0 0.0
      %3915 = vmatprep.subr.mxu0 0.0
      %3916 = vmatpush1.msra.mxu0 0.0
      %3917 = vmatprep.subr.mxu0 0.0
      %3918 = vmatpush1.msra.mxu0 0.0
      %3919 = vmatprep.subr.mxu0 0.0
      %3920 = vmatpush1.msra.mxu0 0.0
      %3921 = vmatprep.subr.mxu0 0.0
      %3922 = vmatpush1.msra.mxu0 0.0
      %3923 = vmatprep.subr.mxu0 0.0
      %3924 = vmatpush1.msra.mxu0 0.0
      %3925 = vmatprep.subr.mxu0 0.0
      %3926 = vmatpush1.msra.mxu0 0.0
      %3927 = vmatprep.subr.mxu0 0.0
      %3928 = vmatpush1.msra.mxu0 0.0
      %3929 = vmatprep.subr.mxu0 0.0
      %3930 = vmatpush1.msra.mxu0 0.0
      %3931 = vmatprep.subr.mxu0 0.0
      %3932 = vmatpush1.msra.mxu0 0.0
      %3933 = vmatprep.subr.mxu0 0.0
      %3934 = vmatpush1.msra.mxu0 0.0
      %3935 = vmatprep.subr.mxu0 0.0
      %3936 = vmatpush1.msra.mxu0 0.0
      %3937 = vmatprep.subr.mxu0 0.0
      %3938 = vmatpush1.msra.mxu0 0.0
      %3939 = vmatprep.subr.mxu0 0.0
      %3940 = vmatpush1.msra.mxu0 0.0
      %3941 = vmatprep.subr.mxu0 0.0
      %3942 = vmatpush1.msra.mxu0 0.0
      %3943 = vmatprep.subr.mxu0 0.0
      %3944 = vmatpush1.msra.mxu0 0.0
      %3945 = vmatprep.mubr.f32.mxu0 0.0
      %v3946 = vand.u32 %v1223, 4294901760
      %3947 = vmatmul.mubr.f32.gmra.mrb[0].mxu0 %v3946
      %v3948 = vpop.f32.mrb[0].mxu0
      %v3949 = vadd.f32 %v3582, %v3948
      %v3950 = vpop.f32.mrb[0].mxu0
      %v3951 = vadd.f32 %v3584, %v3950
      %3952 = vmatprep.mubr.f32.mxu0 0.0
      %v3953 = vand.u32 %v1226, 4294901760
      %3954 = vmatmul.mubr.f32.gmra.mrb[0].mxu0 %v3953
      %v3955 = vpop.f32.mrb[0].mxu0
      %v3956 = vadd.f32 %v3593, %v3955
      %v3957 = vpop.f32.mrb[0].mxu0
      %v3958 = vadd.f32 %v3595, %v3957
      %3959 = vmatprep.mubr.f32.mxu0 0.0
      %v3960 = vand.u32 %v1229, 4294901760
      %3961 = vmatmul.mubr.f32.gmra.mrb[0].mxu0 %v3960
      %v3962 = vpop.f32.mrb[0].mxu0
      %v3963 = vadd.f32 %v3604, %v3962
      %v3964 = vpop.f32.mrb[0].mxu0
      %v3965 = vadd.f32 %v3606, %v3964
      %3966 = vmatprep.mubr.f32.mxu0 0.0
      %v3967 = vand.u32 %v1232, 4294901760
      %3968 = vmatmul.mubr.f32.gmra.mrb[0].mxu0 %v3967
      %v3969 = vpop.f32.mrb[0].mxu0
      %v3970 = vadd.f32 %v3615, %v3969
      %v3971 = vpop.f32.mrb[0].mxu0
      %v3972 = vadd.f32 %v3617, %v3971
      %3973 = vmatprep.mubr.f32.mxu0 0.0
      %v3974 = vand.u32 %v1235, 4294901760
      %3975 = vmatmul.mubr.f32.gmra.mrb[0].mxu0 %v3974
      %v3976 = vpop.f32.mrb[0].mxu0
      %v3977 = vadd.f32 %v3626, %v3976
      %v3978 = vpop.f32.mrb[0].mxu0
      %v3979 = vadd.f32 %v3628, %v3978
      %3980 = vmatprep.mubr.f32.mxu0 0.0
      %v3981 = vand.u32 %v1238, 4294901760
      %3982 = vmatmul.mubr.f32.gmra.mrb[0].mxu0 %v3981
      %v3983 = vpop.f32.mrb[0].mxu0
      %v3984 = vadd.f32 %v3637, %v3983
      %v3985 = vpop.f32.mrb[0].mxu0
      %v3986 = vadd.f32 %v3639, %v3985
      %3987 = vmatprep.mubr.f32.mxu0 0.0
      %v3988 = vand.u32 %v1241, 4294901760
      %3989 = vmatmul.mubr.f32.gmra.mrb[0].mxu0 %v3988
      %v3990 = vpop.f32.mrb[0].mxu0
      %v3991 = vadd.f32 %v3648, %v3990
      %v3992 = vpop.f32.mrb[0].mxu0
      %v3993 = vadd.f32 %v3650, %v3992
      %3994 = vmatprep.mubr.f32.mxu0 0.0
      %v3995 = vand.u32 %v1244, 4294901760
      %3996 = vmatmul.mubr.f32.gmra.mrb[0].mxu0 %v3995
      %v3997 = vpop.f32.mrb[0].mxu0
      %v3998 = vadd.f32 %v3659, %v3997
      %v3999 = vpop.f32.mrb[0].mxu0
      %v4000 = vadd.f32 %v3661, %v3999
      %4001 = vmatprep.mubr.f32.mxu0 0.0
      %v4002 = vand.u32 %v1247, 4294901760
      %4003 = vmatmul.mubr.f32.gmra.mrb[0].mxu0 %v4002
      %v4004 = vpop.f32.mrb[0].mxu0
      %v4005 = vadd.f32 %v3670, %v4004
      %v4006 = vpop.f32.mrb[0].mxu0
      %v4007 = vadd.f32 %v3672, %v4006
      %4008 = vmatprep.mubr.f32.mxu0 0.0
      %v4009 = vand.u32 %v1250, 4294901760
      %4010 = vmatmul.mubr.f32.gmra.mrb[0].mxu0 %v4009
      %v4011 = vpop.f32.mrb[0].mxu0
      %v4012 = vadd.f32 %v3681, %v4011
      %v4013 = vpop.f32.mrb[0].mxu0
      %v4014 = vadd.f32 %v3683, %v4013
      %4015 = vmatprep.mubr.f32.mxu0 0.0
      %v4016 = vand.u32 %v1253, 4294901760
      %4017 = vmatmul.mubr.f32.gmra.mrb[0].mxu0 %v4016
      %v4018 = vpop.f32.mrb[0].mxu0
      %v4019 = vadd.f32 %v3692, %v4018
      %v4020 = vpop.f32.mrb[0].mxu0
      %v4021 = vadd.f32 %v3694, %v4020
      %4022 = vmatprep.mubr.f32.mxu0 0.0
      %v4023 = vand.u32 %v1256, 4294901760
      %4024 = vmatmul.mubr.f32.gmra.mrb[0].mxu0 %v4023
      %v4025 = vpop.f32.mrb[0].mxu0
      %v4026 = vadd.f32 %v3703, %v4025
      %v4027 = vpop.f32.mrb[0].mxu0
      %v4028 = vadd.f32 %v3705, %v4027
      %4029 = vmatprep.mubr.f32.mxu0 0.0
      %v4030 = vand.u32 %v1259, 4294901760
      %4031 = vmatmul.mubr.f32.gmra.mrb[0].mxu0 %v4030
      %v4032 = vpop.f32.mrb[0].mxu0
      %v4033 = vadd.f32 %v3714, %v4032
      %v4034 = vpop.f32.mrb[0].mxu0
      %v4035 = vadd.f32 %v3716, %v4034
      %4036 = vmatprep.mubr.f32.mxu0 0.0
      %v4037 = vand.u32 %v1262, 4294901760
      %4038 = vmatmul.mubr.f32.gmra.mrb[0].mxu0 %v4037
      %v4039 = vpop.f32.mrb[0].mxu0
      %v4040 = vadd.f32 %v3725, %v4039
      %v4041 = vpop.f32.mrb[0].mxu0
      %v4042 = vadd.f32 %v3727, %v4041
      %4043 = vmatprep.mubr.f32.mxu0 0.0
      %v4044 = vand.u32 %v1265, 4294901760
      %4045 = vmatmul.mubr.f32.gmra.mrb[0].mxu0 %v4044
      %v4046 = vpop.f32.mrb[0].mxu0
      %v4047 = vadd.f32 %v3736, %v4046
      %v4048 = vpop.f32.mrb[0].mxu0
      %v4049 = vadd.f32 %v3738, %v4048
      %4050 = vmatprep.mubr.f32.mxu0 0.0
      %v4051 = vand.u32 %v1268, 4294901760
      %4052 = vmatmul.mubr.f32.gmra.mrb[0].mxu0 %v4051
      %v4053 = vpop.f32.mrb[0].mxu0
      %v4054 = vadd.f32 %v3747, %v4053
      %v4055 = vpop.f32.mrb[0].mxu0
      %v4056 = vadd.f32 %v3749, %v4055
      %4057 = vdwg.mxu0
      %v4058 = vand.u32 %v912, 4294901760
      %v4059 = vsub.f32 %v912, %v4058
      %4060 = vmatprep.subr.mxu0 %v4059
      %v4061 = vand.u32 %v911, 4294901760
      %v4062 = vsub.f32 %v911, %v4061
      %4063 = vmatpush1.msra.mxu0 %v4062
      %v4064 = vand.u32 %v915, 4294901760
      %v4065 = vsub.f32 %v915, %v4064
      %4066 = vmatprep.subr.mxu0 %v4065
      %v4067 = vand.u32 %v914, 4294901760
      %v4068 = vsub.f32 %v914, %v4067
      %4069 = vmatpush1.msra.mxu0 %v4068
      %v4070 = vand.u32 %v918, 4294901760
      %v4071 = vsub.f32 %v918, %v4070
      %4072 = vmatprep.subr.mxu0 %v4071
      %v4073 = vand.u32 %v917, 4294901760
      %v4074 = vsub.f32 %v917, %v4073
      %4075 = vmatpush1.msra.mxu0 %v4074
      %v4076 = vand.u32 %v977, 4294901760
      %v4077 = vsub.f32 %v977, %v4076
      %4078 = vmatprep.subr.mxu0 %v4077
      %v4079 = vand.u32 %v976, 4294901760
      %v4080 = vsub.f32 %v976, %v4079
      %4081 = vmatpush1.msra.mxu0 %v4080
      %v4082 = vand.u32 %v980, 4294901760
      %v4083 = vsub.f32 %v980, %v4082
      %4084 = vmatprep.subr.mxu0 %v4083
      %v4085 = vand.u32 %v979, 4294901760
      %v4086 = vsub.f32 %v979, %v4085
      %4087 = vmatpush1.msra.mxu0 %v4086
      %v4088 = vand.u32 %v983, 4294901760
      %v4089 = vsub.f32 %v983, %v4088
      %4090 = vmatprep.subr.mxu0 %v4089
      %v4091 = vand.u32 %v982, 4294901760
      %v4092 = vsub.f32 %v982, %v4091
      %4093 = vmatpush1.msra.mxu0 %v4092
      %v4094 = vand.u32 %v986, 4294901760
      %v4095 = vsub.f32 %v986, %v4094
      %4096 = vmatprep.subr.mxu0 %v4095
      %v4097 = vand.u32 %v985, 4294901760
      %v4098 = vsub.f32 %v985, %v4097
      %4099 = vmatpush1.msra.mxu0 %v4098
      %v4100 = vand.u32 %v989, 4294901760
      %v4101 = vsub.f32 %v989, %v4100
      %4102 = vmatprep.subr.mxu0 %v4101
      %v4103 = vand.u32 %v988, 4294901760
      %v4104 = vsub.f32 %v988, %v4103
      %4105 = vmatpush1.msra.mxu0 %v4104
      %v4106 = vand.u32 %v1048, 4294901760
      %v4107 = vsub.f32 %v1048, %v4106
      %4108 = vmatprep.subr.mxu0 %v4107
      %v4109 = vand.u32 %v1047, 4294901760
      %v4110 = vsub.f32 %v1047, %v4109
      %4111 = vmatpush1.msra.mxu0 %v4110
      %v4112 = vand.u32 %v1051, 4294901760
      %v4113 = vsub.f32 %v1051, %v4112
      %4114 = vmatprep.subr.mxu0 %v4113
      %v4115 = vand.u32 %v1050, 4294901760
      %v4116 = vsub.f32 %v1050, %v4115
      %4117 = vmatpush1.msra.mxu0 %v4116
      %v4118 = vand.u32 %v1054, 4294901760
      %v4119 = vsub.f32 %v1054, %v4118
      %4120 = vmatprep.subr.mxu0 %v4119
      %v4121 = vand.u32 %v1053, 4294901760
      %v4122 = vsub.f32 %v1053, %v4121
      %4123 = vmatpush1.msra.mxu0 %v4122
      %v4124 = vand.u32 %v1057, 4294901760
      %v4125 = vsub.f32 %v1057, %v4124
      %4126 = vmatprep.subr.mxu0 %v4125
      %v4127 = vand.u32 %v1056, 4294901760
      %v4128 = vsub.f32 %v1056, %v4127
      %4129 = vmatpush1.msra.mxu0 %v4128
      %v4130 = vand.u32 %v1060, 4294901760
      %v4131 = vsub.f32 %v1060, %v4130
      %4132 = vmatprep.subr.mxu0 %v4131
      %v4133 = vand.u32 %v1059, 4294901760
      %v4134 = vsub.f32 %v1059, %v4133
      %4135 = vmatpush1.msra.mxu0 %v4134
      %4136 = vmatprep.subr.mxu0 0.0
      %4137 = vmatpush1.msra.mxu0 0.0
      %4138 = vmatprep.subr.mxu0 0.0
      %4139 = vmatpush1.msra.mxu0 0.0
      %4140 = vmatprep.subr.mxu0 0.0
      %4141 = vmatpush1.msra.mxu0 0.0
      %4142 = vmatprep.subr.mxu0 0.0
      %4143 = vmatpush1.msra.mxu0 0.0
      %4144 = vmatprep.subr.mxu0 0.0
      %4145 = vmatpush1.msra.mxu0 0.0
      %4146 = vmatprep.subr.mxu0 0.0
      %4147 = vmatpush1.msra.mxu0 0.0
      %4148 = vmatprep.subr.mxu0 0.0
      %4149 = vmatpush1.msra.mxu0 0.0
      %4150 = vmatprep.subr.mxu0 0.0
      %4151 = vmatpush1.msra.mxu0 0.0
      %4152 = vmatprep.subr.mxu0 0.0
      %4153 = vmatpush1.msra.mxu0 0.0
      %4154 = vmatprep.subr.mxu0 0.0
      %4155 = vmatpush1.msra.mxu0 0.0
      %4156 = vmatprep.subr.mxu0 0.0
      %4157 = vmatpush1.msra.mxu0 0.0
      %4158 = vmatprep.subr.mxu0 0.0
      %4159 = vmatpush1.msra.mxu0 0.0
      %4160 = vmatprep.subr.mxu0 0.0
      %4161 = vmatpush1.msra.mxu0 0.0
      %4162 = vmatprep.subr.mxu0 0.0
      %4163 = vmatpush1.msra.mxu0 0.0
      %4164 = vmatprep.subr.mxu0 0.0
      %4165 = vmatpush1.msra.mxu0 0.0
      %4166 = vmatprep.subr.mxu0 0.0
      %4167 = vmatpush1.msra.mxu0 0.0
      %4168 = vmatprep.subr.mxu0 0.0
      %4169 = vmatpush1.msra.mxu0 0.0
      %4170 = vmatprep.subr.mxu0 0.0
      %4171 = vmatpush1.msra.mxu0 0.0
      %4172 = vmatprep.subr.mxu0 0.0
      %4173 = vmatpush1.msra.mxu0 0.0
      %4174 = vmatprep.mubr.f32.mxu0 0.0
      %v4175 = vand.u32 %v1223, 4294901760
      %v4176 = vsub.f32 %v1223, %v4175
      %4177 = vmatmul.mubr.f32.gmra.mrb[0].mxu0 %v4176
      %v4178 = vpop.f32.mrb[0].mxu0
      %v4179 = vadd.f32 %v3949, %v4178
      %v4180 = vpop.f32.mrb[0].mxu0
      %v4181 = vadd.f32 %v3951, %v4180
      %4182 = vmatprep.mubr.f32.mxu0 0.0
      %v4183 = vand.u32 %v1226, 4294901760
      %v4184 = vsub.f32 %v1226, %v4183
      %4185 = vmatmul.mubr.f32.gmra.mrb[0].mxu0 %v4184
      %v4186 = vpop.f32.mrb[0].mxu0
      %v4187 = vadd.f32 %v3956, %v4186
      %v4188 = vpop.f32.mrb[0].mxu0
      %v4189 = vadd.f32 %v3958, %v4188
      %4190 = vmatprep.mubr.f32.mxu0 0.0
      %v4191 = vand.u32 %v1229, 4294901760
      %v4192 = vsub.f32 %v1229, %v4191
      %4193 = vmatmul.mubr.f32.gmra.mrb[0].mxu0 %v4192
      %v4194 = vpop.f32.mrb[0].mxu0
      %v4195 = vadd.f32 %v3963, %v4194
      %v4196 = vpop.f32.mrb[0].mxu0
      %v4197 = vadd.f32 %v3965, %v4196
      %4198 = vmatprep.mubr.f32.mxu0 0.0
      %v4199 = vand.u32 %v1232, 4294901760
      %v4200 = vsub.f32 %v1232, %v4199
      %4201 = vmatmul.mubr.f32.gmra.mrb[0].mxu0 %v4200
      %v4202 = vpop.f32.mrb[0].mxu0
      %v4203 = vadd.f32 %v3970, %v4202
      %v4204 = vpop.f32.mrb[0].mxu0
      %v4205 = vadd.f32 %v3972, %v4204
      %4206 = vmatprep.mubr.f32.mxu0 0.0
      %v4207 = vand.u32 %v1235, 4294901760
      %v4208 = vsub.f32 %v1235, %v4207
      %4209 = vmatmul.mubr.f32.gmra.mrb[0].mxu0 %v4208
      %v4210 = vpop.f32.mrb[0].mxu0
      %v4211 = vadd.f32 %v3977, %v4210
      %v4212 = vpop.f32.mrb[0].mxu0
      %v4213 = vadd.f32 %v3979, %v4212
      %4214 = vmatprep.mubr.f32.mxu0 0.0
      %v4215 = vand.u32 %v1238, 4294901760
      %v4216 = vsub.f32 %v1238, %v4215
      %4217 = vmatmul.mubr.f32.gmra.mrb[0].mxu0 %v4216
      %v4218 = vpop.f32.mrb[0].mxu0
      %v4219 = vadd.f32 %v3984, %v4218
      %v4220 = vpop.f32.mrb[0].mxu0
      %v4221 = vadd.f32 %v3986, %v4220
      %4222 = vmatprep.mubr.f32.mxu0 0.0
      %v4223 = vand.u32 %v1241, 4294901760
      %v4224 = vsub.f32 %v1241, %v4223
      %4225 = vmatmul.mubr.f32.gmra.mrb[0].mxu0 %v4224
      %v4226 = vpop.f32.mrb[0].mxu0
      %v4227 = vadd.f32 %v3991, %v4226
      %v4228 = vpop.f32.mrb[0].mxu0
      %v4229 = vadd.f32 %v3993, %v4228
      %4230 = vmatprep.mubr.f32.mxu0 0.0
      %v4231 = vand.u32 %v1244, 4294901760
      %v4232 = vsub.f32 %v1244, %v4231
      %4233 = vmatmul.mubr.f32.gmra.mrb[0].mxu0 %v4232
      %v4234 = vpop.f32.mrb[0].mxu0
      %v4235 = vadd.f32 %v3998, %v4234
      %v4236 = vpop.f32.mrb[0].mxu0
      %v4237 = vadd.f32 %v4000, %v4236
      %4238 = vmatprep.mubr.f32.mxu0 0.0
      %v4239 = vand.u32 %v1247, 4294901760
      %v4240 = vsub.f32 %v1247, %v4239
      %4241 = vmatmul.mubr.f32.gmra.mrb[0].mxu0 %v4240
      %v4242 = vpop.f32.mrb[0].mxu0
      %v4243 = vadd.f32 %v4005, %v4242
      %v4244 = vpop.f32.mrb[0].mxu0
      %v4245 = vadd.f32 %v4007, %v4244
      %4246 = vmatprep.mubr.f32.mxu0 0.0
      %v4247 = vand.u32 %v1250, 4294901760
      %v4248 = vsub.f32 %v1250, %v4247
      %4249 = vmatmul.mubr.f32.gmra.mrb[0].mxu0 %v4248
      %v4250 = vpop.f32.mrb[0].mxu0
      %v4251 = vadd.f32 %v4012, %v4250
      %v4252 = vpop.f32.mrb[0].mxu0
      %v4253 = vadd.f32 %v4014, %v4252
      %4254 = vmatprep.mubr.f32.mxu0 0.0
      %v4255 = vand.u32 %v1253, 4294901760
      %v4256 = vsub.f32 %v1253, %v4255
      %4257 = vmatmul.mubr.f32.gmra.mrb[0].mxu0 %v4256
      %v4258 = vpop.f32.mrb[0].mxu0
      %v4259 = vadd.f32 %v4019, %v4258
      %v4260 = vpop.f32.mrb[0].mxu0
      %v4261 = vadd.f32 %v4021, %v4260
      %4262 = vmatprep.mubr.f32.mxu0 0.0
      %v4263 = vand.u32 %v1256, 4294901760
      %v4264 = vsub.f32 %v1256, %v4263
      %4265 = vmatmul.mubr.f32.gmra.mrb[0].mxu0 %v4264
      %v4266 = vpop.f32.mrb[0].mxu0
      %v4267 = vadd.f32 %v4026, %v4266
      %v4268 = vpop.f32.mrb[0].mxu0
      %v4269 = vadd.f32 %v4028, %v4268
      %4270 = vmatprep.mubr.f32.mxu0 0.0
      %v4271 = vand.u32 %v1259, 4294901760
      %v4272 = vsub.f32 %v1259, %v4271
      %4273 = vmatmul.mubr.f32.gmra.mrb[0].mxu0 %v4272
      %v4274 = vpop.f32.mrb[0].mxu0
      %v4275 = vadd.f32 %v4033, %v4274
      %v4276 = vpop.f32.mrb[0].mxu0
      %v4277 = vadd.f32 %v4035, %v4276
      %4278 = vmatprep.mubr.f32.mxu0 0.0
      %v4279 = vand.u32 %v1262, 4294901760
      %v4280 = vsub.f32 %v1262, %v4279
      %4281 = vmatmul.mubr.f32.gmra.mrb[0].mxu0 %v4280
      %v4282 = vpop.f32.mrb[0].mxu0
      %v4283 = vadd.f32 %v4040, %v4282
      %v4284 = vpop.f32.mrb[0].mxu0
      %v4285 = vadd.f32 %v4042, %v4284
      %4286 = vmatprep.mubr.f32.mxu0 0.0
      %v4287 = vand.u32 %v1265, 4294901760
      %v4288 = vsub.f32 %v1265, %v4287
      %4289 = vmatmul.mubr.f32.gmra.mrb[0].mxu0 %v4288
      %v4290 = vpop.f32.mrb[0].mxu0
      %v4291 = vadd.f32 %v4047, %v4290
      %v4292 = vpop.f32.mrb[0].mxu0
      %v4293 = vadd.f32 %v4049, %v4292
      %4294 = vmatprep.mubr.f32.mxu0 0.0
      %v4295 = vand.u32 %v1268, 4294901760
      %v4296 = vsub.f32 %v1268, %v4295
      %4297 = vmatmul.mubr.f32.gmra.mrb[0].mxu0 %v4296
      %v4298 = vpop.f32.mrb[0].mxu0
      %v4299 = vadd.f32 %v4054, %v4298
      %v4300 = vpop.f32.mrb[0].mxu0
      %v4301 = vadd.f32 %v4056, %v4300
      %4302 = vdwg.mxu0
      %v4303 = vand.u32 %v912, 4294901760
      %4304 = vmatprep.subr.mxu0 %v4303
      %v4305 = vand.u32 %v911, 4294901760
      %4306 = vmatpush1.msra.mxu0 %v4305
      %v4307 = vand.u32 %v915, 4294901760
      %4308 = vmatprep.subr.mxu0 %v4307
      %v4309 = vand.u32 %v914, 4294901760
      %4310 = vmatpush1.msra.mxu0 %v4309
      %v4311 = vand.u32 %v918, 4294901760
      %4312 = vmatprep.subr.mxu0 %v4311
      %v4313 = vand.u32 %v917, 4294901760
      %4314 = vmatpush1.msra.mxu0 %v4313
      %v4315 = vand.u32 %v977, 4294901760
      %4316 = vmatprep.subr.mxu0 %v4315
      %v4317 = vand.u32 %v976, 4294901760
      %4318 = vmatpush1.msra.mxu0 %v4317
      %v4319 = vand.u32 %v980, 4294901760
      %4320 = vmatprep.subr.mxu0 %v4319
      %v4321 = vand.u32 %v979, 4294901760
      %4322 = vmatpush1.msra.mxu0 %v4321
      %v4323 = vand.u32 %v983, 4294901760
      %4324 = vmatprep.subr.mxu0 %v4323
      %v4325 = vand.u32 %v982, 4294901760
      %4326 = vmatpush1.msra.mxu0 %v4325
      %v4327 = vand.u32 %v986, 4294901760
      %4328 = vmatprep.subr.mxu0 %v4327
      %v4329 = vand.u32 %v985, 4294901760
      %4330 = vmatpush1.msra.mxu0 %v4329
      %v4331 = vand.u32 %v989, 4294901760
      %4332 = vmatprep.subr.mxu0 %v4331
      %v4333 = vand.u32 %v988, 4294901760
      %4334 = vmatpush1.msra.mxu0 %v4333
      %v4335 = vand.u32 %v1048, 4294901760
      %4336 = vmatprep.subr.mxu0 %v4335
      %v4337 = vand.u32 %v1047, 4294901760
      %4338 = vmatpush1.msra.mxu0 %v4337
      %v4339 = vand.u32 %v1051, 4294901760
      %4340 = vmatprep.subr.mxu0 %v4339
      %v4341 = vand.u32 %v1050, 4294901760
      %4342 = vmatpush1.msra.mxu0 %v4341
      %v4343 = vand.u32 %v1054, 4294901760
      %4344 = vmatprep.subr.mxu0 %v4343
      %v4345 = vand.u32 %v1053, 4294901760
      %4346 = vmatpush1.msra.mxu0 %v4345
      %v4347 = vand.u32 %v1057, 4294901760
      %4348 = vmatprep.subr.mxu0 %v4347
      %v4349 = vand.u32 %v1056, 4294901760
      %4350 = vmatpush1.msra.mxu0 %v4349
      %v4351 = vand.u32 %v1060, 4294901760
      %4352 = vmatprep.subr.mxu0 %v4351
      %v4353 = vand.u32 %v1059, 4294901760
      %4354 = vmatpush1.msra.mxu0 %v4353
      %4355 = vmatprep.subr.mxu0 0.0
      %4356 = vmatpush1.msra.mxu0 0.0
      %4357 = vmatprep.subr.mxu0 0.0
      %4358 = vmatpush1.msra.mxu0 0.0
      %4359 = vmatprep.subr.mxu0 0.0
      %4360 = vmatpush1.msra.mxu0 0.0
      %4361 = vmatprep.subr.mxu0 0.0
      %4362 = vmatpush1.msra.mxu0 0.0
      %4363 = vmatprep.subr.mxu0 0.0
      %4364 = vmatpush1.msra.mxu0 0.0
      %4365 = vmatprep.subr.mxu0 0.0
      %4366 = vmatpush1.msra.mxu0 0.0
      %4367 = vmatprep.subr.mxu0 0.0
      %4368 = vmatpush1.msra.mxu0 0.0
      %4369 = vmatprep.subr.mxu0 0.0
      %4370 = vmatpush1.msra.mxu0 0.0
      %4371 = vmatprep.subr.mxu0 0.0
      %4372 = vmatpush1.msra.mxu0 0.0
      %4373 = vmatprep.subr.mxu0 0.0
      %4374 = vmatpush1.msra.mxu0 0.0
      %4375 = vmatprep.subr.mxu0 0.0
      %4376 = vmatpush1.msra.mxu0 0.0
      %4377 = vmatprep.subr.mxu0 0.0
      %4378 = vmatpush1.msra.mxu0 0.0
      %4379 = vmatprep.subr.mxu0 0.0
      %4380 = vmatpush1.msra.mxu0 0.0
      %4381 = vmatprep.subr.mxu0 0.0
      %4382 = vmatpush1.msra.mxu0 0.0
      %4383 = vmatprep.subr.mxu0 0.0
      %4384 = vmatpush1.msra.mxu0 0.0
      %4385 = vmatprep.subr.mxu0 0.0
      %4386 = vmatpush1.msra.mxu0 0.0
      %4387 = vmatprep.subr.mxu0 0.0
      %4388 = vmatpush1.msra.mxu0 0.0
      %4389 = vmatprep.subr.mxu0 0.0
      %4390 = vmatpush1.msra.mxu0 0.0
      %4391 = vmatprep.subr.mxu0 0.0
      %4392 = vmatpush1.msra.mxu0 0.0
      %4393 = vmatprep.mubr.f32.mxu0 0.0
      %v4394 = vand.u32 %v1223, 4294901760
      %v4395 = vsub.f32 %v1223, %v4394
      %v4396 = vand.u32 %v4395, 4294901760
      %4397 = vmatmul.mubr.f32.gmra.mrb[0].mxu0 %v4396
      %v4398 = vpop.f32.mrb[0].mxu0
      %v4399 = vadd.f32 %v4179, %v4398
      %v4400 = vpop.f32.mrb[0].mxu0
      %v4401 = vadd.f32 %v4181, %v4400
      %4402 = vmatprep.mubr.f32.mxu0 0.0
      %v4403 = vand.u32 %v1226, 4294901760
      %v4404 = vsub.f32 %v1226, %v4403
      %v4405 = vand.u32 %v4404, 4294901760
      %4406 = vmatmul.mubr.f32.gmra.mrb[0].mxu0 %v4405
      %v4407 = vpop.f32.mrb[0].mxu0
      %v4408 = vadd.f32 %v4187, %v4407
      %v4409 = vpop.f32.mrb[0].mxu0
      %v4410 = vadd.f32 %v4189, %v4409
      %4411 = vmatprep.mubr.f32.mxu0 0.0
      %v4412 = vand.u32 %v1229, 4294901760
      %v4413 = vsub.f32 %v1229, %v4412
      %v4414 = vand.u32 %v4413, 4294901760
      %4415 = vmatmul.mubr.f32.gmra.mrb[0].mxu0 %v4414
      %v4416 = vpop.f32.mrb[0].mxu0
      %v4417 = vadd.f32 %v4195, %v4416
      %v4418 = vpop.f32.mrb[0].mxu0
      %v4419 = vadd.f32 %v4197, %v4418
      %4420 = vmatprep.mubr.f32.mxu0 0.0
      %v4421 = vand.u32 %v1232, 4294901760
      %v4422 = vsub.f32 %v1232, %v4421
      %v4423 = vand.u32 %v4422, 4294901760
      %4424 = vmatmul.mubr.f32.gmra.mrb[0].mxu0 %v4423
      %v4425 = vpop.f32.mrb[0].mxu0
      %v4426 = vadd.f32 %v4203, %v4425
      %v4427 = vpop.f32.mrb[0].mxu0
      %v4428 = vadd.f32 %v4205, %v4427
      %4429 = vmatprep.mubr.f32.mxu0 0.0
      %v4430 = vand.u32 %v1235, 4294901760
      %v4431 = vsub.f32 %v1235, %v4430
      %v4432 = vand.u32 %v4431, 4294901760
      %4433 = vmatmul.mubr.f32.gmra.mrb[0].mxu0 %v4432
      %v4434 = vpop.f32.mrb[0].mxu0
      %v4435 = vadd.f32 %v4211, %v4434
      %v4436 = vpop.f32.mrb[0].mxu0
      %v4437 = vadd.f32 %v4213, %v4436
      %4438 = vmatprep.mubr.f32.mxu0 0.0
      %v4439 = vand.u32 %v1238, 4294901760
      %v4440 = vsub.f32 %v1238, %v4439
      %v4441 = vand.u32 %v4440, 4294901760
      %4442 = vmatmul.mubr.f32.gmra.mrb[0].mxu0 %v4441
      %v4443 = vpop.f32.mrb[0].mxu0
      %v4444 = vadd.f32 %v4219, %v4443
      %v4445 = vpop.f32.mrb[0].mxu0
      %v4446 = vadd.f32 %v4221, %v4445
      %4447 = vmatprep.mubr.f32.mxu0 0.0
      %v4448 = vand.u32 %v1241, 4294901760
      %v4449 = vsub.f32 %v1241, %v4448
      %v4450 = vand.u32 %v4449, 4294901760
      %4451 = vmatmul.mubr.f32.gmra.mrb[0].mxu0 %v4450
      %v4452 = vpop.f32.mrb[0].mxu0
      %v4453 = vadd.f32 %v4227, %v4452
      %v4454 = vpop.f32.mrb[0].mxu0
      %v4455 = vadd.f32 %v4229, %v4454
      %4456 = vmatprep.mubr.f32.mxu0 0.0
      %v4457 = vand.u32 %v1244, 4294901760
      %v4458 = vsub.f32 %v1244, %v4457
      %v4459 = vand.u32 %v4458, 4294901760
      %4460 = vmatmul.mubr.f32.gmra.mrb[0].mxu0 %v4459
      %v4461 = vpop.f32.mrb[0].mxu0
      %v4462 = vadd.f32 %v4235, %v4461
      %v4463 = vpop.f32.mrb[0].mxu0
      %v4464 = vadd.f32 %v4237, %v4463
      %4465 = vmatprep.mubr.f32.mxu0 0.0
      %v4466 = vand.u32 %v1247, 4294901760
      %v4467 = vsub.f32 %v1247, %v4466
      %v4468 = vand.u32 %v4467, 4294901760
      %4469 = vmatmul.mubr.f32.gmra.mrb[0].mxu0 %v4468
      %v4470 = vpop.f32.mrb[0].mxu0
      %v4471 = vadd.f32 %v4243, %v4470
      %v4472 = vpop.f32.mrb[0].mxu0
      %v4473 = vadd.f32 %v4245, %v4472
      %4474 = vmatprep.mubr.f32.mxu0 0.0
      %v4475 = vand.u32 %v1250, 4294901760
      %v4476 = vsub.f32 %v1250, %v4475
      %v4477 = vand.u32 %v4476, 4294901760
      %4478 = vmatmul.mubr.f32.gmra.mrb[0].mxu0 %v4477
      %v4479 = vpop.f32.mrb[0].mxu0
      %v4480 = vadd.f32 %v4251, %v4479
      %v4481 = vpop.f32.mrb[0].mxu0
      %v4482 = vadd.f32 %v4253, %v4481
      %4483 = vmatprep.mubr.f32.mxu0 0.0
      %v4484 = vand.u32 %v1253, 4294901760
      %v4485 = vsub.f32 %v1253, %v4484
      %v4486 = vand.u32 %v4485, 4294901760
      %4487 = vmatmul.mubr.f32.gmra.mrb[0].mxu0 %v4486
      %v4488 = vpop.f32.mrb[0].mxu0
      %v4489 = vadd.f32 %v4259, %v4488
      %v4490 = vpop.f32.mrb[0].mxu0
      %v4491 = vadd.f32 %v4261, %v4490
      %4492 = vmatprep.mubr.f32.mxu0 0.0
      %v4493 = vand.u32 %v1256, 4294901760
      %v4494 = vsub.f32 %v1256, %v4493
      %v4495 = vand.u32 %v4494, 4294901760
      %4496 = vmatmul.mubr.f32.gmra.mrb[0].mxu0 %v4495
      %v4497 = vpop.f32.mrb[0].mxu0
      %v4498 = vadd.f32 %v4267, %v4497
      %v4499 = vpop.f32.mrb[0].mxu0
      %v4500 = vadd.f32 %v4269, %v4499
      %4501 = vmatprep.mubr.f32.mxu0 0.0
      %v4502 = vand.u32 %v1259, 4294901760
      %v4503 = vsub.f32 %v1259, %v4502
      %v4504 = vand.u32 %v4503, 4294901760
      %4505 = vmatmul.mubr.f32.gmra.mrb[0].mxu0 %v4504
      %v4506 = vpop.f32.mrb[0].mxu0
      %v4507 = vadd.f32 %v4275, %v4506
      %v4508 = vpop.f32.mrb[0].mxu0
      %v4509 = vadd.f32 %v4277, %v4508
      %4510 = vmatprep.mubr.f32.mxu0 0.0
      %v4511 = vand.u32 %v1262, 4294901760
      %v4512 = vsub.f32 %v1262, %v4511
      %v4513 = vand.u32 %v4512, 4294901760
      %4514 = vmatmul.mubr.f32.gmra.mrb[0].mxu0 %v4513
      %v4515 = vpop.f32.mrb[0].mxu0
      %v4516 = vadd.f32 %v4283, %v4515
      %v4517 = vpop.f32.mrb[0].mxu0
      %v4518 = vadd.f32 %v4285, %v4517
      %4519 = vmatprep.mubr.f32.mxu0 0.0
      %v4520 = vand.u32 %v1265, 4294901760
      %v4521 = vsub.f32 %v1265, %v4520
      %v4522 = vand.u32 %v4521, 4294901760
      %4523 = vmatmul.mubr.f32.gmra.mrb[0].mxu0 %v4522
      %v4524 = vpop.f32.mrb[0].mxu0
      %v4525 = vadd.f32 %v4291, %v4524
      %v4526 = vpop.f32.mrb[0].mxu0
      %v4527 = vadd.f32 %v4293, %v4526
      %4528 = vmatprep.mubr.f32.mxu0 0.0
      %v4529 = vand.u32 %v1268, 4294901760
      %v4530 = vsub.f32 %v1268, %v4529
      %v4531 = vand.u32 %v4530, 4294901760
      %4532 = vmatmul.mubr.f32.gmra.mrb[0].mxu0 %v4531
      %v4533 = vpop.f32.mrb[0].mxu0
      %v4534 = vadd.f32 %v4299, %v4533
      %v4535 = vpop.f32.mrb[0].mxu0
      %v4536 = vadd.f32 %v4301, %v4535
      %4537 = vdwg.mxu0
      %v4538 = vand.u32 %v912, 4294901760
      %v4539 = vsub.f32 %v912, %v4538
      %v4540 = vand.u32 %v4539, 4294901760
      %4541 = vmatprep.subr.mxu0 %v4540
      %v4542 = vand.u32 %v911, 4294901760
      %v4543 = vsub.f32 %v911, %v4542
      %v4544 = vand.u32 %v4543, 4294901760
      %4545 = vmatpush1.msra.mxu0 %v4544
      %v4546 = vand.u32 %v915, 4294901760
      %v4547 = vsub.f32 %v915, %v4546
      %v4548 = vand.u32 %v4547, 4294901760
      %4549 = vmatprep.subr.mxu0 %v4548
      %v4550 = vand.u32 %v914, 4294901760
      %v4551 = vsub.f32 %v914, %v4550
      %v4552 = vand.u32 %v4551, 4294901760
      %4553 = vmatpush1.msra.mxu0 %v4552
      %v4554 = vand.u32 %v918, 4294901760
      %v4555 = vsub.f32 %v918, %v4554
      %v4556 = vand.u32 %v4555, 4294901760
      %4557 = vmatprep.subr.mxu0 %v4556
      %v4558 = vand.u32 %v917, 4294901760
      %v4559 = vsub.f32 %v917, %v4558
      %v4560 = vand.u32 %v4559, 4294901760
      %4561 = vmatpush1.msra.mxu0 %v4560
      %v4562 = vand.u32 %v977, 4294901760
      %v4563 = vsub.f32 %v977, %v4562
      %v4564 = vand.u32 %v4563, 4294901760
      %4565 = vmatprep.subr.mxu0 %v4564
      %v4566 = vand.u32 %v976, 4294901760
      %v4567 = vsub.f32 %v976, %v4566
      %v4568 = vand.u32 %v4567, 4294901760
      %4569 = vmatpush1.msra.mxu0 %v4568
      %v4570 = vand.u32 %v980, 4294901760
      %v4571 = vsub.f32 %v980, %v4570
      %v4572 = vand.u32 %v4571, 4294901760
      %4573 = vmatprep.subr.mxu0 %v4572
      %v4574 = vand.u32 %v979, 4294901760
      %v4575 = vsub.f32 %v979, %v4574
      %v4576 = vand.u32 %v4575, 4294901760
      %4577 = vmatpush1.msra.mxu0 %v4576
      %v4578 = vand.u32 %v983, 4294901760
      %v4579 = vsub.f32 %v983, %v4578
      %v4580 = vand.u32 %v4579, 4294901760
      %4581 = vmatprep.subr.mxu0 %v4580
      %v4582 = vand.u32 %v982, 4294901760
      %v4583 = vsub.f32 %v982, %v4582
      %v4584 = vand.u32 %v4583, 4294901760
      %4585 = vmatpush1.msra.mxu0 %v4584
      %v4586 = vand.u32 %v986, 4294901760
      %v4587 = vsub.f32 %v986, %v4586
      %v4588 = vand.u32 %v4587, 4294901760
      %4589 = vmatprep.subr.mxu0 %v4588
      %v4590 = vand.u32 %v985, 4294901760
      %v4591 = vsub.f32 %v985, %v4590
      %v4592 = vand.u32 %v4591, 4294901760
      %4593 = vmatpush1.msra.mxu0 %v4592
      %v4594 = vand.u32 %v989, 4294901760
      %v4595 = vsub.f32 %v989, %v4594
      %v4596 = vand.u32 %v4595, 4294901760
      %4597 = vmatprep.subr.mxu0 %v4596
      %v4598 = vand.u32 %v988, 4294901760
      %v4599 = vsub.f32 %v988, %v4598
      %v4600 = vand.u32 %v4599, 4294901760
      %4601 = vmatpush1.msra.mxu0 %v4600
      %v4602 = vand.u32 %v1048, 4294901760
      %v4603 = vsub.f32 %v1048, %v4602
      %v4604 = vand.u32 %v4603, 4294901760
      %4605 = vmatprep.subr.mxu0 %v4604
      %v4606 = vand.u32 %v1047, 4294901760
      %v4607 = vsub.f32 %v1047, %v4606
      %v4608 = vand.u32 %v4607, 4294901760
      %4609 = vmatpush1.msra.mxu0 %v4608
      %v4610 = vand.u32 %v1051, 4294901760
      %v4611 = vsub.f32 %v1051, %v4610
      %v4612 = vand.u32 %v4611, 4294901760
      %4613 = vmatprep.subr.mxu0 %v4612
      %v4614 = vand.u32 %v1050, 4294901760
      %v4615 = vsub.f32 %v1050, %v4614
      %v4616 = vand.u32 %v4615, 4294901760
      %4617 = vmatpush1.msra.mxu0 %v4616
      %v4618 = vand.u32 %v1054, 4294901760
      %v4619 = vsub.f32 %v1054, %v4618
      %v4620 = vand.u32 %v4619, 4294901760
      %4621 = vmatprep.subr.mxu0 %v4620
      %v4622 = vand.u32 %v1053, 4294901760
      %v4623 = vsub.f32 %v1053, %v4622
      %v4624 = vand.u32 %v4623, 4294901760
      %4625 = vmatpush1.msra.mxu0 %v4624
      %v4626 = vand.u32 %v1057, 4294901760
      %v4627 = vsub.f32 %v1057, %v4626
      %v4628 = vand.u32 %v4627, 4294901760
      %4629 = vmatprep.subr.mxu0 %v4628
      %v4630 = vand.u32 %v1056, 4294901760
      %v4631 = vsub.f32 %v1056, %v4630
      %v4632 = vand.u32 %v4631, 4294901760
      %4633 = vmatpush1.msra.mxu0 %v4632
      %v4634 = vand.u32 %v1060, 4294901760
      %v4635 = vsub.f32 %v1060, %v4634
      %v4636 = vand.u32 %v4635, 4294901760
      %4637 = vmatprep.subr.mxu0 %v4636
      %v4638 = vand.u32 %v1059, 4294901760
      %v4639 = vsub.f32 %v1059, %v4638
      %v4640 = vand.u32 %v4639, 4294901760
      %4641 = vmatpush1.msra.mxu0 %v4640
      %4642 = vmatprep.subr.mxu0 0.0
      %4643 = vmatpush1.msra.mxu0 0.0
      %4644 = vmatprep.subr.mxu0 0.0
      %4645 = vmatpush1.msra.mxu0 0.0
      %4646 = vmatprep.subr.mxu0 0.0
      %4647 = vmatpush1.msra.mxu0 0.0
      %4648 = vmatprep.subr.mxu0 0.0
      %4649 = vmatpush1.msra.mxu0 0.0
      %4650 = vmatprep.subr.mxu0 0.0
      %4651 = vmatpush1.msra.mxu0 0.0
      %4652 = vmatprep.subr.mxu0 0.0
      %4653 = vmatpush1.msra.mxu0 0.0
      %4654 = vmatprep.subr.mxu0 0.0
      %4655 = vmatpush1.msra.mxu0 0.0
      %4656 = vmatprep.subr.mxu0 0.0
      %4657 = vmatpush1.msra.mxu0 0.0
      %4658 = vmatprep.subr.mxu0 0.0
      %4659 = vmatpush1.msra.mxu0 0.0
      %4660 = vmatprep.subr.mxu0 0.0
      %4661 = vmatpush1.msra.mxu0 0.0
      %4662 = vmatprep.subr.mxu0 0.0
      %4663 = vmatpush1.msra.mxu0 0.0
      %4664 = vmatprep.subr.mxu0 0.0
      %4665 = vmatpush1.msra.mxu0 0.0
      %4666 = vmatprep.subr.mxu0 0.0
      %4667 = vmatpush1.msra.mxu0 0.0
      %4668 = vmatprep.subr.mxu0 0.0
      %4669 = vmatpush1.msra.mxu0 0.0
      %4670 = vmatprep.subr.mxu0 0.0
      %4671 = vmatpush1.msra.mxu0 0.0
      %4672 = vmatprep.subr.mxu0 0.0
      %4673 = vmatpush1.msra.mxu0 0.0
      %4674 = vmatprep.subr.mxu0 0.0
      %4675 = vmatpush1.msra.mxu0 0.0
      %4676 = vmatprep.subr.mxu0 0.0
      %4677 = vmatpush1.msra.mxu0 0.0
      %4678 = vmatprep.subr.mxu0 0.0
      %4679 = vmatpush1.msra.mxu0 0.0
      %4680 = vmatprep.mubr.f32.mxu0 0.0
      %v4681 = vand.u32 %v1223, 4294901760
      %4682 = vmatmul.mubr.f32.gmra.mrb[0].mxu0 %v4681
      %v4683 = vpop.f32.mrb[0].mxu0
      %v4684 = vadd.f32 %v4399, %v4683
      %v4685 = vpop.f32.mrb[0].mxu0
      %v4686 = vadd.f32 %v4401, %v4685
      %4687 = vmatprep.mubr.f32.mxu0 0.0
      %v4688 = vand.u32 %v1226, 4294901760
      %4689 = vmatmul.mubr.f32.gmra.mrb[0].mxu0 %v4688
      %v4690 = vpop.f32.mrb[0].mxu0
      %v4691 = vadd.f32 %v4408, %v4690
      %v4692 = vpop.f32.mrb[0].mxu0
      %v4693 = vadd.f32 %v4410, %v4692
      %4694 = vmatprep.mubr.f32.mxu0 0.0
      %v4695 = vand.u32 %v1229, 4294901760
      %4696 = vmatmul.mubr.f32.gmra.mrb[0].mxu0 %v4695
      %v4697 = vpop.f32.mrb[0].mxu0
      %v4698 = vadd.f32 %v4417, %v4697
      %v4699 = vpop.f32.mrb[0].mxu0
      %v4700 = vadd.f32 %v4419, %v4699
      %4701 = vmatprep.mubr.f32.mxu0 0.0
      %v4702 = vand.u32 %v1232, 4294901760
      %4703 = vmatmul.mubr.f32.gmra.mrb[0].mxu0 %v4702
      %v4704 = vpop.f32.mrb[0].mxu0
      %v4705 = vadd.f32 %v4426, %v4704
      %v4706 = vpop.f32.mrb[0].mxu0
      %v4707 = vadd.f32 %v4428, %v4706
      %4708 = vmatprep.mubr.f32.mxu0 0.0
      %v4709 = vand.u32 %v1235, 4294901760
      %4710 = vmatmul.mubr.f32.gmra.mrb[0].mxu0 %v4709
      %v4711 = vpop.f32.mrb[0].mxu0
      %v4712 = vadd.f32 %v4435, %v4711
      %v4713 = vpop.f32.mrb[0].mxu0
      %v4714 = vadd.f32 %v4437, %v4713
      %4715 = vmatprep.mubr.f32.mxu0 0.0
      %v4716 = vand.u32 %v1238, 4294901760
      %4717 = vmatmul.mubr.f32.gmra.mrb[0].mxu0 %v4716
      %v4718 = vpop.f32.mrb[0].mxu0
      %v4719 = vadd.f32 %v4444, %v4718
      %v4720 = vpop.f32.mrb[0].mxu0
      %v4721 = vadd.f32 %v4446, %v4720
      %4722 = vmatprep.mubr.f32.mxu0 0.0
      %v4723 = vand.u32 %v1241, 4294901760
      %4724 = vmatmul.mubr.f32.gmra.mrb[0].mxu0 %v4723
      %v4725 = vpop.f32.mrb[0].mxu0
      %v4726 = vadd.f32 %v4453, %v4725
      %v4727 = vpop.f32.mrb[0].mxu0
      %v4728 = vadd.f32 %v4455, %v4727
      %4729 = vmatprep.mubr.f32.mxu0 0.0
      %v4730 = vand.u32 %v1244, 4294901760
      %4731 = vmatmul.mubr.f32.gmra.mrb[0].mxu0 %v4730
      %v4732 = vpop.f32.mrb[0].mxu0
      %v4733 = vadd.f32 %v4462, %v4732
      %v4734 = vpop.f32.mrb[0].mxu0
      %v4735 = vadd.f32 %v4464, %v4734
      %4736 = vmatprep.mubr.f32.mxu0 0.0
      %v4737 = vand.u32 %v1247, 4294901760
      %4738 = vmatmul.mubr.f32.gmra.mrb[0].mxu0 %v4737
      %v4739 = vpop.f32.mrb[0].mxu0
      %v4740 = vadd.f32 %v4471, %v4739
      %v4741 = vpop.f32.mrb[0].mxu0
      %v4742 = vadd.f32 %v4473, %v4741
      %4743 = vmatprep.mubr.f32.mxu0 0.0
      %v4744 = vand.u32 %v1250, 4294901760
      %4745 = vmatmul.mubr.f32.gmra.mrb[0].mxu0 %v4744
      %v4746 = vpop.f32.mrb[0].mxu0
      %v4747 = vadd.f32 %v4480, %v4746
      %v4748 = vpop.f32.mrb[0].mxu0
      %v4749 = vadd.f32 %v4482, %v4748
      %4750 = vmatprep.mubr.f32.mxu0 0.0
      %v4751 = vand.u32 %v1253, 4294901760
      %4752 = vmatmul.mubr.f32.gmra.mrb[0].mxu0 %v4751
      %v4753 = vpop.f32.mrb[0].mxu0
      %v4754 = vadd.f32 %v4489, %v4753
      %v4755 = vpop.f32.mrb[0].mxu0
      %v4756 = vadd.f32 %v4491, %v4755
      %4757 = vmatprep.mubr.f32.mxu0 0.0
      %v4758 = vand.u32 %v1256, 4294901760
      %4759 = vmatmul.mubr.f32.gmra.mrb[0].mxu0 %v4758
      %v4760 = vpop.f32.mrb[0].mxu0
      %v4761 = vadd.f32 %v4498, %v4760
      %v4762 = vpop.f32.mrb[0].mxu0
      %v4763 = vadd.f32 %v4500, %v4762
      %4764 = vmatprep.mubr.f32.mxu0 0.0
      %v4765 = vand.u32 %v1259, 4294901760
      %4766 = vmatmul.mubr.f32.gmra.mrb[0].mxu0 %v4765
      %v4767 = vpop.f32.mrb[0].mxu0
      %v4768 = vadd.f32 %v4507, %v4767
      %v4769 = vpop.f32.mrb[0].mxu0
      %v4770 = vadd.f32 %v4509, %v4769
      %4771 = vmatprep.mubr.f32.mxu0 0.0
      %v4772 = vand.u32 %v1262, 4294901760
      %4773 = vmatmul.mubr.f32.gmra.mrb[0].mxu0 %v4772
      %v4774 = vpop.f32.mrb[0].mxu0
      %v4775 = vadd.f32 %v4516, %v4774
      %v4776 = vpop.f32.mrb[0].mxu0
      %v4777 = vadd.f32 %v4518, %v4776
      %4778 = vmatprep.mubr.f32.mxu0 0.0
      %v4779 = vand.u32 %v1265, 4294901760
      %4780 = vmatmul.mubr.f32.gmra.mrb[0].mxu0 %v4779
      %v4781 = vpop.f32.mrb[0].mxu0
      %v4782 = vadd.f32 %v4525, %v4781
      %v4783 = vpop.f32.mrb[0].mxu0
      %v4784 = vadd.f32 %v4527, %v4783
      %4785 = vmatprep.mubr.f32.mxu0 0.0
      %v4786 = vand.u32 %v1268, 4294901760
      %4787 = vmatmul.mubr.f32.gmra.mrb[0].mxu0 %v4786
      %v4788 = vpop.f32.mrb[0].mxu0
      %v4789 = vadd.f32 %v4534, %v4788
      %v4790 = vpop.f32.mrb[0].mxu0
      %v4791 = vadd.f32 %v4536, %v4790
      %4792 = vdwg.mxu0
      %v4793 = vand.u32 %v912, 4294901760
      %4794 = vmatprep.subr.mxu0 %v4793
      %v4795 = vand.u32 %v911, 4294901760
      %4796 = vmatpush1.msra.mxu0 %v4795
      %v4797 = vand.u32 %v915, 4294901760
      %4798 = vmatprep.subr.mxu0 %v4797
      %v4799 = vand.u32 %v914, 4294901760
      %4800 = vmatpush1.msra.mxu0 %v4799
      %v4801 = vand.u32 %v918, 4294901760
      %4802 = vmatprep.subr.mxu0 %v4801
      %v4803 = vand.u32 %v917, 4294901760
      %4804 = vmatpush1.msra.mxu0 %v4803
      %v4805 = vand.u32 %v977, 4294901760
      %4806 = vmatprep.subr.mxu0 %v4805
      %v4807 = vand.u32 %v976, 4294901760
      %4808 = vmatpush1.msra.mxu0 %v4807
      %v4809 = vand.u32 %v980, 4294901760
      %4810 = vmatprep.subr.mxu0 %v4809
      %v4811 = vand.u32 %v979, 4294901760
      %4812 = vmatpush1.msra.mxu0 %v4811
      %v4813 = vand.u32 %v983, 4294901760
      %4814 = vmatprep.subr.mxu0 %v4813
      %v4815 = vand.u32 %v982, 4294901760
      %4816 = vmatpush1.msra.mxu0 %v4815
      %v4817 = vand.u32 %v986, 4294901760
      %4818 = vmatprep.subr.mxu0 %v4817
      %v4819 = vand.u32 %v985, 4294901760
      %4820 = vmatpush1.msra.mxu0 %v4819
      %v4821 = vand.u32 %v989, 4294901760
      %4822 = vmatprep.subr.mxu0 %v4821
      %v4823 = vand.u32 %v988, 4294901760
      %4824 = vmatpush1.msra.mxu0 %v4823
      %v4825 = vand.u32 %v1048, 4294901760
      %4826 = vmatprep.subr.mxu0 %v4825
      %v4827 = vand.u32 %v1047, 4294901760
      %4828 = vmatpush1.msra.mxu0 %v4827
      %v4829 = vand.u32 %v1051, 4294901760
      %4830 = vmatprep.subr.mxu0 %v4829
      %v4831 = vand.u32 %v1050, 4294901760
      %4832 = vmatpush1.msra.mxu0 %v4831
      %v4833 = vand.u32 %v1054, 4294901760
      %4834 = vmatprep.subr.mxu0 %v4833
      %v4835 = vand.u32 %v1053, 4294901760
      %4836 = vmatpush1.msra.mxu0 %v4835
      %v4837 = vand.u32 %v1057, 4294901760
      %4838 = vmatprep.subr.mxu0 %v4837
      %v4839 = vand.u32 %v1056, 4294901760
      %4840 = vmatpush1.msra.mxu0 %v4839
      %v4841 = vand.u32 %v1060, 4294901760
      %4842 = vmatprep.subr.mxu0 %v4841
      %v4843 = vand.u32 %v1059, 4294901760
      %4844 = vmatpush1.msra.mxu0 %v4843
      %4845 = vmatprep.subr.mxu0 0.0
      %4846 = vmatpush1.msra.mxu0 0.0
      %4847 = vmatprep.subr.mxu0 0.0
      %4848 = vmatpush1.msra.mxu0 0.0
      %4849 = vmatprep.subr.mxu0 0.0
      %4850 = vmatpush1.msra.mxu0 0.0
      %4851 = vmatprep.subr.mxu0 0.0
      %4852 = vmatpush1.msra.mxu0 0.0
      %4853 = vmatprep.subr.mxu0 0.0
      %4854 = vmatpush1.msra.mxu0 0.0
      %4855 = vmatprep.subr.mxu0 0.0
      %4856 = vmatpush1.msra.mxu0 0.0
      %4857 = vmatprep.subr.mxu0 0.0
      %4858 = vmatpush1.msra.mxu0 0.0
      %4859 = vmatprep.subr.mxu0 0.0
      %4860 = vmatpush1.msra.mxu0 0.0
      %4861 = vmatprep.subr.mxu0 0.0
      %4862 = vmatpush1.msra.mxu0 0.0
      %4863 = vmatprep.subr.mxu0 0.0
      %4864 = vmatpush1.msra.mxu0 0.0
      %4865 = vmatprep.subr.mxu0 0.0
      %4866 = vmatpush1.msra.mxu0 0.0
      %4867 = vmatprep.subr.mxu0 0.0
      %4868 = vmatpush1.msra.mxu0 0.0
      %4869 = vmatprep.subr.mxu0 0.0
      %4870 = vmatpush1.msra.mxu0 0.0
      %4871 = vmatprep.subr.mxu0 0.0
      %4872 = vmatpush1.msra.mxu0 0.0
      %4873 = vmatprep.subr.mxu0 0.0
      %4874 = vmatpush1.msra.mxu0 0.0
      %4875 = vmatprep.subr.mxu0 0.0
      %4876 = vmatpush1.msra.mxu0 0.0
      %4877 = vmatprep.subr.mxu0 0.0
      %4878 = vmatpush1.msra.mxu0 0.0
      %4879 = vmatprep.subr.mxu0 0.0
      %4880 = vmatpush1.msra.mxu0 0.0
      %4881 = vmatprep.subr.mxu0 0.0
      %4882 = vmatpush1.msra.mxu0 0.0
      %4883 = vmatprep.mubr.f32.mxu0 0.0
      %v4884 = vand.u32 %v1223, 4294901760
      %4885 = vmatmul.mubr.f32.gmra.mrb[0].mxu0 %v4884
      %v4886 = vpop.f32.mrb[0].mxu0
      %v4887 = vadd.f32 %v4684, %v4886
      %v4888 = vpop.f32.mrb[0].mxu0
      %v4889 = vadd.f32 %v4686, %v4888
      %4890 = vmatprep.mubr.f32.mxu0 0.0
      %v4891 = vand.u32 %v1226, 4294901760
      %4892 = vmatmul.mubr.f32.gmra.mrb[0].mxu0 %v4891
      %v4893 = vpop.f32.mrb[0].mxu0
      %v4894 = vadd.f32 %v4691, %v4893
      %v4895 = vpop.f32.mrb[0].mxu0
      %v4896 = vadd.f32 %v4693, %v4895
      %4897 = vmatprep.mubr.f32.mxu0 0.0
      %v4898 = vand.u32 %v1229, 4294901760
      %4899 = vmatmul.mubr.f32.gmra.mrb[0].mxu0 %v4898
      %v4900 = vpop.f32.mrb[0].mxu0
      %v4901 = vadd.f32 %v4698, %v4900
      %v4902 = vpop.f32.mrb[0].mxu0
      %v4903 = vadd.f32 %v4700, %v4902
      %4904 = vmatprep.mubr.f32.mxu0 0.0
      %v4905 = vand.u32 %v1232, 4294901760
      %4906 = vmatmul.mubr.f32.gmra.mrb[0].mxu0 %v4905
      %v4907 = vpop.f32.mrb[0].mxu0
      %v4908 = vadd.f32 %v4705, %v4907
      %v4909 = vpop.f32.mrb[0].mxu0
      %v4910 = vadd.f32 %v4707, %v4909
      %4911 = vmatprep.mubr.f32.mxu0 0.0
      %v4912 = vand.u32 %v1235, 4294901760
      %4913 = vmatmul.mubr.f32.gmra.mrb[0].mxu0 %v4912
      %v4914 = vpop.f32.mrb[0].mxu0
      %v4915 = vadd.f32 %v4712, %v4914
      %v4916 = vpop.f32.mrb[0].mxu0
      %v4917 = vadd.f32 %v4714, %v4916
      %4918 = vmatprep.mubr.f32.mxu0 0.0
      %v4919 = vand.u32 %v1238, 4294901760
      %4920 = vmatmul.mubr.f32.gmra.mrb[0].mxu0 %v4919
      %v4921 = vpop.f32.mrb[0].mxu0
      %v4922 = vadd.f32 %v4719, %v4921
      %v4923 = vpop.f32.mrb[0].mxu0
      %v4924 = vadd.f32 %v4721, %v4923
      %4925 = vmatprep.mubr.f32.mxu0 0.0
      %v4926 = vand.u32 %v1241, 4294901760
      %4927 = vmatmul.mubr.f32.gmra.mrb[0].mxu0 %v4926
      %v4928 = vpop.f32.mrb[0].mxu0
      %v4929 = vadd.f32 %v4726, %v4928
      %v4930 = vpop.f32.mrb[0].mxu0
      %v4931 = vadd.f32 %v4728, %v4930
      %4932 = vmatprep.mubr.f32.mxu0 0.0
      %v4933 = vand.u32 %v1244, 4294901760
      %4934 = vmatmul.mubr.f32.gmra.mrb[0].mxu0 %v4933
      %v4935 = vpop.f32.mrb[0].mxu0
      %v4936 = vadd.f32 %v4733, %v4935
      %v4937 = vpop.f32.mrb[0].mxu0
      %v4938 = vadd.f32 %v4735, %v4937
      %4939 = vmatprep.mubr.f32.mxu0 0.0
      %v4940 = vand.u32 %v1247, 4294901760
      %4941 = vmatmul.mubr.f32.gmra.mrb[0].mxu0 %v4940
      %v4942 = vpop.f32.mrb[0].mxu0
      %v4943 = vadd.f32 %v4740, %v4942
      %v4944 = vpop.f32.mrb[0].mxu0
      %v4945 = vadd.f32 %v4742, %v4944
      %4946 = vmatprep.mubr.f32.mxu0 0.0
      %v4947 = vand.u32 %v1250, 4294901760
      %4948 = vmatmul.mubr.f32.gmra.mrb[0].mxu0 %v4947
      %v4949 = vpop.f32.mrb[0].mxu0
      %v4950 = vadd.f32 %v4747, %v4949
      %v4951 = vpop.f32.mrb[0].mxu0
      %v4952 = vadd.f32 %v4749, %v4951
      %4953 = vmatprep.mubr.f32.mxu0 0.0
      %v4954 = vand.u32 %v1253, 4294901760
      %4955 = vmatmul.mubr.f32.gmra.mrb[0].mxu0 %v4954
      %v4956 = vpop.f32.mrb[0].mxu0
      %v4957 = vadd.f32 %v4754, %v4956
      %v4958 = vpop.f32.mrb[0].mxu0
      %v4959 = vadd.f32 %v4756, %v4958
      %4960 = vmatprep.mubr.f32.mxu0 0.0
      %v4961 = vand.u32 %v1256, 4294901760
      %4962 = vmatmul.mubr.f32.gmra.mrb[0].mxu0 %v4961
      %v4963 = vpop.f32.mrb[0].mxu0
      %v4964 = vadd.f32 %v4761, %v4963
      %v4965 = vpop.f32.mrb[0].mxu0
      %v4966 = vadd.f32 %v4763, %v4965
      %4967 = vmatprep.mubr.f32.mxu0 0.0
      %v4968 = vand.u32 %v1259, 4294901760
      %4969 = vmatmul.mubr.f32.gmra.mrb[0].mxu0 %v4968
      %v4970 = vpop.f32.mrb[0].mxu0
      %v4971 = vadd.f32 %v4768, %v4970
      %v4972 = vpop.f32.mrb[0].mxu0
      %v4973 = vadd.f32 %v4770, %v4972
      %4974 = vmatprep.mubr.f32.mxu0 0.0
      %v4975 = vand.u32 %v1262, 4294901760
      %4976 = vmatmul.mubr.f32.gmra.mrb[0].mxu0 %v4975
      %v4977 = vpop.f32.mrb[0].mxu0
      %v4978 = vadd.f32 %v4775, %v4977
      %v4979 = vpop.f32.mrb[0].mxu0
      %v4980 = vadd.f32 %v4777, %v4979
      %4981 = vmatprep.mubr.f32.mxu0 0.0
      %v4982 = vand.u32 %v1265, 4294901760
      %4983 = vmatmul.mubr.f32.gmra.mrb[0].mxu0 %v4982
      %v4984 = vpop.f32.mrb[0].mxu0
      %v4985 = vadd.f32 %v4782, %v4984
      %v4986 = vpop.f32.mrb[0].mxu0
      %v4987 = vadd.f32 %v4784, %v4986
      %4988 = vmatprep.mubr.f32.mxu0 0.0
      %v4989 = vand.u32 %v1268, 4294901760
      %4990 = vmatmul.mubr.f32.gmra.mrb[0].mxu0 %v4989
      %v4991 = vpop.f32.mrb[0].mxu0
      %v4992 = vadd.f32 %v4789, %v4991
      %v4993 = vpop.f32.mrb[0].mxu0
      %v4994 = vadd.f32 %v4791, %v4993
      %4995 = vdwg.mxu0
      %4996 = vmatprep.subr.mxu0 0.0
      %v4997 = vand.u32 %v471, 4294901760
      %4998 = vmatpush1.msra.mxu0 %v4997
      %4999 = vmatprep.subr.mxu0 0.0
      %v5000 = vand.u32 %v474, 4294901760
      %5001 = vmatpush1.msra.mxu0 %v5000
      %5002 = vmatprep.subr.mxu0 0.0
      %v5003 = vand.u32 %v477, 4294901760
      %5004 = vmatpush1.msra.mxu0 %v5003
      %5005 = vmatprep.subr.mxu0 0.0
      %v5006 = vand.u32 %v480, 4294901760
      %5007 = vmatpush1.msra.mxu0 %v5006
      %5008 = vmatprep.subr.mxu0 0.0
      %v5009 = vand.u32 %v483, 4294901760
      %5010 = vmatpush1.msra.mxu0 %v5009
      %5011 = vmatprep.subr.mxu0 0.0
      %v5012 = vand.u32 %v552, 4294901760
      %5013 = vmatpush1.msra.mxu0 %v5012
      %5014 = vmatprep.subr.mxu0 0.0
      %v5015 = vand.u32 %v555, 4294901760
      %5016 = vmatpush1.msra.mxu0 %v5015
      %5017 = vmatprep.subr.mxu0 0.0
      %v5018 = vand.u32 %v558, 4294901760
      %5019 = vmatpush1.msra.mxu0 %v5018
      %5020 = vmatprep.subr.mxu0 0.0
      %v5021 = vand.u32 %v561, 4294901760
      %5022 = vmatpush1.msra.mxu0 %v5021
      %5023 = vmatprep.subr.mxu0 0.0
      %v5024 = vand.u32 %v564, 4294901760
      %5025 = vmatpush1.msra.mxu0 %v5024
      %5026 = vmatprep.subr.mxu0 0.0
      %v5027 = vand.u32 %v623, 4294901760
      %5028 = vmatpush1.msra.mxu0 %v5027
      %5029 = vmatprep.subr.mxu0 0.0
      %v5030 = vand.u32 %v626, 4294901760
      %5031 = vmatpush1.msra.mxu0 %v5030
      %5032 = vmatprep.subr.mxu0 0.0
      %v5033 = vand.u32 %v629, 4294901760
      %5034 = vmatpush1.msra.mxu0 %v5033
      %5035 = vmatprep.subr.mxu0 0.0
      %v5036 = vand.u32 %v632, 4294901760
      %5037 = vmatpush1.msra.mxu0 %v5036
      %5038 = vmatprep.subr.mxu0 0.0
      %v5039 = vand.u32 %v635, 4294901760
      %5040 = vmatpush1.msra.mxu0 %v5039
      %5041 = vmatprep.subr.mxu0 0.0
      %v5042 = vand.u32 %v694, 4294901760
      %5043 = vmatpush1.msra.mxu0 %v5042
      %5044 = vmatprep.subr.mxu0 0.0
      %v5045 = vand.u32 %v697, 4294901760
      %5046 = vmatpush1.msra.mxu0 %v5045
      %5047 = vmatprep.subr.mxu0 0.0
      %v5048 = vand.u32 %v700, 4294901760
      %5049 = vmatpush1.msra.mxu0 %v5048
      %5050 = vmatprep.subr.mxu0 0.0
      %v5051 = vand.u32 %v703, 4294901760
      %5052 = vmatpush1.msra.mxu0 %v5051
      %5053 = vmatprep.subr.mxu0 0.0
      %v5054 = vand.u32 %v706, 4294901760
      %5055 = vmatpush1.msra.mxu0 %v5054
      %5056 = vmatprep.subr.mxu0 0.0
      %v5057 = vand.u32 %v765, 4294901760
      %5058 = vmatpush1.msra.mxu0 %v5057
      %5059 = vmatprep.subr.mxu0 0.0
      %v5060 = vand.u32 %v768, 4294901760
      %5061 = vmatpush1.msra.mxu0 %v5060
      %5062 = vmatprep.subr.mxu0 0.0
      %v5063 = vand.u32 %v771, 4294901760
      %5064 = vmatpush1.msra.mxu0 %v5063
      %5065 = vmatprep.subr.mxu0 0.0
      %v5066 = vand.u32 %v774, 4294901760
      %5067 = vmatpush1.msra.mxu0 %v5066
      %5068 = vmatprep.subr.mxu0 0.0
      %v5069 = vand.u32 %v777, 4294901760
      %5070 = vmatpush1.msra.mxu0 %v5069
      %5071 = vmatprep.subr.mxu0 0.0
      %v5072 = vand.u32 %v836, 4294901760
      %5073 = vmatpush1.msra.mxu0 %v5072
      %5074 = vmatprep.subr.mxu0 0.0
      %v5075 = vand.u32 %v839, 4294901760
      %5076 = vmatpush1.msra.mxu0 %v5075
      %5077 = vmatprep.subr.mxu0 0.0
      %v5078 = vand.u32 %v842, 4294901760
      %5079 = vmatpush1.msra.mxu0 %v5078
      %5080 = vmatprep.subr.mxu0 0.0
      %v5081 = vand.u32 %v845, 4294901760
      %5082 = vmatpush1.msra.mxu0 %v5081
      %5083 = vmatprep.subr.mxu0 0.0
      %v5084 = vand.u32 %v848, 4294901760
      %5085 = vmatpush1.msra.mxu0 %v5084
      %5086 = vmatprep.subr.mxu0 0.0
      %v5087 = vand.u32 %v907, 4294901760
      %5088 = vmatpush1.msra.mxu0 %v5087
      %5089 = vmatprep.subr.mxu0 0.0
      %v5090 = vand.u32 %v910, 4294901760
      %5091 = vmatpush1.msra.mxu0 %v5090
      %v5092 = vand.u32 %v1078, 4294901760
      %v5093 = vsub.f32 %v1078, %v5092
      %v5094 = vand.u32 %v5093, 4294901760
      %v5095 = vsub.f32 %v5093, %v5094
      %v5096 = vand.u32 %v5095, 4294901760
      %5097 = vmatprep.mubr.f32.mxu0 %v5096
      %v5098 = vand.u32 %v1077, 4294901760
      %v5099 = vsub.f32 %v1077, %v5098
      %v5100 = vand.u32 %v5099, 4294901760
      %v5101 = vsub.f32 %v5099, %v5100
      %v5102 = vand.u32 %v5101, 4294901760
      %5103 = vmatmul.mubr.f32.gmra.mrb[0].mxu0 %v5102
      %v5104 = vpop.f32.mrb[0].mxu0
      %v5105 = vadd.f32 %v1144, %v5104
      %v5106 = vpop.f32.mrb[0].mxu0
      %v5107 = vand.u32 %v1081, 4294901760
      %v5108 = vsub.f32 %v1081, %v5107
      %v5109 = vand.u32 %v5108, 4294901760
      %v5110 = vsub.f32 %v5108, %v5109
      %v5111 = vand.u32 %v5110, 4294901760
      %5112 = vmatprep.mubr.f32.mxu0 %v5111
      %v5113 = vand.u32 %v1080, 4294901760
      %v5114 = vsub.f32 %v1080, %v5113
      %v5115 = vand.u32 %v5114, 4294901760
      %v5116 = vsub.f32 %v5114, %v5115
      %v5117 = vand.u32 %v5116, 4294901760
      %5118 = vmatmul.mubr.f32.gmra.mrb[0].mxu0 %v5117
      %v5119 = vpop.f32.mrb[0].mxu0
      %v5120 = vadd.f32 %v1149, %v5119
      %v5121 = vpop.f32.mrb[0].mxu0
      %v5122 = vand.u32 %v1084, 4294901760
      %v5123 = vsub.f32 %v1084, %v5122
      %v5124 = vand.u32 %v5123, 4294901760
      %v5125 = vsub.f32 %v5123, %v5124
      %v5126 = vand.u32 %v5125, 4294901760
      %5127 = vmatprep.mubr.f32.mxu0 %v5126
      %v5128 = vand.u32 %v1083, 4294901760
      %v5129 = vsub.f32 %v1083, %v5128
      %v5130 = vand.u32 %v5129, 4294901760
      %v5131 = vsub.f32 %v5129, %v5130
      %v5132 = vand.u32 %v5131, 4294901760
      %5133 = vmatmul.mubr.f32.gmra.mrb[0].mxu0 %v5132
      %v5134 = vpop.f32.mrb[0].mxu0
      %v5135 = vadd.f32 %v1154, %v5134
      %v5136 = vpop.f32.mrb[0].mxu0
      %v5137 = vand.u32 %v1087, 4294901760
      %v5138 = vsub.f32 %v1087, %v5137
      %v5139 = vand.u32 %v5138, 4294901760
      %v5140 = vsub.f32 %v5138, %v5139
      %v5141 = vand.u32 %v5140, 4294901760
      %5142 = vmatprep.mubr.f32.mxu0 %v5141
      %v5143 = vand.u32 %v1086, 4294901760
      %v5144 = vsub.f32 %v1086, %v5143
      %v5145 = vand.u32 %v5144, 4294901760
      %v5146 = vsub.f32 %v5144, %v5145
      %v5147 = vand.u32 %v5146, 4294901760
      %5148 = vmatmul.mubr.f32.gmra.mrb[0].mxu0 %v5147
      %v5149 = vpop.f32.mrb[0].mxu0
      %v5150 = vadd.f32 %v1159, %v5149
      %v5151 = vpop.f32.mrb[0].mxu0
      %v5152 = vand.u32 %v1090, 4294901760
      %v5153 = vsub.f32 %v1090, %v5152
      %v5154 = vand.u32 %v5153, 4294901760
      %v5155 = vsub.f32 %v5153, %v5154
      %v5156 = vand.u32 %v5155, 4294901760
      %5157 = vmatprep.mubr.f32.mxu0 %v5156
      %v5158 = vand.u32 %v1089, 4294901760
      %v5159 = vsub.f32 %v1089, %v5158
      %v5160 = vand.u32 %v5159, 4294901760
      %v5161 = vsub.f32 %v5159, %v5160
      %v5162 = vand.u32 %v5161, 4294901760
      %5163 = vmatmul.mubr.f32.gmra.mrb[0].mxu0 %v5162
      %v5164 = vpop.f32.mrb[0].mxu0
      %v5165 = vadd.f32 %v1164, %v5164
      %v5166 = vpop.f32.mrb[0].mxu0
      %v5167 = vand.u32 %v1093, 4294901760
      %v5168 = vsub.f32 %v1093, %v5167
      %v5169 = vand.u32 %v5168, 4294901760
      %v5170 = vsub.f32 %v5168, %v5169
      %v5171 = vand.u32 %v5170, 4294901760
      %5172 = vmatprep.mubr.f32.mxu0 %v5171
      %v5173 = vand.u32 %v1092, 4294901760
      %v5174 = vsub.f32 %v1092, %v5173
      %v5175 = vand.u32 %v5174, 4294901760
      %v5176 = vsub.f32 %v5174, %v5175
      %v5177 = vand.u32 %v5176, 4294901760
      %5178 = vmatmul.mubr.f32.gmra.mrb[0].mxu0 %v5177
      %v5179 = vpop.f32.mrb[0].mxu0
      %v5180 = vadd.f32 %v1169, %v5179
      %v5181 = vpop.f32.mrb[0].mxu0
      %v5182 = vand.u32 %v1096, 4294901760
      %v5183 = vsub.f32 %v1096, %v5182
      %v5184 = vand.u32 %v5183, 4294901760
      %v5185 = vsub.f32 %v5183, %v5184
      %v5186 = vand.u32 %v5185, 4294901760
      %5187 = vmatprep.mubr.f32.mxu0 %v5186
      %v5188 = vand.u32 %v1095, 4294901760
      %v5189 = vsub.f32 %v1095, %v5188
      %v5190 = vand.u32 %v5189, 4294901760
      %v5191 = vsub.f32 %v5189, %v5190
      %v5192 = vand.u32 %v5191, 4294901760
      %5193 = vmatmul.mubr.f32.gmra.mrb[0].mxu0 %v5192
      %v5194 = vpop.f32.mrb[0].mxu0
      %v5195 = vadd.f32 %v1174, %v5194
      %v5196 = vpop.f32.mrb[0].mxu0
      %v5197 = vand.u32 %v1099, 4294901760
      %v5198 = vsub.f32 %v1099, %v5197
      %v5199 = vand.u32 %v5198, 4294901760
      %v5200 = vsub.f32 %v5198, %v5199
      %v5201 = vand.u32 %v5200, 4294901760
      %5202 = vmatprep.mubr.f32.mxu0 %v5201
      %v5203 = vand.u32 %v1098, 4294901760
      %v5204 = vsub.f32 %v1098, %v5203
      %v5205 = vand.u32 %v5204, 4294901760
      %v5206 = vsub.f32 %v5204, %v5205
      %v5207 = vand.u32 %v5206, 4294901760
      %5208 = vmatmul.mubr.f32.gmra.mrb[0].mxu0 %v5207
      %v5209 = vpop.f32.mrb[0].mxu0
      %v5210 = vadd.f32 %v1179, %v5209
      %v5211 = vpop.f32.mrb[0].mxu0
      %v5212 = vand.u32 %v1102, 4294901760
      %v5213 = vsub.f32 %v1102, %v5212
      %v5214 = vand.u32 %v5213, 4294901760
      %v5215 = vsub.f32 %v5213, %v5214
      %v5216 = vand.u32 %v5215, 4294901760
      %5217 = vmatprep.mubr.f32.mxu0 %v5216
      %v5218 = vand.u32 %v1101, 4294901760
      %v5219 = vsub.f32 %v1101, %v5218
      %v5220 = vand.u32 %v5219, 4294901760
      %v5221 = vsub.f32 %v5219, %v5220
      %v5222 = vand.u32 %v5221, 4294901760
      %5223 = vmatmul.mubr.f32.gmra.mrb[0].mxu0 %v5222
      %v5224 = vpop.f32.mrb[0].mxu0
      %v5225 = vadd.f32 %v1184, %v5224
      %v5226 = vpop.f32.mrb[0].mxu0
      %v5227 = vand.u32 %v1105, 4294901760
      %v5228 = vsub.f32 %v1105, %v5227
      %v5229 = vand.u32 %v5228, 4294901760
      %v5230 = vsub.f32 %v5228, %v5229
      %v5231 = vand.u32 %v5230, 4294901760
      %5232 = vmatprep.mubr.f32.mxu0 %v5231
      %v5233 = vand.u32 %v1104, 4294901760
      %v5234 = vsub.f32 %v1104, %v5233
      %v5235 = vand.u32 %v5234, 4294901760
      %v5236 = vsub.f32 %v5234, %v5235
      %v5237 = vand.u32 %v5236, 4294901760
      %5238 = vmatmul.mubr.f32.gmra.mrb[0].mxu0 %v5237
      %v5239 = vpop.f32.mrb[0].mxu0
      %v5240 = vadd.f32 %v1189, %v5239
      %v5241 = vpop.f32.mrb[0].mxu0
      %v5242 = vand.u32 %v1108, 4294901760
      %v5243 = vsub.f32 %v1108, %v5242
      %v5244 = vand.u32 %v5243, 4294901760
      %v5245 = vsub.f32 %v5243, %v5244
      %v5246 = vand.u32 %v5245, 4294901760
      %5247 = vmatprep.mubr.f32.mxu0 %v5246
      %v5248 = vand.u32 %v1107, 4294901760
      %v5249 = vsub.f32 %v1107, %v5248
      %v5250 = vand.u32 %v5249, 4294901760
      %v5251 = vsub.f32 %v5249, %v5250
      %v5252 = vand.u32 %v5251, 4294901760
      %5253 = vmatmul.mubr.f32.gmra.mrb[0].mxu0 %v5252
      %v5254 = vpop.f32.mrb[0].mxu0
      %v5255 = vadd.f32 %v1194, %v5254
      %v5256 = vpop.f32.mrb[0].mxu0
      %v5257 = vand.u32 %v1111, 4294901760
      %v5258 = vsub.f32 %v1111, %v5257
      %v5259 = vand.u32 %v5258, 4294901760
      %v5260 = vsub.f32 %v5258, %v5259
      %v5261 = vand.u32 %v5260, 4294901760
      %5262 = vmatprep.mubr.f32.mxu0 %v5261
      %v5263 = vand.u32 %v1110, 4294901760
      %v5264 = vsub.f32 %v1110, %v5263
      %v5265 = vand.u32 %v5264, 4294901760
      %v5266 = vsub.f32 %v5264, %v5265
      %v5267 = vand.u32 %v5266, 4294901760
      %5268 = vmatmul.mubr.f32.gmra.mrb[0].mxu0 %v5267
      %v5269 = vpop.f32.mrb[0].mxu0
      %v5270 = vadd.f32 %v1199, %v5269
      %v5271 = vpop.f32.mrb[0].mxu0
      %v5272 = vand.u32 %v1114, 4294901760
      %v5273 = vsub.f32 %v1114, %v5272
      %v5274 = vand.u32 %v5273, 4294901760
      %v5275 = vsub.f32 %v5273, %v5274
      %v5276 = vand.u32 %v5275, 4294901760
      %5277 = vmatprep.mubr.f32.mxu0 %v5276
      %v5278 = vand.u32 %v1113, 4294901760
      %v5279 = vsub.f32 %v1113, %v5278
      %v5280 = vand.u32 %v5279, 4294901760
      %v5281 = vsub.f32 %v5279, %v5280
      %v5282 = vand.u32 %v5281, 4294901760
      %5283 = vmatmul.mubr.f32.gmra.mrb[0].mxu0 %v5282
      %v5284 = vpop.f32.mrb[0].mxu0
      %v5285 = vadd.f32 %v1204, %v5284
      %v5286 = vpop.f32.mrb[0].mxu0
      %v5287 = vand.u32 %v1117, 4294901760
      %v5288 = vsub.f32 %v1117, %v5287
      %v5289 = vand.u32 %v5288, 4294901760
      %v5290 = vsub.f32 %v5288, %v5289
      %v5291 = vand.u32 %v5290, 4294901760
      %5292 = vmatprep.mubr.f32.mxu0 %v5291
      %v5293 = vand.u32 %v1116, 4294901760
      %v5294 = vsub.f32 %v1116, %v5293
      %v5295 = vand.u32 %v5294, 4294901760
      %v5296 = vsub.f32 %v5294, %v5295
      %v5297 = vand.u32 %v5296, 4294901760
      %5298 = vmatmul.mubr.f32.gmra.mrb[0].mxu0 %v5297
      %v5299 = vpop.f32.mrb[0].mxu0
      %v5300 = vadd.f32 %v1209, %v5299
      %v5301 = vpop.f32.mrb[0].mxu0
      %v5302 = vand.u32 %v1120, 4294901760
      %v5303 = vsub.f32 %v1120, %v5302
      %v5304 = vand.u32 %v5303, 4294901760
      %v5305 = vsub.f32 %v5303, %v5304
      %v5306 = vand.u32 %v5305, 4294901760
      %5307 = vmatprep.mubr.f32.mxu0 %v5306
      %v5308 = vand.u32 %v1119, 4294901760
      %v5309 = vsub.f32 %v1119, %v5308
      %v5310 = vand.u32 %v5309, 4294901760
      %v5311 = vsub.f32 %v5309, %v5310
      %v5312 = vand.u32 %v5311, 4294901760
      %5313 = vmatmul.mubr.f32.gmra.mrb[0].mxu0 %v5312
      %v5314 = vpop.f32.mrb[0].mxu0
      %v5315 = vadd.f32 %v1214, %v5314
      %v5316 = vpop.f32.mrb[0].mxu0
      %v5317 = vand.u32 %v1123, 4294901760
      %v5318 = vsub.f32 %v1123, %v5317
      %v5319 = vand.u32 %v5318, 4294901760
      %v5320 = vsub.f32 %v5318, %v5319
      %v5321 = vand.u32 %v5320, 4294901760
      %5322 = vmatprep.mubr.f32.mxu0 %v5321
      %v5323 = vand.u32 %v1122, 4294901760
      %v5324 = vsub.f32 %v1122, %v5323
      %v5325 = vand.u32 %v5324, 4294901760
      %v5326 = vsub.f32 %v5324, %v5325
      %v5327 = vand.u32 %v5326, 4294901760
      %5328 = vmatmul.mubr.f32.gmra.mrb[0].mxu0 %v5327
      %v5329 = vpop.f32.mrb[0].mxu0
      %v5330 = vadd.f32 %v1219, %v5329
      %v5331 = vpop.f32.mrb[0].mxu0
      %5332 = vdwg.mxu0
      %5333 = vmatprep.subr.mxu0 0.0
      %v5334 = vand.u32 %v471, 4294901760
      %v5335 = vsub.f32 %v471, %v5334
      %v5336 = vand.u32 %v5335, 4294901760
      %v5337 = vsub.f32 %v5335, %v5336
      %v5338 = vand.u32 %v5337, 4294901760
      %5339 = vmatpush1.msra.mxu0 %v5338
      %5340 = vmatprep.subr.mxu0 0.0
      %v5341 = vand.u32 %v474, 4294901760
      %v5342 = vsub.f32 %v474, %v5341
      %v5343 = vand.u32 %v5342, 4294901760
      %v5344 = vsub.f32 %v5342, %v5343
      %v5345 = vand.u32 %v5344, 4294901760
      %5346 = vmatpush1.msra.mxu0 %v5345
      %5347 = vmatprep.subr.mxu0 0.0
      %v5348 = vand.u32 %v477, 4294901760
      %v5349 = vsub.f32 %v477, %v5348
      %v5350 = vand.u32 %v5349, 4294901760
      %v5351 = vsub.f32 %v5349, %v5350
      %v5352 = vand.u32 %v5351, 4294901760
      %5353 = vmatpush1.msra.mxu0 %v5352
      %5354 = vmatprep.subr.mxu0 0.0
      %v5355 = vand.u32 %v480, 4294901760
      %v5356 = vsub.f32 %v480, %v5355
      %v5357 = vand.u32 %v5356, 4294901760
      %v5358 = vsub.f32 %v5356, %v5357
      %v5359 = vand.u32 %v5358, 4294901760
      %5360 = vmatpush1.msra.mxu0 %v5359
      %5361 = vmatprep.subr.mxu0 0.0
      %v5362 = vand.u32 %v483, 4294901760
      %v5363 = vsub.f32 %v483, %v5362
      %v5364 = vand.u32 %v5363, 4294901760
      %v5365 = vsub.f32 %v5363, %v5364
      %v5366 = vand.u32 %v5365, 4294901760
      %5367 = vmatpush1.msra.mxu0 %v5366
      %5368 = vmatprep.subr.mxu0 0.0
      %v5369 = vand.u32 %v552, 4294901760
      %v5370 = vsub.f32 %v552, %v5369
      %v5371 = vand.u32 %v5370, 4294901760
      %v5372 = vsub.f32 %v5370, %v5371
      %v5373 = vand.u32 %v5372, 4294901760
      %5374 = vmatpush1.msra.mxu0 %v5373
      %5375 = vmatprep.subr.mxu0 0.0
      %v5376 = vand.u32 %v555, 4294901760
      %v5377 = vsub.f32 %v555, %v5376
      %v5378 = vand.u32 %v5377, 4294901760
      %v5379 = vsub.f32 %v5377, %v5378
      %v5380 = vand.u32 %v5379, 4294901760
      %5381 = vmatpush1.msra.mxu0 %v5380
      %5382 = vmatprep.subr.mxu0 0.0
      %v5383 = vand.u32 %v558, 4294901760
      %v5384 = vsub.f32 %v558, %v5383
      %v5385 = vand.u32 %v5384, 4294901760
      %v5386 = vsub.f32 %v5384, %v5385
      %v5387 = vand.u32 %v5386, 4294901760
      %5388 = vmatpush1.msra.mxu0 %v5387
      %5389 = vmatprep.subr.mxu0 0.0
      %v5390 = vand.u32 %v561, 4294901760
      %v5391 = vsub.f32 %v561, %v5390
      %v5392 = vand.u32 %v5391, 4294901760
      %v5393 = vsub.f32 %v5391, %v5392
      %v5394 = vand.u32 %v5393, 4294901760
      %5395 = vmatpush1.msra.mxu0 %v5394
      %5396 = vmatprep.subr.mxu0 0.0
      %v5397 = vand.u32 %v564, 4294901760
      %v5398 = vsub.f32 %v564, %v5397
      %v5399 = vand.u32 %v5398, 4294901760
      %v5400 = vsub.f32 %v5398, %v5399
      %v5401 = vand.u32 %v5400, 4294901760
      %5402 = vmatpush1.msra.mxu0 %v5401
      %5403 = vmatprep.subr.mxu0 0.0
      %v5404 = vand.u32 %v623, 4294901760
      %v5405 = vsub.f32 %v623, %v5404
      %v5406 = vand.u32 %v5405, 4294901760
      %v5407 = vsub.f32 %v5405, %v5406
      %v5408 = vand.u32 %v5407, 4294901760
      %5409 = vmatpush1.msra.mxu0 %v5408
      %5410 = vmatprep.subr.mxu0 0.0
      %v5411 = vand.u32 %v626, 4294901760
      %v5412 = vsub.f32 %v626, %v5411
      %v5413 = vand.u32 %v5412, 4294901760
      %v5414 = vsub.f32 %v5412, %v5413
      %v5415 = vand.u32 %v5414, 4294901760
      %5416 = vmatpush1.msra.mxu0 %v5415
      %5417 = vmatprep.subr.mxu0 0.0
      %v5418 = vand.u32 %v629, 4294901760
      %v5419 = vsub.f32 %v629, %v5418
      %v5420 = vand.u32 %v5419, 4294901760
      %v5421 = vsub.f32 %v5419, %v5420
      %v5422 = vand.u32 %v5421, 4294901760
      %5423 = vmatpush1.msra.mxu0 %v5422
      %5424 = vmatprep.subr.mxu0 0.0
      %v5425 = vand.u32 %v632, 4294901760
      %v5426 = vsub.f32 %v632, %v5425
      %v5427 = vand.u32 %v5426, 4294901760
      %v5428 = vsub.f32 %v5426, %v5427
      %v5429 = vand.u32 %v5428, 4294901760
      %5430 = vmatpush1.msra.mxu0 %v5429
      %5431 = vmatprep.subr.mxu0 0.0
      %v5432 = vand.u32 %v635, 4294901760
      %v5433 = vsub.f32 %v635, %v5432
      %v5434 = vand.u32 %v5433, 4294901760
      %v5435 = vsub.f32 %v5433, %v5434
      %v5436 = vand.u32 %v5435, 4294901760
      %5437 = vmatpush1.msra.mxu0 %v5436
      %5438 = vmatprep.subr.mxu0 0.0
      %v5439 = vand.u32 %v694, 4294901760
      %v5440 = vsub.f32 %v694, %v5439
      %v5441 = vand.u32 %v5440, 4294901760
      %v5442 = vsub.f32 %v5440, %v5441
      %v5443 = vand.u32 %v5442, 4294901760
      %5444 = vmatpush1.msra.mxu0 %v5443
      %5445 = vmatprep.subr.mxu0 0.0
      %v5446 = vand.u32 %v697, 4294901760
      %v5447 = vsub.f32 %v697, %v5446
      %v5448 = vand.u32 %v5447, 4294901760
      %v5449 = vsub.f32 %v5447, %v5448
      %v5450 = vand.u32 %v5449, 4294901760
      %5451 = vmatpush1.msra.mxu0 %v5450
      %5452 = vmatprep.subr.mxu0 0.0
      %v5453 = vand.u32 %v700, 4294901760
      %v5454 = vsub.f32 %v700, %v5453
      %v5455 = vand.u32 %v5454, 4294901760
      %v5456 = vsub.f32 %v5454, %v5455
      %v5457 = vand.u32 %v5456, 4294901760
      %5458 = vmatpush1.msra.mxu0 %v5457
      %5459 = vmatprep.subr.mxu0 0.0
      %v5460 = vand.u32 %v703, 4294901760
      %v5461 = vsub.f32 %v703, %v5460
      %v5462 = vand.u32 %v5461, 4294901760
      %v5463 = vsub.f32 %v5461, %v5462
      %v5464 = vand.u32 %v5463, 4294901760
      %5465 = vmatpush1.msra.mxu0 %v5464
      %5466 = vmatprep.subr.mxu0 0.0
      %v5467 = vand.u32 %v706, 4294901760
      %v5468 = vsub.f32 %v706, %v5467
      %v5469 = vand.u32 %v5468, 4294901760
      %v5470 = vsub.f32 %v5468, %v5469
      %v5471 = vand.u32 %v5470, 4294901760
      %5472 = vmatpush1.msra.mxu0 %v5471
      %5473 = vmatprep.subr.mxu0 0.0
      %v5474 = vand.u32 %v765, 4294901760
      %v5475 = vsub.f32 %v765, %v5474
      %v5476 = vand.u32 %v5475, 4294901760
      %v5477 = vsub.f32 %v5475, %v5476
      %v5478 = vand.u32 %v5477, 4294901760
      %5479 = vmatpush1.msra.mxu0 %v5478
      %5480 = vmatprep.subr.mxu0 0.0
      %v5481 = vand.u32 %v768, 4294901760
      %v5482 = vsub.f32 %v768, %v5481
      %v5483 = vand.u32 %v5482, 4294901760
      %v5484 = vsub.f32 %v5482, %v5483
      %v5485 = vand.u32 %v5484, 4294901760
      %5486 = vmatpush1.msra.mxu0 %v5485
      %5487 = vmatprep.subr.mxu0 0.0
      %v5488 = vand.u32 %v771, 4294901760
      %v5489 = vsub.f32 %v771, %v5488
      %v5490 = vand.u32 %v5489, 4294901760
      %v5491 = vsub.f32 %v5489, %v5490
      %v5492 = vand.u32 %v5491, 4294901760
      %5493 = vmatpush1.msra.mxu0 %v5492
      %5494 = vmatprep.subr.mxu0 0.0
      %v5495 = vand.u32 %v774, 4294901760
      %v5496 = vsub.f32 %v774, %v5495
      %v5497 = vand.u32 %v5496, 4294901760
      %v5498 = vsub.f32 %v5496, %v5497
      %v5499 = vand.u32 %v5498, 4294901760
      %5500 = vmatpush1.msra.mxu0 %v5499
      %5501 = vmatprep.subr.mxu0 0.0
      %v5502 = vand.u32 %v777, 4294901760
      %v5503 = vsub.f32 %v777, %v5502
      %v5504 = vand.u32 %v5503, 4294901760
      %v5505 = vsub.f32 %v5503, %v5504
      %v5506 = vand.u32 %v5505, 4294901760
      %5507 = vmatpush1.msra.mxu0 %v5506
      %5508 = vmatprep.subr.mxu0 0.0
      %v5509 = vand.u32 %v836, 4294901760
      %v5510 = vsub.f32 %v836, %v5509
      %v5511 = vand.u32 %v5510, 4294901760
      %v5512 = vsub.f32 %v5510, %v5511
      %v5513 = vand.u32 %v5512, 4294901760
      %5514 = vmatpush1.msra.mxu0 %v5513
      %5515 = vmatprep.subr.mxu0 0.0
      %v5516 = vand.u32 %v839, 4294901760
      %v5517 = vsub.f32 %v839, %v5516
      %v5518 = vand.u32 %v5517, 4294901760
      %v5519 = vsub.f32 %v5517, %v5518
      %v5520 = vand.u32 %v5519, 4294901760
      %5521 = vmatpush1.msra.mxu0 %v5520
      %5522 = vmatprep.subr.mxu0 0.0
      %v5523 = vand.u32 %v842, 4294901760
      %v5524 = vsub.f32 %v842, %v5523
      %v5525 = vand.u32 %v5524, 4294901760
      %v5526 = vsub.f32 %v5524, %v5525
      %v5527 = vand.u32 %v5526, 4294901760
      %5528 = vmatpush1.msra.mxu0 %v5527
      %5529 = vmatprep.subr.mxu0 0.0
      %v5530 = vand.u32 %v845, 4294901760
      %v5531 = vsub.f32 %v845, %v5530
      %v5532 = vand.u32 %v5531, 4294901760
      %v5533 = vsub.f32 %v5531, %v5532
      %v5534 = vand.u32 %v5533, 4294901760
      %5535 = vmatpush1.msra.mxu0 %v5534
      %5536 = vmatprep.subr.mxu0 0.0
      %v5537 = vand.u32 %v848, 4294901760
      %v5538 = vsub.f32 %v848, %v5537
      %v5539 = vand.u32 %v5538, 4294901760
      %v5540 = vsub.f32 %v5538, %v5539
      %v5541 = vand.u32 %v5540, 4294901760
      %5542 = vmatpush1.msra.mxu0 %v5541
      %5543 = vmatprep.subr.mxu0 0.0
      %v5544 = vand.u32 %v907, 4294901760
      %v5545 = vsub.f32 %v907, %v5544
      %v5546 = vand.u32 %v5545, 4294901760
      %v5547 = vsub.f32 %v5545, %v5546
      %v5548 = vand.u32 %v5547, 4294901760
      %5549 = vmatpush1.msra.mxu0 %v5548
      %5550 = vmatprep.subr.mxu0 0.0
      %v5551 = vand.u32 %v910, 4294901760
      %v5552 = vsub.f32 %v910, %v5551
      %v5553 = vand.u32 %v5552, 4294901760
      %v5554 = vsub.f32 %v5552, %v5553
      %v5555 = vand.u32 %v5554, 4294901760
      %5556 = vmatpush1.msra.mxu0 %v5555
      %v5557 = vand.u32 %v1078, 4294901760
      %5558 = vmatprep.mubr.f32.mxu0 %v5557
      %v5559 = vand.u32 %v1077, 4294901760
      %5560 = vmatmul.mubr.f32.gmra.mrb[0].mxu0 %v5559
      %v5561 = vpop.f32.mrb[0].mxu0
      %v5562 = vadd.f32 %v5105, %v5561
      %v5563 = vpop.f32.mrb[0].mxu0
      %v5564 = vand.u32 %v1081, 4294901760
      %5565 = vmatprep.mubr.f32.mxu0 %v5564
      %v5566 = vand.u32 %v1080, 4294901760
      %5567 = vmatmul.mubr.f32.gmra.mrb[0].mxu0 %v5566
      %v5568 = vpop.f32.mrb[0].mxu0
      %v5569 = vadd.f32 %v5120, %v5568
      %v5570 = vpop.f32.mrb[0].mxu0
      %v5571 = vand.u32 %v1084, 4294901760
      %5572 = vmatprep.mubr.f32.mxu0 %v5571
      %v5573 = vand.u32 %v1083, 4294901760
      %5574 = vmatmul.mubr.f32.gmra.mrb[0].mxu0 %v5573
      %v5575 = vpop.f32.mrb[0].mxu0
      %v5576 = vadd.f32 %v5135, %v5575
      %v5577 = vpop.f32.mrb[0].mxu0
      %v5578 = vand.u32 %v1087, 4294901760
      %5579 = vmatprep.mubr.f32.mxu0 %v5578
      %v5580 = vand.u32 %v1086, 4294901760
      %5581 = vmatmul.mubr.f32.gmra.mrb[0].mxu0 %v5580
      %v5582 = vpop.f32.mrb[0].mxu0
      %v5583 = vadd.f32 %v5150, %v5582
      %v5584 = vpop.f32.mrb[0].mxu0
      %v5585 = vand.u32 %v1090, 4294901760
      %5586 = vmatprep.mubr.f32.mxu0 %v5585
      %v5587 = vand.u32 %v1089, 4294901760
      %5588 = vmatmul.mubr.f32.gmra.mrb[0].mxu0 %v5587
      %v5589 = vpop.f32.mrb[0].mxu0
      %v5590 = vadd.f32 %v5165, %v5589
      %v5591 = vpop.f32.mrb[0].mxu0
      %v5592 = vand.u32 %v1093, 4294901760
      %5593 = vmatprep.mubr.f32.mxu0 %v5592
      %v5594 = vand.u32 %v1092, 4294901760
      %5595 = vmatmul.mubr.f32.gmra.mrb[0].mxu0 %v5594
      %v5596 = vpop.f32.mrb[0].mxu0
      %v5597 = vadd.f32 %v5180, %v5596
      %v5598 = vpop.f32.mrb[0].mxu0
      %v5599 = vand.u32 %v1096, 4294901760
      %5600 = vmatprep.mubr.f32.mxu0 %v5599
      %v5601 = vand.u32 %v1095, 4294901760
      %5602 = vmatmul.mubr.f32.gmra.mrb[0].mxu0 %v5601
      %v5603 = vpop.f32.mrb[0].mxu0
      %v5604 = vadd.f32 %v5195, %v5603
      %v5605 = vpop.f32.mrb[0].mxu0
      %v5606 = vand.u32 %v1099, 4294901760
      %5607 = vmatprep.mubr.f32.mxu0 %v5606
      %v5608 = vand.u32 %v1098, 4294901760
      %5609 = vmatmul.mubr.f32.gmra.mrb[0].mxu0 %v5608
      %v5610 = vpop.f32.mrb[0].mxu0
      %v5611 = vadd.f32 %v5210, %v5610
      %v5612 = vpop.f32.mrb[0].mxu0
      %v5613 = vand.u32 %v1102, 4294901760
      %5614 = vmatprep.mubr.f32.mxu0 %v5613
      %v5615 = vand.u32 %v1101, 4294901760
      %5616 = vmatmul.mubr.f32.gmra.mrb[0].mxu0 %v5615
      %v5617 = vpop.f32.mrb[0].mxu0
      %v5618 = vadd.f32 %v5225, %v5617
      %v5619 = vpop.f32.mrb[0].mxu0
      %v5620 = vand.u32 %v1105, 4294901760
      %5621 = vmatprep.mubr.f32.mxu0 %v5620
      %v5622 = vand.u32 %v1104, 4294901760
      %5623 = vmatmul.mubr.f32.gmra.mrb[0].mxu0 %v5622
      %v5624 = vpop.f32.mrb[0].mxu0
      %v5625 = vadd.f32 %v5240, %v5624
      %v5626 = vpop.f32.mrb[0].mxu0
      %v5627 = vand.u32 %v1108, 4294901760
      %5628 = vmatprep.mubr.f32.mxu0 %v5627
      %v5629 = vand.u32 %v1107, 4294901760
      %5630 = vmatmul.mubr.f32.gmra.mrb[0].mxu0 %v5629
      %v5631 = vpop.f32.mrb[0].mxu0
      %v5632 = vadd.f32 %v5255, %v5631
      %v5633 = vpop.f32.mrb[0].mxu0
      %v5634 = vand.u32 %v1111, 4294901760
      %5635 = vmatprep.mubr.f32.mxu0 %v5634
      %v5636 = vand.u32 %v1110, 4294901760
      %5637 = vmatmul.mubr.f32.gmra.mrb[0].mxu0 %v5636
      %v5638 = vpop.f32.mrb[0].mxu0
      %v5639 = vadd.f32 %v5270, %v5638
      %v5640 = vpop.f32.mrb[0].mxu0
      %v5641 = vand.u32 %v1114, 4294901760
      %5642 = vmatprep.mubr.f32.mxu0 %v5641
      %v5643 = vand.u32 %v1113, 4294901760
      %5644 = vmatmul.mubr.f32.gmra.mrb[0].mxu0 %v5643
      %v5645 = vpop.f32.mrb[0].mxu0
      %v5646 = vadd.f32 %v5285, %v5645
      %v5647 = vpop.f32.mrb[0].mxu0
      %v5648 = vand.u32 %v1117, 4294901760
      %5649 = vmatprep.mubr.f32.mxu0 %v5648
      %v5650 = vand.u32 %v1116, 4294901760
      %5651 = vmatmul.mubr.f32.gmra.mrb[0].mxu0 %v5650
      %v5652 = vpop.f32.mrb[0].mxu0
      %v5653 = vadd.f32 %v5300, %v5652
      %v5654 = vpop.f32.mrb[0].mxu0
      %v5655 = vand.u32 %v1120, 4294901760
      %5656 = vmatprep.mubr.f32.mxu0 %v5655
      %v5657 = vand.u32 %v1119, 4294901760
      %5658 = vmatmul.mubr.f32.gmra.mrb[0].mxu0 %v5657
      %v5659 = vpop.f32.mrb[0].mxu0
      %v5660 = vadd.f32 %v5315, %v5659
      %v5661 = vpop.f32.mrb[0].mxu0
      %v5662 = vand.u32 %v1123, 4294901760
      %5663 = vmatprep.mubr.f32.mxu0 %v5662
      %v5664 = vand.u32 %v1122, 4294901760
      %5665 = vmatmul.mubr.f32.gmra.mrb[0].mxu0 %v5664
      %v5666 = vpop.f32.mrb[0].mxu0
      %v5667 = vadd.f32 %v5330, %v5666
      %v5668 = vpop.f32.mrb[0].mxu0
      %5669 = vdwg.mxu0
      %5670 = vmatprep.subr.mxu0 0.0
      %v5671 = vand.u32 %v471, 4294901760
      %v5672 = vsub.f32 %v471, %v5671
      %5673 = vmatpush1.msra.mxu0 %v5672
      %5674 = vmatprep.subr.mxu0 0.0
      %v5675 = vand.u32 %v474, 4294901760
      %v5676 = vsub.f32 %v474, %v5675
      %5677 = vmatpush1.msra.mxu0 %v5676
      %5678 = vmatprep.subr.mxu0 0.0
      %v5679 = vand.u32 %v477, 4294901760
      %v5680 = vsub.f32 %v477, %v5679
      %5681 = vmatpush1.msra.mxu0 %v5680
      %5682 = vmatprep.subr.mxu0 0.0
      %v5683 = vand.u32 %v480, 4294901760
      %v5684 = vsub.f32 %v480, %v5683
      %5685 = vmatpush1.msra.mxu0 %v5684
      %5686 = vmatprep.subr.mxu0 0.0
      %v5687 = vand.u32 %v483, 4294901760
      %v5688 = vsub.f32 %v483, %v5687
      %5689 = vmatpush1.msra.mxu0 %v5688
      %5690 = vmatprep.subr.mxu0 0.0
      %v5691 = vand.u32 %v552, 4294901760
      %v5692 = vsub.f32 %v552, %v5691
      %5693 = vmatpush1.msra.mxu0 %v5692
      %5694 = vmatprep.subr.mxu0 0.0
      %v5695 = vand.u32 %v555, 4294901760
      %v5696 = vsub.f32 %v555, %v5695
      %5697 = vmatpush1.msra.mxu0 %v5696
      %5698 = vmatprep.subr.mxu0 0.0
      %v5699 = vand.u32 %v558, 4294901760
      %v5700 = vsub.f32 %v558, %v5699
      %5701 = vmatpush1.msra.mxu0 %v5700
      %5702 = vmatprep.subr.mxu0 0.0
      %v5703 = vand.u32 %v561, 4294901760
      %v5704 = vsub.f32 %v561, %v5703
      %5705 = vmatpush1.msra.mxu0 %v5704
      %5706 = vmatprep.subr.mxu0 0.0
      %v5707 = vand.u32 %v564, 4294901760
      %v5708 = vsub.f32 %v564, %v5707
      %5709 = vmatpush1.msra.mxu0 %v5708
      %5710 = vmatprep.subr.mxu0 0.0
      %v5711 = vand.u32 %v623, 4294901760
      %v5712 = vsub.f32 %v623, %v5711
      %5713 = vmatpush1.msra.mxu0 %v5712
      %5714 = vmatprep.subr.mxu0 0.0
      %v5715 = vand.u32 %v626, 4294901760
      %v5716 = vsub.f32 %v626, %v5715
      %5717 = vmatpush1.msra.mxu0 %v5716
      %5718 = vmatprep.subr.mxu0 0.0
      %v5719 = vand.u32 %v629, 4294901760
      %v5720 = vsub.f32 %v629, %v5719
      %5721 = vmatpush1.msra.mxu0 %v5720
      %5722 = vmatprep.subr.mxu0 0.0
      %v5723 = vand.u32 %v632, 4294901760
      %v5724 = vsub.f32 %v632, %v5723
      %5725 = vmatpush1.msra.mxu0 %v5724
      %5726 = vmatprep.subr.mxu0 0.0
      %v5727 = vand.u32 %v635, 4294901760
      %v5728 = vsub.f32 %v635, %v5727
      %5729 = vmatpush1.msra.mxu0 %v5728
      %5730 = vmatprep.subr.mxu0 0.0
      %v5731 = vand.u32 %v694, 4294901760
      %v5732 = vsub.f32 %v694, %v5731
      %5733 = vmatpush1.msra.mxu0 %v5732
      %5734 = vmatprep.subr.mxu0 0.0
      %v5735 = vand.u32 %v697, 4294901760
      %v5736 = vsub.f32 %v697, %v5735
      %5737 = vmatpush1.msra.mxu0 %v5736
      %5738 = vmatprep.subr.mxu0 0.0
      %v5739 = vand.u32 %v700, 4294901760
      %v5740 = vsub.f32 %v700, %v5739
      %5741 = vmatpush1.msra.mxu0 %v5740
      %5742 = vmatprep.subr.mxu0 0.0
      %v5743 = vand.u32 %v703, 4294901760
      %v5744 = vsub.f32 %v703, %v5743
      %5745 = vmatpush1.msra.mxu0 %v5744
      %5746 = vmatprep.subr.mxu0 0.0
      %v5747 = vand.u32 %v706, 4294901760
      %v5748 = vsub.f32 %v706, %v5747
      %5749 = vmatpush1.msra.mxu0 %v5748
      %5750 = vmatprep.subr.mxu0 0.0
      %v5751 = vand.u32 %v765, 4294901760
      %v5752 = vsub.f32 %v765, %v5751
      %5753 = vmatpush1.msra.mxu0 %v5752
      %5754 = vmatprep.subr.mxu0 0.0
      %v5755 = vand.u32 %v768, 4294901760
      %v5756 = vsub.f32 %v768, %v5755
      %5757 = vmatpush1.msra.mxu0 %v5756
      %5758 = vmatprep.subr.mxu0 0.0
      %v5759 = vand.u32 %v771, 4294901760
      %v5760 = vsub.f32 %v771, %v5759
      %5761 = vmatpush1.msra.mxu0 %v5760
      %5762 = vmatprep.subr.mxu0 0.0
      %v5763 = vand.u32 %v774, 4294901760
      %v5764 = vsub.f32 %v774, %v5763
      %5765 = vmatpush1.msra.mxu0 %v5764
      %5766 = vmatprep.subr.mxu0 0.0
      %v5767 = vand.u32 %v777, 4294901760
      %v5768 = vsub.f32 %v777, %v5767
      %5769 = vmatpush1.msra.mxu0 %v5768
      %5770 = vmatprep.subr.mxu0 0.0
      %v5771 = vand.u32 %v836, 4294901760
      %v5772 = vsub.f32 %v836, %v5771
      %5773 = vmatpush1.msra.mxu0 %v5772
      %5774 = vmatprep.subr.mxu0 0.0
      %v5775 = vand.u32 %v839, 4294901760
      %v5776 = vsub.f32 %v839, %v5775
      %5777 = vmatpush1.msra.mxu0 %v5776
      %5778 = vmatprep.subr.mxu0 0.0
      %v5779 = vand.u32 %v842, 4294901760
      %v5780 = vsub.f32 %v842, %v5779
      %5781 = vmatpush1.msra.mxu0 %v5780
      %5782 = vmatprep.subr.mxu0 0.0
      %v5783 = vand.u32 %v845, 4294901760
      %v5784 = vsub.f32 %v845, %v5783
      %5785 = vmatpush1.msra.mxu0 %v5784
      %5786 = vmatprep.subr.mxu0 0.0
      %v5787 = vand.u32 %v848, 4294901760
      %v5788 = vsub.f32 %v848, %v5787
      %5789 = vmatpush1.msra.mxu0 %v5788
      %5790 = vmatprep.subr.mxu0 0.0
      %v5791 = vand.u32 %v907, 4294901760
      %v5792 = vsub.f32 %v907, %v5791
      %5793 = vmatpush1.msra.mxu0 %v5792
      %5794 = vmatprep.subr.mxu0 0.0
      %v5795 = vand.u32 %v910, 4294901760
      %v5796 = vsub.f32 %v910, %v5795
      %5797 = vmatpush1.msra.mxu0 %v5796
      %v5798 = vand.u32 %v1078, 4294901760
      %v5799 = vsub.f32 %v1078, %v5798
      %5800 = vmatprep.mubr.f32.mxu0 %v5799
      %v5801 = vand.u32 %v1077, 4294901760
      %v5802 = vsub.f32 %v1077, %v5801
      %5803 = vmatmul.mubr.f32.gmra.mrb[0].mxu0 %v5802
      %v5804 = vpop.f32.mrb[0].mxu0
      %v5805 = vadd.f32 %v5562, %v5804
      %v5806 = vpop.f32.mrb[0].mxu0
      %v5807 = vand.u32 %v1081, 4294901760
      %v5808 = vsub.f32 %v1081, %v5807
      %5809 = vmatprep.mubr.f32.mxu0 %v5808
      %v5810 = vand.u32 %v1080, 4294901760
      %v5811 = vsub.f32 %v1080, %v5810
      %5812 = vmatmul.mubr.f32.gmra.mrb[0].mxu0 %v5811
      %v5813 = vpop.f32.mrb[0].mxu0
      %v5814 = vadd.f32 %v5569, %v5813
      %v5815 = vpop.f32.mrb[0].mxu0
      %v5816 = vand.u32 %v1084, 4294901760
      %v5817 = vsub.f32 %v1084, %v5816
      %5818 = vmatprep.mubr.f32.mxu0 %v5817
      %v5819 = vand.u32 %v1083, 4294901760
      %v5820 = vsub.f32 %v1083, %v5819
      %5821 = vmatmul.mubr.f32.gmra.mrb[0].mxu0 %v5820
      %v5822 = vpop.f32.mrb[0].mxu0
      %v5823 = vadd.f32 %v5576, %v5822
      %v5824 = vpop.f32.mrb[0].mxu0
      %v5825 = vand.u32 %v1087, 4294901760
      %v5826 = vsub.f32 %v1087, %v5825
      %5827 = vmatprep.mubr.f32.mxu0 %v5826
      %v5828 = vand.u32 %v1086, 4294901760
      %v5829 = vsub.f32 %v1086, %v5828
      %5830 = vmatmul.mubr.f32.gmra.mrb[0].mxu0 %v5829
      %v5831 = vpop.f32.mrb[0].mxu0
      %v5832 = vadd.f32 %v5583, %v5831
      %v5833 = vpop.f32.mrb[0].mxu0
      %v5834 = vand.u32 %v1090, 4294901760
      %v5835 = vsub.f32 %v1090, %v5834
      %5836 = vmatprep.mubr.f32.mxu0 %v5835
      %v5837 = vand.u32 %v1089, 4294901760
      %v5838 = vsub.f32 %v1089, %v5837
      %5839 = vmatmul.mubr.f32.gmra.mrb[0].mxu0 %v5838
      %v5840 = vpop.f32.mrb[0].mxu0
      %v5841 = vadd.f32 %v5590, %v5840
      %v5842 = vpop.f32.mrb[0].mxu0
      %v5843 = vand.u32 %v1093, 4294901760
      %v5844 = vsub.f32 %v1093, %v5843
      %5845 = vmatprep.mubr.f32.mxu0 %v5844
      %v5846 = vand.u32 %v1092, 4294901760
      %v5847 = vsub.f32 %v1092, %v5846
      %5848 = vmatmul.mubr.f32.gmra.mrb[0].mxu0 %v5847
      %v5849 = vpop.f32.mrb[0].mxu0
      %v5850 = vadd.f32 %v5597, %v5849
      %v5851 = vpop.f32.mrb[0].mxu0
      %v5852 = vand.u32 %v1096, 4294901760
      %v5853 = vsub.f32 %v1096, %v5852
      %5854 = vmatprep.mubr.f32.mxu0 %v5853
      %v5855 = vand.u32 %v1095, 4294901760
      %v5856 = vsub.f32 %v1095, %v5855
      %5857 = vmatmul.mubr.f32.gmra.mrb[0].mxu0 %v5856
      %v5858 = vpop.f32.mrb[0].mxu0
      %v5859 = vadd.f32 %v5604, %v5858
      %v5860 = vpop.f32.mrb[0].mxu0
      %v5861 = vand.u32 %v1099, 4294901760
      %v5862 = vsub.f32 %v1099, %v5861
      %5863 = vmatprep.mubr.f32.mxu0 %v5862
      %v5864 = vand.u32 %v1098, 4294901760
      %v5865 = vsub.f32 %v1098, %v5864
      %5866 = vmatmul.mubr.f32.gmra.mrb[0].mxu0 %v5865
      %v5867 = vpop.f32.mrb[0].mxu0
      %v5868 = vadd.f32 %v5611, %v5867
      %v5869 = vpop.f32.mrb[0].mxu0
      %v5870 = vand.u32 %v1102, 4294901760
      %v5871 = vsub.f32 %v1102, %v5870
      %5872 = vmatprep.mubr.f32.mxu0 %v5871
      %v5873 = vand.u32 %v1101, 4294901760
      %v5874 = vsub.f32 %v1101, %v5873
      %5875 = vmatmul.mubr.f32.gmra.mrb[0].mxu0 %v5874
      %v5876 = vpop.f32.mrb[0].mxu0
      %v5877 = vadd.f32 %v5618, %v5876
      %v5878 = vpop.f32.mrb[0].mxu0
      %v5879 = vand.u32 %v1105, 4294901760
      %v5880 = vsub.f32 %v1105, %v5879
      %5881 = vmatprep.mubr.f32.mxu0 %v5880
      %v5882 = vand.u32 %v1104, 4294901760
      %v5883 = vsub.f32 %v1104, %v5882
      %5884 = vmatmul.mubr.f32.gmra.mrb[0].mxu0 %v5883
      %v5885 = vpop.f32.mrb[0].mxu0
      %v5886 = vadd.f32 %v5625, %v5885
      %v5887 = vpop.f32.mrb[0].mxu0
      %v5888 = vand.u32 %v1108, 4294901760
      %v5889 = vsub.f32 %v1108, %v5888
      %5890 = vmatprep.mubr.f32.mxu0 %v5889
      %v5891 = vand.u32 %v1107, 4294901760
      %v5892 = vsub.f32 %v1107, %v5891
      %5893 = vmatmul.mubr.f32.gmra.mrb[0].mxu0 %v5892
      %v5894 = vpop.f32.mrb[0].mxu0
      %v5895 = vadd.f32 %v5632, %v5894
      %v5896 = vpop.f32.mrb[0].mxu0
      %v5897 = vand.u32 %v1111, 4294901760
      %v5898 = vsub.f32 %v1111, %v5897
      %5899 = vmatprep.mubr.f32.mxu0 %v5898
      %v5900 = vand.u32 %v1110, 4294901760
      %v5901 = vsub.f32 %v1110, %v5900
      %5902 = vmatmul.mubr.f32.gmra.mrb[0].mxu0 %v5901
      %v5903 = vpop.f32.mrb[0].mxu0
      %v5904 = vadd.f32 %v5639, %v5903
      %v5905 = vpop.f32.mrb[0].mxu0
      %v5906 = vand.u32 %v1114, 4294901760
      %v5907 = vsub.f32 %v1114, %v5906
      %5908 = vmatprep.mubr.f32.mxu0 %v5907
      %v5909 = vand.u32 %v1113, 4294901760
      %v5910 = vsub.f32 %v1113, %v5909
      %5911 = vmatmul.mubr.f32.gmra.mrb[0].mxu0 %v5910
      %v5912 = vpop.f32.mrb[0].mxu0
      %v5913 = vadd.f32 %v5646, %v5912
      %v5914 = vpop.f32.mrb[0].mxu0
      %v5915 = vand.u32 %v1117, 4294901760
      %v5916 = vsub.f32 %v1117, %v5915
      %5917 = vmatprep.mubr.f32.mxu0 %v5916
      %v5918 = vand.u32 %v1116, 4294901760
      %v5919 = vsub.f32 %v1116, %v5918
      %5920 = vmatmul.mubr.f32.gmra.mrb[0].mxu0 %v5919
      %v5921 = vpop.f32.mrb[0].mxu0
      %v5922 = vadd.f32 %v5653, %v5921
      %v5923 = vpop.f32.mrb[0].mxu0
      %v5924 = vand.u32 %v1120, 4294901760
      %v5925 = vsub.f32 %v1120, %v5924
      %5926 = vmatprep.mubr.f32.mxu0 %v5925
      %v5927 = vand.u32 %v1119, 4294901760
      %v5928 = vsub.f32 %v1119, %v5927
      %5929 = vmatmul.mubr.f32.gmra.mrb[0].mxu0 %v5928
      %v5930 = vpop.f32.mrb[0].mxu0
      %v5931 = vadd.f32 %v5660, %v5930
      %v5932 = vpop.f32.mrb[0].mxu0
      %v5933 = vand.u32 %v1123, 4294901760
      %v5934 = vsub.f32 %v1123, %v5933
      %5935 = vmatprep.mubr.f32.mxu0 %v5934
      %v5936 = vand.u32 %v1122, 4294901760
      %v5937 = vsub.f32 %v1122, %v5936
      %5938 = vmatmul.mubr.f32.gmra.mrb[0].mxu0 %v5937
      %v5939 = vpop.f32.mrb[0].mxu0
      %v5940 = vadd.f32 %v5667, %v5939
      %v5941 = vpop.f32.mrb[0].mxu0
      %5942 = vdwg.mxu0
      %5943 = vmatprep.subr.mxu0 0.0
      %v5944 = vand.u32 %v471, 4294901760
      %5945 = vmatpush1.msra.mxu0 %v5944
      %5946 = vmatprep.subr.mxu0 0.0
      %v5947 = vand.u32 %v474, 4294901760
      %5948 = vmatpush1.msra.mxu0 %v5947
      %5949 = vmatprep.subr.mxu0 0.0
      %v5950 = vand.u32 %v477, 4294901760
      %5951 = vmatpush1.msra.mxu0 %v5950
      %5952 = vmatprep.subr.mxu0 0.0
      %v5953 = vand.u32 %v480, 4294901760
      %5954 = vmatpush1.msra.mxu0 %v5953
      %5955 = vmatprep.subr.mxu0 0.0
      %v5956 = vand.u32 %v483, 4294901760
      %5957 = vmatpush1.msra.mxu0 %v5956
      %5958 = vmatprep.subr.mxu0 0.0
      %v5959 = vand.u32 %v552, 4294901760
      %5960 = vmatpush1.msra.mxu0 %v5959
      %5961 = vmatprep.subr.mxu0 0.0
      %v5962 = vand.u32 %v555, 4294901760
      %5963 = vmatpush1.msra.mxu0 %v5962
      %5964 = vmatprep.subr.mxu0 0.0
      %v5965 = vand.u32 %v558, 4294901760
      %5966 = vmatpush1.msra.mxu0 %v5965
      %5967 = vmatprep.subr.mxu0 0.0
      %v5968 = vand.u32 %v561, 4294901760
      %5969 = vmatpush1.msra.mxu0 %v5968
      %5970 = vmatprep.subr.mxu0 0.0
      %v5971 = vand.u32 %v564, 4294901760
      %5972 = vmatpush1.msra.mxu0 %v5971
      %5973 = vmatprep.subr.mxu0 0.0
      %v5974 = vand.u32 %v623, 4294901760
      %5975 = vmatpush1.msra.mxu0 %v5974
      %5976 = vmatprep.subr.mxu0 0.0
      %v5977 = vand.u32 %v626, 4294901760
      %5978 = vmatpush1.msra.mxu0 %v5977
      %5979 = vmatprep.subr.mxu0 0.0
      %v5980 = vand.u32 %v629, 4294901760
      %5981 = vmatpush1.msra.mxu0 %v5980
      %5982 = vmatprep.subr.mxu0 0.0
      %v5983 = vand.u32 %v632, 4294901760
      %5984 = vmatpush1.msra.mxu0 %v5983
      %5985 = vmatprep.subr.mxu0 0.0
      %v5986 = vand.u32 %v635, 4294901760
      %5987 = vmatpush1.msra.mxu0 %v5986
      %5988 = vmatprep.subr.mxu0 0.0
      %v5989 = vand.u32 %v694, 4294901760
      %5990 = vmatpush1.msra.mxu0 %v5989
      %5991 = vmatprep.subr.mxu0 0.0
      %v5992 = vand.u32 %v697, 4294901760
      %5993 = vmatpush1.msra.mxu0 %v5992
      %5994 = vmatprep.subr.mxu0 0.0
      %v5995 = vand.u32 %v700, 4294901760
      %5996 = vmatpush1.msra.mxu0 %v5995
      %5997 = vmatprep.subr.mxu0 0.0
      %v5998 = vand.u32 %v703, 4294901760
      %5999 = vmatpush1.msra.mxu0 %v5998
      %6000 = vmatprep.subr.mxu0 0.0
      %v6001 = vand.u32 %v706, 4294901760
      %6002 = vmatpush1.msra.mxu0 %v6001
      %6003 = vmatprep.subr.mxu0 0.0
      %v6004 = vand.u32 %v765, 4294901760
      %6005 = vmatpush1.msra.mxu0 %v6004
      %6006 = vmatprep.subr.mxu0 0.0
      %v6007 = vand.u32 %v768, 4294901760
      %6008 = vmatpush1.msra.mxu0 %v6007
      %6009 = vmatprep.subr.mxu0 0.0
      %v6010 = vand.u32 %v771, 4294901760
      %6011 = vmatpush1.msra.mxu0 %v6010
      %6012 = vmatprep.subr.mxu0 0.0
      %v6013 = vand.u32 %v774, 4294901760
      %6014 = vmatpush1.msra.mxu0 %v6013
      %6015 = vmatprep.subr.mxu0 0.0
      %v6016 = vand.u32 %v777, 4294901760
      %6017 = vmatpush1.msra.mxu0 %v6016
      %6018 = vmatprep.subr.mxu0 0.0
      %v6019 = vand.u32 %v836, 4294901760
      %6020 = vmatpush1.msra.mxu0 %v6019
      %6021 = vmatprep.subr.mxu0 0.0
      %v6022 = vand.u32 %v839, 4294901760
      %6023 = vmatpush1.msra.mxu0 %v6022
      %6024 = vmatprep.subr.mxu0 0.0
      %v6025 = vand.u32 %v842, 4294901760
      %6026 = vmatpush1.msra.mxu0 %v6025
      %6027 = vmatprep.subr.mxu0 0.0
      %v6028 = vand.u32 %v845, 4294901760
      %6029 = vmatpush1.msra.mxu0 %v6028
      %6030 = vmatprep.subr.mxu0 0.0
      %v6031 = vand.u32 %v848, 4294901760
      %6032 = vmatpush1.msra.mxu0 %v6031
      %6033 = vmatprep.subr.mxu0 0.0
      %v6034 = vand.u32 %v907, 4294901760
      %6035 = vmatpush1.msra.mxu0 %v6034
      %6036 = vmatprep.subr.mxu0 0.0
      %v6037 = vand.u32 %v910, 4294901760
      %6038 = vmatpush1.msra.mxu0 %v6037
      %v6039 = vand.u32 %v1078, 4294901760
      %v6040 = vsub.f32 %v1078, %v6039
      %v6041 = vand.u32 %v6040, 4294901760
      %6042 = vmatprep.mubr.f32.mxu0 %v6041
      %v6043 = vand.u32 %v1077, 4294901760
      %v6044 = vsub.f32 %v1077, %v6043
      %v6045 = vand.u32 %v6044, 4294901760
      %6046 = vmatmul.mubr.f32.gmra.mrb[0].mxu0 %v6045
      %v6047 = vpop.f32.mrb[0].mxu0
      %v6048 = vadd.f32 %v5805, %v6047
      %v6049 = vpop.f32.mrb[0].mxu0
      %v6050 = vand.u32 %v1081, 4294901760
      %v6051 = vsub.f32 %v1081, %v6050
      %v6052 = vand.u32 %v6051, 4294901760
      %6053 = vmatprep.mubr.f32.mxu0 %v6052
      %v6054 = vand.u32 %v1080, 4294901760
      %v6055 = vsub.f32 %v1080, %v6054
      %v6056 = vand.u32 %v6055, 4294901760
      %6057 = vmatmul.mubr.f32.gmra.mrb[0].mxu0 %v6056
      %v6058 = vpop.f32.mrb[0].mxu0
      %v6059 = vadd.f32 %v5814, %v6058
      %v6060 = vpop.f32.mrb[0].mxu0
      %v6061 = vand.u32 %v1084, 4294901760
      %v6062 = vsub.f32 %v1084, %v6061
      %v6063 = vand.u32 %v6062, 4294901760
      %6064 = vmatprep.mubr.f32.mxu0 %v6063
      %v6065 = vand.u32 %v1083, 4294901760
      %v6066 = vsub.f32 %v1083, %v6065
      %v6067 = vand.u32 %v6066, 4294901760
      %6068 = vmatmul.mubr.f32.gmra.mrb[0].mxu0 %v6067
      %v6069 = vpop.f32.mrb[0].mxu0
      %v6070 = vadd.f32 %v5823, %v6069
      %v6071 = vpop.f32.mrb[0].mxu0
      %v6072 = vand.u32 %v1087, 4294901760
      %v6073 = vsub.f32 %v1087, %v6072
      %v6074 = vand.u32 %v6073, 4294901760
      %6075 = vmatprep.mubr.f32.mxu0 %v6074
      %v6076 = vand.u32 %v1086, 4294901760
      %v6077 = vsub.f32 %v1086, %v6076
      %v6078 = vand.u32 %v6077, 4294901760
      %6079 = vmatmul.mubr.f32.gmra.mrb[0].mxu0 %v6078
      %v6080 = vpop.f32.mrb[0].mxu0
      %v6081 = vadd.f32 %v5832, %v6080
      %v6082 = vpop.f32.mrb[0].mxu0
      %v6083 = vand.u32 %v1090, 4294901760
      %v6084 = vsub.f32 %v1090, %v6083
      %v6085 = vand.u32 %v6084, 4294901760
      %6086 = vmatprep.mubr.f32.mxu0 %v6085
      %v6087 = vand.u32 %v1089, 4294901760
      %v6088 = vsub.f32 %v1089, %v6087
      %v6089 = vand.u32 %v6088, 4294901760
      %6090 = vmatmul.mubr.f32.gmra.mrb[0].mxu0 %v6089
      %v6091 = vpop.f32.mrb[0].mxu0
      %v6092 = vadd.f32 %v5841, %v6091
      %v6093 = vpop.f32.mrb[0].mxu0
      %v6094 = vand.u32 %v1093, 4294901760
      %v6095 = vsub.f32 %v1093, %v6094
      %v6096 = vand.u32 %v6095, 4294901760
      %6097 = vmatprep.mubr.f32.mxu0 %v6096
      %v6098 = vand.u32 %v1092, 4294901760
      %v6099 = vsub.f32 %v1092, %v6098
      %v6100 = vand.u32 %v6099, 4294901760
      %6101 = vmatmul.mubr.f32.gmra.mrb[0].mxu0 %v6100
      %v6102 = vpop.f32.mrb[0].mxu0
      %v6103 = vadd.f32 %v5850, %v6102
      %v6104 = vpop.f32.mrb[0].mxu0
      %v6105 = vand.u32 %v1096, 4294901760
      %v6106 = vsub.f32 %v1096, %v6105
      %v6107 = vand.u32 %v6106, 4294901760
      %6108 = vmatprep.mubr.f32.mxu0 %v6107
      %v6109 = vand.u32 %v1095, 4294901760
      %v6110 = vsub.f32 %v1095, %v6109
      %v6111 = vand.u32 %v6110, 4294901760
      %6112 = vmatmul.mubr.f32.gmra.mrb[0].mxu0 %v6111
      %v6113 = vpop.f32.mrb[0].mxu0
      %v6114 = vadd.f32 %v5859, %v6113
      %v6115 = vpop.f32.mrb[0].mxu0
      %v6116 = vand.u32 %v1099, 4294901760
      %v6117 = vsub.f32 %v1099, %v6116
      %v6118 = vand.u32 %v6117, 4294901760
      %6119 = vmatprep.mubr.f32.mxu0 %v6118
      %v6120 = vand.u32 %v1098, 4294901760
      %v6121 = vsub.f32 %v1098, %v6120
      %v6122 = vand.u32 %v6121, 4294901760
      %6123 = vmatmul.mubr.f32.gmra.mrb[0].mxu0 %v6122
      %v6124 = vpop.f32.mrb[0].mxu0
      %v6125 = vadd.f32 %v5868, %v6124
      %v6126 = vpop.f32.mrb[0].mxu0
      %v6127 = vand.u32 %v1102, 4294901760
      %v6128 = vsub.f32 %v1102, %v6127
      %v6129 = vand.u32 %v6128, 4294901760
      %6130 = vmatprep.mubr.f32.mxu0 %v6129
      %v6131 = vand.u32 %v1101, 4294901760
      %v6132 = vsub.f32 %v1101, %v6131
      %v6133 = vand.u32 %v6132, 4294901760
      %6134 = vmatmul.mubr.f32.gmra.mrb[0].mxu0 %v6133
      %v6135 = vpop.f32.mrb[0].mxu0
      %v6136 = vadd.f32 %v5877, %v6135
      %v6137 = vpop.f32.mrb[0].mxu0
      %v6138 = vand.u32 %v1105, 4294901760
      %v6139 = vsub.f32 %v1105, %v6138
      %v6140 = vand.u32 %v6139, 4294901760
      %6141 = vmatprep.mubr.f32.mxu0 %v6140
      %v6142 = vand.u32 %v1104, 4294901760
      %v6143 = vsub.f32 %v1104, %v6142
      %v6144 = vand.u32 %v6143, 4294901760
      %6145 = vmatmul.mubr.f32.gmra.mrb[0].mxu0 %v6144
      %v6146 = vpop.f32.mrb[0].mxu0
      %v6147 = vadd.f32 %v5886, %v6146
      %v6148 = vpop.f32.mrb[0].mxu0
      %v6149 = vand.u32 %v1108, 4294901760
      %v6150 = vsub.f32 %v1108, %v6149
      %v6151 = vand.u32 %v6150, 4294901760
      %6152 = vmatprep.mubr.f32.mxu0 %v6151
      %v6153 = vand.u32 %v1107, 4294901760
      %v6154 = vsub.f32 %v1107, %v6153
      %v6155 = vand.u32 %v6154, 4294901760
      %6156 = vmatmul.mubr.f32.gmra.mrb[0].mxu0 %v6155
      %v6157 = vpop.f32.mrb[0].mxu0
      %v6158 = vadd.f32 %v5895, %v6157
      %v6159 = vpop.f32.mrb[0].mxu0
      %v6160 = vand.u32 %v1111, 4294901760
      %v6161 = vsub.f32 %v1111, %v6160
      %v6162 = vand.u32 %v6161, 4294901760
      %6163 = vmatprep.mubr.f32.mxu0 %v6162
      %v6164 = vand.u32 %v1110, 4294901760
      %v6165 = vsub.f32 %v1110, %v6164
      %v6166 = vand.u32 %v6165, 4294901760
      %6167 = vmatmul.mubr.f32.gmra.mrb[0].mxu0 %v6166
      %v6168 = vpop.f32.mrb[0].mxu0
      %v6169 = vadd.f32 %v5904, %v6168
      %v6170 = vpop.f32.mrb[0].mxu0
      %v6171 = vand.u32 %v1114, 4294901760
      %v6172 = vsub.f32 %v1114, %v6171
      %v6173 = vand.u32 %v6172, 4294901760
      %6174 = vmatprep.mubr.f32.mxu0 %v6173
      %v6175 = vand.u32 %v1113, 4294901760
      %v6176 = vsub.f32 %v1113, %v6175
      %v6177 = vand.u32 %v6176, 4294901760
      %6178 = vmatmul.mubr.f32.gmra.mrb[0].mxu0 %v6177
      %v6179 = vpop.f32.mrb[0].mxu0
      %v6180 = vadd.f32 %v5913, %v6179
      %v6181 = vpop.f32.mrb[0].mxu0
      %v6182 = vand.u32 %v1117, 4294901760
      %v6183 = vsub.f32 %v1117, %v6182
      %v6184 = vand.u32 %v6183, 4294901760
      %6185 = vmatprep.mubr.f32.mxu0 %v6184
      %v6186 = vand.u32 %v1116, 4294901760
      %v6187 = vsub.f32 %v1116, %v6186
      %v6188 = vand.u32 %v6187, 4294901760
      %6189 = vmatmul.mubr.f32.gmra.mrb[0].mxu0 %v6188
      %v6190 = vpop.f32.mrb[0].mxu0
      %v6191 = vadd.f32 %v5922, %v6190
      %v6192 = vpop.f32.mrb[0].mxu0
      %v6193 = vand.u32 %v1120, 4294901760
      %v6194 = vsub.f32 %v1120, %v6193
      %v6195 = vand.u32 %v6194, 4294901760
      %6196 = vmatprep.mubr.f32.mxu0 %v6195
      %v6197 = vand.u32 %v1119, 4294901760
      %v6198 = vsub.f32 %v1119, %v6197
      %v6199 = vand.u32 %v6198, 4294901760
      %6200 = vmatmul.mubr.f32.gmra.mrb[0].mxu0 %v6199
      %v6201 = vpop.f32.mrb[0].mxu0
      %v6202 = vadd.f32 %v5931, %v6201
      %v6203 = vpop.f32.mrb[0].mxu0
      %v6204 = vand.u32 %v1123, 4294901760
      %v6205 = vsub.f32 %v1123, %v6204
      %v6206 = vand.u32 %v6205, 4294901760
      %6207 = vmatprep.mubr.f32.mxu0 %v6206
      %v6208 = vand.u32 %v1122, 4294901760
      %v6209 = vsub.f32 %v1122, %v6208
      %v6210 = vand.u32 %v6209, 4294901760
      %6211 = vmatmul.mubr.f32.gmra.mrb[0].mxu0 %v6210
      %v6212 = vpop.f32.mrb[0].mxu0
      %v6213 = vadd.f32 %v5940, %v6212
      %v6214 = vpop.f32.mrb[0].mxu0
      %6215 = vdwg.mxu0
      %6216 = vmatprep.subr.mxu0 0.0
      %v6217 = vand.u32 %v471, 4294901760
      %v6218 = vsub.f32 %v471, %v6217
      %v6219 = vand.u32 %v6218, 4294901760
      %6220 = vmatpush1.msra.mxu0 %v6219
      %6221 = vmatprep.subr.mxu0 0.0
      %v6222 = vand.u32 %v474, 4294901760
      %v6223 = vsub.f32 %v474, %v6222
      %v6224 = vand.u32 %v6223, 4294901760
      %6225 = vmatpush1.msra.mxu0 %v6224
      %6226 = vmatprep.subr.mxu0 0.0
      %v6227 = vand.u32 %v477, 4294901760
      %v6228 = vsub.f32 %v477, %v6227
      %v6229 = vand.u32 %v6228, 4294901760
      %6230 = vmatpush1.msra.mxu0 %v6229
      %6231 = vmatprep.subr.mxu0 0.0
      %v6232 = vand.u32 %v480, 4294901760
      %v6233 = vsub.f32 %v480, %v6232
      %v6234 = vand.u32 %v6233, 4294901760
      %6235 = vmatpush1.msra.mxu0 %v6234
      %6236 = vmatprep.subr.mxu0 0.0
      %v6237 = vand.u32 %v483, 4294901760
      %v6238 = vsub.f32 %v483, %v6237
      %v6239 = vand.u32 %v6238, 4294901760
      %6240 = vmatpush1.msra.mxu0 %v6239
      %6241 = vmatprep.subr.mxu0 0.0
      %v6242 = vand.u32 %v552, 4294901760
      %v6243 = vsub.f32 %v552, %v6242
      %v6244 = vand.u32 %v6243, 4294901760
      %6245 = vmatpush1.msra.mxu0 %v6244
      %6246 = vmatprep.subr.mxu0 0.0
      %v6247 = vand.u32 %v555, 4294901760
      %v6248 = vsub.f32 %v555, %v6247
      %v6249 = vand.u32 %v6248, 4294901760
      %6250 = vmatpush1.msra.mxu0 %v6249
      %6251 = vmatprep.subr.mxu0 0.0
      %v6252 = vand.u32 %v558, 4294901760
      %v6253 = vsub.f32 %v558, %v6252
      %v6254 = vand.u32 %v6253, 4294901760
      %6255 = vmatpush1.msra.mxu0 %v6254
      %6256 = vmatprep.subr.mxu0 0.0
      %v6257 = vand.u32 %v561, 4294901760
      %v6258 = vsub.f32 %v561, %v6257
      %v6259 = vand.u32 %v6258, 4294901760
      %6260 = vmatpush1.msra.mxu0 %v6259
      %6261 = vmatprep.subr.mxu0 0.0
      %v6262 = vand.u32 %v564, 4294901760
      %v6263 = vsub.f32 %v564, %v6262
      %v6264 = vand.u32 %v6263, 4294901760
      %6265 = vmatpush1.msra.mxu0 %v6264
      %6266 = vmatprep.subr.mxu0 0.0
      %v6267 = vand.u32 %v623, 4294901760
      %v6268 = vsub.f32 %v623, %v6267
      %v6269 = vand.u32 %v6268, 4294901760
      %6270 = vmatpush1.msra.mxu0 %v6269
      %6271 = vmatprep.subr.mxu0 0.0
      %v6272 = vand.u32 %v626, 4294901760
      %v6273 = vsub.f32 %v626, %v6272
      %v6274 = vand.u32 %v6273, 4294901760
      %6275 = vmatpush1.msra.mxu0 %v6274
      %6276 = vmatprep.subr.mxu0 0.0
      %v6277 = vand.u32 %v629, 4294901760
      %v6278 = vsub.f32 %v629, %v6277
      %v6279 = vand.u32 %v6278, 4294901760
      %6280 = vmatpush1.msra.mxu0 %v6279
      %6281 = vmatprep.subr.mxu0 0.0
      %v6282 = vand.u32 %v632, 4294901760
      %v6283 = vsub.f32 %v632, %v6282
      %v6284 = vand.u32 %v6283, 4294901760
      %6285 = vmatpush1.msra.mxu0 %v6284
      %6286 = vmatprep.subr.mxu0 0.0
      %v6287 = vand.u32 %v635, 4294901760
      %v6288 = vsub.f32 %v635, %v6287
      %v6289 = vand.u32 %v6288, 4294901760
      %6290 = vmatpush1.msra.mxu0 %v6289
      %6291 = vmatprep.subr.mxu0 0.0
      %v6292 = vand.u32 %v694, 4294901760
      %v6293 = vsub.f32 %v694, %v6292
      %v6294 = vand.u32 %v6293, 4294901760
      %6295 = vmatpush1.msra.mxu0 %v6294
      %6296 = vmatprep.subr.mxu0 0.0
      %v6297 = vand.u32 %v697, 4294901760
      %v6298 = vsub.f32 %v697, %v6297
      %v6299 = vand.u32 %v6298, 4294901760
      %6300 = vmatpush1.msra.mxu0 %v6299
      %6301 = vmatprep.subr.mxu0 0.0
      %v6302 = vand.u32 %v700, 4294901760
      %v6303 = vsub.f32 %v700, %v6302
      %v6304 = vand.u32 %v6303, 4294901760
      %6305 = vmatpush1.msra.mxu0 %v6304
      %6306 = vmatprep.subr.mxu0 0.0
      %v6307 = vand.u32 %v703, 4294901760
      %v6308 = vsub.f32 %v703, %v6307
      %v6309 = vand.u32 %v6308, 4294901760
      %6310 = vmatpush1.msra.mxu0 %v6309
      %6311 = vmatprep.subr.mxu0 0.0
      %v6312 = vand.u32 %v706, 4294901760
      %v6313 = vsub.f32 %v706, %v6312
      %v6314 = vand.u32 %v6313, 4294901760
      %6315 = vmatpush1.msra.mxu0 %v6314
      %6316 = vmatprep.subr.mxu0 0.0
      %v6317 = vand.u32 %v765, 4294901760
      %v6318 = vsub.f32 %v765, %v6317
      %v6319 = vand.u32 %v6318, 4294901760
      %6320 = vmatpush1.msra.mxu0 %v6319
      %6321 = vmatprep.subr.mxu0 0.0
      %v6322 = vand.u32 %v768, 4294901760
      %v6323 = vsub.f32 %v768, %v6322
      %v6324 = vand.u32 %v6323, 4294901760
      %6325 = vmatpush1.msra.mxu0 %v6324
      %6326 = vmatprep.subr.mxu0 0.0
      %v6327 = vand.u32 %v771, 4294901760
      %v6328 = vsub.f32 %v771, %v6327
      %v6329 = vand.u32 %v6328, 4294901760
      %6330 = vmatpush1.msra.mxu0 %v6329
      %6331 = vmatprep.subr.mxu0 0.0
      %v6332 = vand.u32 %v774, 4294901760
      %v6333 = vsub.f32 %v774, %v6332
      %v6334 = vand.u32 %v6333, 4294901760
      %6335 = vmatpush1.msra.mxu0 %v6334
      %6336 = vmatprep.subr.mxu0 0.0
      %v6337 = vand.u32 %v777, 4294901760
      %v6338 = vsub.f32 %v777, %v6337
      %v6339 = vand.u32 %v6338, 4294901760
      %6340 = vmatpush1.msra.mxu0 %v6339
      %6341 = vmatprep.subr.mxu0 0.0
      %v6342 = vand.u32 %v836, 4294901760
      %v6343 = vsub.f32 %v836, %v6342
      %v6344 = vand.u32 %v6343, 4294901760
      %6345 = vmatpush1.msra.mxu0 %v6344
      %6346 = vmatprep.subr.mxu0 0.0
      %v6347 = vand.u32 %v839, 4294901760
      %v6348 = vsub.f32 %v839, %v6347
      %v6349 = vand.u32 %v6348, 4294901760
      %6350 = vmatpush1.msra.mxu0 %v6349
      %6351 = vmatprep.subr.mxu0 0.0
      %v6352 = vand.u32 %v842, 4294901760
      %v6353 = vsub.f32 %v842, %v6352
      %v6354 = vand.u32 %v6353, 4294901760
      %6355 = vmatpush1.msra.mxu0 %v6354
      %6356 = vmatprep.subr.mxu0 0.0
      %v6357 = vand.u32 %v845, 4294901760
      %v6358 = vsub.f32 %v845, %v6357
      %v6359 = vand.u32 %v6358, 4294901760
      %6360 = vmatpush1.msra.mxu0 %v6359
      %6361 = vmatprep.subr.mxu0 0.0
      %v6362 = vand.u32 %v848, 4294901760
      %v6363 = vsub.f32 %v848, %v6362
      %v6364 = vand.u32 %v6363, 4294901760
      %6365 = vmatpush1.msra.mxu0 %v6364
      %6366 = vmatprep.subr.mxu0 0.0
      %v6367 = vand.u32 %v907, 4294901760
      %v6368 = vsub.f32 %v907, %v6367
      %v6369 = vand.u32 %v6368, 4294901760
      %6370 = vmatpush1.msra.mxu0 %v6369
      %6371 = vmatprep.subr.mxu0 0.0
      %v6372 = vand.u32 %v910, 4294901760
      %v6373 = vsub.f32 %v910, %v6372
      %v6374 = vand.u32 %v6373, 4294901760
      %6375 = vmatpush1.msra.mxu0 %v6374
      %v6376 = vand.u32 %v1078, 4294901760
      %6377 = vmatprep.mubr.f32.mxu0 %v6376
      %v6378 = vand.u32 %v1077, 4294901760
      %6379 = vmatmul.mubr.f32.gmra.mrb[0].mxu0 %v6378
      %v6380 = vpop.f32.mrb[0].mxu0
      %v6381 = vadd.f32 %v6048, %v6380
      %v6382 = vpop.f32.mrb[0].mxu0
      %v6383 = vand.u32 %v1081, 4294901760
      %6384 = vmatprep.mubr.f32.mxu0 %v6383
      %v6385 = vand.u32 %v1080, 4294901760
      %6386 = vmatmul.mubr.f32.gmra.mrb[0].mxu0 %v6385
      %v6387 = vpop.f32.mrb[0].mxu0
      %v6388 = vadd.f32 %v6059, %v6387
      %v6389 = vpop.f32.mrb[0].mxu0
      %v6390 = vand.u32 %v1084, 4294901760
      %6391 = vmatprep.mubr.f32.mxu0 %v6390
      %v6392 = vand.u32 %v1083, 4294901760
      %6393 = vmatmul.mubr.f32.gmra.mrb[0].mxu0 %v6392
      %v6394 = vpop.f32.mrb[0].mxu0
      %v6395 = vadd.f32 %v6070, %v6394
      %v6396 = vpop.f32.mrb[0].mxu0
      %v6397 = vand.u32 %v1087, 4294901760
      %6398 = vmatprep.mubr.f32.mxu0 %v6397
      %v6399 = vand.u32 %v1086, 4294901760
      %6400 = vmatmul.mubr.f32.gmra.mrb[0].mxu0 %v6399
      %v6401 = vpop.f32.mrb[0].mxu0
      %v6402 = vadd.f32 %v6081, %v6401
      %v6403 = vpop.f32.mrb[0].mxu0
      %v6404 = vand.u32 %v1090, 4294901760
      %6405 = vmatprep.mubr.f32.mxu0 %v6404
      %v6406 = vand.u32 %v1089, 4294901760
      %6407 = vmatmul.mubr.f32.gmra.mrb[0].mxu0 %v6406
      %v6408 = vpop.f32.mrb[0].mxu0
      %v6409 = vadd.f32 %v6092, %v6408
      %v6410 = vpop.f32.mrb[0].mxu0
      %v6411 = vand.u32 %v1093, 4294901760
      %6412 = vmatprep.mubr.f32.mxu0 %v6411
      %v6413 = vand.u32 %v1092, 4294901760
      %6414 = vmatmul.mubr.f32.gmra.mrb[0].mxu0 %v6413
      %v6415 = vpop.f32.mrb[0].mxu0
      %v6416 = vadd.f32 %v6103, %v6415
      %v6417 = vpop.f32.mrb[0].mxu0
      %v6418 = vand.u32 %v1096, 4294901760
      %6419 = vmatprep.mubr.f32.mxu0 %v6418
      %v6420 = vand.u32 %v1095, 4294901760
      %6421 = vmatmul.mubr.f32.gmra.mrb[0].mxu0 %v6420
      %v6422 = vpop.f32.mrb[0].mxu0
      %v6423 = vadd.f32 %v6114, %v6422
      %v6424 = vpop.f32.mrb[0].mxu0
      %v6425 = vand.u32 %v1099, 4294901760
      %6426 = vmatprep.mubr.f32.mxu0 %v6425
      %v6427 = vand.u32 %v1098, 4294901760
      %6428 = vmatmul.mubr.f32.gmra.mrb[0].mxu0 %v6427
      %v6429 = vpop.f32.mrb[0].mxu0
      %v6430 = vadd.f32 %v6125, %v6429
      %v6431 = vpop.f32.mrb[0].mxu0
      %v6432 = vand.u32 %v1102, 4294901760
      %6433 = vmatprep.mubr.f32.mxu0 %v6432
      %v6434 = vand.u32 %v1101, 4294901760
      %6435 = vmatmul.mubr.f32.gmra.mrb[0].mxu0 %v6434
      %v6436 = vpop.f32.mrb[0].mxu0
      %v6437 = vadd.f32 %v6136, %v6436
      %v6438 = vpop.f32.mrb[0].mxu0
      %v6439 = vand.u32 %v1105, 4294901760
      %6440 = vmatprep.mubr.f32.mxu0 %v6439
      %v6441 = vand.u32 %v1104, 4294901760
      %6442 = vmatmul.mubr.f32.gmra.mrb[0].mxu0 %v6441
      %v6443 = vpop.f32.mrb[0].mxu0
      %v6444 = vadd.f32 %v6147, %v6443
      %v6445 = vpop.f32.mrb[0].mxu0
      %v6446 = vand.u32 %v1108, 4294901760
      %6447 = vmatprep.mubr.f32.mxu0 %v6446
      %v6448 = vand.u32 %v1107, 4294901760
      %6449 = vmatmul.mubr.f32.gmra.mrb[0].mxu0 %v6448
      %v6450 = vpop.f32.mrb[0].mxu0
      %v6451 = vadd.f32 %v6158, %v6450
      %v6452 = vpop.f32.mrb[0].mxu0
      %v6453 = vand.u32 %v1111, 4294901760
      %6454 = vmatprep.mubr.f32.mxu0 %v6453
      %v6455 = vand.u32 %v1110, 4294901760
      %6456 = vmatmul.mubr.f32.gmra.mrb[0].mxu0 %v6455
      %v6457 = vpop.f32.mrb[0].mxu0
      %v6458 = vadd.f32 %v6169, %v6457
      %v6459 = vpop.f32.mrb[0].mxu0
      %v6460 = vand.u32 %v1114, 4294901760
      %6461 = vmatprep.mubr.f32.mxu0 %v6460
      %v6462 = vand.u32 %v1113, 4294901760
      %6463 = vmatmul.mubr.f32.gmra.mrb[0].mxu0 %v6462
      %v6464 = vpop.f32.mrb[0].mxu0
      %v6465 = vadd.f32 %v6180, %v6464
      %v6466 = vpop.f32.mrb[0].mxu0
      %v6467 = vand.u32 %v1117, 4294901760
      %6468 = vmatprep.mubr.f32.mxu0 %v6467
      %v6469 = vand.u32 %v1116, 4294901760
      %6470 = vmatmul.mubr.f32.gmra.mrb[0].mxu0 %v6469
      %v6471 = vpop.f32.mrb[0].mxu0
      %v6472 = vadd.f32 %v6191, %v6471
      %v6473 = vpop.f32.mrb[0].mxu0
      %v6474 = vand.u32 %v1120, 4294901760
      %6475 = vmatprep.mubr.f32.mxu0 %v6474
      %v6476 = vand.u32 %v1119, 4294901760
      %6477 = vmatmul.mubr.f32.gmra.mrb[0].mxu0 %v6476
      %v6478 = vpop.f32.mrb[0].mxu0
      %v6479 = vadd.f32 %v6202, %v6478
      %v6480 = vpop.f32.mrb[0].mxu0
      %v6481 = vand.u32 %v1123, 4294901760
      %6482 = vmatprep.mubr.f32.mxu0 %v6481
      %v6483 = vand.u32 %v1122, 4294901760
      %6484 = vmatmul.mubr.f32.gmra.mrb[0].mxu0 %v6483
      %v6485 = vpop.f32.mrb[0].mxu0
      %v6486 = vadd.f32 %v6213, %v6485
      %v6487 = vpop.f32.mrb[0].mxu0
      %6488 = vdwg.mxu0
      %6489 = vmatprep.subr.mxu0 0.0
      %v6490 = vand.u32 %v471, 4294901760
      %6491 = vmatpush1.msra.mxu0 %v6490
      %6492 = vmatprep.subr.mxu0 0.0
      %v6493 = vand.u32 %v474, 4294901760
      %6494 = vmatpush1.msra.mxu0 %v6493
      %6495 = vmatprep.subr.mxu0 0.0
      %v6496 = vand.u32 %v477, 4294901760
      %6497 = vmatpush1.msra.mxu0 %v6496
      %6498 = vmatprep.subr.mxu0 0.0
      %v6499 = vand.u32 %v480, 4294901760
      %6500 = vmatpush1.msra.mxu0 %v6499
      %6501 = vmatprep.subr.mxu0 0.0
      %v6502 = vand.u32 %v483, 4294901760
      %6503 = vmatpush1.msra.mxu0 %v6502
      %6504 = vmatprep.subr.mxu0 0.0
      %v6505 = vand.u32 %v552, 4294901760
      %6506 = vmatpush1.msra.mxu0 %v6505
      %6507 = vmatprep.subr.mxu0 0.0
      %v6508 = vand.u32 %v555, 4294901760
      %6509 = vmatpush1.msra.mxu0 %v6508
      %6510 = vmatprep.subr.mxu0 0.0
      %v6511 = vand.u32 %v558, 4294901760
      %6512 = vmatpush1.msra.mxu0 %v6511
      %6513 = vmatprep.subr.mxu0 0.0
      %v6514 = vand.u32 %v561, 4294901760
      %6515 = vmatpush1.msra.mxu0 %v6514
      %6516 = vmatprep.subr.mxu0 0.0
      %v6517 = vand.u32 %v564, 4294901760
      %6518 = vmatpush1.msra.mxu0 %v6517
      %6519 = vmatprep.subr.mxu0 0.0
      %v6520 = vand.u32 %v623, 4294901760
      %6521 = vmatpush1.msra.mxu0 %v6520
      %6522 = vmatprep.subr.mxu0 0.0
      %v6523 = vand.u32 %v626, 4294901760
      %6524 = vmatpush1.msra.mxu0 %v6523
      %6525 = vmatprep.subr.mxu0 0.0
      %v6526 = vand.u32 %v629, 4294901760
      %6527 = vmatpush1.msra.mxu0 %v6526
      %6528 = vmatprep.subr.mxu0 0.0
      %v6529 = vand.u32 %v632, 4294901760
      %6530 = vmatpush1.msra.mxu0 %v6529
      %6531 = vmatprep.subr.mxu0 0.0
      %v6532 = vand.u32 %v635, 4294901760
      %6533 = vmatpush1.msra.mxu0 %v6532
      %6534 = vmatprep.subr.mxu0 0.0
      %v6535 = vand.u32 %v694, 4294901760
      %6536 = vmatpush1.msra.mxu0 %v6535
      %6537 = vmatprep.subr.mxu0 0.0
      %v6538 = vand.u32 %v697, 4294901760
      %6539 = vmatpush1.msra.mxu0 %v6538
      %6540 = vmatprep.subr.mxu0 0.0
      %v6541 = vand.u32 %v700, 4294901760
      %6542 = vmatpush1.msra.mxu0 %v6541
      %6543 = vmatprep.subr.mxu0 0.0
      %v6544 = vand.u32 %v703, 4294901760
      %6545 = vmatpush1.msra.mxu0 %v6544
      %6546 = vmatprep.subr.mxu0 0.0
      %v6547 = vand.u32 %v706, 4294901760
      %6548 = vmatpush1.msra.mxu0 %v6547
      %6549 = vmatprep.subr.mxu0 0.0
      %v6550 = vand.u32 %v765, 4294901760
      %6551 = vmatpush1.msra.mxu0 %v6550
      %6552 = vmatprep.subr.mxu0 0.0
      %v6553 = vand.u32 %v768, 4294901760
      %6554 = vmatpush1.msra.mxu0 %v6553
      %6555 = vmatprep.subr.mxu0 0.0
      %v6556 = vand.u32 %v771, 4294901760
      %6557 = vmatpush1.msra.mxu0 %v6556
      %6558 = vmatprep.subr.mxu0 0.0
      %v6559 = vand.u32 %v774, 4294901760
      %6560 = vmatpush1.msra.mxu0 %v6559
      %6561 = vmatprep.subr.mxu0 0.0
      %v6562 = vand.u32 %v777, 4294901760
      %6563 = vmatpush1.msra.mxu0 %v6562
      %6564 = vmatprep.subr.mxu0 0.0
      %v6565 = vand.u32 %v836, 4294901760
      %6566 = vmatpush1.msra.mxu0 %v6565
      %6567 = vmatprep.subr.mxu0 0.0
      %v6568 = vand.u32 %v839, 4294901760
      %6569 = vmatpush1.msra.mxu0 %v6568
      %6570 = vmatprep.subr.mxu0 0.0
      %v6571 = vand.u32 %v842, 4294901760
      %6572 = vmatpush1.msra.mxu0 %v6571
      %6573 = vmatprep.subr.mxu0 0.0
      %v6574 = vand.u32 %v845, 4294901760
      %6575 = vmatpush1.msra.mxu0 %v6574
      %6576 = vmatprep.subr.mxu0 0.0
      %v6577 = vand.u32 %v848, 4294901760
      %6578 = vmatpush1.msra.mxu0 %v6577
      %6579 = vmatprep.subr.mxu0 0.0
      %v6580 = vand.u32 %v907, 4294901760
      %6581 = vmatpush1.msra.mxu0 %v6580
      %6582 = vmatprep.subr.mxu0 0.0
      %v6583 = vand.u32 %v910, 4294901760
      %6584 = vmatpush1.msra.mxu0 %v6583
      %v6585 = vand.u32 %v1078, 4294901760
      %6586 = vmatprep.mubr.f32.mxu0 %v6585
      %v6587 = vand.u32 %v1077, 4294901760
      %6588 = vmatmul.mubr.f32.gmra.mrb[0].mxu0 %v6587
      %v6589 = vpop.f32.mrb[0].mxu0
      %v6590 = vadd.f32 %v6381, %v6589
      %v6591 = vpop.f32.mrb[0].mxu0
      %v6592 = vand.u32 %v1081, 4294901760
      %6593 = vmatprep.mubr.f32.mxu0 %v6592
      %v6594 = vand.u32 %v1080, 4294901760
      %6595 = vmatmul.mubr.f32.gmra.mrb[0].mxu0 %v6594
      %v6596 = vpop.f32.mrb[0].mxu0
      %v6597 = vadd.f32 %v6388, %v6596
      %v6598 = vpop.f32.mrb[0].mxu0
      %v6599 = vand.u32 %v1084, 4294901760
      %6600 = vmatprep.mubr.f32.mxu0 %v6599
      %v6601 = vand.u32 %v1083, 4294901760
      %6602 = vmatmul.mubr.f32.gmra.mrb[0].mxu0 %v6601
      %v6603 = vpop.f32.mrb[0].mxu0
      %v6604 = vadd.f32 %v6395, %v6603
      %v6605 = vpop.f32.mrb[0].mxu0
      %v6606 = vand.u32 %v1087, 4294901760
      %6607 = vmatprep.mubr.f32.mxu0 %v6606
      %v6608 = vand.u32 %v1086, 4294901760
      %6609 = vmatmul.mubr.f32.gmra.mrb[0].mxu0 %v6608
      %v6610 = vpop.f32.mrb[0].mxu0
      %v6611 = vadd.f32 %v6402, %v6610
      %v6612 = vpop.f32.mrb[0].mxu0
      %v6613 = vand.u32 %v1090, 4294901760
      %6614 = vmatprep.mubr.f32.mxu0 %v6613
      %v6615 = vand.u32 %v1089, 4294901760
      %6616 = vmatmul.mubr.f32.gmra.mrb[0].mxu0 %v6615
      %v6617 = vpop.f32.mrb[0].mxu0
      %v6618 = vadd.f32 %v6409, %v6617
      %v6619 = vpop.f32.mrb[0].mxu0
      %v6620 = vand.u32 %v1093, 4294901760
      %6621 = vmatprep.mubr.f32.mxu0 %v6620
      %v6622 = vand.u32 %v1092, 4294901760
      %6623 = vmatmul.mubr.f32.gmra.mrb[0].mxu0 %v6622
      %v6624 = vpop.f32.mrb[0].mxu0
      %v6625 = vadd.f32 %v6416, %v6624
      %v6626 = vpop.f32.mrb[0].mxu0
      %v6627 = vand.u32 %v1096, 4294901760
      %6628 = vmatprep.mubr.f32.mxu0 %v6627
      %v6629 = vand.u32 %v1095, 4294901760
      %6630 = vmatmul.mubr.f32.gmra.mrb[0].mxu0 %v6629
      %v6631 = vpop.f32.mrb[0].mxu0
      %v6632 = vadd.f32 %v6423, %v6631
      %v6633 = vpop.f32.mrb[0].mxu0
      %v6634 = vand.u32 %v1099, 4294901760
      %6635 = vmatprep.mubr.f32.mxu0 %v6634
      %v6636 = vand.u32 %v1098, 4294901760
      %6637 = vmatmul.mubr.f32.gmra.mrb[0].mxu0 %v6636
      %v6638 = vpop.f32.mrb[0].mxu0
      %v6639 = vadd.f32 %v6430, %v6638
      %v6640 = vpop.f32.mrb[0].mxu0
      %v6641 = vand.u32 %v1102, 4294901760
      %6642 = vmatprep.mubr.f32.mxu0 %v6641
      %v6643 = vand.u32 %v1101, 4294901760
      %6644 = vmatmul.mubr.f32.gmra.mrb[0].mxu0 %v6643
      %v6645 = vpop.f32.mrb[0].mxu0
      %v6646 = vadd.f32 %v6437, %v6645
      %v6647 = vpop.f32.mrb[0].mxu0
      %v6648 = vand.u32 %v1105, 4294901760
      %6649 = vmatprep.mubr.f32.mxu0 %v6648
      %v6650 = vand.u32 %v1104, 4294901760
      %6651 = vmatmul.mubr.f32.gmra.mrb[0].mxu0 %v6650
      %v6652 = vpop.f32.mrb[0].mxu0
      %v6653 = vadd.f32 %v6444, %v6652
      %v6654 = vpop.f32.mrb[0].mxu0
      %v6655 = vand.u32 %v1108, 4294901760
      %6656 = vmatprep.mubr.f32.mxu0 %v6655
      %v6657 = vand.u32 %v1107, 4294901760
      %6658 = vmatmul.mubr.f32.gmra.mrb[0].mxu0 %v6657
      %v6659 = vpop.f32.mrb[0].mxu0
      %v6660 = vadd.f32 %v6451, %v6659
      %v6661 = vpop.f32.mrb[0].mxu0
      %v6662 = vand.u32 %v1111, 4294901760
      %6663 = vmatprep.mubr.f32.mxu0 %v6662
      %v6664 = vand.u32 %v1110, 4294901760
      %6665 = vmatmul.mubr.f32.gmra.mrb[0].mxu0 %v6664
      %v6666 = vpop.f32.mrb[0].mxu0
      %v6667 = vadd.f32 %v6458, %v6666
      %v6668 = vpop.f32.mrb[0].mxu0
      %v6669 = vand.u32 %v1114, 4294901760
      %6670 = vmatprep.mubr.f32.mxu0 %v6669
      %v6671 = vand.u32 %v1113, 4294901760
      %6672 = vmatmul.mubr.f32.gmra.mrb[0].mxu0 %v6671
      %v6673 = vpop.f32.mrb[0].mxu0
      %v6674 = vadd.f32 %v6465, %v6673
      %v6675 = vpop.f32.mrb[0].mxu0
      %v6676 = vand.u32 %v1117, 4294901760
      %6677 = vmatprep.mubr.f32.mxu0 %v6676
      %v6678 = vand.u32 %v1116, 4294901760
      %6679 = vmatmul.mubr.f32.gmra.mrb[0].mxu0 %v6678
      %v6680 = vpop.f32.mrb[0].mxu0
      %v6681 = vadd.f32 %v6472, %v6680
      %v6682 = vpop.f32.mrb[0].mxu0
      %v6683 = vand.u32 %v1120, 4294901760
      %6684 = vmatprep.mubr.f32.mxu0 %v6683
      %v6685 = vand.u32 %v1119, 4294901760
      %6686 = vmatmul.mubr.f32.gmra.mrb[0].mxu0 %v6685
      %v6687 = vpop.f32.mrb[0].mxu0
      %v6688 = vadd.f32 %v6479, %v6687
      %v6689 = vpop.f32.mrb[0].mxu0
      %v6690 = vand.u32 %v1123, 4294901760
      %6691 = vmatprep.mubr.f32.mxu0 %v6690
      %v6692 = vand.u32 %v1122, 4294901760
      %6693 = vmatmul.mubr.f32.gmra.mrb[0].mxu0 %v6692
      %v6694 = vpop.f32.mrb[0].mxu0
      %v6695 = vadd.f32 %v6486, %v6694
      %v6696 = vpop.f32.mrb[0].mxu0
      %6697 = vdwg.mxu0
      %6698 = vmatprep.subr.mxu0 0.0
      %v6699 = vand.u32 %v913, 4294901760
      %6700 = vmatpush1.msra.mxu0 %v6699
      %6701 = vmatprep.subr.mxu0 0.0
      %v6702 = vand.u32 %v916, 4294901760
      %6703 = vmatpush1.msra.mxu0 %v6702
      %6704 = vmatprep.subr.mxu0 0.0
      %v6705 = vand.u32 %v919, 4294901760
      %6706 = vmatpush1.msra.mxu0 %v6705
      %6707 = vmatprep.subr.mxu0 0.0
      %v6708 = vand.u32 %v978, 4294901760
      %6709 = vmatpush1.msra.mxu0 %v6708
      %6710 = vmatprep.subr.mxu0 0.0
      %v6711 = vand.u32 %v981, 4294901760
      %6712 = vmatpush1.msra.mxu0 %v6711
      %6713 = vmatprep.subr.mxu0 0.0
      %v6714 = vand.u32 %v984, 4294901760
      %6715 = vmatpush1.msra.mxu0 %v6714
      %6716 = vmatprep.subr.mxu0 0.0
      %v6717 = vand.u32 %v987, 4294901760
      %6718 = vmatpush1.msra.mxu0 %v6717
      %6719 = vmatprep.subr.mxu0 0.0
      %v6720 = vand.u32 %v990, 4294901760
      %6721 = vmatpush1.msra.mxu0 %v6720
      %6722 = vmatprep.subr.mxu0 0.0
      %v6723 = vand.u32 %v1049, 4294901760
      %6724 = vmatpush1.msra.mxu0 %v6723
      %6725 = vmatprep.subr.mxu0 0.0
      %v6726 = vand.u32 %v1052, 4294901760
      %6727 = vmatpush1.msra.mxu0 %v6726
      %6728 = vmatprep.subr.mxu0 0.0
      %v6729 = vand.u32 %v1055, 4294901760
      %6730 = vmatpush1.msra.mxu0 %v6729
      %6731 = vmatprep.subr.mxu0 0.0
      %v6732 = vand.u32 %v1058, 4294901760
      %6733 = vmatpush1.msra.mxu0 %v6732
      %6734 = vmatprep.subr.mxu0 0.0
      %v6735 = vand.u32 %v1061, 4294901760
      %6736 = vmatpush1.msra.mxu0 %v6735
      %6737 = vmatprep.subr.mxu0 0.0
      %6738 = vmatpush1.msra.mxu0 0.0
      %6739 = vmatprep.subr.mxu0 0.0
      %6740 = vmatpush1.msra.mxu0 0.0
      %6741 = vmatprep.subr.mxu0 0.0
      %6742 = vmatpush1.msra.mxu0 0.0
      %6743 = vmatprep.subr.mxu0 0.0
      %6744 = vmatpush1.msra.mxu0 0.0
      %6745 = vmatprep.subr.mxu0 0.0
      %6746 = vmatpush1.msra.mxu0 0.0
      %6747 = vmatprep.subr.mxu0 0.0
      %6748 = vmatpush1.msra.mxu0 0.0
      %6749 = vmatprep.subr.mxu0 0.0
      %6750 = vmatpush1.msra.mxu0 0.0
      %6751 = vmatprep.subr.mxu0 0.0
      %6752 = vmatpush1.msra.mxu0 0.0
      %6753 = vmatprep.subr.mxu0 0.0
      %6754 = vmatpush1.msra.mxu0 0.0
      %6755 = vmatprep.subr.mxu0 0.0
      %6756 = vmatpush1.msra.mxu0 0.0
      %6757 = vmatprep.subr.mxu0 0.0
      %6758 = vmatpush1.msra.mxu0 0.0
      %6759 = vmatprep.subr.mxu0 0.0
      %6760 = vmatpush1.msra.mxu0 0.0
      %6761 = vmatprep.subr.mxu0 0.0
      %6762 = vmatpush1.msra.mxu0 0.0
      %6763 = vmatprep.subr.mxu0 0.0
      %6764 = vmatpush1.msra.mxu0 0.0
      %6765 = vmatprep.subr.mxu0 0.0
      %6766 = vmatpush1.msra.mxu0 0.0
      %6767 = vmatprep.subr.mxu0 0.0
      %6768 = vmatpush1.msra.mxu0 0.0
      %6769 = vmatprep.subr.mxu0 0.0
      %6770 = vmatpush1.msra.mxu0 0.0
      %6771 = vmatprep.subr.mxu0 0.0
      %6772 = vmatpush1.msra.mxu0 0.0
      %6773 = vmatprep.subr.mxu0 0.0
      %6774 = vmatpush1.msra.mxu0 0.0
      %6775 = vmatprep.mubr.f32.mxu0 0.0
      %v6776 = vand.u32 %v1223, 4294901760
      %v6777 = vsub.f32 %v1223, %v6776
      %v6778 = vand.u32 %v6777, 4294901760
      %v6779 = vsub.f32 %v6777, %v6778
      %v6780 = vand.u32 %v6779, 4294901760
      %6781 = vmatmul.mubr.f32.gmra.mrb[0].mxu0 %v6780
      %v6782 = vpop.f32.mrb[0].mxu0
      %v6783 = vadd.f32 %v6590, %v6782
      %v6784 = vpop.f32.mrb[0].mxu0
      %6785 = vmatprep.mubr.f32.mxu0 0.0
      %v6786 = vand.u32 %v1226, 4294901760
      %v6787 = vsub.f32 %v1226, %v6786
      %v6788 = vand.u32 %v6787, 4294901760
      %v6789 = vsub.f32 %v6787, %v6788
      %v6790 = vand.u32 %v6789, 4294901760
      %6791 = vmatmul.mubr.f32.gmra.mrb[0].mxu0 %v6790
      %v6792 = vpop.f32.mrb[0].mxu0
      %v6793 = vadd.f32 %v6597, %v6792
      %v6794 = vpop.f32.mrb[0].mxu0
      %6795 = vmatprep.mubr.f32.mxu0 0.0
      %v6796 = vand.u32 %v1229, 4294901760
      %v6797 = vsub.f32 %v1229, %v6796
      %v6798 = vand.u32 %v6797, 4294901760
      %v6799 = vsub.f32 %v6797, %v6798
      %v6800 = vand.u32 %v6799, 4294901760
      %6801 = vmatmul.mubr.f32.gmra.mrb[0].mxu0 %v6800
      %v6802 = vpop.f32.mrb[0].mxu0
      %v6803 = vadd.f32 %v6604, %v6802
      %v6804 = vpop.f32.mrb[0].mxu0
      %6805 = vmatprep.mubr.f32.mxu0 0.0
      %v6806 = vand.u32 %v1232, 4294901760
      %v6807 = vsub.f32 %v1232, %v6806
      %v6808 = vand.u32 %v6807, 4294901760
      %v6809 = vsub.f32 %v6807, %v6808
      %v6810 = vand.u32 %v6809, 4294901760
      %6811 = vmatmul.mubr.f32.gmra.mrb[0].mxu0 %v6810
      %v6812 = vpop.f32.mrb[0].mxu0
      %v6813 = vadd.f32 %v6611, %v6812
      %v6814 = vpop.f32.mrb[0].mxu0
      %6815 = vmatprep.mubr.f32.mxu0 0.0
      %v6816 = vand.u32 %v1235, 4294901760
      %v6817 = vsub.f32 %v1235, %v6816
      %v6818 = vand.u32 %v6817, 4294901760
      %v6819 = vsub.f32 %v6817, %v6818
      %v6820 = vand.u32 %v6819, 4294901760
      %6821 = vmatmul.mubr.f32.gmra.mrb[0].mxu0 %v6820
      %v6822 = vpop.f32.mrb[0].mxu0
      %v6823 = vadd.f32 %v6618, %v6822
      %v6824 = vpop.f32.mrb[0].mxu0
      %6825 = vmatprep.mubr.f32.mxu0 0.0
      %v6826 = vand.u32 %v1238, 4294901760
      %v6827 = vsub.f32 %v1238, %v6826
      %v6828 = vand.u32 %v6827, 4294901760
      %v6829 = vsub.f32 %v6827, %v6828
      %v6830 = vand.u32 %v6829, 4294901760
      %6831 = vmatmul.mubr.f32.gmra.mrb[0].mxu0 %v6830
      %v6832 = vpop.f32.mrb[0].mxu0
      %v6833 = vadd.f32 %v6625, %v6832
      %v6834 = vpop.f32.mrb[0].mxu0
      %6835 = vmatprep.mubr.f32.mxu0 0.0
      %v6836 = vand.u32 %v1241, 4294901760
      %v6837 = vsub.f32 %v1241, %v6836
      %v6838 = vand.u32 %v6837, 4294901760
      %v6839 = vsub.f32 %v6837, %v6838
      %v6840 = vand.u32 %v6839, 4294901760
      %6841 = vmatmul.mubr.f32.gmra.mrb[0].mxu0 %v6840
      %v6842 = vpop.f32.mrb[0].mxu0
      %v6843 = vadd.f32 %v6632, %v6842
      %v6844 = vpop.f32.mrb[0].mxu0
      %6845 = vmatprep.mubr.f32.mxu0 0.0
      %v6846 = vand.u32 %v1244, 4294901760
      %v6847 = vsub.f32 %v1244, %v6846
      %v6848 = vand.u32 %v6847, 4294901760
      %v6849 = vsub.f32 %v6847, %v6848
      %v6850 = vand.u32 %v6849, 4294901760
      %6851 = vmatmul.mubr.f32.gmra.mrb[0].mxu0 %v6850
      %v6852 = vpop.f32.mrb[0].mxu0
      %v6853 = vadd.f32 %v6639, %v6852
      %v6854 = vpop.f32.mrb[0].mxu0
      %6855 = vmatprep.mubr.f32.mxu0 0.0
      %v6856 = vand.u32 %v1247, 4294901760
      %v6857 = vsub.f32 %v1247, %v6856
      %v6858 = vand.u32 %v6857, 4294901760
      %v6859 = vsub.f32 %v6857, %v6858
      %v6860 = vand.u32 %v6859, 4294901760
      %6861 = vmatmul.mubr.f32.gmra.mrb[0].mxu0 %v6860
      %v6862 = vpop.f32.mrb[0].mxu0
      %v6863 = vadd.f32 %v6646, %v6862
      %v6864 = vpop.f32.mrb[0].mxu0
      %6865 = vmatprep.mubr.f32.mxu0 0.0
      %v6866 = vand.u32 %v1250, 4294901760
      %v6867 = vsub.f32 %v1250, %v6866
      %v6868 = vand.u32 %v6867, 4294901760
      %v6869 = vsub.f32 %v6867, %v6868
      %v6870 = vand.u32 %v6869, 4294901760
      %6871 = vmatmul.mubr.f32.gmra.mrb[0].mxu0 %v6870
      %v6872 = vpop.f32.mrb[0].mxu0
      %v6873 = vadd.f32 %v6653, %v6872
      %v6874 = vpop.f32.mrb[0].mxu0
      %6875 = vmatprep.mubr.f32.mxu0 0.0
      %v6876 = vand.u32 %v1253, 4294901760
      %v6877 = vsub.f32 %v1253, %v6876
      %v6878 = vand.u32 %v6877, 4294901760
      %v6879 = vsub.f32 %v6877, %v6878
      %v6880 = vand.u32 %v6879, 4294901760
      %6881 = vmatmul.mubr.f32.gmra.mrb[0].mxu0 %v6880
      %v6882 = vpop.f32.mrb[0].mxu0
      %v6883 = vadd.f32 %v6660, %v6882
      %v6884 = vpop.f32.mrb[0].mxu0
      %6885 = vmatprep.mubr.f32.mxu0 0.0
      %v6886 = vand.u32 %v1256, 4294901760
      %v6887 = vsub.f32 %v1256, %v6886
      %v6888 = vand.u32 %v6887, 4294901760
      %v6889 = vsub.f32 %v6887, %v6888
      %v6890 = vand.u32 %v6889, 4294901760
      %6891 = vmatmul.mubr.f32.gmra.mrb[0].mxu0 %v6890
      %v6892 = vpop.f32.mrb[0].mxu0
      %v6893 = vadd.f32 %v6667, %v6892
      %v6894 = vpop.f32.mrb[0].mxu0
      %6895 = vmatprep.mubr.f32.mxu0 0.0
      %v6896 = vand.u32 %v1259, 4294901760
      %v6897 = vsub.f32 %v1259, %v6896
      %v6898 = vand.u32 %v6897, 4294901760
      %v6899 = vsub.f32 %v6897, %v6898
      %v6900 = vand.u32 %v6899, 4294901760
      %6901 = vmatmul.mubr.f32.gmra.mrb[0].mxu0 %v6900
      %v6902 = vpop.f32.mrb[0].mxu0
      %v6903 = vadd.f32 %v6674, %v6902
      %v6904 = vpop.f32.mrb[0].mxu0
      %6905 = vmatprep.mubr.f32.mxu0 0.0
      %v6906 = vand.u32 %v1262, 4294901760
      %v6907 = vsub.f32 %v1262, %v6906
      %v6908 = vand.u32 %v6907, 4294901760
      %v6909 = vsub.f32 %v6907, %v6908
      %v6910 = vand.u32 %v6909, 4294901760
      %6911 = vmatmul.mubr.f32.gmra.mrb[0].mxu0 %v6910
      %v6912 = vpop.f32.mrb[0].mxu0
      %v6913 = vadd.f32 %v6681, %v6912
      %v6914 = vpop.f32.mrb[0].mxu0
      %6915 = vmatprep.mubr.f32.mxu0 0.0
      %v6916 = vand.u32 %v1265, 4294901760
      %v6917 = vsub.f32 %v1265, %v6916
      %v6918 = vand.u32 %v6917, 4294901760
      %v6919 = vsub.f32 %v6917, %v6918
      %v6920 = vand.u32 %v6919, 4294901760
      %6921 = vmatmul.mubr.f32.gmra.mrb[0].mxu0 %v6920
      %v6922 = vpop.f32.mrb[0].mxu0
      %v6923 = vadd.f32 %v6688, %v6922
      %v6924 = vpop.f32.mrb[0].mxu0
      %6925 = vmatprep.mubr.f32.mxu0 0.0
      %v6926 = vand.u32 %v1268, 4294901760
      %v6927 = vsub.f32 %v1268, %v6926
      %v6928 = vand.u32 %v6927, 4294901760
      %v6929 = vsub.f32 %v6927, %v6928
      %v6930 = vand.u32 %v6929, 4294901760
      %6931 = vmatmul.mubr.f32.gmra.mrb[0].mxu0 %v6930
      %v6932 = vpop.f32.mrb[0].mxu0
      %v6933 = vadd.f32 %v6695, %v6932
      %v6934 = vpop.f32.mrb[0].mxu0
      %6935 = vdwg.mxu0
      %6936 = vmatprep.subr.mxu0 0.0
      %v6937 = vand.u32 %v913, 4294901760
      %v6938 = vsub.f32 %v913, %v6937
      %v6939 = vand.u32 %v6938, 4294901760
      %v6940 = vsub.f32 %v6938, %v6939
      %v6941 = vand.u32 %v6940, 4294901760
      %6942 = vmatpush1.msra.mxu0 %v6941
      %6943 = vmatprep.subr.mxu0 0.0
      %v6944 = vand.u32 %v916, 4294901760
      %v6945 = vsub.f32 %v916, %v6944
      %v6946 = vand.u32 %v6945, 4294901760
      %v6947 = vsub.f32 %v6945, %v6946
      %v6948 = vand.u32 %v6947, 4294901760
      %6949 = vmatpush1.msra.mxu0 %v6948
      %6950 = vmatprep.subr.mxu0 0.0
      %v6951 = vand.u32 %v919, 4294901760
      %v6952 = vsub.f32 %v919, %v6951
      %v6953 = vand.u32 %v6952, 4294901760
      %v6954 = vsub.f32 %v6952, %v6953
      %v6955 = vand.u32 %v6954, 4294901760
      %6956 = vmatpush1.msra.mxu0 %v6955
      %6957 = vmatprep.subr.mxu0 0.0
      %v6958 = vand.u32 %v978, 4294901760
      %v6959 = vsub.f32 %v978, %v6958
      %v6960 = vand.u32 %v6959, 4294901760
      %v6961 = vsub.f32 %v6959, %v6960
      %v6962 = vand.u32 %v6961, 4294901760
      %6963 = vmatpush1.msra.mxu0 %v6962
      %6964 = vmatprep.subr.mxu0 0.0
      %v6965 = vand.u32 %v981, 4294901760
      %v6966 = vsub.f32 %v981, %v6965
      %v6967 = vand.u32 %v6966, 4294901760
      %v6968 = vsub.f32 %v6966, %v6967
      %v6969 = vand.u32 %v6968, 4294901760
      %6970 = vmatpush1.msra.mxu0 %v6969
      %6971 = vmatprep.subr.mxu0 0.0
      %v6972 = vand.u32 %v984, 4294901760
      %v6973 = vsub.f32 %v984, %v6972
      %v6974 = vand.u32 %v6973, 4294901760
      %v6975 = vsub.f32 %v6973, %v6974
      %v6976 = vand.u32 %v6975, 4294901760
      %6977 = vmatpush1.msra.mxu0 %v6976
      %6978 = vmatprep.subr.mxu0 0.0
      %v6979 = vand.u32 %v987, 4294901760
      %v6980 = vsub.f32 %v987, %v6979
      %v6981 = vand.u32 %v6980, 4294901760
      %v6982 = vsub.f32 %v6980, %v6981
      %v6983 = vand.u32 %v6982, 4294901760
      %6984 = vmatpush1.msra.mxu0 %v6983
      %6985 = vmatprep.subr.mxu0 0.0
      %v6986 = vand.u32 %v990, 4294901760
      %v6987 = vsub.f32 %v990, %v6986
      %v6988 = vand.u32 %v6987, 4294901760
      %v6989 = vsub.f32 %v6987, %v6988
      %v6990 = vand.u32 %v6989, 4294901760
      %6991 = vmatpush1.msra.mxu0 %v6990
      %6992 = vmatprep.subr.mxu0 0.0
      %v6993 = vand.u32 %v1049, 4294901760
      %v6994 = vsub.f32 %v1049, %v6993
      %v6995 = vand.u32 %v6994, 4294901760
      %v6996 = vsub.f32 %v6994, %v6995
      %v6997 = vand.u32 %v6996, 4294901760
      %6998 = vmatpush1.msra.mxu0 %v6997
      %6999 = vmatprep.subr.mxu0 0.0
      %v7000 = vand.u32 %v1052, 4294901760
      %v7001 = vsub.f32 %v1052, %v7000
      %v7002 = vand.u32 %v7001, 4294901760
      %v7003 = vsub.f32 %v7001, %v7002
      %v7004 = vand.u32 %v7003, 4294901760
      %7005 = vmatpush1.msra.mxu0 %v7004
      %7006 = vmatprep.subr.mxu0 0.0
      %v7007 = vand.u32 %v1055, 4294901760
      %v7008 = vsub.f32 %v1055, %v7007
      %v7009 = vand.u32 %v7008, 4294901760
      %v7010 = vsub.f32 %v7008, %v7009
      %v7011 = vand.u32 %v7010, 4294901760
      %7012 = vmatpush1.msra.mxu0 %v7011
      %7013 = vmatprep.subr.mxu0 0.0
      %v7014 = vand.u32 %v1058, 4294901760
      %v7015 = vsub.f32 %v1058, %v7014
      %v7016 = vand.u32 %v7015, 4294901760
      %v7017 = vsub.f32 %v7015, %v7016
      %v7018 = vand.u32 %v7017, 4294901760
      %7019 = vmatpush1.msra.mxu0 %v7018
      %7020 = vmatprep.subr.mxu0 0.0
      %v7021 = vand.u32 %v1061, 4294901760
      %v7022 = vsub.f32 %v1061, %v7021
      %v7023 = vand.u32 %v7022, 4294901760
      %v7024 = vsub.f32 %v7022, %v7023
      %v7025 = vand.u32 %v7024, 4294901760
      %7026 = vmatpush1.msra.mxu0 %v7025
      %7027 = vmatprep.subr.mxu0 0.0
      %7028 = vmatpush1.msra.mxu0 0.0
      %7029 = vmatprep.subr.mxu0 0.0
      %7030 = vmatpush1.msra.mxu0 0.0
      %7031 = vmatprep.subr.mxu0 0.0
      %7032 = vmatpush1.msra.mxu0 0.0
      %7033 = vmatprep.subr.mxu0 0.0
      %7034 = vmatpush1.msra.mxu0 0.0
      %7035 = vmatprep.subr.mxu0 0.0
      %7036 = vmatpush1.msra.mxu0 0.0
      %7037 = vmatprep.subr.mxu0 0.0
      %7038 = vmatpush1.msra.mxu0 0.0
      %7039 = vmatprep.subr.mxu0 0.0
      %7040 = vmatpush1.msra.mxu0 0.0
      %7041 = vmatprep.subr.mxu0 0.0
      %7042 = vmatpush1.msra.mxu0 0.0
      %7043 = vmatprep.subr.mxu0 0.0
      %7044 = vmatpush1.msra.mxu0 0.0
      %7045 = vmatprep.subr.mxu0 0.0
      %7046 = vmatpush1.msra.mxu0 0.0
      %7047 = vmatprep.subr.mxu0 0.0
      %7048 = vmatpush1.msra.mxu0 0.0
      %7049 = vmatprep.subr.mxu0 0.0
      %7050 = vmatpush1.msra.mxu0 0.0
      %7051 = vmatprep.subr.mxu0 0.0
      %7052 = vmatpush1.msra.mxu0 0.0
      %7053 = vmatprep.subr.mxu0 0.0
      %7054 = vmatpush1.msra.mxu0 0.0
      %7055 = vmatprep.subr.mxu0 0.0
      %7056 = vmatpush1.msra.mxu0 0.0
      %7057 = vmatprep.subr.mxu0 0.0
      %7058 = vmatpush1.msra.mxu0 0.0
      %7059 = vmatprep.subr.mxu0 0.0
      %7060 = vmatpush1.msra.mxu0 0.0
      %7061 = vmatprep.subr.mxu0 0.0
      %7062 = vmatpush1.msra.mxu0 0.0
      %7063 = vmatprep.subr.mxu0 0.0
      %7064 = vmatpush1.msra.mxu0 0.0
      %7065 = vmatprep.mubr.f32.mxu0 0.0
      %v7066 = vand.u32 %v1223, 4294901760
      %7067 = vmatmul.mubr.f32.gmra.mrb[0].mxu0 %v7066
      %v7068 = vpop.f32.mrb[0].mxu0
      %v7069 = vadd.f32 %v6783, %v7068
      %v7070 = vpop.f32.mrb[0].mxu0
      %7071 = vmatprep.mubr.f32.mxu0 0.0
      %v7072 = vand.u32 %v1226, 4294901760
      %7073 = vmatmul.mubr.f32.gmra.mrb[0].mxu0 %v7072
      %v7074 = vpop.f32.mrb[0].mxu0
      %v7075 = vadd.f32 %v6793, %v7074
      %v7076 = vpop.f32.mrb[0].mxu0
      %7077 = vmatprep.mubr.f32.mxu0 0.0
      %v7078 = vand.u32 %v1229, 4294901760
      %7079 = vmatmul.mubr.f32.gmra.mrb[0].mxu0 %v7078
      %v7080 = vpop.f32.mrb[0].mxu0
      %v7081 = vadd.f32 %v6803, %v7080
      %v7082 = vpop.f32.mrb[0].mxu0
      %7083 = vmatprep.mubr.f32.mxu0 0.0
      %v7084 = vand.u32 %v1232, 4294901760
      %7085 = vmatmul.mubr.f32.gmra.mrb[0].mxu0 %v7084
      %v7086 = vpop.f32.mrb[0].mxu0
      %v7087 = vadd.f32 %v6813, %v7086
      %v7088 = vpop.f32.mrb[0].mxu0
      %7089 = vmatprep.mubr.f32.mxu0 0.0
      %v7090 = vand.u32 %v1235, 4294901760
      %7091 = vmatmul.mubr.f32.gmra.mrb[0].mxu0 %v7090
      %v7092 = vpop.f32.mrb[0].mxu0
      %v7093 = vadd.f32 %v6823, %v7092
      %v7094 = vpop.f32.mrb[0].mxu0
      %7095 = vmatprep.mubr.f32.mxu0 0.0
      %v7096 = vand.u32 %v1238, 4294901760
      %7097 = vmatmul.mubr.f32.gmra.mrb[0].mxu0 %v7096
      %v7098 = vpop.f32.mrb[0].mxu0
      %v7099 = vadd.f32 %v6833, %v7098
      %v7100 = vpop.f32.mrb[0].mxu0
      %7101 = vmatprep.mubr.f32.mxu0 0.0
      %v7102 = vand.u32 %v1241, 4294901760
      %7103 = vmatmul.mubr.f32.gmra.mrb[0].mxu0 %v7102
      %v7104 = vpop.f32.mrb[0].mxu0
      %v7105 = vadd.f32 %v6843, %v7104
      %v7106 = vpop.f32.mrb[0].mxu0
      %7107 = vmatprep.mubr.f32.mxu0 0.0
      %v7108 = vand.u32 %v1244, 4294901760
      %7109 = vmatmul.mubr.f32.gmra.mrb[0].mxu0 %v7108
      %v7110 = vpop.f32.mrb[0].mxu0
      %v7111 = vadd.f32 %v6853, %v7110
      %v7112 = vpop.f32.mrb[0].mxu0
      %7113 = vmatprep.mubr.f32.mxu0 0.0
      %v7114 = vand.u32 %v1247, 4294901760
      %7115 = vmatmul.mubr.f32.gmra.mrb[0].mxu0 %v7114
      %v7116 = vpop.f32.mrb[0].mxu0
      %v7117 = vadd.f32 %v6863, %v7116
      %v7118 = vpop.f32.mrb[0].mxu0
      %7119 = vmatprep.mubr.f32.mxu0 0.0
      %v7120 = vand.u32 %v1250, 4294901760
      %7121 = vmatmul.mubr.f32.gmra.mrb[0].mxu0 %v7120
      %v7122 = vpop.f32.mrb[0].mxu0
      %v7123 = vadd.f32 %v6873, %v7122
      %v7124 = vpop.f32.mrb[0].mxu0
      %7125 = vmatprep.mubr.f32.mxu0 0.0
      %v7126 = vand.u32 %v1253, 4294901760
      %7127 = vmatmul.mubr.f32.gmra.mrb[0].mxu0 %v7126
      %v7128 = vpop.f32.mrb[0].mxu0
      %v7129 = vadd.f32 %v6883, %v7128
      %v7130 = vpop.f32.mrb[0].mxu0
      %7131 = vmatprep.mubr.f32.mxu0 0.0
      %v7132 = vand.u32 %v1256, 4294901760
      %7133 = vmatmul.mubr.f32.gmra.mrb[0].mxu0 %v7132
      %v7134 = vpop.f32.mrb[0].mxu0
      %v7135 = vadd.f32 %v6893, %v7134
      %v7136 = vpop.f32.mrb[0].mxu0
      %7137 = vmatprep.mubr.f32.mxu0 0.0
      %v7138 = vand.u32 %v1259, 4294901760
      %7139 = vmatmul.mubr.f32.gmra.mrb[0].mxu0 %v7138
      %v7140 = vpop.f32.mrb[0].mxu0
      %v7141 = vadd.f32 %v6903, %v7140
      %v7142 = vpop.f32.mrb[0].mxu0
      %7143 = vmatprep.mubr.f32.mxu0 0.0
      %v7144 = vand.u32 %v1262, 4294901760
      %7145 = vmatmul.mubr.f32.gmra.mrb[0].mxu0 %v7144
      %v7146 = vpop.f32.mrb[0].mxu0
      %v7147 = vadd.f32 %v6913, %v7146
      %v7148 = vpop.f32.mrb[0].mxu0
      %7149 = vmatprep.mubr.f32.mxu0 0.0
      %v7150 = vand.u32 %v1265, 4294901760
      %7151 = vmatmul.mubr.f32.gmra.mrb[0].mxu0 %v7150
      %v7152 = vpop.f32.mrb[0].mxu0
      %v7153 = vadd.f32 %v6923, %v7152
      %v7154 = vpop.f32.mrb[0].mxu0
      %7155 = vmatprep.mubr.f32.mxu0 0.0
      %v7156 = vand.u32 %v1268, 4294901760
      %7157 = vmatmul.mubr.f32.gmra.mrb[0].mxu0 %v7156
      %v7158 = vpop.f32.mrb[0].mxu0
      %v7159 = vadd.f32 %v6933, %v7158
      %v7160 = vpop.f32.mrb[0].mxu0
      %7161 = vdwg.mxu0
      %7162 = vmatprep.subr.mxu0 0.0
      %v7163 = vand.u32 %v913, 4294901760
      %v7164 = vsub.f32 %v913, %v7163
      %7165 = vmatpush1.msra.mxu0 %v7164
      %7166 = vmatprep.subr.mxu0 0.0
      %v7167 = vand.u32 %v916, 4294901760
      %v7168 = vsub.f32 %v916, %v7167
      %7169 = vmatpush1.msra.mxu0 %v7168
      %7170 = vmatprep.subr.mxu0 0.0
      %v7171 = vand.u32 %v919, 4294901760
      %v7172 = vsub.f32 %v919, %v7171
      %7173 = vmatpush1.msra.mxu0 %v7172
      %7174 = vmatprep.subr.mxu0 0.0
      %v7175 = vand.u32 %v978, 4294901760
      %v7176 = vsub.f32 %v978, %v7175
      %7177 = vmatpush1.msra.mxu0 %v7176
      %7178 = vmatprep.subr.mxu0 0.0
      %v7179 = vand.u32 %v981, 4294901760
      %v7180 = vsub.f32 %v981, %v7179
      %7181 = vmatpush1.msra.mxu0 %v7180
      %7182 = vmatprep.subr.mxu0 0.0
      %v7183 = vand.u32 %v984, 4294901760
      %v7184 = vsub.f32 %v984, %v7183
      %7185 = vmatpush1.msra.mxu0 %v7184
      %7186 = vmatprep.subr.mxu0 0.0
      %v7187 = vand.u32 %v987, 4294901760
      %v7188 = vsub.f32 %v987, %v7187
      %7189 = vmatpush1.msra.mxu0 %v7188
      %7190 = vmatprep.subr.mxu0 0.0
      %v7191 = vand.u32 %v990, 4294901760
      %v7192 = vsub.f32 %v990, %v7191
      %7193 = vmatpush1.msra.mxu0 %v7192
      %7194 = vmatprep.subr.mxu0 0.0
      %v7195 = vand.u32 %v1049, 4294901760
      %v7196 = vsub.f32 %v1049, %v7195
      %7197 = vmatpush1.msra.mxu0 %v7196
      %7198 = vmatprep.subr.mxu0 0.0
      %v7199 = vand.u32 %v1052, 4294901760
      %v7200 = vsub.f32 %v1052, %v7199
      %7201 = vmatpush1.msra.mxu0 %v7200
      %7202 = vmatprep.subr.mxu0 0.0
      %v7203 = vand.u32 %v1055, 4294901760
      %v7204 = vsub.f32 %v1055, %v7203
      %7205 = vmatpush1.msra.mxu0 %v7204
      %7206 = vmatprep.subr.mxu0 0.0
      %v7207 = vand.u32 %v1058, 4294901760
      %v7208 = vsub.f32 %v1058, %v7207
      %7209 = vmatpush1.msra.mxu0 %v7208
      %7210 = vmatprep.subr.mxu0 0.0
      %v7211 = vand.u32 %v1061, 4294901760
      %v7212 = vsub.f32 %v1061, %v7211
      %7213 = vmatpush1.msra.mxu0 %v7212
      %7214 = vmatprep.subr.mxu0 0.0
      %7215 = vmatpush1.msra.mxu0 0.0
      %7216 = vmatprep.subr.mxu0 0.0
      %7217 = vmatpush1.msra.mxu0 0.0
      %7218 = vmatprep.subr.mxu0 0.0
      %7219 = vmatpush1.msra.mxu0 0.0
      %7220 = vmatprep.subr.mxu0 0.0
      %7221 = vmatpush1.msra.mxu0 0.0
      %7222 = vmatprep.subr.mxu0 0.0
      %7223 = vmatpush1.msra.mxu0 0.0
      %7224 = vmatprep.subr.mxu0 0.0
      %7225 = vmatpush1.msra.mxu0 0.0
      %7226 = vmatprep.subr.mxu0 0.0
      %7227 = vmatpush1.msra.mxu0 0.0
      %7228 = vmatprep.subr.mxu0 0.0
      %7229 = vmatpush1.msra.mxu0 0.0
      %7230 = vmatprep.subr.mxu0 0.0
      %7231 = vmatpush1.msra.mxu0 0.0
      %7232 = vmatprep.subr.mxu0 0.0
      %7233 = vmatpush1.msra.mxu0 0.0
      %7234 = vmatprep.subr.mxu0 0.0
      %7235 = vmatpush1.msra.mxu0 0.0
      %7236 = vmatprep.subr.mxu0 0.0
      %7237 = vmatpush1.msra.mxu0 0.0
      %7238 = vmatprep.subr.mxu0 0.0
      %7239 = vmatpush1.msra.mxu0 0.0
      %7240 = vmatprep.subr.mxu0 0.0
      %7241 = vmatpush1.msra.mxu0 0.0
      %7242 = vmatprep.subr.mxu0 0.0
      %7243 = vmatpush1.msra.mxu0 0.0
      %7244 = vmatprep.subr.mxu0 0.0
      %7245 = vmatpush1.msra.mxu0 0.0
      %7246 = vmatprep.subr.mxu0 0.0
      %7247 = vmatpush1.msra.mxu0 0.0
      %7248 = vmatprep.subr.mxu0 0.0
      %7249 = vmatpush1.msra.mxu0 0.0
      %7250 = vmatprep.subr.mxu0 0.0
      %7251 = vmatpush1.msra.mxu0 0.0
      %7252 = vmatprep.mubr.f32.mxu0 0.0
      %v7253 = vand.u32 %v1223, 4294901760
      %v7254 = vsub.f32 %v1223, %v7253
      %7255 = vmatmul.mubr.f32.gmra.mrb[0].mxu0 %v7254
      %v7256 = vpop.f32.mrb[0].mxu0
      %v7257 = vadd.f32 %v7069, %v7256
      %v7258 = vpop.f32.mrb[0].mxu0
      %7259 = vmatprep.mubr.f32.mxu0 0.0
      %v7260 = vand.u32 %v1226, 4294901760
      %v7261 = vsub.f32 %v1226, %v7260
      %7262 = vmatmul.mubr.f32.gmra.mrb[0].mxu0 %v7261
      %v7263 = vpop.f32.mrb[0].mxu0
      %v7264 = vadd.f32 %v7075, %v7263
      %v7265 = vpop.f32.mrb[0].mxu0
      %7266 = vmatprep.mubr.f32.mxu0 0.0
      %v7267 = vand.u32 %v1229, 4294901760
      %v7268 = vsub.f32 %v1229, %v7267
      %7269 = vmatmul.mubr.f32.gmra.mrb[0].mxu0 %v7268
      %v7270 = vpop.f32.mrb[0].mxu0
      %v7271 = vadd.f32 %v7081, %v7270
      %v7272 = vpop.f32.mrb[0].mxu0
      %7273 = vmatprep.mubr.f32.mxu0 0.0
      %v7274 = vand.u32 %v1232, 4294901760
      %v7275 = vsub.f32 %v1232, %v7274
      %7276 = vmatmul.mubr.f32.gmra.mrb[0].mxu0 %v7275
      %v7277 = vpop.f32.mrb[0].mxu0
      %v7278 = vadd.f32 %v7087, %v7277
      %v7279 = vpop.f32.mrb[0].mxu0
      %7280 = vmatprep.mubr.f32.mxu0 0.0
      %v7281 = vand.u32 %v1235, 4294901760
      %v7282 = vsub.f32 %v1235, %v7281
      %7283 = vmatmul.mubr.f32.gmra.mrb[0].mxu0 %v7282
      %v7284 = vpop.f32.mrb[0].mxu0
      %v7285 = vadd.f32 %v7093, %v7284
      %v7286 = vpop.f32.mrb[0].mxu0
      %7287 = vmatprep.mubr.f32.mxu0 0.0
      %v7288 = vand.u32 %v1238, 4294901760
      %v7289 = vsub.f32 %v1238, %v7288
      %7290 = vmatmul.mubr.f32.gmra.mrb[0].mxu0 %v7289
      %v7291 = vpop.f32.mrb[0].mxu0
      %v7292 = vadd.f32 %v7099, %v7291
      %v7293 = vpop.f32.mrb[0].mxu0
      %7294 = vmatprep.mubr.f32.mxu0 0.0
      %v7295 = vand.u32 %v1241, 4294901760
      %v7296 = vsub.f32 %v1241, %v7295
      %7297 = vmatmul.mubr.f32.gmra.mrb[0].mxu0 %v7296
      %v7298 = vpop.f32.mrb[0].mxu0
      %v7299 = vadd.f32 %v7105, %v7298
      %v7300 = vpop.f32.mrb[0].mxu0
      %7301 = vmatprep.mubr.f32.mxu0 0.0
      %v7302 = vand.u32 %v1244, 4294901760
      %v7303 = vsub.f32 %v1244, %v7302
      %7304 = vmatmul.mubr.f32.gmra.mrb[0].mxu0 %v7303
      %v7305 = vpop.f32.mrb[0].mxu0
      %v7306 = vadd.f32 %v7111, %v7305
      %v7307 = vpop.f32.mrb[0].mxu0
      %7308 = vmatprep.mubr.f32.mxu0 0.0
      %v7309 = vand.u32 %v1247, 4294901760
      %v7310 = vsub.f32 %v1247, %v7309
      %7311 = vmatmul.mubr.f32.gmra.mrb[0].mxu0 %v7310
      %v7312 = vpop.f32.mrb[0].mxu0
      %v7313 = vadd.f32 %v7117, %v7312
      %v7314 = vpop.f32.mrb[0].mxu0
      %7315 = vmatprep.mubr.f32.mxu0 0.0
      %v7316 = vand.u32 %v1250, 4294901760
      %v7317 = vsub.f32 %v1250, %v7316
      %7318 = vmatmul.mubr.f32.gmra.mrb[0].mxu0 %v7317
      %v7319 = vpop.f32.mrb[0].mxu0
      %v7320 = vadd.f32 %v7123, %v7319
      %v7321 = vpop.f32.mrb[0].mxu0
      %7322 = vmatprep.mubr.f32.mxu0 0.0
      %v7323 = vand.u32 %v1253, 4294901760
      %v7324 = vsub.f32 %v1253, %v7323
      %7325 = vmatmul.mubr.f32.gmra.mrb[0].mxu0 %v7324
      %v7326 = vpop.f32.mrb[0].mxu0
      %v7327 = vadd.f32 %v7129, %v7326
      %v7328 = vpop.f32.mrb[0].mxu0
      %7329 = vmatprep.mubr.f32.mxu0 0.0
      %v7330 = vand.u32 %v1256, 4294901760
      %v7331 = vsub.f32 %v1256, %v7330
      %7332 = vmatmul.mubr.f32.gmra.mrb[0].mxu0 %v7331
      %v7333 = vpop.f32.mrb[0].mxu0
      %v7334 = vadd.f32 %v7135, %v7333
      %v7335 = vpop.f32.mrb[0].mxu0
      %7336 = vmatprep.mubr.f32.mxu0 0.0
      %v7337 = vand.u32 %v1259, 4294901760
      %v7338 = vsub.f32 %v1259, %v7337
      %7339 = vmatmul.mubr.f32.gmra.mrb[0].mxu0 %v7338
      %v7340 = vpop.f32.mrb[0].mxu0
      %v7341 = vadd.f32 %v7141, %v7340
      %v7342 = vpop.f32.mrb[0].mxu0
      %7343 = vmatprep.mubr.f32.mxu0 0.0
      %v7344 = vand.u32 %v1262, 4294901760
      %v7345 = vsub.f32 %v1262, %v7344
      %7346 = vmatmul.mubr.f32.gmra.mrb[0].mxu0 %v7345
      %v7347 = vpop.f32.mrb[0].mxu0
      %v7348 = vadd.f32 %v7147, %v7347
      %v7349 = vpop.f32.mrb[0].mxu0
      %7350 = vmatprep.mubr.f32.mxu0 0.0
      %v7351 = vand.u32 %v1265, 4294901760
      %v7352 = vsub.f32 %v1265, %v7351
      %7353 = vmatmul.mubr.f32.gmra.mrb[0].mxu0 %v7352
      %v7354 = vpop.f32.mrb[0].mxu0
      %v7355 = vadd.f32 %v7153, %v7354
      %v7356 = vpop.f32.mrb[0].mxu0
      %7357 = vmatprep.mubr.f32.mxu0 0.0
      %v7358 = vand.u32 %v1268, 4294901760
      %v7359 = vsub.f32 %v1268, %v7358
      %7360 = vmatmul.mubr.f32.gmra.mrb[0].mxu0 %v7359
      %v7361 = vpop.f32.mrb[0].mxu0
      %v7362 = vadd.f32 %v7159, %v7361
      %v7363 = vpop.f32.mrb[0].mxu0
      %7364 = vdwg.mxu0
      %7365 = vmatprep.subr.mxu0 0.0
      %v7366 = vand.u32 %v913, 4294901760
      %7367 = vmatpush1.msra.mxu0 %v7366
      %7368 = vmatprep.subr.mxu0 0.0
      %v7369 = vand.u32 %v916, 4294901760
      %7370 = vmatpush1.msra.mxu0 %v7369
      %7371 = vmatprep.subr.mxu0 0.0
      %v7372 = vand.u32 %v919, 4294901760
      %7373 = vmatpush1.msra.mxu0 %v7372
      %7374 = vmatprep.subr.mxu0 0.0
      %v7375 = vand.u32 %v978, 4294901760
      %7376 = vmatpush1.msra.mxu0 %v7375
      %7377 = vmatprep.subr.mxu0 0.0
      %v7378 = vand.u32 %v981, 4294901760
      %7379 = vmatpush1.msra.mxu0 %v7378
      %7380 = vmatprep.subr.mxu0 0.0
      %v7381 = vand.u32 %v984, 4294901760
      %7382 = vmatpush1.msra.mxu0 %v7381
      %7383 = vmatprep.subr.mxu0 0.0
      %v7384 = vand.u32 %v987, 4294901760
      %7385 = vmatpush1.msra.mxu0 %v7384
      %7386 = vmatprep.subr.mxu0 0.0
      %v7387 = vand.u32 %v990, 4294901760
      %7388 = vmatpush1.msra.mxu0 %v7387
      %7389 = vmatprep.subr.mxu0 0.0
      %v7390 = vand.u32 %v1049, 4294901760
      %7391 = vmatpush1.msra.mxu0 %v7390
      %7392 = vmatprep.subr.mxu0 0.0
      %v7393 = vand.u32 %v1052, 4294901760
      %7394 = vmatpush1.msra.mxu0 %v7393
      %7395 = vmatprep.subr.mxu0 0.0
      %v7396 = vand.u32 %v1055, 4294901760
      %7397 = vmatpush1.msra.mxu0 %v7396
      %7398 = vmatprep.subr.mxu0 0.0
      %v7399 = vand.u32 %v1058, 4294901760
      %7400 = vmatpush1.msra.mxu0 %v7399
      %7401 = vmatprep.subr.mxu0 0.0
      %v7402 = vand.u32 %v1061, 4294901760
      %7403 = vmatpush1.msra.mxu0 %v7402
      %7404 = vmatprep.subr.mxu0 0.0
      %7405 = vmatpush1.msra.mxu0 0.0
      %7406 = vmatprep.subr.mxu0 0.0
      %7407 = vmatpush1.msra.mxu0 0.0
      %7408 = vmatprep.subr.mxu0 0.0
      %7409 = vmatpush1.msra.mxu0 0.0
      %7410 = vmatprep.subr.mxu0 0.0
      %7411 = vmatpush1.msra.mxu0 0.0
      %7412 = vmatprep.subr.mxu0 0.0
      %7413 = vmatpush1.msra.mxu0 0.0
      %7414 = vmatprep.subr.mxu0 0.0
      %7415 = vmatpush1.msra.mxu0 0.0
      %7416 = vmatprep.subr.mxu0 0.0
      %7417 = vmatpush1.msra.mxu0 0.0
      %7418 = vmatprep.subr.mxu0 0.0
      %7419 = vmatpush1.msra.mxu0 0.0
      %7420 = vmatprep.subr.mxu0 0.0
      %7421 = vmatpush1.msra.mxu0 0.0
      %7422 = vmatprep.subr.mxu0 0.0
      %7423 = vmatpush1.msra.mxu0 0.0
      %7424 = vmatprep.subr.mxu0 0.0
      %7425 = vmatpush1.msra.mxu0 0.0
      %7426 = vmatprep.subr.mxu0 0.0
      %7427 = vmatpush1.msra.mxu0 0.0
      %7428 = vmatprep.subr.mxu0 0.0
      %7429 = vmatpush1.msra.mxu0 0.0
      %7430 = vmatprep.subr.mxu0 0.0
      %7431 = vmatpush1.msra.mxu0 0.0
      %7432 = vmatprep.subr.mxu0 0.0
      %7433 = vmatpush1.msra.mxu0 0.0
      %7434 = vmatprep.subr.mxu0 0.0
      %7435 = vmatpush1.msra.mxu0 0.0
      %7436 = vmatprep.subr.mxu0 0.0
      %7437 = vmatpush1.msra.mxu0 0.0
      %7438 = vmatprep.subr.mxu0 0.0
      %7439 = vmatpush1.msra.mxu0 0.0
      %7440 = vmatprep.subr.mxu0 0.0
      %7441 = vmatpush1.msra.mxu0 0.0
      %7442 = vmatprep.mubr.f32.mxu0 0.0
      %v7443 = vand.u32 %v1223, 4294901760
      %v7444 = vsub.f32 %v1223, %v7443
      %v7445 = vand.u32 %v7444, 4294901760
      %7446 = vmatmul.mubr.f32.gmra.mrb[0].mxu0 %v7445
      %v7447 = vpop.f32.mrb[0].mxu0
      %v7448 = vadd.f32 %v7257, %v7447
      %v7449 = vpop.f32.mrb[0].mxu0
      %7450 = vmatprep.mubr.f32.mxu0 0.0
      %v7451 = vand.u32 %v1226, 4294901760
      %v7452 = vsub.f32 %v1226, %v7451
      %v7453 = vand.u32 %v7452, 4294901760
      %7454 = vmatmul.mubr.f32.gmra.mrb[0].mxu0 %v7453
      %v7455 = vpop.f32.mrb[0].mxu0
      %v7456 = vadd.f32 %v7264, %v7455
      %v7457 = vpop.f32.mrb[0].mxu0
      %7458 = vmatprep.mubr.f32.mxu0 0.0
      %v7459 = vand.u32 %v1229, 4294901760
      %v7460 = vsub.f32 %v1229, %v7459
      %v7461 = vand.u32 %v7460, 4294901760
      %7462 = vmatmul.mubr.f32.gmra.mrb[0].mxu0 %v7461
      %v7463 = vpop.f32.mrb[0].mxu0
      %v7464 = vadd.f32 %v7271, %v7463
      %v7465 = vpop.f32.mrb[0].mxu0
      %7466 = vmatprep.mubr.f32.mxu0 0.0
      %v7467 = vand.u32 %v1232, 4294901760
      %v7468 = vsub.f32 %v1232, %v7467
      %v7469 = vand.u32 %v7468, 4294901760
      %7470 = vmatmul.mubr.f32.gmra.mrb[0].mxu0 %v7469
      %v7471 = vpop.f32.mrb[0].mxu0
      %v7472 = vadd.f32 %v7278, %v7471
      %v7473 = vpop.f32.mrb[0].mxu0
      %7474 = vmatprep.mubr.f32.mxu0 0.0
      %v7475 = vand.u32 %v1235, 4294901760
      %v7476 = vsub.f32 %v1235, %v7475
      %v7477 = vand.u32 %v7476, 4294901760
      %7478 = vmatmul.mubr.f32.gmra.mrb[0].mxu0 %v7477
      %v7479 = vpop.f32.mrb[0].mxu0
      %v7480 = vadd.f32 %v7285, %v7479
      %v7481 = vpop.f32.mrb[0].mxu0
      %7482 = vmatprep.mubr.f32.mxu0 0.0
      %v7483 = vand.u32 %v1238, 4294901760
      %v7484 = vsub.f32 %v1238, %v7483
      %v7485 = vand.u32 %v7484, 4294901760
      %7486 = vmatmul.mubr.f32.gmra.mrb[0].mxu0 %v7485
      %v7487 = vpop.f32.mrb[0].mxu0
      %v7488 = vadd.f32 %v7292, %v7487
      %v7489 = vpop.f32.mrb[0].mxu0
      %7490 = vmatprep.mubr.f32.mxu0 0.0
      %v7491 = vand.u32 %v1241, 4294901760
      %v7492 = vsub.f32 %v1241, %v7491
      %v7493 = vand.u32 %v7492, 4294901760
      %7494 = vmatmul.mubr.f32.gmra.mrb[0].mxu0 %v7493
      %v7495 = vpop.f32.mrb[0].mxu0
      %v7496 = vadd.f32 %v7299, %v7495
      %v7497 = vpop.f32.mrb[0].mxu0
      %7498 = vmatprep.mubr.f32.mxu0 0.0
      %v7499 = vand.u32 %v1244, 4294901760
      %v7500 = vsub.f32 %v1244, %v7499
      %v7501 = vand.u32 %v7500, 4294901760
      %7502 = vmatmul.mubr.f32.gmra.mrb[0].mxu0 %v7501
      %v7503 = vpop.f32.mrb[0].mxu0
      %v7504 = vadd.f32 %v7306, %v7503
      %v7505 = vpop.f32.mrb[0].mxu0
      %7506 = vmatprep.mubr.f32.mxu0 0.0
      %v7507 = vand.u32 %v1247, 4294901760
      %v7508 = vsub.f32 %v1247, %v7507
      %v7509 = vand.u32 %v7508, 4294901760
      %7510 = vmatmul.mubr.f32.gmra.mrb[0].mxu0 %v7509
      %v7511 = vpop.f32.mrb[0].mxu0
      %v7512 = vadd.f32 %v7313, %v7511
      %v7513 = vpop.f32.mrb[0].mxu0
      %7514 = vmatprep.mubr.f32.mxu0 0.0
      %v7515 = vand.u32 %v1250, 4294901760
      %v7516 = vsub.f32 %v1250, %v7515
      %v7517 = vand.u32 %v7516, 4294901760
      %7518 = vmatmul.mubr.f32.gmra.mrb[0].mxu0 %v7517
      %v7519 = vpop.f32.mrb[0].mxu0
      %v7520 = vadd.f32 %v7320, %v7519
      %v7521 = vpop.f32.mrb[0].mxu0
      %7522 = vmatprep.mubr.f32.mxu0 0.0
      %v7523 = vand.u32 %v1253, 4294901760
      %v7524 = vsub.f32 %v1253, %v7523
      %v7525 = vand.u32 %v7524, 4294901760
      %7526 = vmatmul.mubr.f32.gmra.mrb[0].mxu0 %v7525
      %v7527 = vpop.f32.mrb[0].mxu0
      %v7528 = vadd.f32 %v7327, %v7527
      %v7529 = vpop.f32.mrb[0].mxu0
      %7530 = vmatprep.mubr.f32.mxu0 0.0
      %v7531 = vand.u32 %v1256, 4294901760
      %v7532 = vsub.f32 %v1256, %v7531
      %v7533 = vand.u32 %v7532, 4294901760
      %7534 = vmatmul.mubr.f32.gmra.mrb[0].mxu0 %v7533
      %v7535 = vpop.f32.mrb[0].mxu0
      %v7536 = vadd.f32 %v7334, %v7535
      %v7537 = vpop.f32.mrb[0].mxu0
      %7538 = vmatprep.mubr.f32.mxu0 0.0
      %v7539 = vand.u32 %v1259, 4294901760
      %v7540 = vsub.f32 %v1259, %v7539
      %v7541 = vand.u32 %v7540, 4294901760
      %7542 = vmatmul.mubr.f32.gmra.mrb[0].mxu0 %v7541
      %v7543 = vpop.f32.mrb[0].mxu0
      %v7544 = vadd.f32 %v7341, %v7543
      %v7545 = vpop.f32.mrb[0].mxu0
      %7546 = vmatprep.mubr.f32.mxu0 0.0
      %v7547 = vand.u32 %v1262, 4294901760
      %v7548 = vsub.f32 %v1262, %v7547
      %v7549 = vand.u32 %v7548, 4294901760
      %7550 = vmatmul.mubr.f32.gmra.mrb[0].mxu0 %v7549
      %v7551 = vpop.f32.mrb[0].mxu0
      %v7552 = vadd.f32 %v7348, %v7551
      %v7553 = vpop.f32.mrb[0].mxu0
      %7554 = vmatprep.mubr.f32.mxu0 0.0
      %v7555 = vand.u32 %v1265, 4294901760
      %v7556 = vsub.f32 %v1265, %v7555
      %v7557 = vand.u32 %v7556, 4294901760
      %7558 = vmatmul.mubr.f32.gmra.mrb[0].mxu0 %v7557
      %v7559 = vpop.f32.mrb[0].mxu0
      %v7560 = vadd.f32 %v7355, %v7559
      %v7561 = vpop.f32.mrb[0].mxu0
      %7562 = vmatprep.mubr.f32.mxu0 0.0
      %v7563 = vand.u32 %v1268, 4294901760
      %v7564 = vsub.f32 %v1268, %v7563
      %v7565 = vand.u32 %v7564, 4294901760
      %7566 = vmatmul.mubr.f32.gmra.mrb[0].mxu0 %v7565
      %v7567 = vpop.f32.mrb[0].mxu0
      %v7568 = vadd.f32 %v7362, %v7567
      %v7569 = vpop.f32.mrb[0].mxu0
      %7570 = vdwg.mxu0
      %7571 = vmatprep.subr.mxu0 0.0
      %v7572 = vand.u32 %v913, 4294901760
      %v7573 = vsub.f32 %v913, %v7572
      %v7574 = vand.u32 %v7573, 4294901760
      %7575 = vmatpush1.msra.mxu0 %v7574
      %7576 = vmatprep.subr.mxu0 0.0
      %v7577 = vand.u32 %v916, 4294901760
      %v7578 = vsub.f32 %v916, %v7577
      %v7579 = vand.u32 %v7578, 4294901760
      %7580 = vmatpush1.msra.mxu0 %v7579
      %7581 = vmatprep.subr.mxu0 0.0
      %v7582 = vand.u32 %v919, 4294901760
      %v7583 = vsub.f32 %v919, %v7582
      %v7584 = vand.u32 %v7583, 4294901760
      %7585 = vmatpush1.msra.mxu0 %v7584
      %7586 = vmatprep.subr.mxu0 0.0
      %v7587 = vand.u32 %v978, 4294901760
      %v7588 = vsub.f32 %v978, %v7587
      %v7589 = vand.u32 %v7588, 4294901760
      %7590 = vmatpush1.msra.mxu0 %v7589
      %7591 = vmatprep.subr.mxu0 0.0
      %v7592 = vand.u32 %v981, 4294901760
      %v7593 = vsub.f32 %v981, %v7592
      %v7594 = vand.u32 %v7593, 4294901760
      %7595 = vmatpush1.msra.mxu0 %v7594
      %7596 = vmatprep.subr.mxu0 0.0
      %v7597 = vand.u32 %v984, 4294901760
      %v7598 = vsub.f32 %v984, %v7597
      %v7599 = vand.u32 %v7598, 4294901760
      %7600 = vmatpush1.msra.mxu0 %v7599
      %7601 = vmatprep.subr.mxu0 0.0
      %v7602 = vand.u32 %v987, 4294901760
      %v7603 = vsub.f32 %v987, %v7602
      %v7604 = vand.u32 %v7603, 4294901760
      %7605 = vmatpush1.msra.mxu0 %v7604
      %7606 = vmatprep.subr.mxu0 0.0
      %v7607 = vand.u32 %v990, 4294901760
      %v7608 = vsub.f32 %v990, %v7607
      %v7609 = vand.u32 %v7608, 4294901760
      %7610 = vmatpush1.msra.mxu0 %v7609
      %7611 = vmatprep.subr.mxu0 0.0
      %v7612 = vand.u32 %v1049, 4294901760
      %v7613 = vsub.f32 %v1049, %v7612
      %v7614 = vand.u32 %v7613, 4294901760
      %7615 = vmatpush1.msra.mxu0 %v7614
      %7616 = vmatprep.subr.mxu0 0.0
      %v7617 = vand.u32 %v1052, 4294901760
      %v7618 = vsub.f32 %v1052, %v7617
      %v7619 = vand.u32 %v7618, 4294901760
      %7620 = vmatpush1.msra.mxu0 %v7619
      %7621 = vmatprep.subr.mxu0 0.0
      %v7622 = vand.u32 %v1055, 4294901760
      %v7623 = vsub.f32 %v1055, %v7622
      %v7624 = vand.u32 %v7623, 4294901760
      %7625 = vmatpush1.msra.mxu0 %v7624
      %7626 = vmatprep.subr.mxu0 0.0
      %v7627 = vand.u32 %v1058, 4294901760
      %v7628 = vsub.f32 %v1058, %v7627
      %v7629 = vand.u32 %v7628, 4294901760
      %7630 = vmatpush1.msra.mxu0 %v7629
      %7631 = vmatprep.subr.mxu0 0.0
      %v7632 = vand.u32 %v1061, 4294901760
      %v7633 = vsub.f32 %v1061, %v7632
      %v7634 = vand.u32 %v7633, 4294901760
      %7635 = vmatpush1.msra.mxu0 %v7634
      %7636 = vmatprep.subr.mxu0 0.0
      %7637 = vmatpush1.msra.mxu0 0.0
      %7638 = vmatprep.subr.mxu0 0.0
      %7639 = vmatpush1.msra.mxu0 0.0
      %7640 = vmatprep.subr.mxu0 0.0
      %7641 = vmatpush1.msra.mxu0 0.0
      %7642 = vmatprep.subr.mxu0 0.0
      %7643 = vmatpush1.msra.mxu0 0.0
      %7644 = vmatprep.subr.mxu0 0.0
      %7645 = vmatpush1.msra.mxu0 0.0
      %7646 = vmatprep.subr.mxu0 0.0
      %7647 = vmatpush1.msra.mxu0 0.0
      %7648 = vmatprep.subr.mxu0 0.0
      %7649 = vmatpush1.msra.mxu0 0.0
      %7650 = vmatprep.subr.mxu0 0.0
      %7651 = vmatpush1.msra.mxu0 0.0
      %7652 = vmatprep.subr.mxu0 0.0
      %7653 = vmatpush1.msra.mxu0 0.0
      %7654 = vmatprep.subr.mxu0 0.0
      %7655 = vmatpush1.msra.mxu0 0.0
      %7656 = vmatprep.subr.mxu0 0.0
      %7657 = vmatpush1.msra.mxu0 0.0
      %7658 = vmatprep.subr.mxu0 0.0
      %7659 = vmatpush1.msra.mxu0 0.0
      %7660 = vmatprep.subr.mxu0 0.0
      %7661 = vmatpush1.msra.mxu0 0.0
      %7662 = vmatprep.subr.mxu0 0.0
      %7663 = vmatpush1.msra.mxu0 0.0
      %7664 = vmatprep.subr.mxu0 0.0
      %7665 = vmatpush1.msra.mxu0 0.0
      %7666 = vmatprep.subr.mxu0 0.0
      %7667 = vmatpush1.msra.mxu0 0.0
      %7668 = vmatprep.subr.mxu0 0.0
      %7669 = vmatpush1.msra.mxu0 0.0
      %7670 = vmatprep.subr.mxu0 0.0
      %7671 = vmatpush1.msra.mxu0 0.0
      %7672 = vmatprep.subr.mxu0 0.0
      %7673 = vmatpush1.msra.mxu0 0.0
      %7674 = vmatprep.mubr.f32.mxu0 0.0
      %v7675 = vand.u32 %v1223, 4294901760
      %7676 = vmatmul.mubr.f32.gmra.mrb[0].mxu0 %v7675
      %v7677 = vpop.f32.mrb[0].mxu0
      %v7678 = vadd.f32 %v7448, %v7677
      %v7679 = vpop.f32.mrb[0].mxu0
      %7680 = vmatprep.mubr.f32.mxu0 0.0
      %v7681 = vand.u32 %v1226, 4294901760
      %7682 = vmatmul.mubr.f32.gmra.mrb[0].mxu0 %v7681
      %v7683 = vpop.f32.mrb[0].mxu0
      %v7684 = vadd.f32 %v7456, %v7683
      %v7685 = vpop.f32.mrb[0].mxu0
      %7686 = vmatprep.mubr.f32.mxu0 0.0
      %v7687 = vand.u32 %v1229, 4294901760
      %7688 = vmatmul.mubr.f32.gmra.mrb[0].mxu0 %v7687
      %v7689 = vpop.f32.mrb[0].mxu0
      %v7690 = vadd.f32 %v7464, %v7689
      %v7691 = vpop.f32.mrb[0].mxu0
      %7692 = vmatprep.mubr.f32.mxu0 0.0
      %v7693 = vand.u32 %v1232, 4294901760
      %7694 = vmatmul.mubr.f32.gmra.mrb[0].mxu0 %v7693
      %v7695 = vpop.f32.mrb[0].mxu0
      %v7696 = vadd.f32 %v7472, %v7695
      %v7697 = vpop.f32.mrb[0].mxu0
      %7698 = vmatprep.mubr.f32.mxu0 0.0
      %v7699 = vand.u32 %v1235, 4294901760
      %7700 = vmatmul.mubr.f32.gmra.mrb[0].mxu0 %v7699
      %v7701 = vpop.f32.mrb[0].mxu0
      %v7702 = vadd.f32 %v7480, %v7701
      %v7703 = vpop.f32.mrb[0].mxu0
      %7704 = vmatprep.mubr.f32.mxu0 0.0
      %v7705 = vand.u32 %v1238, 4294901760
      %7706 = vmatmul.mubr.f32.gmra.mrb[0].mxu0 %v7705
      %v7707 = vpop.f32.mrb[0].mxu0
      %v7708 = vadd.f32 %v7488, %v7707
      %v7709 = vpop.f32.mrb[0].mxu0
      %7710 = vmatprep.mubr.f32.mxu0 0.0
      %v7711 = vand.u32 %v1241, 4294901760
      %7712 = vmatmul.mubr.f32.gmra.mrb[0].mxu0 %v7711
      %v7713 = vpop.f32.mrb[0].mxu0
      %v7714 = vadd.f32 %v7496, %v7713
      %v7715 = vpop.f32.mrb[0].mxu0
      %7716 = vmatprep.mubr.f32.mxu0 0.0
      %v7717 = vand.u32 %v1244, 4294901760
      %7718 = vmatmul.mubr.f32.gmra.mrb[0].mxu0 %v7717
      %v7719 = vpop.f32.mrb[0].mxu0
      %v7720 = vadd.f32 %v7504, %v7719
      %v7721 = vpop.f32.mrb[0].mxu0
      %7722 = vmatprep.mubr.f32.mxu0 0.0
      %v7723 = vand.u32 %v1247, 4294901760
      %7724 = vmatmul.mubr.f32.gmra.mrb[0].mxu0 %v7723
      %v7725 = vpop.f32.mrb[0].mxu0
      %v7726 = vadd.f32 %v7512, %v7725
      %v7727 = vpop.f32.mrb[0].mxu0
      %7728 = vmatprep.mubr.f32.mxu0 0.0
      %v7729 = vand.u32 %v1250, 4294901760
      %7730 = vmatmul.mubr.f32.gmra.mrb[0].mxu0 %v7729
      %v7731 = vpop.f32.mrb[0].mxu0
      %v7732 = vadd.f32 %v7520, %v7731
      %v7733 = vpop.f32.mrb[0].mxu0
      %7734 = vmatprep.mubr.f32.mxu0 0.0
      %v7735 = vand.u32 %v1253, 4294901760
      %7736 = vmatmul.mubr.f32.gmra.mrb[0].mxu0 %v7735
      %v7737 = vpop.f32.mrb[0].mxu0
      %v7738 = vadd.f32 %v7528, %v7737
      %v7739 = vpop.f32.mrb[0].mxu0
      %7740 = vmatprep.mubr.f32.mxu0 0.0
      %v7741 = vand.u32 %v1256, 4294901760
      %7742 = vmatmul.mubr.f32.gmra.mrb[0].mxu0 %v7741
      %v7743 = vpop.f32.mrb[0].mxu0
      %v7744 = vadd.f32 %v7536, %v7743
      %v7745 = vpop.f32.mrb[0].mxu0
      %7746 = vmatprep.mubr.f32.mxu0 0.0
      %v7747 = vand.u32 %v1259, 4294901760
      %7748 = vmatmul.mubr.f32.gmra.mrb[0].mxu0 %v7747
      %v7749 = vpop.f32.mrb[0].mxu0
      %v7750 = vadd.f32 %v7544, %v7749
      %v7751 = vpop.f32.mrb[0].mxu0
      %7752 = vmatprep.mubr.f32.mxu0 0.0
      %v7753 = vand.u32 %v1262, 4294901760
      %7754 = vmatmul.mubr.f32.gmra.mrb[0].mxu0 %v7753
      %v7755 = vpop.f32.mrb[0].mxu0
      %v7756 = vadd.f32 %v7552, %v7755
      %v7757 = vpop.f32.mrb[0].mxu0
      %7758 = vmatprep.mubr.f32.mxu0 0.0
      %v7759 = vand.u32 %v1265, 4294901760
      %7760 = vmatmul.mubr.f32.gmra.mrb[0].mxu0 %v7759
      %v7761 = vpop.f32.mrb[0].mxu0
      %v7762 = vadd.f32 %v7560, %v7761
      %v7763 = vpop.f32.mrb[0].mxu0
      %7764 = vmatprep.mubr.f32.mxu0 0.0
      %v7765 = vand.u32 %v1268, 4294901760
      %7766 = vmatmul.mubr.f32.gmra.mrb[0].mxu0 %v7765
      %v7767 = vpop.f32.mrb[0].mxu0
      %v7768 = vadd.f32 %v7568, %v7767
      %v7769 = vpop.f32.mrb[0].mxu0
      %7770 = vdwg.mxu0
      %7771 = vmatprep.subr.mxu0 0.0
      %v7772 = vand.u32 %v913, 4294901760
      %7773 = vmatpush1.msra.mxu0 %v7772
      %7774 = vmatprep.subr.mxu0 0.0
      %v7775 = vand.u32 %v916, 4294901760
      %7776 = vmatpush1.msra.mxu0 %v7775
      %7777 = vmatprep.subr.mxu0 0.0
      %v7778 = vand.u32 %v919, 4294901760
      %7779 = vmatpush1.msra.mxu0 %v7778
      %7780 = vmatprep.subr.mxu0 0.0
      %v7781 = vand.u32 %v978, 4294901760
      %7782 = vmatpush1.msra.mxu0 %v7781
      %7783 = vmatprep.subr.mxu0 0.0
      %v7784 = vand.u32 %v981, 4294901760
      %7785 = vmatpush1.msra.mxu0 %v7784
      %7786 = vmatprep.subr.mxu0 0.0
      %v7787 = vand.u32 %v984, 4294901760
      %7788 = vmatpush1.msra.mxu0 %v7787
      %7789 = vmatprep.subr.mxu0 0.0
      %v7790 = vand.u32 %v987, 4294901760
      %7791 = vmatpush1.msra.mxu0 %v7790
      %7792 = vmatprep.subr.mxu0 0.0
      %v7793 = vand.u32 %v990, 4294901760
      %7794 = vmatpush1.msra.mxu0 %v7793
      %7795 = vmatprep.subr.mxu0 0.0
      %v7796 = vand.u32 %v1049, 4294901760
      %7797 = vmatpush1.msra.mxu0 %v7796
      %7798 = vmatprep.subr.mxu0 0.0
      %v7799 = vand.u32 %v1052, 4294901760
      %7800 = vmatpush1.msra.mxu0 %v7799
      %7801 = vmatprep.subr.mxu0 0.0
      %v7802 = vand.u32 %v1055, 4294901760
      %7803 = vmatpush1.msra.mxu0 %v7802
      %7804 = vmatprep.subr.mxu0 0.0
      %v7805 = vand.u32 %v1058, 4294901760
      %7806 = vmatpush1.msra.mxu0 %v7805
      %7807 = vmatprep.subr.mxu0 0.0
      %v7808 = vand.u32 %v1061, 4294901760
      %7809 = vmatpush1.msra.mxu0 %v7808
      %7810 = vmatprep.subr.mxu0 0.0
      %7811 = vmatpush1.msra.mxu0 0.0
      %7812 = vmatprep.subr.mxu0 0.0
      %7813 = vmatpush1.msra.mxu0 0.0
      %7814 = vmatprep.subr.mxu0 0.0
      %7815 = vmatpush1.msra.mxu0 0.0
      %7816 = vmatprep.subr.mxu0 0.0
      %7817 = vmatpush1.msra.mxu0 0.0
      %7818 = vmatprep.subr.mxu0 0.0
      %7819 = vmatpush1.msra.mxu0 0.0
      %7820 = vmatprep.subr.mxu0 0.0
      %7821 = vmatpush1.msra.mxu0 0.0
      %7822 = vmatprep.subr.mxu0 0.0
      %7823 = vmatpush1.msra.mxu0 0.0
      %7824 = vmatprep.subr.mxu0 0.0
      %7825 = vmatpush1.msra.mxu0 0.0
      %7826 = vmatprep.subr.mxu0 0.0
      %7827 = vmatpush1.msra.mxu0 0.0
      %7828 = vmatprep.subr.mxu0 0.0
      %7829 = vmatpush1.msra.mxu0 0.0
      %7830 = vmatprep.subr.mxu0 0.0
      %7831 = vmatpush1.msra.mxu0 0.0
      %7832 = vmatprep.subr.mxu0 0.0
      %7833 = vmatpush1.msra.mxu0 0.0
      %7834 = vmatprep.subr.mxu0 0.0
      %7835 = vmatpush1.msra.mxu0 0.0
      %7836 = vmatprep.subr.mxu0 0.0
      %7837 = vmatpush1.msra.mxu0 0.0
      %7838 = vmatprep.subr.mxu0 0.0
      %7839 = vmatpush1.msra.mxu0 0.0
      %7840 = vmatprep.subr.mxu0 0.0
      %7841 = vmatpush1.msra.mxu0 0.0
      %7842 = vmatprep.subr.mxu0 0.0
      %7843 = vmatpush1.msra.mxu0 0.0
      %7844 = vmatprep.subr.mxu0 0.0
      %7845 = vmatpush1.msra.mxu0 0.0
      %7846 = vmatprep.subr.mxu0 0.0
      %7847 = vmatpush1.msra.mxu0 0.0
      %7848 = vmatprep.mubr.f32.mxu0 0.0
      %v7849 = vand.u32 %v1223, 4294901760
      %7850 = vmatmul.mubr.f32.gmra.mrb[0].mxu0 %v7849
      %v7851 = vpop.f32.mrb[0].mxu0
      %v7852 = vadd.f32 %v7678, %v7851
      %v7853 = vpop.f32.mrb[0].mxu0
      %7854 = vmatprep.mubr.f32.mxu0 0.0
      %v7855 = vand.u32 %v1226, 4294901760
      %7856 = vmatmul.mubr.f32.gmra.mrb[0].mxu0 %v7855
      %v7857 = vpop.f32.mrb[0].mxu0
      %v7858 = vadd.f32 %v7684, %v7857
      %v7859 = vpop.f32.mrb[0].mxu0
      %7860 = vmatprep.mubr.f32.mxu0 0.0
      %v7861 = vand.u32 %v1229, 4294901760
      %7862 = vmatmul.mubr.f32.gmra.mrb[0].mxu0 %v7861
      %v7863 = vpop.f32.mrb[0].mxu0
      %v7864 = vadd.f32 %v7690, %v7863
      %v7865 = vpop.f32.mrb[0].mxu0
      %7866 = vmatprep.mubr.f32.mxu0 0.0
      %v7867 = vand.u32 %v1232, 4294901760
      %7868 = vmatmul.mubr.f32.gmra.mrb[0].mxu0 %v7867
      %v7869 = vpop.f32.mrb[0].mxu0
      %v7870 = vadd.f32 %v7696, %v7869
      %v7871 = vpop.f32.mrb[0].mxu0
      %7872 = vmatprep.mubr.f32.mxu0 0.0
      %v7873 = vand.u32 %v1235, 4294901760
      %7874 = vmatmul.mubr.f32.gmra.mrb[0].mxu0 %v7873
      %v7875 = vpop.f32.mrb[0].mxu0
      %v7876 = vadd.f32 %v7702, %v7875
      %v7877 = vpop.f32.mrb[0].mxu0
      %7878 = vmatprep.mubr.f32.mxu0 0.0
      %v7879 = vand.u32 %v1238, 4294901760
      %7880 = vmatmul.mubr.f32.gmra.mrb[0].mxu0 %v7879
      %v7881 = vpop.f32.mrb[0].mxu0
      %v7882 = vadd.f32 %v7708, %v7881
      %v7883 = vpop.f32.mrb[0].mxu0
      %7884 = vmatprep.mubr.f32.mxu0 0.0
      %v7885 = vand.u32 %v1241, 4294901760
      %7886 = vmatmul.mubr.f32.gmra.mrb[0].mxu0 %v7885
      %v7887 = vpop.f32.mrb[0].mxu0
      %v7888 = vadd.f32 %v7714, %v7887
      %v7889 = vpop.f32.mrb[0].mxu0
      %7890 = vmatprep.mubr.f32.mxu0 0.0
      %v7891 = vand.u32 %v1244, 4294901760
      %7892 = vmatmul.mubr.f32.gmra.mrb[0].mxu0 %v7891
      %v7893 = vpop.f32.mrb[0].mxu0
      %v7894 = vadd.f32 %v7720, %v7893
      %v7895 = vpop.f32.mrb[0].mxu0
      %7896 = vmatprep.mubr.f32.mxu0 0.0
      %v7897 = vand.u32 %v1247, 4294901760
      %7898 = vmatmul.mubr.f32.gmra.mrb[0].mxu0 %v7897
      %v7899 = vpop.f32.mrb[0].mxu0
      %v7900 = vadd.f32 %v7726, %v7899
      %v7901 = vpop.f32.mrb[0].mxu0
      %7902 = vmatprep.mubr.f32.mxu0 0.0
      %v7903 = vand.u32 %v1250, 4294901760
      %7904 = vmatmul.mubr.f32.gmra.mrb[0].mxu0 %v7903
      %v7905 = vpop.f32.mrb[0].mxu0
      %v7906 = vadd.f32 %v7732, %v7905
      %v7907 = vpop.f32.mrb[0].mxu0
      %7908 = vmatprep.mubr.f32.mxu0 0.0
      %v7909 = vand.u32 %v1253, 4294901760
      %7910 = vmatmul.mubr.f32.gmra.mrb[0].mxu0 %v7909
      %v7911 = vpop.f32.mrb[0].mxu0
      %v7912 = vadd.f32 %v7738, %v7911
      %v7913 = vpop.f32.mrb[0].mxu0
      %7914 = vmatprep.mubr.f32.mxu0 0.0
      %v7915 = vand.u32 %v1256, 4294901760
      %7916 = vmatmul.mubr.f32.gmra.mrb[0].mxu0 %v7915
      %v7917 = vpop.f32.mrb[0].mxu0
      %v7918 = vadd.f32 %v7744, %v7917
      %v7919 = vpop.f32.mrb[0].mxu0
      %7920 = vmatprep.mubr.f32.mxu0 0.0
      %v7921 = vand.u32 %v1259, 4294901760
      %7922 = vmatmul.mubr.f32.gmra.mrb[0].mxu0 %v7921
      %v7923 = vpop.f32.mrb[0].mxu0
      %v7924 = vadd.f32 %v7750, %v7923
      %v7925 = vpop.f32.mrb[0].mxu0
      %7926 = vmatprep.mubr.f32.mxu0 0.0
      %v7927 = vand.u32 %v1262, 4294901760
      %7928 = vmatmul.mubr.f32.gmra.mrb[0].mxu0 %v7927
      %v7929 = vpop.f32.mrb[0].mxu0
      %v7930 = vadd.f32 %v7756, %v7929
      %v7931 = vpop.f32.mrb[0].mxu0
      %7932 = vmatprep.mubr.f32.mxu0 0.0
      %v7933 = vand.u32 %v1265, 4294901760
      %7934 = vmatmul.mubr.f32.gmra.mrb[0].mxu0 %v7933
      %v7935 = vpop.f32.mrb[0].mxu0
      %v7936 = vadd.f32 %v7762, %v7935
      %v7937 = vpop.f32.mrb[0].mxu0
      %7938 = vmatprep.mubr.f32.mxu0 0.0
      %v7939 = vand.u32 %v1268, 4294901760
      %7940 = vmatmul.mubr.f32.gmra.mrb[0].mxu0 %v7939
      %v7941 = vpop.f32.mrb[0].mxu0
      %v7942 = vadd.f32 %v7768, %v7941
      %v7943 = vpop.f32.mrb[0].mxu0
      %7944 = vdwg.mxu0
      %v7945 = vxor.u32 %v4887, 2147483648
      %v7946 = vxor.u32 %v4889, 2147483648
      %v7947 = vxor.u32 %v7852, 2147483648
      %v7948 = vxor.u32 %v4894, 2147483648
      %v7949 = vxor.u32 %v4896, 2147483648
      %v7950 = vxor.u32 %v7858, 2147483648
      %v7951 = vxor.u32 %v4901, 2147483648
      %v7952 = vxor.u32 %v4903, 2147483648
      %v7953 = vxor.u32 %v7864, 2147483648
      %v7954 = vxor.u32 %v4908, 2147483648
      %v7955 = vxor.u32 %v4910, 2147483648
      %v7956 = vxor.u32 %v7870, 2147483648
      %v7957 = vmul.f32 %v7945, 1.442695
      %v7958 = vpow.pop %v7957
      %v7959 = vmul.f32 %v7946, 1.442695
      %v7960 = vpow.pop %v7959
      %v7961 = vmul.f32 %v7947, 1.442695
      %v7962 = vpow.pop %v7961
      %v7963 = vmul.f32 %v7948, 1.442695
      %v7964 = vpow.pop %v7963
      %v7965 = vmul.f32 %v7949, 1.442695
      %v7966 = vpow.pop %v7965
      %v7967 = vmul.f32 %v7950, 1.442695
      %v7968 = vpow.pop %v7967
      %v7969 = vmul.f32 %v7951, 1.442695
      %v7970 = vpow.pop %v7969
      %v7971 = vmul.f32 %v7952, 1.442695
      %v7972 = vpow.pop %v7971
      %v7973 = vmul.f32 %v7953, 1.442695
      %v7974 = vpow.pop %v7973
      %v7975 = vmul.f32 %v7954, 1.442695
      %v7976 = vpow.pop %v7975
      %v7977 = vmul.f32 %v7955, 1.442695
      %v7978 = vpow.pop %v7977
      %v7979 = vmul.f32 %v7956, 1.442695
      %v7980 = vpow.pop %v7979
      %v7981 = vadd.f32 %v7958, 1.0
      %v7982 = vadd.f32 %v7960, 1.0
      %v7983 = vadd.f32 %v7962, 1.0
      %v7984 = vadd.f32 %v7964, 1.0
      %v7985 = vadd.f32 %v7966, 1.0
      %v7986 = vadd.f32 %v7968, 1.0
      %v7987 = vadd.f32 %v7970, 1.0
      %v7988 = vadd.f32 %v7972, 1.0
      %v7989 = vadd.f32 %v7974, 1.0
      %v7990 = vadd.f32 %v7976, 1.0
      %v7991 = vadd.f32 %v7978, 1.0
      %v7992 = vadd.f32 %v7980, 1.0
      %v7993 = vrcp.pop %v7981
      %v7994 = vmul.f32 1.0, %v7993
      %v7995 = vrcp.pop %v7982
      %v7996 = vmul.f32 1.0, %v7995
      %v7997 = vrcp.pop %v7983
      %v7998 = vmul.f32 1.0, %v7997
      %v7999 = vrcp.pop %v7984
      %v8000 = vmul.f32 1.0, %v7999
      %v8001 = vrcp.pop %v7985
      %v8002 = vmul.f32 1.0, %v8001
      %v8003 = vrcp.pop %v7986
      %v8004 = vmul.f32 1.0, %v8003
      %v8005 = vrcp.pop %v7987
      %v8006 = vmul.f32 1.0, %v8005
      %v8007 = vrcp.pop %v7988
      %v8008 = vmul.f32 1.0, %v8007
      %v8009 = vrcp.pop %v7989
      %v8010 = vmul.f32 1.0, %v8009
      %v8011 = vrcp.pop %v7990
      %v8012 = vmul.f32 1.0, %v8011
      %v8013 = vrcp.pop %v7991
      %v8014 = vmul.f32 1.0, %v8013
      %v8015 = vrcp.pop %v7992
      %v8016 = vmul.f32 1.0, %v8015
      %v8017 = vxor.u32 %v4915, 2147483648
      %v8018 = vxor.u32 %v4917, 2147483648
      %v8019 = vxor.u32 %v7876, 2147483648
      %v8020 = vxor.u32 %v4922, 2147483648
      %v8021 = vxor.u32 %v4924, 2147483648
      %v8022 = vxor.u32 %v7882, 2147483648
      %v8023 = vxor.u32 %v4929, 2147483648
      %v8024 = vxor.u32 %v4931, 2147483648
      %v8025 = vxor.u32 %v7888, 2147483648
      %v8026 = vxor.u32 %v4936, 2147483648
      %v8027 = vxor.u32 %v4938, 2147483648
      %v8028 = vxor.u32 %v7894, 2147483648
      %v8029 = vmul.f32 %v8017, 1.442695
      %v8030 = vpow.pop %v8029
      %v8031 = vmul.f32 %v8018, 1.442695
      %v8032 = vpow.pop %v8031
      %v8033 = vmul.f32 %v8019, 1.442695
      %v8034 = vpow.pop %v8033
      %v8035 = vmul.f32 %v8020, 1.442695
      %v8036 = vpow.pop %v8035
      %v8037 = vmul.f32 %v8021, 1.442695
      %v8038 = vpow.pop %v8037
      %v8039 = vmul.f32 %v8022, 1.442695
      %v8040 = vpow.pop %v8039
      %v8041 = vmul.f32 %v8023, 1.442695
      %v8042 = vpow.pop %v8041
      %v8043 = vmul.f32 %v8024, 1.442695
      %v8044 = vpow.pop %v8043
      %v8045 = vmul.f32 %v8025, 1.442695
      %v8046 = vpow.pop %v8045
      %v8047 = vmul.f32 %v8026, 1.442695
      %v8048 = vpow.pop %v8047
      %v8049 = vmul.f32 %v8027, 1.442695
      %v8050 = vpow.pop %v8049
      %v8051 = vmul.f32 %v8028, 1.442695
      %v8052 = vpow.pop %v8051
      %v8053 = vadd.f32 %v8030, 1.0
      %v8054 = vadd.f32 %v8032, 1.0
      %v8055 = vadd.f32 %v8034, 1.0
      %v8056 = vadd.f32 %v8036, 1.0
      %v8057 = vadd.f32 %v8038, 1.0
      %v8058 = vadd.f32 %v8040, 1.0
      %v8059 = vadd.f32 %v8042, 1.0
      %v8060 = vadd.f32 %v8044, 1.0
      %v8061 = vadd.f32 %v8046, 1.0
      %v8062 = vadd.f32 %v8048, 1.0
      %v8063 = vadd.f32 %v8050, 1.0
      %v8064 = vadd.f32 %v8052, 1.0
      %v8065 = vrcp.pop %v8053
      %v8066 = vmul.f32 1.0, %v8065
      %v8067 = vrcp.pop %v8054
      %v8068 = vmul.f32 1.0, %v8067
      %v8069 = vrcp.pop %v8055
      %v8070 = vmul.f32 1.0, %v8069
      %v8071 = vrcp.pop %v8056
      %v8072 = vmul.f32 1.0, %v8071
      %v8073 = vrcp.pop %v8057
      %v8074 = vmul.f32 1.0, %v8073
      %v8075 = vrcp.pop %v8058
      %v8076 = vmul.f32 1.0, %v8075
      %v8077 = vrcp.pop %v8059
      %v8078 = vmul.f32 1.0, %v8077
      %v8079 = vrcp.pop %v8060
      %v8080 = vmul.f32 1.0, %v8079
      %v8081 = vrcp.pop %v8061
      %v8082 = vmul.f32 1.0, %v8081
      %v8083 = vrcp.pop %v8062
      %v8084 = vmul.f32 1.0, %v8083
      %v8085 = vrcp.pop %v8063
      %v8086 = vmul.f32 1.0, %v8085
      %v8087 = vrcp.pop %v8064
      %v8088 = vmul.f32 1.0, %v8087
      %v8089 = vxor.u32 %v4943, 2147483648
      %v8090 = vxor.u32 %v4945, 2147483648
      %v8091 = vxor.u32 %v7900, 2147483648
      %v8092 = vxor.u32 %v4950, 2147483648
      %v8093 = vxor.u32 %v4952, 2147483648
      %v8094 = vxor.u32 %v7906, 2147483648
      %v8095 = vxor.u32 %v4957, 2147483648
      %v8096 = vxor.u32 %v4959, 2147483648
      %v8097 = vxor.u32 %v7912, 2147483648
      %v8098 = vxor.u32 %v4964, 2147483648
      %v8099 = vxor.u32 %v4966, 2147483648
      %v8100 = vxor.u32 %v7918, 2147483648
      %v8101 = vmul.f32 %v8089, 1.442695
      %v8102 = vpow.pop %v8101
      %v8103 = vmul.f32 %v8090, 1.442695
      %v8104 = vpow.pop %v8103
      %v8105 = vmul.f32 %v8091, 1.442695
      %v8106 = vpow.pop %v8105
      %v8107 = vmul.f32 %v8092, 1.442695
      %v8108 = vpow.pop %v8107
      %v8109 = vmul.f32 %v8093, 1.442695
      %v8110 = vpow.pop %v8109
      %v8111 = vmul.f32 %v8094, 1.442695
      %v8112 = vpow.pop %v8111
      %v8113 = vmul.f32 %v8095, 1.442695
      %v8114 = vpow.pop %v8113
      %v8115 = vmul.f32 %v8096, 1.442695
      %v8116 = vpow.pop %v8115
      %v8117 = vmul.f32 %v8097, 1.442695
      %v8118 = vpow.pop %v8117
      %v8119 = vmul.f32 %v8098, 1.442695
      %v8120 = vpow.pop %v8119
      %v8121 = vmul.f32 %v8099, 1.442695
      %v8122 = vpow.pop %v8121
      %v8123 = vmul.f32 %v8100, 1.442695
      %v8124 = vpow.pop %v8123
      %v8125 = vadd.f32 %v8102, 1.0
      %v8126 = vadd.f32 %v8104, 1.0
      %v8127 = vadd.f32 %v8106, 1.0
      %v8128 = vadd.f32 %v8108, 1.0
      %v8129 = vadd.f32 %v8110, 1.0
      %v8130 = vadd.f32 %v8112, 1.0
      %v8131 = vadd.f32 %v8114, 1.0
      %v8132 = vadd.f32 %v8116, 1.0
      %v8133 = vadd.f32 %v8118, 1.0
      %v8134 = vadd.f32 %v8120, 1.0
      %v8135 = vadd.f32 %v8122, 1.0
      %v8136 = vadd.f32 %v8124, 1.0
      %v8137 = vrcp.pop %v8125
      %v8138 = vmul.f32 1.0, %v8137
      %v8139 = vrcp.pop %v8126
      %v8140 = vmul.f32 1.0, %v8139
      %v8141 = vrcp.pop %v8127
      %v8142 = vmul.f32 1.0, %v8141
      %v8143 = vrcp.pop %v8128
      %v8144 = vmul.f32 1.0, %v8143
      %v8145 = vrcp.pop %v8129
      %v8146 = vmul.f32 1.0, %v8145
      %v8147 = vrcp.pop %v8130
      %v8148 = vmul.f32 1.0, %v8147
      %v8149 = vrcp.pop %v8131
      %v8150 = vmul.f32 1.0, %v8149
      %v8151 = vrcp.pop %v8132
      %v8152 = vmul.f32 1.0, %v8151
      %v8153 = vrcp.pop %v8133
      %v8154 = vmul.f32 1.0, %v8153
      %v8155 = vrcp.pop %v8134
      %v8156 = vmul.f32 1.0, %v8155
      %v8157 = vrcp.pop %v8135
      %v8158 = vmul.f32 1.0, %v8157
      %v8159 = vrcp.pop %v8136
      %v8160 = vmul.f32 1.0, %v8159
      %v8161 = vtanh.pop %v4971
      %v8162 = vtanh.pop %v4973
      %v8163 = vtanh.pop %v7924
      %v8164 = vtanh.pop %v4978
      %v8165 = vtanh.pop %v4980
      %v8166 = vtanh.pop %v7930
      %v8167 = vtanh.pop %v4985
      %v8168 = vtanh.pop %v4987
      %v8169 = vtanh.pop %v7936
      %v8170 = vtanh.pop %v4992
      %v8171 = vtanh.pop %v4994
      %v8172 = vtanh.pop %v7942
      %v8173 = vld [vmem:[%s240] sm:$0xff]
      %v8174 = vld [vmem:[%s240 + $0x8] sm:$0xff]
      %v8175 = vld [vmem:[%s240 + $0x10] sm:$0xff]
      %v8176 = vld [vmem:[%s240 + $0x18] sm:$0xff]
      %v8177 = vld [vmem:[%s240 + $0x20] sm:$0xff]
      %v8178 = vld [vmem:[%s240 + $0x28] sm:$0xff]
      %v8179 = vld [vmem:[%s240 + $0x30] sm:$0xff]
      %v8180 = vld [vmem:[%s240 + $0x38] sm:$0xff]
      %v8181 = vld [vmem:[%s240 + $0x40] sm:$0xff]
      %v8182 = vld [vmem:[%s240 + $0x48] sm:$0xff]
      %v8183 = vld [vmem:[%s240 + $0x50] sm:$0xff]
      %v8184 = vld [vmem:[%s240 + $0x58] sm:$0xff]
      %v8185 = vmul.f32 %v8066, %v8173
      %v8186 = vmul.f32 %v8068, %v8174
      %v8187 = vmul.f32 %v8070, %v8175
      %v8188 = vmul.f32 %v8072, %v8176
      %v8189 = vmul.f32 %v8074, %v8177
      %v8190 = vmul.f32 %v8076, %v8178
      %v8191 = vmul.f32 %v8078, %v8179
      %v8192 = vmul.f32 %v8080, %v8180
      %v8193 = vmul.f32 %v8082, %v8181
      %v8194 = vmul.f32 %v8084, %v8182
      %v8195 = vmul.f32 %v8086, %v8183
      %v8196 = vmul.f32 %v8088, %v8184
      %v8197 = vmul.f32 %v7994, %v8161
      %v8198 = vmul.f32 %v7996, %v8162
      %v8199 = vmul.f32 %v7998, %v8163
      %v8200 = vmul.f32 %v8000, %v8164
      %v8201 = vmul.f32 %v8002, %v8165
      %v8202 = vmul.f32 %v8004, %v8166
      %v8203 = vmul.f32 %v8006, %v8167
      %v8204 = vmul.f32 %v8008, %v8168
      %v8205 = vmul.f32 %v8010, %v8169
      %v8206 = vmul.f32 %v8012, %v8170
      %v8207 = vmul.f32 %v8014, %v8171
      %v8208 = vmul.f32 %v8016, %v8172
      %v8209 = vadd.f32 %v8185, %v8197
      %v8210 = vadd.f32 %v8186, %v8198
      %v8211 = vadd.f32 %v8187, %v8199
      %v8212 = vadd.f32 %v8188, %v8200
      %v8213 = vadd.f32 %v8189, %v8201
      %v8214 = vadd.f32 %v8190, %v8202
      %v8215 = vadd.f32 %v8191, %v8203
      %v8216 = vadd.f32 %v8192, %v8204
      %v8217 = vadd.f32 %v8193, %v8205
      %v8218 = vadd.f32 %v8194, %v8206
      %v8219 = vadd.f32 %v8195, %v8207
      %v8220 = vadd.f32 %v8196, %v8208
      %v8221 = vtanh.pop %v8209
      %v8222 = vtanh.pop %v8210
      %v8223 = vtanh.pop %v8211
      %v8224 = vtanh.pop %v8212
      %v8225 = vtanh.pop %v8213
      %v8226 = vtanh.pop %v8214
      %v8227 = vtanh.pop %v8215
      %v8228 = vtanh.pop %v8216
      %v8229 = vtanh.pop %v8217
      %v8230 = vtanh.pop %v8218
      %v8231 = vtanh.pop %v8219
      %v8232 = vtanh.pop %v8220
      %v8233 = vmul.f32 %v8138, %v8221
      %v8234 = vmul.f32 %v8140, %v8222
      %v8235 = vmul.f32 %v8142, %v8223
      %v8236 = vmul.f32 %v8144, %v8224
      %v8237 = vmul.f32 %v8146, %v8225
      %v8238 = vmul.f32 %v8148, %v8226
      %v8239 = vmul.f32 %v8150, %v8227
      %v8240 = vmul.f32 %v8152, %v8228
      %v8241 = vmul.f32 %v8154, %v8229
      %v8242 = vmul.f32 %v8156, %v8230
      %v8243 = vmul.f32 %v8158, %v8231
      %v8244 = vmul.f32 %v8160, %v8232
      %8245 = vst [vmem:[%s260] sm:$0xff] %v8209
      %8246 = vst [vmem:[%s260 + $0x8] sm:$0xff] %v8210
      %8247 = vst [vmem:[%s260 + $0x10] sm:$0xff] %v8211
      %8248 = vst [vmem:[%s260 + $0x18] sm:$0xff] %v8212
      %8249 = vst [vmem:[%s260 + $0x20] sm:$0xff] %v8213
      %8250 = vst [vmem:[%s260 + $0x28] sm:$0xff] %v8214
      %8251 = vst [vmem:[%s260 + $0x30] sm:$0xff] %v8215
      %8252 = vst [vmem:[%s260 + $0x38] sm:$0xff] %v8216
      %8253 = vst [vmem:[%s260 + $0x40] sm:$0xff] %v8217
      %8254 = vst [vmem:[%s260 + $0x48] sm:$0xff] %v8218
      %8255 = vst [vmem:[%s260 + $0x50] sm:$0xff] %v8219
      %8256 = vst [vmem:[%s260 + $0x58] sm:$0xff] %v8220
      %8257 = vst [vmem:[%s250] sm:$0xff] %v8233
      %8258 = vst [vmem:[%s250 + $0x8] sm:$0xff] %v8234
      %8259 = vst [vmem:[%s250 + $0x10] sm:$0xff] %v8235
      %8260 = vst [vmem:[%s250 + $0x18] sm:$0xff] %v8236
      %8261 = vst [vmem:[%s250 + $0x20] sm:$0xff] %v8237
      %8262 = vst [vmem:[%s250 + $0x28] sm:$0xff] %v8238
      %8263 = vst [vmem:[%s250 + $0x30] sm:$0xff] %v8239
      %8264 = vst [vmem:[%s250 + $0x38] sm:$0xff] %v8240
      %8265 = vst [vmem:[%s250 + $0x40] sm:$0xff] %v8241
      %8266 = vst [vmem:[%s250 + $0x48] sm:$0xff] %v8242
      %8267 = vst [vmem:[%s250 + $0x50] sm:$0xff] %v8243
      %8268 = vst [vmem:[%s250 + $0x58] sm:$0xff] %v8244
      %s8269 = smul.u32 3, %s22
      %p8270 = scmp.lt.s32.totalorder %s21, 1
      %s8271 = scalar_select %p8270, %s21, 1
      %p8272 = scmp.lt.s32.totalorder %s8269, 2
      %s8273 = scalar_select %p8272, %s8269, 2
      %s8274 = smul.addr %s8271, 12
      %s8275 = sadd.s32 %s8273, %s8274
      %s8276 = smul.addr %s8275, 8
      %s8277 = scalar_lea.vmem %s4, %s8276
      %s8278 = smul.u32 3, %s22
      %p8279 = scmp.lt.s32.totalorder %s21, 1
      %s8280 = scalar_select %p8279, %s21, 1
      %p8281 = scmp.lt.s32.totalorder %s8278, 2
      %s8282 = scalar_select %p8281, %s8278, 2
      %s8283 = smul.addr %s8280, 12
      %s8284 = sadd.s32 %s8282, %s8283
      %s8285 = smul.addr %s8284, 8
      %s8286 = scalar_lea.vmem %s5, %s8285
      // Predicated region
      $region109: #{convlstm_step.1} parent=31 // pred_check
        %p8287 = pneg %p119
      $region110: #{convlstm_step.1} parent=31 // pred_check_branch
        %8289 = sbr.rel (%p8287) target = $region112
      $region111: #{convlstm_step.1} parent=31 // pred_region
        %s8290 = smul.u32 3, %s22
      $region112: #{convlstm_step.1} parent=31 // pred_fallthru
        _
      // Predicated region
      $region113: #{convlstm_step.1} parent=31 // pred_check
        %p8291 = pneg %p147
      $region114: #{convlstm_step.1} parent=31 // pred_check_branch
        %8293 = sbr.rel (%p8291) target = $region116
      $region115: #{convlstm_step.1} parent=31 // pred_region
        %s8294 = smul.u32 3, %s22
      $region116: #{convlstm_step.1} parent=31 // pred_fallthru
        _
    $region32: #{convlstm_step.1} parent=5 // pred_fallthru
      _
    %p8295 = scmp.le.s32.totalorder 2, %s12
    // Predicated region
    $region117: #{convlstm_step.1} parent=5 // pred_check
      %p8296 = pneg %p8295
    $region118: #{convlstm_step.1} parent=5 // pred_check_branch
      %8298 = sbr.rel (%p8296) target = $region120
    $region119: #{convlstm_step.1} parent=5 // pred_region
      %s8299 = ssub.s32 %s12, 2
      // Predicated region
      $region121: #{convlstm_step.1} parent=119 // pred_check
        %p8300 = pneg %p125
      $region122: #{convlstm_step.1} parent=119 // pred_check_branch
        %8302 = sbr.rel (%p8300) target = $region124
      $region123: #{convlstm_step.1} parent=119 // pred_region
        %s8303 = smul.u32 3, %s24
        %p8304 = scmp.lt.s32.totalorder %s23, 1
        %s8305 = scalar_select %p8304, %s23, 1
        %p8306 = scmp.lt.s32.totalorder %s8303, 2
        %s8307 = scalar_select %p8306, %s8303, 2
        %s8308 = smul.addr %s8305, 12
        %s8309 = sadd.s32 %s8307, %s8308
        %s8310 = smul.addr %s8309, 8
        %s8311 = scalar_lea.vmem %s4, %s8310
      $region124: #{convlstm_step.1} parent=119 // pred_fallthru
        _
      // Predicated region
      $region125: #{convlstm_step.1} parent=119 // pred_check
        %p8312 = pneg %p153
      $region126: #{convlstm_step.1} parent=119 // pred_check_branch
        %8314 = sbr.rel (%p8312) target = $region128
      $region127: #{convlstm_step.1} parent=119 // pred_region
        %s8315 = smul.u32 3, %s24
        %p8316 = scmp.lt.s32.totalorder %s23, 1
        %s8317 = scalar_select %p8316, %s23, 1
        %p8318 = scmp.lt.s32.totalorder %s8315, 2
        %s8319 = scalar_select %p8318, %s8315, 2
        %s8320 = smul.addr %s8317, 12
        %s8321 = sadd.s32 %s8319, %s8320
        %s8322 = smul.addr %s8321, 8
        %s8323 = scalar_lea.vmem %s5, %s8322
      $region128: #{convlstm_step.1} parent=119 // pred_fallthru
        _
    $region120: #{convlstm_step.1} parent=5 // pred_fallthru
      _
  $region6: #{convlstm_step.1} parent=0 // loop_footer
    %s16 = sadd.s32 1, %s12
  $region7: #{convlstm_step.1} parent=0 // loop_footer_branch
    %11 = sbr.rel target = $region3
  $region8: #{convlstm_step.1} parent=0 // loop_exit
    _
  %8324 = vsyncmov [#allocation3]
  %s8325 = vpop.sfrf %8324
  %p8326 = scmp.eq.s32.totalorder %s8325, 0
  %p8327 = pneg %p8326
  %8329 = shalt.err (%p8327)
  %s8330 = scalar_lea.sflag [#allocation3], 1
  %8331 = vsyncmov %s8330
  %s8332 = vpop.sfrf %8331
  %p8333 = scmp.eq.s32.totalorder %s8332, 0
  %p8334 = pneg %p8333
  %8336 = shalt.err (%p8334)

</llo_original>
